<compile_context>
chip_gen: v7x
topology: tpu7x:2x2x1
jax: 0.10.0
libtpu: 0.0.40
codegen_flags: <defaults>
</compile_context>

<pallas_src>
import numpy as np
import jax
import jax.numpy as jnp
from jax.experimental import pallas as pl
from jax.experimental.pallas import tpu as pltpu

LEFT_OFFSET = 7
RIGHT_OFFSET = 7
BN_EPS = 1e-5
COUT = 32            # every conv group has 32 output channels
CPAD = 32            # conv input channels zero-padded to 32
KPACK = 4 * CPAD     # 128: 3 taps x 32ch + 32 zero lanes packed along MXU K
N_CLASSES = 7
N_CONV = 3
FEAT_ROWS = 8        # head feature tile rows (B <= 8)


def _round_up(x, m):
    return (x + m - 1) // m * m


# --------------------------------------------------------------------------
# Synthetic feature names (the original module reads feature_names.txt).
# --------------------------------------------------------------------------
def build_feature_names(n_mel=24, n_contrast=3, n_mfcc=8, n_yin=3):
    names = []
    names += [f"raw_melspect_mean_{i:03d}" for i in range(n_mel)]
    names += [f"raw_melspect_std_{i:03d}" for i in range(n_mel)]
    names += [f"raw_contrast_mean_{i:02d}" for i in range(n_contrast)]
    names += [f"raw_contrast_std_{i:02d}" for i in range(n_contrast)]
    for base in ["mfcc_", "mfcc_d_", "mfcc_d2_"]:
        for typ in ["raw_", "cln_"]:
            names += [f"{typ}{base}mean_{i:02d}" for i in range(n_mfcc)]
            names += [f"{typ}{base}std_{i:02d}" for i in range(n_mfcc)]
    names += [f"yin_feat_{i}" for i in range(n_yin)]
    names += ["zcr_mean", "zcr_std"]
    for base in ["flatness_", "centroid_", "flux_", "energy_", "power_", "bandwidth_"]:
        for typ in ["raw_", "cln_"]:
            names += [f"{typ}{base}mean", f"{typ}{base}std"]
    return np.array(names)


def build_indices(feature_names):
    def idx(prefix):
        return np.where(np.char.startswith(feature_names, prefix))[0]

    melspect = np.stack((idx("raw_melspect_mean_"), idx("raw_melspect_std_"),
                         idx("raw_melspect_mean_"), idx("raw_melspect_std_")))
    contrast = np.stack((idx("raw_contrast_mean_"), idx("raw_contrast_std_"),
                         idx("raw_contrast_mean_"), idx("raw_contrast_std_")))
    mfcc_rows = []
    for base in ["mfcc_", "mfcc_d_", "mfcc_d2_"]:
        for typ in ["raw_", "cln_"]:
            mfcc_rows.append(idx(f"{typ}{base}mean"))
            mfcc_rows.append(idx(f"{typ}{base}std"))
    mfcc = np.stack(mfcc_rows)

    one_d_rows = [np.array([i]) for i in idx("yin_")]
    one_d_rows.append(idx("zcr_mean"))
    one_d_rows.append(idx("zcr_std"))
    for base in ["flatness_", "centroid_", "flux_", "energy_", "power_", "bandwidth_"]:
        for typ in ["raw_", "cln_"]:
            one_d_rows.append(idx(f"{typ}{base}mean"))
            one_d_rows.append(idx(f"{typ}{base}std"))
    one_d = np.stack(one_d_rows)
    return melspect, contrast, mfcc, one_d


# --------------------------------------------------------------------------
# get_images() collapsed to two gathers: precomputed column index arrays bake
# in the swapaxes / repeat_interleave / slicing of the original module.
# --------------------------------------------------------------------------
def build_gather_columns(idxs):
    mel_idx, con_idx, mfcc_idx, one_d_idx = idxs
    w = mel_idx.shape[1]                                      # 24
    con_cols = con_idx[:, (np.arange(w) + 1) // 9]            # repeat(9)[1:-2]
    mfcc_cols = mfcc_idx[:, np.arange(w) // 3]                # repeat(3)
    img_cols = np.concatenate([mel_idx, con_cols, mfcc_cols], axis=0)   # (20, 24)
    oned_cols = one_d_idx[:, 0]                                          # (29,)
    return img_cols, oned_cols


def compute_geometry(B, H, W, L):
    geo2d, geo1d = [], []
    h, w = H, W
    for _ in range(N_CONV):
        hp, wp = h + 2, w + 2
        geo2d.append(dict(H=h, W=w, Hp=hp, Wp=wp, M=B * hp * wp,
                          Hh=h // 2, Wh=w // 2))
        h, w = h // 2, w // 2
    ln = L
    for _ in range(N_CONV):
        lp = ln + 2
        pit = lp + (lp % 2)               # even pitch -> clean stride-2 pooling
        geo1d.append(dict(L=ln, Lp=lp, P=pit, M=B * pit, Lh=ln // 2))
        ln = ln // 2
    return geo2d, geo1d, h, w, ln


# --------------------------------------------------------------------------
# One-time parameter preparation (hoisted out of forward): K-packed conv
# weights, folded BN/bias scale+shift, permuted Linear weight.
# --------------------------------------------------------------------------
def prepare_params(params, Hf, Wf):
    def fold(p):
        sc = p["scale"].reshape(1, COUT).astype(jnp.float32)
        sh = (p["shift"] + p["b"] * p["scale"]).reshape(1, COUT).astype(jnp.float32)
        return sc, sh                     # max(a+b) = max(a)+b -> bias after pool

    def pack2d(p):
        wt = p["w"]                                            # (32, cin, 3, 3)
        cin = wt.shape[1]
        wt = jnp.pad(wt, ((0, 0), (0, CPAD - cin), (0, 0), (0, 0)))
        # (kh, kw, cin, out) -> (kh, kw*32+cin, out), pad K to 128
        wk = jnp.transpose(wt, (2, 3, 1, 0)).reshape(3, 3 * CPAD, COUT)
        wk = jnp.pad(wk, ((0, 0), (0, KPACK - 3 * CPAD), (0, 0))).astype(jnp.bfloat16)
        sc, sh = fold(p)
        return wk, sc, sh

    def pack1d(p):
        wt = p["w"]                                            # (32, cin, 3)
        cin = wt.shape[1]
        wt = jnp.pad(wt, ((0, 0), (0, CPAD - cin), (0, 0)))
        wk = jnp.transpose(wt, (2, 1, 0)).reshape(1, 3 * CPAD, COUT)
        wk = jnp.pad(wk, ((0, 0), (0, KPACK - 3 * CPAD), (0, 0))).astype(jnp.bfloat16)
        sc, sh = fold(p)
        return wk, sc, sh

    wi, sci, shi = zip(*[pack2d(p) for p in params["image"]])
    wo, sco, sho = zip(*[pack1d(p) for p in params["one_d"]])

    # PyTorch flattens NCHW (c, h, w); kernel features are spatial-major /
    # channel-minor -> permute Linear weight rows once here.
    n_img = COUT * Hf * Wf
    i = np.arange(n_img)
    perm = np.concatenate([(i % COUT) * (Hf * Wf) + i // COUT,
                           n_img + np.arange(COUT)])
    w_lin = params["linear"]["w"][perm, :].astype(jnp.float32)
    b_lin = params["linear"]["b"].reshape(1, N_CLASSES).astype(jnp.float32)

    return dict(w_img=jnp.stack(wi), sc_img=jnp.stack(sci), sh_img=jnp.stack(shi),
                w_oned=jnp.stack(wo), sc_oned=jnp.stack(sco), sh_oned=jnp.stack(sho),
                w_lin=w_lin, b_lin=b_lin)


# --------------------------------------------------------------------------
# Fused forward: ONE pallas_call for both conv paths + Linear head.
# --------------------------------------------------------------------------
def make_forward(idxs):
    img_cols_np, oned_cols_np = build_gather_columns(idxs)
    c_img, W_IMG = img_cols_np.shape
    c_1d = oned_cols_np.shape[0]
    img_cols = jnp.asarray(img_cols_np)
    oned_cols = jnp.asarray(oned_cols_np)

    @jax.jit
    def forward(prep, x):
        B, T, _ = x.shape
        assert B <= FEAT_ROWS
        geo2d, geo1d, Hf, Wf, Lf = compute_geometry(B, T, W_IMG, T)
        assert Hf == 1 and Lf == 1
        assert geo2d[-1]["Hh"] == 1 and geo1d[-1]["Lh"] == 1
        g2a, g2b, g2c = geo2d
        g1a, g1b, g1c = geo1d
        n_sp = Hf * Wf

        def rows2d(g):                       # valid rows + tap-shift slack
            return _round_up(g["M"] + 2 * g["Wp"] + 2, 8)

        def rows1d(g):
            return _round_up(g["M"] + 2, 8)

        img_rows, pad2i_rows, pad3i_rows = (rows2d(g) for g in geo2d)
        oned_rows, pad2o_rows, pad3o_rows = (rows1d(g) for g in geo1d)
        y_rows = _round_up(max(g["M"] for g in geo2d + geo1d), 8)
        p_rows = _round_up(y_rows // 2, 8)
        stage_rows = _round_up(max([g["M"] + 2 * g["Wp"] for g in geo2d]
                                   + [g["M"] for g in geo1d]), 16)

        # ---- input glue: two gathers + flat pitched zero-padded slabs (bf16) ----
        imgs = jnp.transpose(x[:, :, img_cols], (0, 1, 3, 2))            # NHWC
        imgs = jnp.pad(imgs, ((0, 0), (1, 1), (1, 1), (0, CPAD - c_img)))
        xi = imgs.reshape(B * g2a["Hp"] * g2a["Wp"], CPAD)
        xi = jnp.pad(xi, ((0, img_rows - xi.shape[0]), (0, 0))).astype(jnp.bfloat16)

        oned = x[:, :, oned_cols]                                        # (B,L,C)
        oned = jnp.pad(oned, ((0, 0), (1, 1 + g1a["P"] - g1a["Lp"]), (0, CPAD - c_1d)))
        xo = oned.reshape(B * g1a["P"], CPAD)
        xo = jnp.pad(xo, ((0, oned_rows - xo.shape[0]), (0, 0))).astype(jnp.bfloat16)

        # ------------------------- the fused kernel -------------------------
        def kernel(img_ref, oned_ref, wimg_ref, woned_ref,
                   sci_ref, shi_ref, sco_ref, sho_ref, wlin_ref, blin_ref,
                   o_ref,
                   y_ref, p_ref, stage_ref, feat_ref,
                   padi2_ref, padi3_ref, pado2_ref, pado3_ref):

            # Zero-init: padded slabs (untouched rows ARE next layer's padding),
            # the stage (lanes 96:128 stay zero), the head feature tile.
            for buf in (padi2_ref, padi3_ref, pado2_ref, pado3_ref,
                        stage_ref, feat_ref):
                buf[...] = jnp.zeros_like(buf)

            def build_stage(src_ref, m_ext):
                # stage[s, 32j:32j+32] = src[s + j]  -> 3 taps packed along K.
                for j in range(3):
                    stage_ref[pl.ds(0, m_ext), pl.ds(j * CPAD, CPAD)] = (
                        src_ref[pl.ds(j, m_ext), :].astype(jnp.bfloat16))

            def pool_w(m):
                # maxpool along the fast spatial dim via two stride-2 loads.
                half = m // 2
                p_ref[pl.ds(0, half), :] = jnp.maximum(
                    y_ref[pl.ds(0, half, 2), :], y_ref[pl.ds(1, half, 2), :])
                return half

            def group2d(src_ref, layer, g, emit):
                Wp, M = g["Wp"], g["M"]
                build_stage(src_ref, M + 2 * Wp)
                # conv3x3 'same' = 3 MXU matmuls with K=128, f32 accumulate.
                acc = jnp.dot(stage_ref[pl.ds(0, M), :], wimg_ref[layer, 0, :, :],
                              preferred_element_type=jnp.float32)
                acc = acc + jnp.dot(stage_ref[pl.ds(Wp, M), :], wimg_ref[layer, 1, :, :],
                                    preferred_element_type=jnp.float32)
                acc = acc + jnp.dot(stage_ref[pl.ds(2 * Wp, M), :], wimg_ref[layer, 2, :, :],
                                    preferred_element_type=jnp.float32)
                y_ref[pl.ds(0, M), :] = acc
                half = pool_w(M)
                # h-pool + BN + ReLU as ONE full-slab vector pass.
                w2 = Wp // 2
                n_act = half - w2
                sc, sh = sci_ref[layer, :, :], shi_ref[layer, :, :]
                hmax = jnp.maximum(p_ref[pl.ds(0, n_act), :],
                                   p_ref[pl.ds(w2, n_act), :])
                y_ref[pl.ds(0, n_act), :] = jnp.maximum(hmax * sc + sh, 0.0)
                # placement copies only (no math in the loop).
                blk = (g["Hp"] * g["Wp"]) // 2
                for b in range(B):
                    for ph in range(g["Hh"]):
                        emit(b, ph, b * blk + 2 * ph * w2, g["Wh"])

            def group1d(src_ref, layer, g, emit):
                M = g["M"]
                build_stage(src_ref, M)
                y_ref[pl.ds(0, M), :] = jnp.dot(
                    stage_ref[pl.ds(0, M), :], woned_ref[layer, 0, :, :],
                    preferred_element_type=jnp.float32)
                half = pool_w(M)
                sc, sh = sco_ref[layer, :, :], sho_ref[layer, :, :]
                y_ref[pl.ds(0, half), :] = jnp.maximum(
                    p_ref[pl.ds(0, half), :] * sc + sh, 0.0)
                for b in range(B):
                    emit(b, b * (g["P"] // 2), g["Lh"])

            def to_pad2d(dst_ref, g_next):
                def emit(b, ph, r0, n):
                    dst = (b * g_next["Hp"] * g_next["Wp"]
                           + (ph + 1) * g_next["Wp"] + 1)
                    dst_ref[pl.ds(dst, n), :] = y_ref[pl.ds(r0, n), :]
                return emit

            def to_pad1d(dst_ref, g_next):
                def emit(b, r0, n):
                    dst_ref[pl.ds(b * g_next["P"] + 1, n), :] = y_ref[pl.ds(r0, n), :]
                return emit

            def to_feat2d(b, ph, r0, n):      # final image layer: Hh == 1
                for s in range(n):
                    feat_ref[pl.ds(b, 1), pl.ds(s * COUT, COUT)] = (
                        y_ref[pl.ds(r0 + s, 1), :])

            def to_feat1d(b, r0, n):          # final 1-d layer: Lh == 1
                feat_ref[pl.ds(b, 1), pl.ds(n_sp * COUT, COUT)] = (
                    y_ref[pl.ds(r0, 1), :])

            # ---- image path (intermediates never leave VMEM) ----
            group2d(img_ref, 0, g2a, to_pad2d(padi2_ref, g2b))
            group2d(padi2_ref, 1, g2b, to_pad2d(padi3_ref, g2c))
            group2d(padi3_ref, 2, g2c, to_feat2d)

            # ---- one-d path ----
            group1d(oned_ref, 0, g1a, to_pad1d(pado2_ref, g1b))
            group1d(pado2_ref, 1, g1b, to_pad1d(pado3_ref, g1c))
            group1d(pado3_ref, 2, g1c, to_feat1d)

            # ---- Linear head: ONE (8,128)@(128,7) matmul + bias + one store ----
            logits = jnp.dot(feat_ref[...], wlin_ref[...],
                             preferred_element_type=jnp.float32) + blin_ref[...]
            o_ref[...] = logits[:B, :]

        vmem_spec = pl.BlockSpec(memory_space=pltpu.MemorySpace.VMEM)
        return pl.pallas_call(
            kernel,
            out_shape=jax.ShapeDtypeStruct((B, N_CLASSES), jnp.float32),
            in_specs=[vmem_spec] * 10,
            out_specs=vmem_spec,
            scratch_shapes=[
                pltpu.VMEM((y_rows, CPAD), jnp.float32),        # conv / activated slab
                pltpu.VMEM((p_rows, CPAD), jnp.float32),        # w-pooled slab
                pltpu.VMEM((stage_rows, KPACK), jnp.bfloat16),  # K-packed conv LHS
                pltpu.VMEM((FEAT_ROWS, KPACK), jnp.float32),    # head feature tile
                pltpu.VMEM((pad2i_rows, CPAD), jnp.float32),    # image layer-2 input
                pltpu.VMEM((pad3i_rows, CPAD), jnp.float32),    # image layer-3 input
                pltpu.VMEM((pad2o_rows, CPAD), jnp.float32),    # 1-d   layer-2 input
                pltpu.VMEM((pad3o_rows, CPAD), jnp.float32),    # 1-d   layer-3 input
            ],
        )(xi, xo, prep["w_img"], prep["w_oned"], prep["sc_img"], prep["sh_img"],
          prep["sc_oned"], prep["sh_oned"], prep["w_lin"], prep["b_lin"])

    return forward


# --------------------------------------------------------------------------
# Deterministic parameter init (PyTorch-shaped conv weights)
# --------------------------------------------------------------------------
def init_params(key, img_cin, oned_cin, linear_in):
    keys = iter(jax.random.split(key, 14))
    bn_scale = jnp.full((COUT,), 1.0 / np.sqrt(1.0 + BN_EPS), jnp.float32)
    bn_shift = jnp.zeros((COUT,), jnp.float32)
    id_scale = jnp.ones((COUT,), jnp.float32)
    id_shift = jnp.zeros((COUT,), jnp.float32)

    def conv2d_p(cin, bn=True):
        w = jax.random.normal(next(keys), (COUT, cin, 3, 3), jnp.float32) / np.sqrt(9.0 * cin)
        b = 0.01 * jax.random.normal(next(keys), (COUT,), jnp.float32)
        return {"w": w, "b": b,
                "scale": bn_scale if bn else id_scale,
                "shift": bn_shift if bn else id_shift}

    def conv1d_p(cin, bn=True):
        w = jax.random.normal(next(keys), (COUT, cin, 3), jnp.float32) / np.sqrt(3.0 * cin)
        b = 0.01 * jax.random.normal(next(keys), (COUT,), jnp.float32)
        return {"w": w, "b": b,
                "scale": bn_scale if bn else id_scale,
                "shift": bn_shift if bn else id_shift}

    image = [conv2d_p(img_cin), conv2d_p(COUT), conv2d_p(COUT)]
    one_d = [conv1d_p(oned_cin), conv1d_p(COUT), conv1d_p(COUT, bn=False)]
    lw = jax.random.normal(next(keys), (linear_in, N_CLASSES), jnp.float32) / np.sqrt(linear_in)
    lb = 0.01 * jax.random.normal(next(keys), (N_CLASSES,), jnp.float32)
    return {"image": image, "one_d": one_d, "linear": {"w": lw, "b": lb}}


if __name__ == "__main__":
    feature_names = build_feature_names()
    idxs = build_indices(feature_names)
    mel_idx, con_idx, mfcc_idx, one_d_idx = idxs

    n_feat = len(feature_names)                          # 179
    T = LEFT_OFFSET + RIGHT_OFFSET + 1                   # 15
    B = 2

    img_cin = mel_idx.shape[0] + con_idx.shape[0] + mfcc_idx.shape[0]   # 20
    oned_cin = one_d_idx.shape[0]                                       # 29

    # conv output sizes (mirrors Bob.__init__ probing with zeros)
    H, W = T, mel_idx.shape[1]
    for _ in range(N_CONV):
        H, W = H // 2, W // 2
    L = T
    for _ in range(N_CONV):
        L //= 2
    linear_in = COUT * H * W + COUT * L                  # 96 + 32 = 128

    params = init_params(jax.random.PRNGKey(1), img_cin, oned_cin, linear_in)
    prep = prepare_params(params, H, W)                  # one-time weight packing
    forward = make_forward(idxs)

    x = jax.random.normal(jax.random.PRNGKey(0), (B, T, n_feat), jnp.float32)
    out = jax.block_until_ready(forward(prep, x))
    assert out.shape == (B, N_CLASSES) and out.dtype == jnp.float32
    assert bool(jnp.all(jnp.isfinite(out)))
    print("KERNEL_OK")
</pallas_src>

<mosaic_0001>
module attributes {stable_mosaic.version = 11 : i64} {
  func.func @kernel(%arg0: memref<944x32xbf16, #tpu.memory_space<vmem>>, %arg1: memref<40x32xbf16, #tpu.memory_space<vmem>>, %arg2: memref<3x3x128x32xbf16, #tpu.memory_space<vmem>>, %arg3: memref<3x1x128x32xbf16, #tpu.memory_space<vmem>>, %arg4: memref<3x1x32xf32, #tpu.memory_space<vmem>>, %arg5: memref<3x1x32xf32, #tpu.memory_space<vmem>>, %arg6: memref<3x1x32xf32, #tpu.memory_space<vmem>>, %arg7: memref<3x1x32xf32, #tpu.memory_space<vmem>>, %arg8: memref<128x7xf32, #tpu.memory_space<vmem>>, %arg9: memref<1x7xf32, #tpu.memory_space<vmem>>, %arg10: memref<2x7xf32, #tpu.memory_space<vmem>>, %arg11: memref<888x32xf32, #tpu.memory_space<vmem>>, %arg12: memref<448x32xf32, #tpu.memory_space<vmem>>, %arg13: memref<944x128xbf16, #tpu.memory_space<vmem>>, %arg14: memref<8x128xf32, #tpu.memory_space<vmem>>, %arg15: memref<288x32xf32, #tpu.memory_space<vmem>>, %arg16: memref<104x32xf32, #tpu.memory_space<vmem>>, %arg17: memref<24x32xf32, #tpu.memory_space<vmem>>, %arg18: memref<16x32xf32, #tpu.memory_space<vmem>>) attributes {dimension_semantics = [], scalar_prefetch = 0 : i64, scratch_operands = 8 : i64, tpu.core_type = #tpu.core_type<tc>} {
    %cst = arith.constant 0.000000e+00 : f32
    %0 = vector.broadcast %cst : f32 to vector<288x32xf32>
    %c0 = arith.constant 0 : index
    %c0_0 = arith.constant 0 : index
    %1 = vector.load %arg15[%c0, %c0_0] : memref<288x32xf32, #tpu.memory_space<vmem>>, vector<288x32xf32>
    tpu.vector_store %arg15[%c0, %c0_0], %0 {strides = array<i32>} : memref<288x32xf32, #tpu.memory_space<vmem>>, vector<288x32xf32>,
    %cst_1 = arith.constant 0.000000e+00 : f32
    %2 = vector.broadcast %cst_1 : f32 to vector<104x32xf32>
    %c0_2 = arith.constant 0 : index
    %c0_3 = arith.constant 0 : index
    %3 = vector.load %arg16[%c0_2, %c0_3] : memref<104x32xf32, #tpu.memory_space<vmem>>, vector<104x32xf32>
    tpu.vector_store %arg16[%c0_2, %c0_3], %2 {strides = array<i32>} : memref<104x32xf32, #tpu.memory_space<vmem>>, vector<104x32xf32>,
    %cst_4 = arith.constant 0.000000e+00 : f32
    %4 = vector.broadcast %cst_4 : f32 to vector<24x32xf32>
    %c0_5 = arith.constant 0 : index
    %c0_6 = arith.constant 0 : index
    %5 = vector.load %arg17[%c0_5, %c0_6] : memref<24x32xf32, #tpu.memory_space<vmem>>, vector<24x32xf32>
    tpu.vector_store %arg17[%c0_5, %c0_6], %4 {strides = array<i32>} : memref<24x32xf32, #tpu.memory_space<vmem>>, vector<24x32xf32>,
    %cst_7 = arith.constant 0.000000e+00 : f32
    %6 = vector.broadcast %cst_7 : f32 to vector<16x32xf32>
    %c0_8 = arith.constant 0 : index
    %c0_9 = arith.constant 0 : index
    %7 = vector.load %arg18[%c0_8, %c0_9] : memref<16x32xf32, #tpu.memory_space<vmem>>, vector<16x32xf32>
    tpu.vector_store %arg18[%c0_8, %c0_9], %6 {strides = array<i32>} : memref<16x32xf32, #tpu.memory_space<vmem>>, vector<16x32xf32>,
    %cst_10 = arith.constant 0.000000e+00 : bf16
    %8 = vector.broadcast %cst_10 : bf16 to vector<944x128xbf16>
    %c0_11 = arith.constant 0 : index
    %c0_12 = arith.constant 0 : index
    %9 = vector.load %arg13[%c0_11, %c0_12] : memref<944x128xbf16, #tpu.memory_space<vmem>>, vector<944x128xbf16>
    tpu.vector_store %arg13[%c0_11, %c0_12], %8 {strides = array<i32>} : memref<944x128xbf16, #tpu.memory_space<vmem>>, vector<944x128xbf16>,
    %cst_13 = arith.constant 0.000000e+00 : f32
    %10 = vector.broadcast %cst_13 : f32 to vector<8x128xf32>
    %c0_14 = arith.constant 0 : index
    %c0_15 = arith.constant 0 : index
    %11 = vector.load %arg14[%c0_14, %c0_15] : memref<8x128xf32, #tpu.memory_space<vmem>>, vector<8x128xf32>
    tpu.vector_store %arg14[%c0_14, %c0_15], %10 {strides = array<i32>} : memref<8x128xf32, #tpu.memory_space<vmem>>, vector<8x128xf32>,
    %c0_16 = arith.constant 0 : index
    %c0_17 = arith.constant 0 : index
    %12 = vector.load %arg0[%c0_16, %c0_17] : memref<944x32xbf16, #tpu.memory_space<vmem>>, vector<936x32xbf16>
    %c0_18 = arith.constant 0 : index
    %c0_19 = arith.constant 0 : index
    %13 = vector.load %arg13[%c0_18, %c0_19] : memref<944x128xbf16, #tpu.memory_space<vmem>>, vector<936x32xbf16>
    tpu.vector_store %arg13[%c0_18, %c0_19], %12 {strides = array<i32>} : memref<944x128xbf16, #tpu.memory_space<vmem>>, vector<936x32xbf16>,
    %c1 = arith.constant 1 : index
    %c0_20 = arith.constant 0 : index
    %14 = vector.load %arg0[%c1, %c0_20] : memref<944x32xbf16, #tpu.memory_space<vmem>>, vector<936x32xbf16>
    %c0_21 = arith.constant 0 : index
    %c32 = arith.constant 32 : index
    %15 = vector.load %arg13[%c0_21, %c32] : memref<944x128xbf16, #tpu.memory_space<vmem>>, vector<936x32xbf16>
    tpu.vector_store %arg13[%c0_21, %c32], %14 {strides = array<i32>} : memref<944x128xbf16, #tpu.memory_space<vmem>>, vector<936x32xbf16>,
    %c2 = arith.constant 2 : index
    %c0_22 = arith.constant 0 : index
    %16 = vector.load %arg0[%c2, %c0_22] : memref<944x32xbf16, #tpu.memory_space<vmem>>, vector<936x32xbf16>
    %c0_23 = arith.constant 0 : index
    %c64 = arith.constant 64 : index
    %17 = vector.load %arg13[%c0_23, %c64] : memref<944x128xbf16, #tpu.memory_space<vmem>>, vector<936x32xbf16>
    tpu.vector_store %arg13[%c0_23, %c64], %16 {strides = array<i32>} : memref<944x128xbf16, #tpu.memory_space<vmem>>, vector<936x32xbf16>,
    %c0_24 = arith.constant 0 : index
    %c0_25 = arith.constant 0 : index
    %18 = vector.load %arg13[%c0_24, %c0_25] : memref<944x128xbf16, #tpu.memory_space<vmem>>, vector<884x128xbf16>
    %c0_26 = arith.constant 0 : index
    %c0_27 = arith.constant 0 : index
    %c0_28 = arith.constant 0 : index
    %c0_29 = arith.constant 0 : index
    %19 = vector.load %arg2[%c0_26, %c0_27, %c0_28, %c0_29] : memref<3x3x128x32xbf16, #tpu.memory_space<vmem>>, vector<1x1x128x32xbf16>
    %20 = vector.shape_cast %19 : vector<1x1x128x32xbf16> to vector<128x32xbf16>
    %cst_30 = arith.constant dense<0.000000e+00> : vector<884x32xf32>
    %21 = tpu.matmul %18, %20, %cst_30 {dimension_numbers = #tpu.dot_dimension_numbers<[1], [0], [0], [1], [0, 0, 1, 1], [], []>} : vector<884x128xbf16>, vector<128x32xbf16>, vector<884x32xf32> -> vector<884x32xf32>
    %c26 = arith.constant 26 : index
    %c0_31 = arith.constant 0 : index
    %22 = vector.load %arg13[%c26, %c0_31] : memref<944x128xbf16, #tpu.memory_space<vmem>>, vector<884x128xbf16>
    %c0_32 = arith.constant 0 : index
    %c1_33 = arith.constant 1 : index
    %c0_34 = arith.constant 0 : index
    %c0_35 = arith.constant 0 : index
    %23 = vector.load %arg2[%c0_32, %c1_33, %c0_34, %c0_35] : memref<3x3x128x32xbf16, #tpu.memory_space<vmem>>, vector<1x1x128x32xbf16>
    %24 = vector.shape_cast %23 : vector<1x1x128x32xbf16> to vector<128x32xbf16>
    %cst_36 = arith.constant dense<0.000000e+00> : vector<884x32xf32>
    %25 = tpu.matmul %22, %24, %cst_36 {dimension_numbers = #tpu.dot_dimension_numbers<[1], [0], [0], [1], [0, 0, 1, 1], [], []>} : vector<884x128xbf16>, vector<128x32xbf16>, vector<884x32xf32> -> vector<884x32xf32>
    %26 = arith.addf %21, %25 : vector<884x32xf32>
    %c52 = arith.constant 52 : index
    %c0_37 = arith.constant 0 : index
    %27 = vector.load %arg13[%c52, %c0_37] : memref<944x128xbf16, #tpu.memory_space<vmem>>, vector<884x128xbf16>
    %c0_38 = arith.constant 0 : index
    %c2_39 = arith.constant 2 : index
    %c0_40 = arith.constant 0 : index
    %c0_41 = arith.constant 0 : index
    %28 = vector.load %arg2[%c0_38, %c2_39, %c0_40, %c0_41] : memref<3x3x128x32xbf16, #tpu.memory_space<vmem>>, vector<1x1x128x32xbf16>
    %29 = vector.shape_cast %28 : vector<1x1x128x32xbf16> to vector<128x32xbf16>
    %cst_42 = arith.constant dense<0.000000e+00> : vector<884x32xf32>
    %30 = tpu.matmul %27, %29, %cst_42 {dimension_numbers = #tpu.dot_dimension_numbers<[1], [0], [0], [1], [0, 0, 1, 1], [], []>} : vector<884x128xbf16>, vector<128x32xbf16>, vector<884x32xf32> -> vector<884x32xf32>
    %31 = arith.addf %26, %30 : vector<884x32xf32>
    %c0_43 = arith.constant 0 : index
    %c0_44 = arith.constant 0 : index
    %32 = vector.load %arg11[%c0_43, %c0_44] : memref<888x32xf32, #tpu.memory_space<vmem>>, vector<884x32xf32>
    tpu.vector_store %arg11[%c0_43, %c0_44], %31 {strides = array<i32>} : memref<888x32xf32, #tpu.memory_space<vmem>>, vector<884x32xf32>,
    %c0_45 = arith.constant 0 : index
    %c0_46 = arith.constant 0 : index
    %33 = tpu.strided_load %arg11[%c0_45, %c0_46] {strides = array<i32: 2, 1>} : memref<888x32xf32, #tpu.memory_space<vmem>>, vector<442x32xf32>
    %c1_47 = arith.constant 1 : index
    %c0_48 = arith.constant 0 : index
    %34 = tpu.strided_load %arg11[%c1_47, %c0_48] {strides = array<i32: 2, 1>} : memref<888x32xf32, #tpu.memory_space<vmem>>, vector<442x32xf32>
    %35 = arith.maximumf %33, %34 : vector<442x32xf32>
    %c0_49 = arith.constant 0 : index
    %c0_50 = arith.constant 0 : index
    %36 = vector.load %arg12[%c0_49, %c0_50] : memref<448x32xf32, #tpu.memory_space<vmem>>, vector<442x32xf32>
    tpu.vector_store %arg12[%c0_49, %c0_50], %35 {strides = array<i32>} : memref<448x32xf32, #tpu.memory_space<vmem>>, vector<442x32xf32>,
    %c0_51 = arith.constant 0 : index
    %c0_52 = arith.constant 0 : index
    %c0_53 = arith.constant 0 : index
    %37 = vector.load %arg4[%c0_51, %c0_52, %c0_53] : memref<3x1x32xf32, #tpu.memory_space<vmem>>, vector<1x1x32xf32>
    %38 = vector.shape_cast %37 : vector<1x1x32xf32> to vector<1x32xf32>
    %c0_54 = arith.constant 0 : index
    %c0_55 = arith.constant 0 : index
    %c0_56 = arith.constant 0 : index
    %39 = vector.load %arg5[%c0_54, %c0_55, %c0_56] : memref<3x1x32xf32, #tpu.memory_space<vmem>>, vector<1x1x32xf32>
    %40 = vector.shape_cast %39 : vector<1x1x32xf32> to vector<1x32xf32>
    %c0_57 = arith.constant 0 : index
    %c0_58 = arith.constant 0 : index
    %41 = vector.load %arg12[%c0_57, %c0_58] : memref<448x32xf32, #tpu.memory_space<vmem>>, vector<429x32xf32>
    %c13 = arith.constant 13 : index
    %c0_59 = arith.constant 0 : index
    %42 = vector.load %arg12[%c13, %c0_59] : memref<448x32xf32, #tpu.memory_space<vmem>>, vector<429x32xf32>
    %43 = arith.maximumf %41, %42 : vector<429x32xf32>
    %44 = vector.broadcast %38 : vector<1x32xf32> to vector<429x32xf32>
    %45 = arith.mulf %43, %44 : vector<429x32xf32>
    %46 = vector.broadcast %40 : vector<1x32xf32> to vector<429x32xf32>
    %47 = arith.addf %45, %46 : vector<429x32xf32>
    %cst_60 = arith.constant 0.000000e+00 : f32
    %48 = vector.broadcast %cst_60 : f32 to vector<429x32xf32>
    %49 = arith.maximumf %47, %48 : vector<429x32xf32>
    %c0_61 = arith.constant 0 : index
    %c0_62 = arith.constant 0 : index
    %50 = vector.load %arg11[%c0_61, %c0_62] : memref<888x32xf32, #tpu.memory_space<vmem>>, vector<429x32xf32>
    tpu.vector_store %arg11[%c0_61, %c0_62], %49 {strides = array<i32>} : memref<888x32xf32, #tpu.memory_space<vmem>>, vector<429x32xf32>,
    %c0_63 = arith.constant 0 : index
    %c0_64 = arith.constant 0 : index
    %51 = vector.load %arg11[%c0_63, %c0_64] : memref<888x32xf32, #tpu.memory_space<vmem>>, vector<12x32xf32>
    %c15 = arith.constant 15 : index
    %c0_65 = arith.constant 0 : index
    %52 = vector.load %arg15[%c15, %c0_65] : memref<288x32xf32, #tpu.memory_space<vmem>>, vector<12x32xf32>
    tpu.vector_store %arg15[%c15, %c0_65], %51 {strides = array<i32>} : memref<288x32xf32, #tpu.memory_space<vmem>>, vector<12x32xf32>,
    %c26_66 = arith.constant 26 : index
    %c0_67 = arith.constant 0 : index
    %53 = vector.load %arg11[%c26_66, %c0_67] : memref<888x32xf32, #tpu.memory_space<vmem>>, vector<12x32xf32>
    %c29 = arith.constant 29 : index
    %c0_68 = arith.constant 0 : index
    %54 = vector.load %arg15[%c29, %c0_68] : memref<288x32xf32, #tpu.memory_space<vmem>>, vector<12x32xf32>
    tpu.vector_store %arg15[%c29, %c0_68], %53 {strides = array<i32>} : memref<288x32xf32, #tpu.memory_space<vmem>>, vector<12x32xf32>,
    %c52_69 = arith.constant 52 : index
    %c0_70 = arith.constant 0 : index
    %55 = vector.load %arg11[%c52_69, %c0_70] : memref<888x32xf32, #tpu.memory_space<vmem>>, vector<12x32xf32>
    %c43 = arith.constant 43 : index
    %c0_71 = arith.constant 0 : index
    %56 = vector.load %arg15[%c43, %c0_71] : memref<288x32xf32, #tpu.memory_space<vmem>>, vector<12x32xf32>
    tpu.vector_store %arg15[%c43, %c0_71], %55 {strides = array<i32>} : memref<288x32xf32, #tpu.memory_space<vmem>>, vector<12x32xf32>,
    %c78 = arith.constant 78 : index
    %c0_72 = arith.constant 0 : index
    %57 = vector.load %arg11[%c78, %c0_72] : memref<888x32xf32, #tpu.memory_space<vmem>>, vector<12x32xf32>
    %c57 = arith.constant 57 : index
    %c0_73 = arith.constant 0 : index
    %58 = vector.load %arg15[%c57, %c0_73] : memref<288x32xf32, #tpu.memory_space<vmem>>, vector<12x32xf32>
    tpu.vector_store %arg15[%c57, %c0_73], %57 {strides = array<i32>} : memref<288x32xf32, #tpu.memory_space<vmem>>, vector<12x32xf32>,
    %c104 = arith.constant 104 : index
    %c0_74 = arith.constant 0 : index
    %59 = vector.load %arg11[%c104, %c0_74] : memref<888x32xf32, #tpu.memory_space<vmem>>, vector<12x32xf32>
    %c71 = arith.constant 71 : index
    %c0_75 = arith.constant 0 : index
    %60 = vector.load %arg15[%c71, %c0_75] : memref<288x32xf32, #tpu.memory_space<vmem>>, vector<12x32xf32>
    tpu.vector_store %arg15[%c71, %c0_75], %59 {strides = array<i32>} : memref<288x32xf32, #tpu.memory_space<vmem>>, vector<12x32xf32>,
    %c130 = arith.constant 130 : index
    %c0_76 = arith.constant 0 : index
    %61 = vector.load %arg11[%c130, %c0_76] : memref<888x32xf32, #tpu.memory_space<vmem>>, vector<12x32xf32>
    %c85 = arith.constant 85 : index
    %c0_77 = arith.constant 0 : index
    %62 = vector.load %arg15[%c85, %c0_77] : memref<288x32xf32, #tpu.memory_space<vmem>>, vector<12x32xf32>
    tpu.vector_store %arg15[%c85, %c0_77], %61 {strides = array<i32>} : memref<288x32xf32, #tpu.memory_space<vmem>>, vector<12x32xf32>,
    %c156 = arith.constant 156 : index
    %c0_78 = arith.constant 0 : index
    %63 = vector.load %arg11[%c156, %c0_78] : memref<888x32xf32, #tpu.memory_space<vmem>>, vector<12x32xf32>
    %c99 = arith.constant 99 : index
    %c0_79 = arith.constant 0 : index
    %64 = vector.load %arg15[%c99, %c0_79] : memref<288x32xf32, #tpu.memory_space<vmem>>, vector<12x32xf32>
    tpu.vector_store %arg15[%c99, %c0_79], %63 {strides = array<i32>} : memref<288x32xf32, #tpu.memory_space<vmem>>, vector<12x32xf32>,
    %c221 = arith.constant 221 : index
    %c0_80 = arith.constant 0 : index
    %65 = vector.load %arg11[%c221, %c0_80] : memref<888x32xf32, #tpu.memory_space<vmem>>, vector<12x32xf32>
    %c141 = arith.constant 141 : index
    %c0_81 = arith.constant 0 : index
    %66 = vector.load %arg15[%c141, %c0_81] : memref<288x32xf32, #tpu.memory_space<vmem>>, vector<12x32xf32>
    tpu.vector_store %arg15[%c141, %c0_81], %65 {strides = array<i32>} : memref<288x32xf32, #tpu.memory_space<vmem>>, vector<12x32xf32>,
    %c247 = arith.constant 247 : index
    %c0_82 = arith.constant 0 : index
    %67 = vector.load %arg11[%c247, %c0_82] : memref<888x32xf32, #tpu.memory_space<vmem>>, vector<12x32xf32>
    %c155 = arith.constant 155 : index
    %c0_83 = arith.constant 0 : index
    %68 = vector.load %arg15[%c155, %c0_83] : memref<288x32xf32, #tpu.memory_space<vmem>>, vector<12x32xf32>
    tpu.vector_store %arg15[%c155, %c0_83], %67 {strides = array<i32>} : memref<288x32xf32, #tpu.memory_space<vmem>>, vector<12x32xf32>,
    %c273 = arith.constant 273 : index
    %c0_84 = arith.constant 0 : index
    %69 = vector.load %arg11[%c273, %c0_84] : memref<888x32xf32, #tpu.memory_space<vmem>>, vector<12x32xf32>
    %c169 = arith.constant 169 : index
    %c0_85 = arith.constant 0 : index
    %70 = vector.load %arg15[%c169, %c0_85] : memref<288x32xf32, #tpu.memory_space<vmem>>, vector<12x32xf32>
    tpu.vector_store %arg15[%c169, %c0_85], %69 {strides = array<i32>} : memref<288x32xf32, #tpu.memory_space<vmem>>, vector<12x32xf32>,
    %c299 = arith.constant 299 : index
    %c0_86 = arith.constant 0 : index
    %71 = vector.load %arg11[%c299, %c0_86] : memref<888x32xf32, #tpu.memory_space<vmem>>, vector<12x32xf32>
    %c183 = arith.constant 183 : index
    %c0_87 = arith.constant 0 : index
    %72 = vector.load %arg15[%c183, %c0_87] : memref<288x32xf32, #tpu.memory_space<vmem>>, vector<12x32xf32>
    tpu.vector_store %arg15[%c183, %c0_87], %71 {strides = array<i32>} : memref<288x32xf32, #tpu.memory_space<vmem>>, vector<12x32xf32>,
    %c325 = arith.constant 325 : index
    %c0_88 = arith.constant 0 : index
    %73 = vector.load %arg11[%c325, %c0_88] : memref<888x32xf32, #tpu.memory_space<vmem>>, vector<12x32xf32>
    %c197 = arith.constant 197 : index
    %c0_89 = arith.constant 0 : index
    %74 = vector.load %arg15[%c197, %c0_89] : memref<288x32xf32, #tpu.memory_space<vmem>>, vector<12x32xf32>
    tpu.vector_store %arg15[%c197, %c0_89], %73 {strides = array<i32>} : memref<288x32xf32, #tpu.memory_space<vmem>>, vector<12x32xf32>,
    %c351 = arith.constant 351 : index
    %c0_90 = arith.constant 0 : index
    %75 = vector.load %arg11[%c351, %c0_90] : memref<888x32xf32, #tpu.memory_space<vmem>>, vector<12x32xf32>
    %c211 = arith.constant 211 : index
    %c0_91 = arith.constant 0 : index
    %76 = vector.load %arg15[%c211, %c0_91] : memref<288x32xf32, #tpu.memory_space<vmem>>, vector<12x32xf32>
    tpu.vector_store %arg15[%c211, %c0_91], %75 {strides = array<i32>} : memref<288x32xf32, #tpu.memory_space<vmem>>, vector<12x32xf32>,
    %c377 = arith.constant 377 : index
    %c0_92 = arith.constant 0 : index
    %77 = vector.load %arg11[%c377, %c0_92] : memref<888x32xf32, #tpu.memory_space<vmem>>, vector<12x32xf32>
    %c225 = arith.constant 225 : index
    %c0_93 = arith.constant 0 : index
    %78 = vector.load %arg15[%c225, %c0_93] : memref<288x32xf32, #tpu.memory_space<vmem>>, vector<12x32xf32>
    tpu.vector_store %arg15[%c225, %c0_93], %77 {strides = array<i32>} : memref<288x32xf32, #tpu.memory_space<vmem>>, vector<12x32xf32>,
    %c0_94 = arith.constant 0 : index
    %c0_95 = arith.constant 0 : index
    %79 = vector.load %arg15[%c0_94, %c0_95] : memref<288x32xf32, #tpu.memory_space<vmem>>, vector<280x32xf32>
    %80 = arith.truncf %79 : vector<280x32xf32> to vector<280x32xbf16>
    %c0_96 = arith.constant 0 : index
    %c0_97 = arith.constant 0 : index
    %81 = vector.load %arg13[%c0_96, %c0_97] : memref<944x128xbf16, #tpu.memory_space<vmem>>, vector<280x32xbf16>
    tpu.vector_store %arg13[%c0_96, %c0_97], %80 {strides = array<i32>} : memref<944x128xbf16, #tpu.memory_space<vmem>>, vector<280x32xbf16>,
    %c1_98 = arith.constant 1 : index
    %c0_99 = arith.constant 0 : index
    %82 = vector.load %arg15[%c1_98, %c0_99] : memref<288x32xf32, #tpu.memory_space<vmem>>, vector<280x32xf32>
    %83 = arith.truncf %82 : vector<280x32xf32> to vector<280x32xbf16>
    %c0_100 = arith.constant 0 : index
    %c32_101 = arith.constant 32 : index
    %84 = vector.load %arg13[%c0_100, %c32_101] : memref<944x128xbf16, #tpu.memory_space<vmem>>, vector<280x32xbf16>
    tpu.vector_store %arg13[%c0_100, %c32_101], %83 {strides = array<i32>} : memref<944x128xbf16, #tpu.memory_space<vmem>>, vector<280x32xbf16>,
    %c2_102 = arith.constant 2 : index
    %c0_103 = arith.constant 0 : index
    %85 = vector.load %arg15[%c2_102, %c0_103] : memref<288x32xf32, #tpu.memory_space<vmem>>, vector<280x32xf32>
    %86 = arith.truncf %85 : vector<280x32xf32> to vector<280x32xbf16>
    %c0_104 = arith.constant 0 : index
    %c64_105 = arith.constant 64 : index
    %87 = vector.load %arg13[%c0_104, %c64_105] : memref<944x128xbf16, #tpu.memory_space<vmem>>, vector<280x32xbf16>
    tpu.vector_store %arg13[%c0_104, %c64_105], %86 {strides = array<i32>} : memref<944x128xbf16, #tpu.memory_space<vmem>>, vector<280x32xbf16>,
    %c0_106 = arith.constant 0 : index
    %c0_107 = arith.constant 0 : index
    %88 = vector.load %arg13[%c0_106, %c0_107] : memref<944x128xbf16, #tpu.memory_space<vmem>>, vector<252x128xbf16>
    %c1_108 = arith.constant 1 : index
    %c0_109 = arith.constant 0 : index
    %c0_110 = arith.constant 0 : index
    %c0_111 = arith.constant 0 : index
    %89 = vector.load %arg2[%c1_108, %c0_109, %c0_110, %c0_111] : memref<3x3x128x32xbf16, #tpu.memory_space<vmem>>, vector<1x1x128x32xbf16>
    %90 = vector.shape_cast %89 : vector<1x1x128x32xbf16> to vector<128x32xbf16>
    %cst_112 = arith.constant dense<0.000000e+00> : vector<252x32xf32>
    %91 = tpu.matmul %88, %90, %cst_112 {dimension_numbers = #tpu.dot_dimension_numbers<[1], [0], [0], [1], [0, 0, 1, 1], [], []>} : vector<252x128xbf16>, vector<128x32xbf16>, vector<252x32xf32> -> vector<252x32xf32>
    %c14 = arith.constant 14 : index
    %c0_113 = arith.constant 0 : index
    %92 = vector.load %arg13[%c14, %c0_113] : memref<944x128xbf16, #tpu.memory_space<vmem>>, vector<252x128xbf16>
    %c1_114 = arith.constant 1 : index
    %c1_115 = arith.constant 1 : index
    %c0_116 = arith.constant 0 : index
    %c0_117 = arith.constant 0 : index
    %93 = vector.load %arg2[%c1_114, %c1_115, %c0_116, %c0_117] : memref<3x3x128x32xbf16, #tpu.memory_space<vmem>>, vector<1x1x128x32xbf16>
    %94 = vector.shape_cast %93 : vector<1x1x128x32xbf16> to vector<128x32xbf16>
    %cst_118 = arith.constant dense<0.000000e+00> : vector<252x32xf32>
    %95 = tpu.matmul %92, %94, %cst_118 {dimension_numbers = #tpu.dot_dimension_numbers<[1], [0], [0], [1], [0, 0, 1, 1], [], []>} : vector<252x128xbf16>, vector<128x32xbf16>, vector<252x32xf32> -> vector<252x32xf32>
    %96 = arith.addf %91, %95 : vector<252x32xf32>
    %c28 = arith.constant 28 : index
    %c0_119 = arith.constant 0 : index
    %97 = vector.load %arg13[%c28, %c0_119] : memref<944x128xbf16, #tpu.memory_space<vmem>>, vector<252x128xbf16>
    %c1_120 = arith.constant 1 : index
    %c2_121 = arith.constant 2 : index
    %c0_122 = arith.constant 0 : index
    %c0_123 = arith.constant 0 : index
    %98 = vector.load %arg2[%c1_120, %c2_121, %c0_122, %c0_123] : memref<3x3x128x32xbf16, #tpu.memory_space<vmem>>, vector<1x1x128x32xbf16>
    %99 = vector.shape_cast %98 : vector<1x1x128x32xbf16> to vector<128x32xbf16>
    %cst_124 = arith.constant dense<0.000000e+00> : vector<252x32xf32>
    %100 = tpu.matmul %97, %99, %cst_124 {dimension_numbers = #tpu.dot_dimension_numbers<[1], [0], [0], [1], [0, 0, 1, 1], [], []>} : vector<252x128xbf16>, vector<128x32xbf16>, vector<252x32xf32> -> vector<252x32xf32>
    %101 = arith.addf %96, %100 : vector<252x32xf32>
    %c0_125 = arith.constant 0 : index
    %c0_126 = arith.constant 0 : index
    %102 = vector.load %arg11[%c0_125, %c0_126] : memref<888x32xf32, #tpu.memory_space<vmem>>, vector<252x32xf32>
    tpu.vector_store %arg11[%c0_125, %c0_126], %101 {strides = array<i32>} : memref<888x32xf32, #tpu.memory_space<vmem>>, vector<252x32xf32>,
    %c0_127 = arith.constant 0 : index
    %c0_128 = arith.constant 0 : index
    %103 = tpu.strided_load %arg11[%c0_127, %c0_128] {strides = array<i32: 2, 1>} : memref<888x32xf32, #tpu.memory_space<vmem>>, vector<126x32xf32>
    %c1_129 = arith.constant 1 : index
    %c0_130 = arith.constant 0 : index
    %104 = tpu.strided_load %arg11[%c1_129, %c0_130] {strides = array<i32: 2, 1>} : memref<888x32xf32, #tpu.memory_space<vmem>>, vector<126x32xf32>
    %105 = arith.maximumf %103, %104 : vector<126x32xf32>
    %c0_131 = arith.constant 0 : index
    %c0_132 = arith.constant 0 : index
    %106 = vector.load %arg12[%c0_131, %c0_132] : memref<448x32xf32, #tpu.memory_space<vmem>>, vector<126x32xf32>
    tpu.vector_store %arg12[%c0_131, %c0_132], %105 {strides = array<i32>} : memref<448x32xf32, #tpu.memory_space<vmem>>, vector<126x32xf32>,
    %c1_133 = arith.constant 1 : index
    %c0_134 = arith.constant 0 : index
    %c0_135 = arith.constant 0 : index
    %107 = vector.load %arg4[%c1_133, %c0_134, %c0_135] : memref<3x1x32xf32, #tpu.memory_space<vmem>>, vector<1x1x32xf32>
    %108 = vector.shape_cast %107 : vector<1x1x32xf32> to vector<1x32xf32>
    %c1_136 = arith.constant 1 : index
    %c0_137 = arith.constant 0 : index
    %c0_138 = arith.constant 0 : index
    %109 = vector.load %arg5[%c1_136, %c0_137, %c0_138] : memref<3x1x32xf32, #tpu.memory_space<vmem>>, vector<1x1x32xf32>
    %110 = vector.shape_cast %109 : vector<1x1x32xf32> to vector<1x32xf32>
    %c0_139 = arith.constant 0 : index
    %c0_140 = arith.constant 0 : index
    %111 = vector.load %arg12[%c0_139, %c0_140] : memref<448x32xf32, #tpu.memory_space<vmem>>, vector<119x32xf32>
    %c7 = arith.constant 7 : index
    %c0_141 = arith.constant 0 : index
    %112 = vector.load %arg12[%c7, %c0_141] : memref<448x32xf32, #tpu.memory_space<vmem>>, vector<119x32xf32>
    %113 = arith.maximumf %111, %112 : vector<119x32xf32>
    %114 = vector.broadcast %108 : vector<1x32xf32> to vector<119x32xf32>
    %115 = arith.mulf %113, %114 : vector<119x32xf32>
    %116 = vector.broadcast %110 : vector<1x32xf32> to vector<119x32xf32>
    %117 = arith.addf %115, %116 : vector<119x32xf32>
    %cst_142 = arith.constant 0.000000e+00 : f32
    %118 = vector.broadcast %cst_142 : f32 to vector<119x32xf32>
    %119 = arith.maximumf %117, %118 : vector<119x32xf32>
    %c0_143 = arith.constant 0 : index
    %c0_144 = arith.constant 0 : index
    %120 = vector.load %arg11[%c0_143, %c0_144] : memref<888x32xf32, #tpu.memory_space<vmem>>, vector<119x32xf32>
    tpu.vector_store %arg11[%c0_143, %c0_144], %119 {strides = array<i32>} : memref<888x32xf32, #tpu.memory_space<vmem>>, vector<119x32xf32>,
    %c0_145 = arith.constant 0 : index
    %c0_146 = arith.constant 0 : index
    %121 = vector.load %arg11[%c0_145, %c0_146] : memref<888x32xf32, #tpu.memory_space<vmem>>, vector<6x32xf32>
    %c9 = arith.constant 9 : index
    %c0_147 = arith.constant 0 : index
    %122 = vector.load %arg16[%c9, %c0_147] : memref<104x32xf32, #tpu.memory_space<vmem>>, vector<6x32xf32>
    tpu.vector_store %arg16[%c9, %c0_147], %121 {strides = array<i32>} : memref<104x32xf32, #tpu.memory_space<vmem>>, vector<6x32xf32>,
    %c14_148 = arith.constant 14 : index
    %c0_149 = arith.constant 0 : index
    %123 = vector.load %arg11[%c14_148, %c0_149] : memref<888x32xf32, #tpu.memory_space<vmem>>, vector<6x32xf32>
    %c17 = arith.constant 17 : index
    %c0_150 = arith.constant 0 : index
    %124 = vector.load %arg16[%c17, %c0_150] : memref<104x32xf32, #tpu.memory_space<vmem>>, vector<6x32xf32>
    tpu.vector_store %arg16[%c17, %c0_150], %123 {strides = array<i32>} : memref<104x32xf32, #tpu.memory_space<vmem>>, vector<6x32xf32>,
    %c28_151 = arith.constant 28 : index
    %c0_152 = arith.constant 0 : index
    %125 = vector.load %arg11[%c28_151, %c0_152] : memref<888x32xf32, #tpu.memory_space<vmem>>, vector<6x32xf32>
    %c25 = arith.constant 25 : index
    %c0_153 = arith.constant 0 : index
    %126 = vector.load %arg16[%c25, %c0_153] : memref<104x32xf32, #tpu.memory_space<vmem>>, vector<6x32xf32>
    tpu.vector_store %arg16[%c25, %c0_153], %125 {strides = array<i32>} : memref<104x32xf32, #tpu.memory_space<vmem>>, vector<6x32xf32>,
    %c63 = arith.constant 63 : index
    %c0_154 = arith.constant 0 : index
    %127 = vector.load %arg11[%c63, %c0_154] : memref<888x32xf32, #tpu.memory_space<vmem>>, vector<6x32xf32>
    %c49 = arith.constant 49 : index
    %c0_155 = arith.constant 0 : index
    %128 = vector.load %arg16[%c49, %c0_155] : memref<104x32xf32, #tpu.memory_space<vmem>>, vector<6x32xf32>
    tpu.vector_store %arg16[%c49, %c0_155], %127 {strides = array<i32>} : memref<104x32xf32, #tpu.memory_space<vmem>>, vector<6x32xf32>,
    %c77 = arith.constant 77 : index
    %c0_156 = arith.constant 0 : index
    %129 = vector.load %arg11[%c77, %c0_156] : memref<888x32xf32, #tpu.memory_space<vmem>>, vector<6x32xf32>
    %c57_157 = arith.constant 57 : index
    %c0_158 = arith.constant 0 : index
    %130 = vector.load %arg16[%c57_157, %c0_158] : memref<104x32xf32, #tpu.memory_space<vmem>>, vector<6x32xf32>
    tpu.vector_store %arg16[%c57_157, %c0_158], %129 {strides = array<i32>} : memref<104x32xf32, #tpu.memory_space<vmem>>, vector<6x32xf32>,
    %c91 = arith.constant 91 : index
    %c0_159 = arith.constant 0 : index
    %131 = vector.load %arg11[%c91, %c0_159] : memref<888x32xf32, #tpu.memory_space<vmem>>, vector<6x32xf32>
    %c65 = arith.constant 65 : index
    %c0_160 = arith.constant 0 : index
    %132 = vector.load %arg16[%c65, %c0_160] : memref<104x32xf32, #tpu.memory_space<vmem>>, vector<6x32xf32>
    tpu.vector_store %arg16[%c65, %c0_160], %131 {strides = array<i32>} : memref<104x32xf32, #tpu.memory_space<vmem>>, vector<6x32xf32>,
    %c0_161 = arith.constant 0 : index
    %c0_162 = arith.constant 0 : index
    %133 = vector.load %arg16[%c0_161, %c0_162] : memref<104x32xf32, #tpu.memory_space<vmem>>, vector<96x32xf32>
    %134 = arith.truncf %133 : vector<96x32xf32> to vector<96x32xbf16>
    %c0_163 = arith.constant 0 : index
    %c0_164 = arith.constant 0 : index
    %135 = vector.load %arg13[%c0_163, %c0_164] : memref<944x128xbf16, #tpu.memory_space<vmem>>, vector<96x32xbf16>
    tpu.vector_store %arg13[%c0_163, %c0_164], %134 {strides = array<i32>} : memref<944x128xbf16, #tpu.memory_space<vmem>>, vector<96x32xbf16>,
    %c1_165 = arith.constant 1 : index
    %c0_166 = arith.constant 0 : index
    %136 = vector.load %arg16[%c1_165, %c0_166] : memref<104x32xf32, #tpu.memory_space<vmem>>, vector<96x32xf32>
    %137 = arith.truncf %136 : vector<96x32xf32> to vector<96x32xbf16>
    %c0_167 = arith.constant 0 : index
    %c32_168 = arith.constant 32 : index
    %138 = vector.load %arg13[%c0_167, %c32_168] : memref<944x128xbf16, #tpu.memory_space<vmem>>, vector<96x32xbf16>
    tpu.vector_store %arg13[%c0_167, %c32_168], %137 {strides = array<i32>} : memref<944x128xbf16, #tpu.memory_space<vmem>>, vector<96x32xbf16>,
    %c2_169 = arith.constant 2 : index
    %c0_170 = arith.constant 0 : index
    %139 = vector.load %arg16[%c2_169, %c0_170] : memref<104x32xf32, #tpu.memory_space<vmem>>, vector<96x32xf32>
    %140 = arith.truncf %139 : vector<96x32xf32> to vector<96x32xbf16>
    %c0_171 = arith.constant 0 : index
    %c64_172 = arith.constant 64 : index
    %141 = vector.load %arg13[%c0_171, %c64_172] : memref<944x128xbf16, #tpu.memory_space<vmem>>, vector<96x32xbf16>
    tpu.vector_store %arg13[%c0_171, %c64_172], %140 {strides = array<i32>} : memref<944x128xbf16, #tpu.memory_space<vmem>>, vector<96x32xbf16>,
    %c0_173 = arith.constant 0 : index
    %c0_174 = arith.constant 0 : index
    %142 = vector.load %arg13[%c0_173, %c0_174] : memref<944x128xbf16, #tpu.memory_space<vmem>>, vector<80x128xbf16>
    %c2_175 = arith.constant 2 : index
    %c0_176 = arith.constant 0 : index
    %c0_177 = arith.constant 0 : index
    %c0_178 = arith.constant 0 : index
    %143 = vector.load %arg2[%c2_175, %c0_176, %c0_177, %c0_178] : memref<3x3x128x32xbf16, #tpu.memory_space<vmem>>, vector<1x1x128x32xbf16>
    %144 = vector.shape_cast %143 : vector<1x1x128x32xbf16> to vector<128x32xbf16>
    %cst_179 = arith.constant dense<0.000000e+00> : vector<80x32xf32>
    %145 = tpu.matmul %142, %144, %cst_179 {dimension_numbers = #tpu.dot_dimension_numbers<[1], [0], [0], [1], [0, 0, 1, 1], [], []>} : vector<80x128xbf16>, vector<128x32xbf16>, vector<80x32xf32> -> vector<80x32xf32>
    %c8 = arith.constant 8 : index
    %c0_180 = arith.constant 0 : index
    %146 = vector.load %arg13[%c8, %c0_180] : memref<944x128xbf16, #tpu.memory_space<vmem>>, vector<80x128xbf16>
    %c2_181 = arith.constant 2 : index
    %c1_182 = arith.constant 1 : index
    %c0_183 = arith.constant 0 : index
    %c0_184 = arith.constant 0 : index
    %147 = vector.load %arg2[%c2_181, %c1_182, %c0_183, %c0_184] : memref<3x3x128x32xbf16, #tpu.memory_space<vmem>>, vector<1x1x128x32xbf16>
    %148 = vector.shape_cast %147 : vector<1x1x128x32xbf16> to vector<128x32xbf16>
    %cst_185 = arith.constant dense<0.000000e+00> : vector<80x32xf32>
    %149 = tpu.matmul %146, %148, %cst_185 {dimension_numbers = #tpu.dot_dimension_numbers<[1], [0], [0], [1], [0, 0, 1, 1], [], []>} : vector<80x128xbf16>, vector<128x32xbf16>, vector<80x32xf32> -> vector<80x32xf32>
    %150 = arith.addf %145, %149 : vector<80x32xf32>
    %c16 = arith.constant 16 : index
    %c0_186 = arith.constant 0 : index
    %151 = vector.load %arg13[%c16, %c0_186] : memref<944x128xbf16, #tpu.memory_space<vmem>>, vector<80x128xbf16>
    %c2_187 = arith.constant 2 : index
    %c2_188 = arith.constant 2 : index
    %c0_189 = arith.constant 0 : index
    %c0_190 = arith.constant 0 : index
    %152 = vector.load %arg2[%c2_187, %c2_188, %c0_189, %c0_190] : memref<3x3x128x32xbf16, #tpu.memory_space<vmem>>, vector<1x1x128x32xbf16>
    %153 = vector.shape_cast %152 : vector<1x1x128x32xbf16> to vector<128x32xbf16>
    %cst_191 = arith.constant dense<0.000000e+00> : vector<80x32xf32>
    %154 = tpu.matmul %151, %153, %cst_191 {dimension_numbers = #tpu.dot_dimension_numbers<[1], [0], [0], [1], [0, 0, 1, 1], [], []>} : vector<80x128xbf16>, vector<128x32xbf16>, vector<80x32xf32> -> vector<80x32xf32>
    %155 = arith.addf %150, %154 : vector<80x32xf32>
    %c0_192 = arith.constant 0 : index
    %c0_193 = arith.constant 0 : index
    %156 = vector.load %arg11[%c0_192, %c0_193] : memref<888x32xf32, #tpu.memory_space<vmem>>, vector<80x32xf32>
    tpu.vector_store %arg11[%c0_192, %c0_193], %155 {strides = array<i32>} : memref<888x32xf32, #tpu.memory_space<vmem>>, vector<80x32xf32>,
    %c0_194 = arith.constant 0 : index
    %c0_195 = arith.constant 0 : index
    %157 = tpu.strided_load %arg11[%c0_194, %c0_195] {strides = array<i32: 2, 1>} : memref<888x32xf32, #tpu.memory_space<vmem>>, vector<40x32xf32>
    %c1_196 = arith.constant 1 : index
    %c0_197 = arith.constant 0 : index
    %158 = tpu.strided_load %arg11[%c1_196, %c0_197] {strides = array<i32: 2, 1>} : memref<888x32xf32, #tpu.memory_space<vmem>>, vector<40x32xf32>
    %159 = arith.maximumf %157, %158 : vector<40x32xf32>
    %c0_198 = arith.constant 0 : index
    %c0_199 = arith.constant 0 : index
    %160 = vector.load %arg12[%c0_198, %c0_199] : memref<448x32xf32, #tpu.memory_space<vmem>>, vector<40x32xf32>
    tpu.vector_store %arg12[%c0_198, %c0_199], %159 {strides = array<i32>} : memref<448x32xf32, #tpu.memory_space<vmem>>, vector<40x32xf32>,
    %c2_200 = arith.constant 2 : index
    %c0_201 = arith.constant 0 : index
    %c0_202 = arith.constant 0 : index
    %161 = vector.load %arg4[%c2_200, %c0_201, %c0_202] : memref<3x1x32xf32, #tpu.memory_space<vmem>>, vector<1x1x32xf32>
    %162 = vector.shape_cast %161 : vector<1x1x32xf32> to vector<1x32xf32>
    %c2_203 = arith.constant 2 : index
    %c0_204 = arith.constant 0 : index
    %c0_205 = arith.constant 0 : index
    %163 = vector.load %arg5[%c2_203, %c0_204, %c0_205] : memref<3x1x32xf32, #tpu.memory_space<vmem>>, vector<1x1x32xf32>
    %164 = vector.shape_cast %163 : vector<1x1x32xf32> to vector<1x32xf32>
    %c0_206 = arith.constant 0 : index
    %c0_207 = arith.constant 0 : index
    %165 = vector.load %arg12[%c0_206, %c0_207] : memref<448x32xf32, #tpu.memory_space<vmem>>, vector<36x32xf32>
    %c4 = arith.constant 4 : index
    %c0_208 = arith.constant 0 : index
    %166 = vector.load %arg12[%c4, %c0_208] : memref<448x32xf32, #tpu.memory_space<vmem>>, vector<36x32xf32>
    %167 = arith.maximumf %165, %166 : vector<36x32xf32>
    %168 = vector.broadcast %162 : vector<1x32xf32> to vector<36x32xf32>
    %169 = arith.mulf %167, %168 : vector<36x32xf32>
    %170 = vector.broadcast %164 : vector<1x32xf32> to vector<36x32xf32>
    %171 = arith.addf %169, %170 : vector<36x32xf32>
    %cst_209 = arith.constant 0.000000e+00 : f32
    %172 = vector.broadcast %cst_209 : f32 to vector<36x32xf32>
    %173 = arith.maximumf %171, %172 : vector<36x32xf32>
    %c0_210 = arith.constant 0 : index
    %c0_211 = arith.constant 0 : index
    %174 = vector.load %arg11[%c0_210, %c0_211] : memref<888x32xf32, #tpu.memory_space<vmem>>, vector<36x32xf32>
    tpu.vector_store %arg11[%c0_210, %c0_211], %173 {strides = array<i32>} : memref<888x32xf32, #tpu.memory_space<vmem>>, vector<36x32xf32>,
    %c0_212 = arith.constant 0 : index
    %c0_213 = arith.constant 0 : index
    %175 = vector.load %arg11[%c0_212, %c0_213] : memref<888x32xf32, #tpu.memory_space<vmem>>, vector<1x32xf32>
    %c0_214 = arith.constant 0 : index
    %c0_215 = arith.constant 0 : index
    %176 = vector.load %arg14[%c0_214, %c0_215] : memref<8x128xf32, #tpu.memory_space<vmem>>, vector<1x32xf32>
    tpu.vector_store %arg14[%c0_214, %c0_215], %175 {strides = array<i32>} : memref<8x128xf32, #tpu.memory_space<vmem>>, vector<1x32xf32>,
    %c1_216 = arith.constant 1 : index
    %c0_217 = arith.constant 0 : index
    %177 = vector.load %arg11[%c1_216, %c0_217] : memref<888x32xf32, #tpu.memory_space<vmem>>, vector<1x32xf32>
    %c0_218 = arith.constant 0 : index
    %c32_219 = arith.constant 32 : index
    %178 = vector.load %arg14[%c0_218, %c32_219] : memref<8x128xf32, #tpu.memory_space<vmem>>, vector<1x32xf32>
    tpu.vector_store %arg14[%c0_218, %c32_219], %177 {strides = array<i32>} : memref<8x128xf32, #tpu.memory_space<vmem>>, vector<1x32xf32>,
    %c2_220 = arith.constant 2 : index
    %c0_221 = arith.constant 0 : index
    %179 = vector.load %arg11[%c2_220, %c0_221] : memref<888x32xf32, #tpu.memory_space<vmem>>, vector<1x32xf32>
    %c0_222 = arith.constant 0 : index
    %c64_223 = arith.constant 64 : index
    %180 = vector.load %arg14[%c0_222, %c64_223] : memref<8x128xf32, #tpu.memory_space<vmem>>, vector<1x32xf32>
    tpu.vector_store %arg14[%c0_222, %c64_223], %179 {strides = array<i32>} : memref<8x128xf32, #tpu.memory_space<vmem>>, vector<1x32xf32>,
    %c20 = arith.constant 20 : index
    %c0_224 = arith.constant 0 : index
    %181 = vector.load %arg11[%c20, %c0_224] : memref<888x32xf32, #tpu.memory_space<vmem>>, vector<1x32xf32>
    %c1_225 = arith.constant 1 : index
    %c0_226 = arith.constant 0 : index
    %182 = vector.load %arg14[%c1_225, %c0_226] : memref<8x128xf32, #tpu.memory_space<vmem>>, vector<1x32xf32>
    tpu.vector_store %arg14[%c1_225, %c0_226], %181 {strides = array<i32>} : memref<8x128xf32, #tpu.memory_space<vmem>>, vector<1x32xf32>,
    %c21 = arith.constant 21 : index
    %c0_227 = arith.constant 0 : index
    %183 = vector.load %arg11[%c21, %c0_227] : memref<888x32xf32, #tpu.memory_space<vmem>>, vector<1x32xf32>
    %c1_228 = arith.constant 1 : index
    %c32_229 = arith.constant 32 : index
    %184 = vector.load %arg14[%c1_228, %c32_229] : memref<8x128xf32, #tpu.memory_space<vmem>>, vector<1x32xf32>
    tpu.vector_store %arg14[%c1_228, %c32_229], %183 {strides = array<i32>} : memref<8x128xf32, #tpu.memory_space<vmem>>, vector<1x32xf32>,
    %c22 = arith.constant 22 : index
    %c0_230 = arith.constant 0 : index
    %185 = vector.load %arg11[%c22, %c0_230] : memref<888x32xf32, #tpu.memory_space<vmem>>, vector<1x32xf32>
    %c1_231 = arith.constant 1 : index
    %c64_232 = arith.constant 64 : index
    %186 = vector.load %arg14[%c1_231, %c64_232] : memref<8x128xf32, #tpu.memory_space<vmem>>, vector<1x32xf32>
    tpu.vector_store %arg14[%c1_231, %c64_232], %185 {strides = array<i32>} : memref<8x128xf32, #tpu.memory_space<vmem>>, vector<1x32xf32>,
    %c0_233 = arith.constant 0 : index
    %c0_234 = arith.constant 0 : index
    %187 = vector.load %arg1[%c0_233, %c0_234] : memref<40x32xbf16, #tpu.memory_space<vmem>>, vector<36x32xbf16>
    %c0_235 = arith.constant 0 : index
    %c0_236 = arith.constant 0 : index
    %188 = vector.load %arg13[%c0_235, %c0_236] : memref<944x128xbf16, #tpu.memory_space<vmem>>, vector<36x32xbf16>
    tpu.vector_store %arg13[%c0_235, %c0_236], %187 {strides = array<i32>} : memref<944x128xbf16, #tpu.memory_space<vmem>>, vector<36x32xbf16>,
    %c1_237 = arith.constant 1 : index
    %c0_238 = arith.constant 0 : index
    %189 = vector.load %arg1[%c1_237, %c0_238] : memref<40x32xbf16, #tpu.memory_space<vmem>>, vector<36x32xbf16>
    %c0_239 = arith.constant 0 : index
    %c32_240 = arith.constant 32 : index
    %190 = vector.load %arg13[%c0_239, %c32_240] : memref<944x128xbf16, #tpu.memory_space<vmem>>, vector<36x32xbf16>
    tpu.vector_store %arg13[%c0_239, %c32_240], %189 {strides = array<i32>} : memref<944x128xbf16, #tpu.memory_space<vmem>>, vector<36x32xbf16>,
    %c2_241 = arith.constant 2 : index
    %c0_242 = arith.constant 0 : index
    %191 = vector.load %arg1[%c2_241, %c0_242] : memref<40x32xbf16, #tpu.memory_space<vmem>>, vector<36x32xbf16>
    %c0_243 = arith.constant 0 : index
    %c64_244 = arith.constant 64 : index
    %192 = vector.load %arg13[%c0_243, %c64_244] : memref<944x128xbf16, #tpu.memory_space<vmem>>, vector<36x32xbf16>
    tpu.vector_store %arg13[%c0_243, %c64_244], %191 {strides = array<i32>} : memref<944x128xbf16, #tpu.memory_space<vmem>>, vector<36x32xbf16>,
    %c0_245 = arith.constant 0 : index
    %c0_246 = arith.constant 0 : index
    %193 = vector.load %arg13[%c0_245, %c0_246] : memref<944x128xbf16, #tpu.memory_space<vmem>>, vector<36x128xbf16>
    %c0_247 = arith.constant 0 : index
    %c0_248 = arith.constant 0 : index
    %c0_249 = arith.constant 0 : index
    %c0_250 = arith.constant 0 : index
    %194 = vector.load %arg3[%c0_247, %c0_248, %c0_249, %c0_250] : memref<3x1x128x32xbf16, #tpu.memory_space<vmem>>, vector<1x1x128x32xbf16>
    %195 = vector.shape_cast %194 : vector<1x1x128x32xbf16> to vector<128x32xbf16>
    %cst_251 = arith.constant dense<0.000000e+00> : vector<36x32xf32>
    %196 = tpu.matmul %193, %195, %cst_251 {dimension_numbers = #tpu.dot_dimension_numbers<[1], [0], [0], [1], [0, 0, 1, 1], [], []>} : vector<36x128xbf16>, vector<128x32xbf16>, vector<36x32xf32> -> vector<36x32xf32>
    %c0_252 = arith.constant 0 : index
    %c0_253 = arith.constant 0 : index
    %197 = vector.load %arg11[%c0_252, %c0_253] : memref<888x32xf32, #tpu.memory_space<vmem>>, vector<36x32xf32>
    tpu.vector_store %arg11[%c0_252, %c0_253], %196 {strides = array<i32>} : memref<888x32xf32, #tpu.memory_space<vmem>>, vector<36x32xf32>,
    %c0_254 = arith.constant 0 : index
    %c0_255 = arith.constant 0 : index
    %198 = tpu.strided_load %arg11[%c0_254, %c0_255] {strides = array<i32: 2, 1>} : memref<888x32xf32, #tpu.memory_space<vmem>>, vector<18x32xf32>
    %c1_256 = arith.constant 1 : index
    %c0_257 = arith.constant 0 : index
    %199 = tpu.strided_load %arg11[%c1_256, %c0_257] {strides = array<i32: 2, 1>} : memref<888x32xf32, #tpu.memory_space<vmem>>, vector<18x32xf32>
    %200 = arith.maximumf %198, %199 : vector<18x32xf32>
    %c0_258 = arith.constant 0 : index
    %c0_259 = arith.constant 0 : index
    %201 = vector.load %arg12[%c0_258, %c0_259] : memref<448x32xf32, #tpu.memory_space<vmem>>, vector<18x32xf32>
    tpu.vector_store %arg12[%c0_258, %c0_259], %200 {strides = array<i32>} : memref<448x32xf32, #tpu.memory_space<vmem>>, vector<18x32xf32>,
    %c0_260 = arith.constant 0 : index
    %c0_261 = arith.constant 0 : index
    %c0_262 = arith.constant 0 : index
    %202 = vector.load %arg6[%c0_260, %c0_261, %c0_262] : memref<3x1x32xf32, #tpu.memory_space<vmem>>, vector<1x1x32xf32>
    %203 = vector.shape_cast %202 : vector<1x1x32xf32> to vector<1x32xf32>
    %c0_263 = arith.constant 0 : index
    %c0_264 = arith.constant 0 : index
    %c0_265 = arith.constant 0 : index
    %204 = vector.load %arg7[%c0_263, %c0_264, %c0_265] : memref<3x1x32xf32, #tpu.memory_space<vmem>>, vector<1x1x32xf32>
    %205 = vector.shape_cast %204 : vector<1x1x32xf32> to vector<1x32xf32>
    %c0_266 = arith.constant 0 : index
    %c0_267 = arith.constant 0 : index
    %206 = vector.load %arg12[%c0_266, %c0_267] : memref<448x32xf32, #tpu.memory_space<vmem>>, vector<18x32xf32>
    %207 = vector.broadcast %203 : vector<1x32xf32> to vector<18x32xf32>
    %208 = arith.mulf %206, %207 : vector<18x32xf32>
    %209 = vector.broadcast %205 : vector<1x32xf32> to vector<18x32xf32>
    %210 = arith.addf %208, %209 : vector<18x32xf32>
    %cst_268 = arith.constant 0.000000e+00 : f32
    %211 = vector.broadcast %cst_268 : f32 to vector<18x32xf32>
    %212 = arith.maximumf %210, %211 : vector<18x32xf32>
    %c0_269 = arith.constant 0 : index
    %c0_270 = arith.constant 0 : index
    %213 = vector.load %arg11[%c0_269, %c0_270] : memref<888x32xf32, #tpu.memory_space<vmem>>, vector<18x32xf32>
    tpu.vector_store %arg11[%c0_269, %c0_270], %212 {strides = array<i32>} : memref<888x32xf32, #tpu.memory_space<vmem>>, vector<18x32xf32>,
    %c0_271 = arith.constant 0 : index
    %c0_272 = arith.constant 0 : index
    %214 = vector.load %arg11[%c0_271, %c0_272] : memref<888x32xf32, #tpu.memory_space<vmem>>, vector<7x32xf32>
    %c1_273 = arith.constant 1 : index
    %c0_274 = arith.constant 0 : index
    %215 = vector.load %arg17[%c1_273, %c0_274] : memref<24x32xf32, #tpu.memory_space<vmem>>, vector<7x32xf32>
    tpu.vector_store %arg17[%c1_273, %c0_274], %214 {strides = array<i32>} : memref<24x32xf32, #tpu.memory_space<vmem>>, vector<7x32xf32>,
    %c9_275 = arith.constant 9 : index
    %c0_276 = arith.constant 0 : index
    %216 = vector.load %arg11[%c9_275, %c0_276] : memref<888x32xf32, #tpu.memory_space<vmem>>, vector<7x32xf32>
    %c11 = arith.constant 11 : index
    %c0_277 = arith.constant 0 : index
    %217 = vector.load %arg17[%c11, %c0_277] : memref<24x32xf32, #tpu.memory_space<vmem>>, vector<7x32xf32>
    tpu.vector_store %arg17[%c11, %c0_277], %216 {strides = array<i32>} : memref<24x32xf32, #tpu.memory_space<vmem>>, vector<7x32xf32>,
    %c0_278 = arith.constant 0 : index
    %c0_279 = arith.constant 0 : index
    %218 = vector.load %arg17[%c0_278, %c0_279] : memref<24x32xf32, #tpu.memory_space<vmem>>, vector<20x32xf32>
    %219 = arith.truncf %218 : vector<20x32xf32> to vector<20x32xbf16>
    %c0_280 = arith.constant 0 : index
    %c0_281 = arith.constant 0 : index
    %220 = vector.load %arg13[%c0_280, %c0_281] : memref<944x128xbf16, #tpu.memory_space<vmem>>, vector<20x32xbf16>
    tpu.vector_store %arg13[%c0_280, %c0_281], %219 {strides = array<i32>} : memref<944x128xbf16, #tpu.memory_space<vmem>>, vector<20x32xbf16>,
    %c1_282 = arith.constant 1 : index
    %c0_283 = arith.constant 0 : index
    %221 = vector.load %arg17[%c1_282, %c0_283] : memref<24x32xf32, #tpu.memory_space<vmem>>, vector<20x32xf32>
    %222 = arith.truncf %221 : vector<20x32xf32> to vector<20x32xbf16>
    %c0_284 = arith.constant 0 : index
    %c32_285 = arith.constant 32 : index
    %223 = vector.load %arg13[%c0_284, %c32_285] : memref<944x128xbf16, #tpu.memory_space<vmem>>, vector<20x32xbf16>
    tpu.vector_store %arg13[%c0_284, %c32_285], %222 {strides = array<i32>} : memref<944x128xbf16, #tpu.memory_space<vmem>>, vector<20x32xbf16>,
    %c2_286 = arith.constant 2 : index
    %c0_287 = arith.constant 0 : index
    %224 = vector.load %arg17[%c2_286, %c0_287] : memref<24x32xf32, #tpu.memory_space<vmem>>, vector<20x32xf32>
    %225 = arith.truncf %224 : vector<20x32xf32> to vector<20x32xbf16>
    %c0_288 = arith.constant 0 : index
    %c64_289 = arith.constant 64 : index
    %226 = vector.load %arg13[%c0_288, %c64_289] : memref<944x128xbf16, #tpu.memory_space<vmem>>, vector<20x32xbf16>
    tpu.vector_store %arg13[%c0_288, %c64_289], %225 {strides = array<i32>} : memref<944x128xbf16, #tpu.memory_space<vmem>>, vector<20x32xbf16>,
    %c0_290 = arith.constant 0 : index
    %c0_291 = arith.constant 0 : index
    %227 = vector.load %arg13[%c0_290, %c0_291] : memref<944x128xbf16, #tpu.memory_space<vmem>>, vector<20x128xbf16>
    %c1_292 = arith.constant 1 : index
    %c0_293 = arith.constant 0 : index
    %c0_294 = arith.constant 0 : index
    %c0_295 = arith.constant 0 : index
    %228 = vector.load %arg3[%c1_292, %c0_293, %c0_294, %c0_295] : memref<3x1x128x32xbf16, #tpu.memory_space<vmem>>, vector<1x1x128x32xbf16>
    %229 = vector.shape_cast %228 : vector<1x1x128x32xbf16> to vector<128x32xbf16>
    %cst_296 = arith.constant dense<0.000000e+00> : vector<20x32xf32>
    %230 = tpu.matmul %227, %229, %cst_296 {dimension_numbers = #tpu.dot_dimension_numbers<[1], [0], [0], [1], [0, 0, 1, 1], [], []>} : vector<20x128xbf16>, vector<128x32xbf16>, vector<20x32xf32> -> vector<20x32xf32>
    %c0_297 = arith.constant 0 : index
    %c0_298 = arith.constant 0 : index
    %231 = vector.load %arg11[%c0_297, %c0_298] : memref<888x32xf32, #tpu.memory_space<vmem>>, vector<20x32xf32>
    tpu.vector_store %arg11[%c0_297, %c0_298], %230 {strides = array<i32>} : memref<888x32xf32, #tpu.memory_space<vmem>>, vector<20x32xf32>,
    %c0_299 = arith.constant 0 : index
    %c0_300 = arith.constant 0 : index
    %232 = tpu.strided_load %arg11[%c0_299, %c0_300] {strides = array<i32: 2, 1>} : memref<888x32xf32, #tpu.memory_space<vmem>>, vector<10x32xf32>
    %c1_301 = arith.constant 1 : index
    %c0_302 = arith.constant 0 : index
    %233 = tpu.strided_load %arg11[%c1_301, %c0_302] {strides = array<i32: 2, 1>} : memref<888x32xf32, #tpu.memory_space<vmem>>, vector<10x32xf32>
    %234 = arith.maximumf %232, %233 : vector<10x32xf32>
    %c0_303 = arith.constant 0 : index
    %c0_304 = arith.constant 0 : index
    %235 = vector.load %arg12[%c0_303, %c0_304] : memref<448x32xf32, #tpu.memory_space<vmem>>, vector<10x32xf32>
    tpu.vector_store %arg12[%c0_303, %c0_304], %234 {strides = array<i32>} : memref<448x32xf32, #tpu.memory_space<vmem>>, vector<10x32xf32>,
    %c1_305 = arith.constant 1 : index
    %c0_306 = arith.constant 0 : index
    %c0_307 = arith.constant 0 : index
    %236 = vector.load %arg6[%c1_305, %c0_306, %c0_307] : memref<3x1x32xf32, #tpu.memory_space<vmem>>, vector<1x1x32xf32>
    %237 = vector.shape_cast %236 : vector<1x1x32xf32> to vector<1x32xf32>
    %c1_308 = arith.constant 1 : index
    %c0_309 = arith.constant 0 : index
    %c0_310 = arith.constant 0 : index
    %238 = vector.load %arg7[%c1_308, %c0_309, %c0_310] : memref<3x1x32xf32, #tpu.memory_space<vmem>>, vector<1x1x32xf32>
    %239 = vector.shape_cast %238 : vector<1x1x32xf32> to vector<1x32xf32>
    %c0_311 = arith.constant 0 : index
    %c0_312 = arith.constant 0 : index
    %240 = vector.load %arg12[%c0_311, %c0_312] : memref<448x32xf32, #tpu.memory_space<vmem>>, vector<10x32xf32>
    %241 = vector.broadcast %237 : vector<1x32xf32> to vector<10x32xf32>
    %242 = arith.mulf %240, %241 : vector<10x32xf32>
    %243 = vector.broadcast %239 : vector<1x32xf32> to vector<10x32xf32>
    %244 = arith.addf %242, %243 : vector<10x32xf32>
    %cst_313 = arith.constant 0.000000e+00 : f32
    %245 = vector.broadcast %cst_313 : f32 to vector<10x32xf32>
    %246 = arith.maximumf %244, %245 : vector<10x32xf32>
    %c0_314 = arith.constant 0 : index
    %c0_315 = arith.constant 0 : index
    %247 = vector.load %arg11[%c0_314, %c0_315] : memref<888x32xf32, #tpu.memory_space<vmem>>, vector<10x32xf32>
    tpu.vector_store %arg11[%c0_314, %c0_315], %246 {strides = array<i32>} : memref<888x32xf32, #tpu.memory_space<vmem>>, vector<10x32xf32>,
    %c0_316 = arith.constant 0 : index
    %c0_317 = arith.constant 0 : index
    %248 = vector.load %arg11[%c0_316, %c0_317] : memref<888x32xf32, #tpu.memory_space<vmem>>, vector<3x32xf32>
    %c1_318 = arith.constant 1 : index
    %c0_319 = arith.constant 0 : index
    %249 = vector.load %arg18[%c1_318, %c0_319] : memref<16x32xf32, #tpu.memory_space<vmem>>, vector<3x32xf32>
    tpu.vector_store %arg18[%c1_318, %c0_319], %248 {strides = array<i32>} : memref<16x32xf32, #tpu.memory_space<vmem>>, vector<3x32xf32>,
    %c5 = arith.constant 5 : index
    %c0_320 = arith.constant 0 : index
    %250 = vector.load %arg11[%c5, %c0_320] : memref<888x32xf32, #tpu.memory_space<vmem>>, vector<3x32xf32>
    %c7_321 = arith.constant 7 : index
    %c0_322 = arith.constant 0 : index
    %251 = vector.load %arg18[%c7_321, %c0_322] : memref<16x32xf32, #tpu.memory_space<vmem>>, vector<3x32xf32>
    tpu.vector_store %arg18[%c7_321, %c0_322], %250 {strides = array<i32>} : memref<16x32xf32, #tpu.memory_space<vmem>>, vector<3x32xf32>,
    %c0_323 = arith.constant 0 : index
    %c0_324 = arith.constant 0 : index
    %252 = vector.load %arg18[%c0_323, %c0_324] : memref<16x32xf32, #tpu.memory_space<vmem>>, vector<12x32xf32>
    %253 = arith.truncf %252 : vector<12x32xf32> to vector<12x32xbf16>
    %c0_325 = arith.constant 0 : index
    %c0_326 = arith.constant 0 : index
    %254 = vector.load %arg13[%c0_325, %c0_326] : memref<944x128xbf16, #tpu.memory_space<vmem>>, vector<12x32xbf16>
    tpu.vector_store %arg13[%c0_325, %c0_326], %253 {strides = array<i32>} : memref<944x128xbf16, #tpu.memory_space<vmem>>, vector<12x32xbf16>,
    %c1_327 = arith.constant 1 : index
    %c0_328 = arith.constant 0 : index
    %255 = vector.load %arg18[%c1_327, %c0_328] : memref<16x32xf32, #tpu.memory_space<vmem>>, vector<12x32xf32>
    %256 = arith.truncf %255 : vector<12x32xf32> to vector<12x32xbf16>
    %c0_329 = arith.constant 0 : index
    %c32_330 = arith.constant 32 : index
    %257 = vector.load %arg13[%c0_329, %c32_330] : memref<944x128xbf16, #tpu.memory_space<vmem>>, vector<12x32xbf16>
    tpu.vector_store %arg13[%c0_329, %c32_330], %256 {strides = array<i32>} : memref<944x128xbf16, #tpu.memory_space<vmem>>, vector<12x32xbf16>,
    %c2_331 = arith.constant 2 : index
    %c0_332 = arith.constant 0 : index
    %258 = vector.load %arg18[%c2_331, %c0_332] : memref<16x32xf32, #tpu.memory_space<vmem>>, vector<12x32xf32>
    %259 = arith.truncf %258 : vector<12x32xf32> to vector<12x32xbf16>
    %c0_333 = arith.constant 0 : index
    %c64_334 = arith.constant 64 : index
    %260 = vector.load %arg13[%c0_333, %c64_334] : memref<944x128xbf16, #tpu.memory_space<vmem>>, vector<12x32xbf16>
    tpu.vector_store %arg13[%c0_333, %c64_334], %259 {strides = array<i32>} : memref<944x128xbf16, #tpu.memory_space<vmem>>, vector<12x32xbf16>,
    %c0_335 = arith.constant 0 : index
    %c0_336 = arith.constant 0 : index
    %261 = vector.load %arg13[%c0_335, %c0_336] : memref<944x128xbf16, #tpu.memory_space<vmem>>, vector<12x128xbf16>
    %c2_337 = arith.constant 2 : index
    %c0_338 = arith.constant 0 : index
    %c0_339 = arith.constant 0 : index
    %c0_340 = arith.constant 0 : index
    %262 = vector.load %arg3[%c2_337, %c0_338, %c0_339, %c0_340] : memref<3x1x128x32xbf16, #tpu.memory_space<vmem>>, vector<1x1x128x32xbf16>
    %263 = vector.shape_cast %262 : vector<1x1x128x32xbf16> to vector<128x32xbf16>
    %cst_341 = arith.constant dense<0.000000e+00> : vector<12x32xf32>
    %264 = tpu.matmul %261, %263, %cst_341 {dimension_numbers = #tpu.dot_dimension_numbers<[1], [0], [0], [1], [0, 0, 1, 1], [], []>} : vector<12x128xbf16>, vector<128x32xbf16>, vector<12x32xf32> -> vector<12x32xf32>
    %c0_342 = arith.constant 0 : index
    %c0_343 = arith.constant 0 : index
    %265 = vector.load %arg11[%c0_342, %c0_343] : memref<888x32xf32, #tpu.memory_space<vmem>>, vector<12x32xf32>
    tpu.vector_store %arg11[%c0_342, %c0_343], %264 {strides = array<i32>} : memref<888x32xf32, #tpu.memory_space<vmem>>, vector<12x32xf32>,
    %c0_344 = arith.constant 0 : index
    %c0_345 = arith.constant 0 : index
    %266 = tpu.strided_load %arg11[%c0_344, %c0_345] {strides = array<i32: 2, 1>} : memref<888x32xf32, #tpu.memory_space<vmem>>, vector<6x32xf32>
    %c1_346 = arith.constant 1 : index
    %c0_347 = arith.constant 0 : index
    %267 = tpu.strided_load %arg11[%c1_346, %c0_347] {strides = array<i32: 2, 1>} : memref<888x32xf32, #tpu.memory_space<vmem>>, vector<6x32xf32>
    %268 = arith.maximumf %266, %267 : vector<6x32xf32>
    %c0_348 = arith.constant 0 : index
    %c0_349 = arith.constant 0 : index
    %269 = vector.load %arg12[%c0_348, %c0_349] : memref<448x32xf32, #tpu.memory_space<vmem>>, vector<6x32xf32>
    tpu.vector_store %arg12[%c0_348, %c0_349], %268 {strides = array<i32>} : memref<448x32xf32, #tpu.memory_space<vmem>>, vector<6x32xf32>,
    %c2_350 = arith.constant 2 : index
    %c0_351 = arith.constant 0 : index
    %c0_352 = arith.constant 0 : index
    %270 = vector.load %arg6[%c2_350, %c0_351, %c0_352] : memref<3x1x32xf32, #tpu.memory_space<vmem>>, vector<1x1x32xf32>
    %271 = vector.shape_cast %270 : vector<1x1x32xf32> to vector<1x32xf32>
    %c2_353 = arith.constant 2 : index
    %c0_354 = arith.constant 0 : index
    %c0_355 = arith.constant 0 : index
    %272 = vector.load %arg7[%c2_353, %c0_354, %c0_355] : memref<3x1x32xf32, #tpu.memory_space<vmem>>, vector<1x1x32xf32>
    %273 = vector.shape_cast %272 : vector<1x1x32xf32> to vector<1x32xf32>
    %c0_356 = arith.constant 0 : index
    %c0_357 = arith.constant 0 : index
    %274 = vector.load %arg12[%c0_356, %c0_357] : memref<448x32xf32, #tpu.memory_space<vmem>>, vector<6x32xf32>
    %275 = vector.broadcast %271 : vector<1x32xf32> to vector<6x32xf32>
    %276 = arith.mulf %274, %275 : vector<6x32xf32>
    %277 = vector.broadcast %273 : vector<1x32xf32> to vector<6x32xf32>
    %278 = arith.addf %276, %277 : vector<6x32xf32>
    %cst_358 = arith.constant 0.000000e+00 : f32
    %279 = vector.broadcast %cst_358 : f32 to vector<6x32xf32>
    %280 = arith.maximumf %278, %279 : vector<6x32xf32>
    %c0_359 = arith.constant 0 : index
    %c0_360 = arith.constant 0 : index
    %281 = vector.load %arg11[%c0_359, %c0_360] : memref<888x32xf32, #tpu.memory_space<vmem>>, vector<6x32xf32>
    tpu.vector_store %arg11[%c0_359, %c0_360], %280 {strides = array<i32>} : memref<888x32xf32, #tpu.memory_space<vmem>>, vector<6x32xf32>,
    %c0_361 = arith.constant 0 : index
    %c0_362 = arith.constant 0 : index
    %282 = vector.load %arg11[%c0_361, %c0_362] : memref<888x32xf32, #tpu.memory_space<vmem>>, vector<1x32xf32>
    %c0_363 = arith.constant 0 : index
    %c96 = arith.constant 96 : index
    %283 = vector.load %arg14[%c0_363, %c96] : memref<8x128xf32, #tpu.memory_space<vmem>>, vector<1x32xf32>
    tpu.vector_store %arg14[%c0_363, %c96], %282 {strides = array<i32>} : memref<8x128xf32, #tpu.memory_space<vmem>>, vector<1x32xf32>,
    %c3 = arith.constant 3 : index
    %c0_364 = arith.constant 0 : index
    %284 = vector.load %arg11[%c3, %c0_364] : memref<888x32xf32, #tpu.memory_space<vmem>>, vector<1x32xf32>
    %c1_365 = arith.constant 1 : index
    %c96_366 = arith.constant 96 : index
    %285 = vector.load %arg14[%c1_365, %c96_366] : memref<8x128xf32, #tpu.memory_space<vmem>>, vector<1x32xf32>
    tpu.vector_store %arg14[%c1_365, %c96_366], %284 {strides = array<i32>} : memref<8x128xf32, #tpu.memory_space<vmem>>, vector<1x32xf32>,
    %c0_367 = arith.constant 0 : index
    %c0_368 = arith.constant 0 : index
    %286 = vector.load %arg14[%c0_367, %c0_368] : memref<8x128xf32, #tpu.memory_space<vmem>>, vector<8x128xf32>
    %c0_369 = arith.constant 0 : index
    %c0_370 = arith.constant 0 : index
    %287 = vector.load %arg8[%c0_369, %c0_370] : memref<128x7xf32, #tpu.memory_space<vmem>>, vector<128x7xf32>
    %cst_371 = arith.constant dense<0.000000e+00> : vector<8x7xf32>
    %288 = tpu.matmul %286, %287, %cst_371 {dimension_numbers = #tpu.dot_dimension_numbers<[1], [0], [0], [1], [0, 0, 1, 1], [], []>} : vector<8x128xf32>, vector<128x7xf32>, vector<8x7xf32> -> vector<8x7xf32>
    %c0_372 = arith.constant 0 : index
    %c0_373 = arith.constant 0 : index
    %289 = vector.load %arg9[%c0_372, %c0_373] : memref<1x7xf32, #tpu.memory_space<vmem>>, vector<1x7xf32>
    %290 = vector.broadcast %289 : vector<1x7xf32> to vector<8x7xf32>
    %291 = arith.addf %288, %290 : vector<8x7xf32>
    %292 = vector.extract_strided_slice %291 {offsets = [0, 0], sizes = [2, 7], strides = [1, 1]} : vector<8x7xf32> to vector<2x7xf32>
    %c0_374 = arith.constant 0 : index
    %c0_375 = arith.constant 0 : index
    %293 = vector.load %arg10[%c0_374, %c0_375] : memref<2x7xf32, #tpu.memory_space<vmem>>, vector<2x7xf32>
    tpu.vector_store %arg10[%c0_374, %c0_375], %292 {strides = array<i32>} : memref<2x7xf32, #tpu.memory_space<vmem>>, vector<2x7xf32>,
    return
  }
}

</mosaic_0001>

<llo_original>
// kernel: forward.1
$region0: #{forward.1}
  #allocation0 [shape = 'u32[]', space=smem, size = 0x4, offset = 0x4, fixed_abs, tag = 'smem constant byte address 0x4 - core index']
  #allocation1 [shape = 'u32[144,128]{1,0:T(1,128)}', space=vmem, size = 0x12000, scoped, tag = 'internal scratch']
  #allocation2 [shape = 'f32[888,32]{1,0:T(8,128)}', space=vmem, size = 0x6f000, scoped, tag = 'scratch operand']
  #allocation3 [shape = 'f32[448,32]{1,0:T(8,128)}', space=vmem, size = 0x38000, scoped, tag = 'scratch operand']
  #allocation4 [shape = 'bf16[944,128]{1,0:T(16,128)(2,1)}', space=vmem, size = 0x3b000, scoped, tag = 'scratch operand']
  #allocation5 [shape = 'f32[8,128]{1,0:T(8,128)}', space=vmem, size = 0x1000, scoped, tag = 'scratch operand']
  #allocation6 [shape = 'f32[288,32]{1,0:T(8,128)}', space=vmem, size = 0x24000, scoped, tag = 'scratch operand']
  #allocation7 [shape = 'f32[104,32]{1,0:T(8,128)}', space=vmem, size = 0xd000, scoped, tag = 'scratch operand']
  #allocation8 [shape = 'f32[24,32]{1,0:T(8,128)}', space=vmem, size = 0x3000, scoped, tag = 'scratch operand']
  #allocation9 [shape = 'f32[16,32]{1,0:T(8,128)}', space=vmem, size = 0x2000, scoped, tag = 'scratch operand']
  %s0 = inlined_call_operand.vmem [shape: bf16[944,32], index: 0, kind: input, shape index: {}]
  %s1 = inlined_call_operand.vmem [shape: bf16[40,32], index: 1, kind: input, shape index: {}]
  %s2 = inlined_call_operand.vmem [shape: bf16[3,3,128,32], index: 2, kind: input, shape index: {}]
  %s3 = inlined_call_operand.vmem [shape: bf16[3,1,128,32], index: 3, kind: input, shape index: {}]
  %s4 = inlined_call_operand.vmem [shape: f32[3,1,32], index: 4, kind: input, shape index: {}]
  %s5 = inlined_call_operand.vmem [shape: f32[3,1,32], index: 5, kind: input, shape index: {}]
  %s6 = inlined_call_operand.vmem [shape: f32[3,1,32], index: 6, kind: input, shape index: {}]
  %s7 = inlined_call_operand.vmem [shape: f32[3,1,32], index: 7, kind: input, shape index: {}]
  %s8 = inlined_call_operand.vmem [shape: f32[128,7], index: 8, kind: input, shape index: {}]
  %s9 = inlined_call_operand.vmem [shape: f32[1,7], index: 9, kind: input, shape index: {}]
  %s10 = inlined_call_operand.hbm [shape: f32[2,7], index: 10, kind: output, shape index: {}]
  %s11 = sld [smem:[#allocation0]]
  $region50: #{forward.1} parent=0
    _
  %s13 = ssub.s32 1, %s11
  %s14 = scalar_select 0, %s13, %s11
  $region1: #{forward.1} parent=0
    #allocation10 [shape = 'u8[1024]{0}', space=vmem, size = 0x400, scoped, tag = 'output window, operand 0, single buffered']
    #allocation11 [shape = 's32[1]{0}', space=sflag, size = 0x4, scoped, tag = 'scoped memory for forward.1']
    %15 = vsyncpa [#allocation11], 0
    // Predicated region
    $region2: #{forward.1} parent=1 // pred_check
      _
    $region3: #{forward.1} parent=1 // pred_check_branch
      %17 = sbr.rel (0) target = $region5
    $region4: #{forward.1} parent=1 // pred_region
      _
    $region5: #{forward.1} parent=1 // pred_fallthru
      _
    // Predicated region
    $region6: #{forward.1} parent=1 // pred_check
      _
    $region7: #{forward.1} parent=1 // pred_check_branch
      %19 = sbr.rel (0) target = $region9
    $region8: #{forward.1} parent=1 // pred_region
      _
    $region9: #{forward.1} parent=1 // pred_fallthru
      _
    // Predicated region
    $region10: #{forward.1} parent=1 // pred_check
      _
    $region11: #{forward.1} parent=1 // pred_check_branch
      %21 = sbr.rel (0) target = $region13
    $region12: #{forward.1} parent=1 // pred_region
      _
    $region13: #{forward.1} parent=1 // pred_fallthru
      _
    // Predicated region
    $region14: #{forward.1} parent=1 // pred_check
      _
    $region15: #{forward.1} parent=1 // pred_check_branch
      %23 = sbr.rel (0) target = $region17
    $region16: #{forward.1} parent=1 // pred_region
      _
    $region17: #{forward.1} parent=1 // pred_fallthru
      _
    // Predicated region
    $region18: #{forward.1} parent=1 // pred_check
      _
    $region19: #{forward.1} parent=1 // pred_check_branch
      %25 = sbr.rel (0) target = $region21
    $region20: #{forward.1} parent=1 // pred_region
      _
    $region21: #{forward.1} parent=1 // pred_fallthru
      _
    // Predicated region
    $region22: #{forward.1} parent=1 // pred_check
      _
    $region23: #{forward.1} parent=1 // pred_check_branch
      %27 = sbr.rel (0) target = $region25
    $region24: #{forward.1} parent=1 // pred_region
      _
    $region25: #{forward.1} parent=1 // pred_fallthru
      _
    // Predicated region
    $region26: #{forward.1} parent=1 // pred_check
      _
    $region27: #{forward.1} parent=1 // pred_check_branch
      %29 = sbr.rel (0) target = $region29
    $region28: #{forward.1} parent=1 // pred_region
      _
    $region29: #{forward.1} parent=1 // pred_fallthru
      _
    // Predicated region
    $region30: #{forward.1} parent=1 // pred_check
      _
    $region31: #{forward.1} parent=1 // pred_check_branch
      %31 = sbr.rel (0) target = $region33
    $region32: #{forward.1} parent=1 // pred_region
      _
    $region33: #{forward.1} parent=1 // pred_fallthru
      _
    // Predicated region
    $region34: #{forward.1} parent=1 // pred_check
      _
    $region35: #{forward.1} parent=1 // pred_check_branch
      %33 = sbr.rel (0) target = $region37
    $region36: #{forward.1} parent=1 // pred_region
      _
    $region37: #{forward.1} parent=1 // pred_fallthru
      _
    // Predicated region
    $region38: #{forward.1} parent=1 // pred_check
      _
    $region39: #{forward.1} parent=1 // pred_check_branch
      %35 = sbr.rel (0) target = $region41
    $region40: #{forward.1} parent=1 // pred_region
      _
    $region41: #{forward.1} parent=1 // pred_fallthru
      _
    %vm37 = vcmask 261120
    %38 = vst.msk [vmem:[#allocation6] sm:$0xff] %vm37, 0.0
    %39 = vst.msk [vmem:[#allocation6 + $0x8] sm:$0xff] %vm37, 0.0
    %40 = vst.msk [vmem:[#allocation6 + $0x10] sm:$0xff] %vm37, 0.0
    %41 = vst.msk [vmem:[#allocation6 + $0x18] sm:$0xff] %vm37, 0.0
    %42 = vst.msk [vmem:[#allocation6 + $0x20] sm:$0xff] %vm37, 0.0
    %43 = vst.msk [vmem:[#allocation6 + $0x28] sm:$0xff] %vm37, 0.0
    %44 = vst.msk [vmem:[#allocation6 + $0x30] sm:$0xff] %vm37, 0.0
    %45 = vst.msk [vmem:[#allocation6 + $0x38] sm:$0xff] %vm37, 0.0
    %46 = vst.msk [vmem:[#allocation6 + $0x40] sm:$0xff] %vm37, 0.0
    %47 = vst.msk [vmem:[#allocation6 + $0x48] sm:$0xff] %vm37, 0.0
    %48 = vst.msk [vmem:[#allocation6 + $0x50] sm:$0xff] %vm37, 0.0
    %49 = vst.msk [vmem:[#allocation6 + $0x58] sm:$0xff] %vm37, 0.0
    %50 = vst.msk [vmem:[#allocation6 + $0x60] sm:$0xff] %vm37, 0.0
    %51 = vst.msk [vmem:[#allocation6 + $0x68] sm:$0xff] %vm37, 0.0
    %52 = vst.msk [vmem:[#allocation6 + $0x70] sm:$0xff] %vm37, 0.0
    %53 = vst.msk [vmem:[#allocation6 + $0x78] sm:$0xff] %vm37, 0.0
    %54 = vst.msk [vmem:[#allocation6 + $0x80] sm:$0xff] %vm37, 0.0
    %55 = vst.msk [vmem:[#allocation6 + $0x88] sm:$0xff] %vm37, 0.0
    %56 = vst.msk [vmem:[#allocation6 + $0x90] sm:$0xff] %vm37, 0.0
    %57 = vst.msk [vmem:[#allocation6 + $0x98] sm:$0xff] %vm37, 0.0
    %58 = vst.msk [vmem:[#allocation6 + $0xa0] sm:$0xff] %vm37, 0.0
    %59 = vst.msk [vmem:[#allocation6 + $0xa8] sm:$0xff] %vm37, 0.0
    %60 = vst.msk [vmem:[#allocation6 + $0xb0] sm:$0xff] %vm37, 0.0
    %61 = vst.msk [vmem:[#allocation6 + $0xb8] sm:$0xff] %vm37, 0.0
    %62 = vst.msk [vmem:[#allocation6 + $0xc0] sm:$0xff] %vm37, 0.0
    %63 = vst.msk [vmem:[#allocation6 + $0xc8] sm:$0xff] %vm37, 0.0
    %64 = vst.msk [vmem:[#allocation6 + $0xd0] sm:$0xff] %vm37, 0.0
    %65 = vst.msk [vmem:[#allocation6 + $0xd8] sm:$0xff] %vm37, 0.0
    %66 = vst.msk [vmem:[#allocation6 + $0xe0] sm:$0xff] %vm37, 0.0
    %67 = vst.msk [vmem:[#allocation6 + $0xe8] sm:$0xff] %vm37, 0.0
    %68 = vst.msk [vmem:[#allocation6 + $0xf0] sm:$0xff] %vm37, 0.0
    %69 = vst.msk [vmem:[#allocation6 + $0xf8] sm:$0xff] %vm37, 0.0
    %70 = vst.msk [vmem:[#allocation6 + $0x100] sm:$0xff] %vm37, 0.0
    %71 = vst.msk [vmem:[#allocation6 + $0x108] sm:$0xff] %vm37, 0.0
    %72 = vst.msk [vmem:[#allocation6 + $0x110] sm:$0xff] %vm37, 0.0
    %73 = vst.msk [vmem:[#allocation6 + $0x118] sm:$0xff] %vm37, 0.0
    %74 = vst.msk [vmem:[#allocation7] sm:$0xff] %vm37, 0.0
    %75 = vst.msk [vmem:[#allocation7 + $0x8] sm:$0xff] %vm37, 0.0
    %76 = vst.msk [vmem:[#allocation7 + $0x10] sm:$0xff] %vm37, 0.0
    %77 = vst.msk [vmem:[#allocation7 + $0x18] sm:$0xff] %vm37, 0.0
    %78 = vst.msk [vmem:[#allocation7 + $0x20] sm:$0xff] %vm37, 0.0
    %79 = vst.msk [vmem:[#allocation7 + $0x28] sm:$0xff] %vm37, 0.0
    %80 = vst.msk [vmem:[#allocation7 + $0x30] sm:$0xff] %vm37, 0.0
    %81 = vst.msk [vmem:[#allocation7 + $0x38] sm:$0xff] %vm37, 0.0
    %82 = vst.msk [vmem:[#allocation7 + $0x40] sm:$0xff] %vm37, 0.0
    %83 = vst.msk [vmem:[#allocation7 + $0x48] sm:$0xff] %vm37, 0.0
    %84 = vst.msk [vmem:[#allocation7 + $0x50] sm:$0xff] %vm37, 0.0
    %85 = vst.msk [vmem:[#allocation7 + $0x58] sm:$0xff] %vm37, 0.0
    %86 = vst.msk [vmem:[#allocation7 + $0x60] sm:$0xff] %vm37, 0.0
    %87 = vst.msk [vmem:[#allocation8] sm:$0xff] %vm37, 0.0
    %88 = vst.msk [vmem:[#allocation8 + $0x8] sm:$0xff] %vm37, 0.0
    %89 = vst.msk [vmem:[#allocation8 + $0x10] sm:$0xff] %vm37, 0.0
    %90 = vst.msk [vmem:[#allocation9] sm:$0xff] %vm37, 0.0
    %91 = vst.msk [vmem:[#allocation9 + $0x8] sm:$0xff] %vm37, 0.0
    %92 = vst [vmem:[#allocation4] sm:$0xff] 0
    %93 = vst [vmem:[#allocation4 + $0x8] sm:$0xff] 0
    %94 = vst [vmem:[#allocation4 + $0x10] sm:$0xff] 0
    %95 = vst [vmem:[#allocation4 + $0x18] sm:$0xff] 0
    %96 = vst [vmem:[#allocation4 + $0x20] sm:$0xff] 0
    %97 = vst [vmem:[#allocation4 + $0x28] sm:$0xff] 0
    %98 = vst [vmem:[#allocation4 + $0x30] sm:$0xff] 0
    %99 = vst [vmem:[#allocation4 + $0x38] sm:$0xff] 0
    %100 = vst [vmem:[#allocation4 + $0x40] sm:$0xff] 0
    %101 = vst [vmem:[#allocation4 + $0x48] sm:$0xff] 0
    %102 = vst [vmem:[#allocation4 + $0x50] sm:$0xff] 0
    %103 = vst [vmem:[#allocation4 + $0x58] sm:$0xff] 0
    %104 = vst [vmem:[#allocation4 + $0x60] sm:$0xff] 0
    %105 = vst [vmem:[#allocation4 + $0x68] sm:$0xff] 0
    %106 = vst [vmem:[#allocation4 + $0x70] sm:$0xff] 0
    %107 = vst [vmem:[#allocation4 + $0x78] sm:$0xff] 0
    %108 = vst [vmem:[#allocation4 + $0x80] sm:$0xff] 0
    %109 = vst [vmem:[#allocation4 + $0x88] sm:$0xff] 0
    %110 = vst [vmem:[#allocation4 + $0x90] sm:$0xff] 0
    %111 = vst [vmem:[#allocation4 + $0x98] sm:$0xff] 0
    %112 = vst [vmem:[#allocation4 + $0xa0] sm:$0xff] 0
    %113 = vst [vmem:[#allocation4 + $0xa8] sm:$0xff] 0
    %114 = vst [vmem:[#allocation4 + $0xb0] sm:$0xff] 0
    %115 = vst [vmem:[#allocation4 + $0xb8] sm:$0xff] 0
    %116 = vst [vmem:[#allocation4 + $0xc0] sm:$0xff] 0
    %117 = vst [vmem:[#allocation4 + $0xc8] sm:$0xff] 0
    %118 = vst [vmem:[#allocation4 + $0xd0] sm:$0xff] 0
    %119 = vst [vmem:[#allocation4 + $0xd8] sm:$0xff] 0
    %120 = vst [vmem:[#allocation4 + $0xe0] sm:$0xff] 0
    %121 = vst [vmem:[#allocation4 + $0xe8] sm:$0xff] 0
    %122 = vst [vmem:[#allocation4 + $0xf0] sm:$0xff] 0
    %123 = vst [vmem:[#allocation4 + $0xf8] sm:$0xff] 0
    %124 = vst [vmem:[#allocation4 + $0x100] sm:$0xff] 0
    %125 = vst [vmem:[#allocation4 + $0x108] sm:$0xff] 0
    %126 = vst [vmem:[#allocation4 + $0x110] sm:$0xff] 0
    %127 = vst [vmem:[#allocation4 + $0x118] sm:$0xff] 0
    %128 = vst [vmem:[#allocation4 + $0x120] sm:$0xff] 0
    %129 = vst [vmem:[#allocation4 + $0x128] sm:$0xff] 0
    %130 = vst [vmem:[#allocation4 + $0x130] sm:$0xff] 0
    %131 = vst [vmem:[#allocation4 + $0x138] sm:$0xff] 0
    %132 = vst [vmem:[#allocation4 + $0x140] sm:$0xff] 0
    %133 = vst [vmem:[#allocation4 + $0x148] sm:$0xff] 0
    %134 = vst [vmem:[#allocation4 + $0x150] sm:$0xff] 0
    %135 = vst [vmem:[#allocation4 + $0x158] sm:$0xff] 0
    %136 = vst [vmem:[#allocation4 + $0x160] sm:$0xff] 0
    %137 = vst [vmem:[#allocation4 + $0x168] sm:$0xff] 0
    %138 = vst [vmem:[#allocation4 + $0x170] sm:$0xff] 0
    %139 = vst [vmem:[#allocation4 + $0x178] sm:$0xff] 0
    %140 = vst [vmem:[#allocation4 + $0x180] sm:$0xff] 0
    %141 = vst [vmem:[#allocation4 + $0x188] sm:$0xff] 0
    %142 = vst [vmem:[#allocation4 + $0x190] sm:$0xff] 0
    %143 = vst [vmem:[#allocation4 + $0x198] sm:$0xff] 0
    %144 = vst [vmem:[#allocation4 + $0x1a0] sm:$0xff] 0
    %145 = vst [vmem:[#allocation4 + $0x1a8] sm:$0xff] 0
    %146 = vst [vmem:[#allocation4 + $0x1b0] sm:$0xff] 0
    %147 = vst [vmem:[#allocation4 + $0x1b8] sm:$0xff] 0
    %148 = vst [vmem:[#allocation4 + $0x1c0] sm:$0xff] 0
    %149 = vst [vmem:[#allocation4 + $0x1c8] sm:$0xff] 0
    %150 = vst [vmem:[#allocation4 + $0x1d0] sm:$0xff] 0
    %151 = vst [vmem:[#allocation5] sm:$0xff] 0.0
    %v152 = vld [vmem:[%s0] sm:$0xf]
    %v153 = vld [vmem:[%s0 + $0x4] sm:$0xf]
    %v154 = vld [vmem:[%s0 + $0x8] sm:$0xf]
    %v155 = vld [vmem:[%s0 + $0xc] sm:$0xf]
    %v156 = vld [vmem:[%s0 + $0x10] sm:$0xf]
    %v157 = vld [vmem:[%s0 + $0x14] sm:$0xf]
    %v158 = vld [vmem:[%s0 + $0x18] sm:$0xf]
    %v159 = vld [vmem:[%s0 + $0x1c] sm:$0xf]
    %v160 = vld [vmem:[%s0 + $0x20] sm:$0xf]
    %v161 = vld [vmem:[%s0 + $0x24] sm:$0xf]
    %v162 = vld [vmem:[%s0 + $0x28] sm:$0xf]
    %v163 = vld [vmem:[%s0 + $0x2c] sm:$0xf]
    %v164 = vld [vmem:[%s0 + $0x30] sm:$0xf]
    %v165 = vld [vmem:[%s0 + $0x34] sm:$0xf]
    %v166 = vld [vmem:[%s0 + $0x38] sm:$0xf]
    %v167 = vld [vmem:[%s0 + $0x3c] sm:$0xf]
    %v168 = vld [vmem:[%s0 + $0x40] sm:$0xf]
    %v169 = vld [vmem:[%s0 + $0x44] sm:$0xf]
    %v170 = vld [vmem:[%s0 + $0x48] sm:$0xf]
    %v171 = vld [vmem:[%s0 + $0x4c] sm:$0xf]
    %v172 = vld [vmem:[%s0 + $0x50] sm:$0xf]
    %v173 = vld [vmem:[%s0 + $0x54] sm:$0xf]
    %v174 = vld [vmem:[%s0 + $0x58] sm:$0xf]
    %v175 = vld [vmem:[%s0 + $0x5c] sm:$0xf]
    %v176 = vld [vmem:[%s0 + $0x60] sm:$0xf]
    %v177 = vld [vmem:[%s0 + $0x64] sm:$0xf]
    %v178 = vld [vmem:[%s0 + $0x68] sm:$0xf]
    %v179 = vld [vmem:[%s0 + $0x6c] sm:$0xf]
    %v180 = vld [vmem:[%s0 + $0x70] sm:$0xf]
    %v181 = vld [vmem:[%s0 + $0x74] sm:$0xf]
    %v182 = vld [vmem:[%s0 + $0x78] sm:$0xf]
    %v183 = vld [vmem:[%s0 + $0x7c] sm:$0xf]
    %v184 = vld [vmem:[%s0 + $0x80] sm:$0xf]
    %v185 = vld [vmem:[%s0 + $0x84] sm:$0xf]
    %v186 = vld [vmem:[%s0 + $0x88] sm:$0xf]
    %v187 = vld [vmem:[%s0 + $0x8c] sm:$0xf]
    %v188 = vld [vmem:[%s0 + $0x90] sm:$0xf]
    %v189 = vld [vmem:[%s0 + $0x94] sm:$0xf]
    %v190 = vld [vmem:[%s0 + $0x98] sm:$0xf]
    %v191 = vld [vmem:[%s0 + $0x9c] sm:$0xf]
    %v192 = vld [vmem:[%s0 + $0xa0] sm:$0xf]
    %v193 = vld [vmem:[%s0 + $0xa4] sm:$0xf]
    %v194 = vld [vmem:[%s0 + $0xa8] sm:$0xf]
    %v195 = vld [vmem:[%s0 + $0xac] sm:$0xf]
    %v196 = vld [vmem:[%s0 + $0xb0] sm:$0xf]
    %v197 = vld [vmem:[%s0 + $0xb4] sm:$0xf]
    %v198 = vld [vmem:[%s0 + $0xb8] sm:$0xf]
    %v199 = vld [vmem:[%s0 + $0xbc] sm:$0xf]
    %v200 = vld [vmem:[%s0 + $0xc0] sm:$0xf]
    %v201 = vld [vmem:[%s0 + $0xc4] sm:$0xf]
    %v202 = vld [vmem:[%s0 + $0xc8] sm:$0xf]
    %v203 = vld [vmem:[%s0 + $0xcc] sm:$0xf]
    %v204 = vld [vmem:[%s0 + $0xd0] sm:$0xf]
    %v205 = vld [vmem:[%s0 + $0xd4] sm:$0xf]
    %v206 = vld [vmem:[%s0 + $0xd8] sm:$0xf]
    %v207 = vld [vmem:[%s0 + $0xdc] sm:$0xf]
    %v208 = vld [vmem:[%s0 + $0xe0] sm:$0xf]
    %v209 = vld [vmem:[%s0 + $0xe4] sm:$0xf]
    %v210 = vld [vmem:[%s0 + $0xe8] sm:$0xf]
    %v211 = vld [vmem:[%s0 + $0xec] sm:$0xf]
    %v212 = vld [vmem:[%s0 + $0xf0] sm:$0xf]
    %v213 = vld [vmem:[%s0 + $0xf4] sm:$0xf]
    %v214 = vld [vmem:[%s0 + $0xf8] sm:$0xf]
    %v215 = vld [vmem:[%s0 + $0xfc] sm:$0xf]
    %v216 = vld [vmem:[%s0 + $0x100] sm:$0xf]
    %v217 = vld [vmem:[%s0 + $0x104] sm:$0xf]
    %v218 = vld [vmem:[%s0 + $0x108] sm:$0xf]
    %v219 = vld [vmem:[%s0 + $0x10c] sm:$0xf]
    %v220 = vld [vmem:[%s0 + $0x110] sm:$0xf]
    %v221 = vld [vmem:[%s0 + $0x114] sm:$0xf]
    %v222 = vld [vmem:[%s0 + $0x118] sm:$0xf]
    %v223 = vld [vmem:[%s0 + $0x11c] sm:$0xf]
    %v224 = vld [vmem:[%s0 + $0x120] sm:$0xf]
    %v225 = vld [vmem:[%s0 + $0x124] sm:$0xf]
    %v226 = vld [vmem:[%s0 + $0x128] sm:$0xf]
    %v227 = vld [vmem:[%s0 + $0x12c] sm:$0xf]
    %v228 = vld [vmem:[%s0 + $0x130] sm:$0xf]
    %v229 = vld [vmem:[%s0 + $0x134] sm:$0xf]
    %v230 = vld [vmem:[%s0 + $0x138] sm:$0xf]
    %v231 = vld [vmem:[%s0 + $0x13c] sm:$0xf]
    %v232 = vld [vmem:[%s0 + $0x140] sm:$0xf]
    %v233 = vld [vmem:[%s0 + $0x144] sm:$0xf]
    %v234 = vld [vmem:[%s0 + $0x148] sm:$0xf]
    %v235 = vld [vmem:[%s0 + $0x14c] sm:$0xf]
    %v236 = vld [vmem:[%s0 + $0x150] sm:$0xf]
    %v237 = vld [vmem:[%s0 + $0x154] sm:$0xf]
    %v238 = vld [vmem:[%s0 + $0x158] sm:$0xf]
    %v239 = vld [vmem:[%s0 + $0x15c] sm:$0xf]
    %v240 = vld [vmem:[%s0 + $0x160] sm:$0xf]
    %v241 = vld [vmem:[%s0 + $0x164] sm:$0xf]
    %v242 = vld [vmem:[%s0 + $0x168] sm:$0xf]
    %v243 = vld [vmem:[%s0 + $0x16c] sm:$0xf]
    %v244 = vld [vmem:[%s0 + $0x170] sm:$0xf]
    %v245 = vld [vmem:[%s0 + $0x174] sm:$0xf]
    %v246 = vld [vmem:[%s0 + $0x178] sm:$0xf]
    %v247 = vld [vmem:[%s0 + $0x17c] sm:$0xf]
    %v248 = vld [vmem:[%s0 + $0x180] sm:$0xf]
    %v249 = vld [vmem:[%s0 + $0x184] sm:$0xf]
    %v250 = vld [vmem:[%s0 + $0x188] sm:$0xf]
    %v251 = vld [vmem:[%s0 + $0x18c] sm:$0xf]
    %v252 = vld [vmem:[%s0 + $0x190] sm:$0xf]
    %v253 = vld [vmem:[%s0 + $0x194] sm:$0xf]
    %v254 = vld [vmem:[%s0 + $0x198] sm:$0xf]
    %v255 = vld [vmem:[%s0 + $0x19c] sm:$0xf]
    %v256 = vld [vmem:[%s0 + $0x1a0] sm:$0xf]
    %v257 = vld [vmem:[%s0 + $0x1a4] sm:$0xf]
    %v258 = vld [vmem:[%s0 + $0x1a8] sm:$0xf]
    %v259 = vld [vmem:[%s0 + $0x1ac] sm:$0xf]
    %v260 = vld [vmem:[%s0 + $0x1b0] sm:$0xf]
    %v261 = vld [vmem:[%s0 + $0x1b4] sm:$0xf]
    %v262 = vld [vmem:[%s0 + $0x1b8] sm:$0xf]
    %v263 = vld [vmem:[%s0 + $0x1bc] sm:$0xf]
    %v264 = vld [vmem:[%s0 + $0x1c0] sm:$0xf]
    %v265 = vld [vmem:[%s0 + $0x1c4] sm:$0xf]
    %v266 = vld [vmem:[%s0 + $0x1c8] sm:$0xf]
    %v267 = vld [vmem:[%s0 + $0x1cc] sm:$0xf]
    %v268 = vld [vmem:[%s0 + $0x1d0] sm:$0xf]
    %v386 = vunpack.c.l.b16 %v152
    %v387 = vunpack.c.l.b16 %v153
    %v388 = vunpack.c.l.b16 %v154
    %v389 = vunpack.c.l.b16 %v155
    %v390 = vunpack.c.l.b16 %v156
    %v391 = vunpack.c.l.b16 %v157
    %v392 = vunpack.c.l.b16 %v158
    %v393 = vunpack.c.l.b16 %v159
    %v394 = vunpack.c.l.b16 %v160
    %v395 = vunpack.c.l.b16 %v161
    %v396 = vunpack.c.l.b16 %v162
    %v397 = vunpack.c.l.b16 %v163
    %v398 = vunpack.c.l.b16 %v164
    %v399 = vunpack.c.l.b16 %v165
    %v400 = vunpack.c.l.b16 %v166
    %v401 = vunpack.c.l.b16 %v167
    %v402 = vunpack.c.l.b16 %v168
    %v403 = vunpack.c.l.b16 %v169
    %v404 = vunpack.c.l.b16 %v170
    %v405 = vunpack.c.l.b16 %v171
    %v406 = vunpack.c.l.b16 %v172
    %v407 = vunpack.c.l.b16 %v173
    %v408 = vunpack.c.l.b16 %v174
    %v409 = vunpack.c.l.b16 %v175
    %v410 = vunpack.c.l.b16 %v176
    %v411 = vunpack.c.l.b16 %v177
    %v412 = vunpack.c.l.b16 %v178
    %v413 = vunpack.c.l.b16 %v179
    %v414 = vunpack.c.l.b16 %v180
    %v415 = vunpack.c.l.b16 %v181
    %v416 = vunpack.c.l.b16 %v182
    %v417 = vunpack.c.l.b16 %v183
    %v418 = vunpack.c.l.b16 %v184
    %v419 = vunpack.c.l.b16 %v185
    %v420 = vunpack.c.l.b16 %v186
    %v421 = vunpack.c.l.b16 %v187
    %v422 = vunpack.c.l.b16 %v188
    %v423 = vunpack.c.l.b16 %v189
    %v424 = vunpack.c.l.b16 %v190
    %v425 = vunpack.c.l.b16 %v191
    %v426 = vunpack.c.l.b16 %v192
    %v427 = vunpack.c.l.b16 %v193
    %v428 = vunpack.c.l.b16 %v194
    %v429 = vunpack.c.l.b16 %v195
    %v430 = vunpack.c.l.b16 %v196
    %v431 = vunpack.c.l.b16 %v197
    %v432 = vunpack.c.l.b16 %v198
    %v433 = vunpack.c.l.b16 %v199
    %v434 = vunpack.c.l.b16 %v200
    %v435 = vunpack.c.l.b16 %v201
    %v436 = vunpack.c.l.b16 %v202
    %v437 = vunpack.c.l.b16 %v203
    %v438 = vunpack.c.l.b16 %v204
    %v439 = vunpack.c.l.b16 %v205
    %v440 = vunpack.c.l.b16 %v206
    %v441 = vunpack.c.l.b16 %v207
    %v442 = vunpack.c.l.b16 %v208
    %v443 = vunpack.c.l.b16 %v209
    %v444 = vunpack.c.l.b16 %v210
    %v445 = vunpack.c.l.b16 %v211
    %v446 = vunpack.c.l.b16 %v212
    %v447 = vunpack.c.l.b16 %v213
    %v448 = vunpack.c.l.b16 %v214
    %v449 = vunpack.c.l.b16 %v215
    %v450 = vunpack.c.l.b16 %v216
    %v451 = vunpack.c.l.b16 %v217
    %v452 = vunpack.c.l.b16 %v218
    %v453 = vunpack.c.l.b16 %v219
    %v454 = vunpack.c.l.b16 %v220
    %v455 = vunpack.c.l.b16 %v221
    %v456 = vunpack.c.l.b16 %v222
    %v457 = vunpack.c.l.b16 %v223
    %v458 = vunpack.c.l.b16 %v224
    %v459 = vunpack.c.l.b16 %v225
    %v460 = vunpack.c.l.b16 %v226
    %v461 = vunpack.c.l.b16 %v227
    %v462 = vunpack.c.l.b16 %v228
    %v463 = vunpack.c.l.b16 %v229
    %v464 = vunpack.c.l.b16 %v230
    %v465 = vunpack.c.l.b16 %v231
    %v466 = vunpack.c.l.b16 %v232
    %v467 = vunpack.c.l.b16 %v233
    %v468 = vunpack.c.l.b16 %v234
    %v469 = vunpack.c.l.b16 %v235
    %v470 = vunpack.c.l.b16 %v236
    %v471 = vunpack.c.l.b16 %v237
    %v472 = vunpack.c.l.b16 %v238
    %v473 = vunpack.c.l.b16 %v239
    %v474 = vunpack.c.l.b16 %v240
    %v475 = vunpack.c.l.b16 %v241
    %v476 = vunpack.c.l.b16 %v242
    %v477 = vunpack.c.l.b16 %v243
    %v478 = vunpack.c.l.b16 %v244
    %v479 = vunpack.c.l.b16 %v245
    %v480 = vunpack.c.l.b16 %v246
    %v481 = vunpack.c.l.b16 %v247
    %v482 = vunpack.c.l.b16 %v248
    %v483 = vunpack.c.l.b16 %v249
    %v484 = vunpack.c.l.b16 %v250
    %v485 = vunpack.c.l.b16 %v251
    %v486 = vunpack.c.l.b16 %v252
    %v487 = vunpack.c.l.b16 %v253
    %v488 = vunpack.c.l.b16 %v254
    %v489 = vunpack.c.l.b16 %v255
    %v490 = vunpack.c.l.b16 %v256
    %v491 = vunpack.c.l.b16 %v257
    %v492 = vunpack.c.l.b16 %v258
    %v493 = vunpack.c.l.b16 %v259
    %v494 = vunpack.c.l.b16 %v260
    %v495 = vunpack.c.l.b16 %v261
    %v496 = vunpack.c.l.b16 %v262
    %v497 = vunpack.c.l.b16 %v263
    %v498 = vunpack.c.l.b16 %v264
    %v499 = vunpack.c.l.b16 %v265
    %v500 = vunpack.c.l.b16 %v266
    %v501 = vunpack.c.l.b16 %v267
    %v502 = vunpack.c.l.b16 %v268
    %v503 = vpack.c.b16 %v387, %v386
    %v504 = vpack.c.b16 %v389, %v388
    %v505 = vpack.c.b16 %v391, %v390
    %v506 = vpack.c.b16 %v393, %v392
    %v507 = vpack.c.b16 %v395, %v394
    %v508 = vpack.c.b16 %v397, %v396
    %v509 = vpack.c.b16 %v399, %v398
    %v510 = vpack.c.b16 %v401, %v400
    %v511 = vpack.c.b16 %v403, %v402
    %v512 = vpack.c.b16 %v405, %v404
    %v513 = vpack.c.b16 %v407, %v406
    %v514 = vpack.c.b16 %v409, %v408
    %v515 = vpack.c.b16 %v411, %v410
    %v516 = vpack.c.b16 %v413, %v412
    %v517 = vpack.c.b16 %v415, %v414
    %v518 = vpack.c.b16 %v417, %v416
    %v519 = vpack.c.b16 %v419, %v418
    %v520 = vpack.c.b16 %v421, %v420
    %v521 = vpack.c.b16 %v423, %v422
    %v522 = vpack.c.b16 %v425, %v424
    %v523 = vpack.c.b16 %v427, %v426
    %v524 = vpack.c.b16 %v429, %v428
    %v525 = vpack.c.b16 %v431, %v430
    %v526 = vpack.c.b16 %v433, %v432
    %v527 = vpack.c.b16 %v435, %v434
    %v528 = vpack.c.b16 %v437, %v436
    %v529 = vpack.c.b16 %v439, %v438
    %v530 = vpack.c.b16 %v441, %v440
    %v531 = vpack.c.b16 %v443, %v442
    %v532 = vpack.c.b16 %v445, %v444
    %v533 = vpack.c.b16 %v447, %v446
    %v534 = vpack.c.b16 %v449, %v448
    %v535 = vpack.c.b16 %v451, %v450
    %v536 = vpack.c.b16 %v453, %v452
    %v537 = vpack.c.b16 %v455, %v454
    %v538 = vpack.c.b16 %v457, %v456
    %v539 = vpack.c.b16 %v459, %v458
    %v540 = vpack.c.b16 %v461, %v460
    %v541 = vpack.c.b16 %v463, %v462
    %v542 = vpack.c.b16 %v465, %v464
    %v543 = vpack.c.b16 %v467, %v466
    %v544 = vpack.c.b16 %v469, %v468
    %v545 = vpack.c.b16 %v471, %v470
    %v546 = vpack.c.b16 %v473, %v472
    %v547 = vpack.c.b16 %v475, %v474
    %v548 = vpack.c.b16 %v477, %v476
    %v549 = vpack.c.b16 %v479, %v478
    %v550 = vpack.c.b16 %v481, %v480
    %v551 = vpack.c.b16 %v483, %v482
    %v552 = vpack.c.b16 %v485, %v484
    %v553 = vpack.c.b16 %v487, %v486
    %v554 = vpack.c.b16 %v489, %v488
    %v555 = vpack.c.b16 %v491, %v490
    %v556 = vpack.c.b16 %v493, %v492
    %v557 = vpack.c.b16 %v495, %v494
    %v558 = vpack.c.b16 %v497, %v496
    %v559 = vpack.c.b16 %v499, %v498
    %v560 = vpack.c.b16 %v501, %v500
    %v561 = vpack.c.b16 %v502, %v502
    %621 = vst.msk [vmem:[#allocation4] sm:$0xff] %vm37, %v503
    %622 = vst.msk [vmem:[#allocation4 + $0x8] sm:$0xff] %vm37, %v504
    %623 = vst.msk [vmem:[#allocation4 + $0x10] sm:$0xff] %vm37, %v505
    %624 = vst.msk [vmem:[#allocation4 + $0x18] sm:$0xff] %vm37, %v506
    %625 = vst.msk [vmem:[#allocation4 + $0x20] sm:$0xff] %vm37, %v507
    %626 = vst.msk [vmem:[#allocation4 + $0x28] sm:$0xff] %vm37, %v508
    %627 = vst.msk [vmem:[#allocation4 + $0x30] sm:$0xff] %vm37, %v509
    %628 = vst.msk [vmem:[#allocation4 + $0x38] sm:$0xff] %vm37, %v510
    %629 = vst.msk [vmem:[#allocation4 + $0x40] sm:$0xff] %vm37, %v511
    %630 = vst.msk [vmem:[#allocation4 + $0x48] sm:$0xff] %vm37, %v512
    %631 = vst.msk [vmem:[#allocation4 + $0x50] sm:$0xff] %vm37, %v513
    %632 = vst.msk [vmem:[#allocation4 + $0x58] sm:$0xff] %vm37, %v514
    %633 = vst.msk [vmem:[#allocation4 + $0x60] sm:$0xff] %vm37, %v515
    %634 = vst.msk [vmem:[#allocation4 + $0x68] sm:$0xff] %vm37, %v516
    %635 = vst.msk [vmem:[#allocation4 + $0x70] sm:$0xff] %vm37, %v517
    %636 = vst.msk [vmem:[#allocation4 + $0x78] sm:$0xff] %vm37, %v518
    %637 = vst.msk [vmem:[#allocation4 + $0x80] sm:$0xff] %vm37, %v519
    %638 = vst.msk [vmem:[#allocation4 + $0x88] sm:$0xff] %vm37, %v520
    %639 = vst.msk [vmem:[#allocation4 + $0x90] sm:$0xff] %vm37, %v521
    %640 = vst.msk [vmem:[#allocation4 + $0x98] sm:$0xff] %vm37, %v522
    %641 = vst.msk [vmem:[#allocation4 + $0xa0] sm:$0xff] %vm37, %v523
    %642 = vst.msk [vmem:[#allocation4 + $0xa8] sm:$0xff] %vm37, %v524
    %643 = vst.msk [vmem:[#allocation4 + $0xb0] sm:$0xff] %vm37, %v525
    %644 = vst.msk [vmem:[#allocation4 + $0xb8] sm:$0xff] %vm37, %v526
    %645 = vst.msk [vmem:[#allocation4 + $0xc0] sm:$0xff] %vm37, %v527
    %646 = vst.msk [vmem:[#allocation4 + $0xc8] sm:$0xff] %vm37, %v528
    %647 = vst.msk [vmem:[#allocation4 + $0xd0] sm:$0xff] %vm37, %v529
    %648 = vst.msk [vmem:[#allocation4 + $0xd8] sm:$0xff] %vm37, %v530
    %649 = vst.msk [vmem:[#allocation4 + $0xe0] sm:$0xff] %vm37, %v531
    %650 = vst.msk [vmem:[#allocation4 + $0xe8] sm:$0xff] %vm37, %v532
    %651 = vst.msk [vmem:[#allocation4 + $0xf0] sm:$0xff] %vm37, %v533
    %652 = vst.msk [vmem:[#allocation4 + $0xf8] sm:$0xff] %vm37, %v534
    %653 = vst.msk [vmem:[#allocation4 + $0x100] sm:$0xff] %vm37, %v535
    %654 = vst.msk [vmem:[#allocation4 + $0x108] sm:$0xff] %vm37, %v536
    %655 = vst.msk [vmem:[#allocation4 + $0x110] sm:$0xff] %vm37, %v537
    %656 = vst.msk [vmem:[#allocation4 + $0x118] sm:$0xff] %vm37, %v538
    %657 = vst.msk [vmem:[#allocation4 + $0x120] sm:$0xff] %vm37, %v539
    %658 = vst.msk [vmem:[#allocation4 + $0x128] sm:$0xff] %vm37, %v540
    %659 = vst.msk [vmem:[#allocation4 + $0x130] sm:$0xff] %vm37, %v541
    %660 = vst.msk [vmem:[#allocation4 + $0x138] sm:$0xff] %vm37, %v542
    %661 = vst.msk [vmem:[#allocation4 + $0x140] sm:$0xff] %vm37, %v543
    %662 = vst.msk [vmem:[#allocation4 + $0x148] sm:$0xff] %vm37, %v544
    %663 = vst.msk [vmem:[#allocation4 + $0x150] sm:$0xff] %vm37, %v545
    %664 = vst.msk [vmem:[#allocation4 + $0x158] sm:$0xff] %vm37, %v546
    %665 = vst.msk [vmem:[#allocation4 + $0x160] sm:$0xff] %vm37, %v547
    %666 = vst.msk [vmem:[#allocation4 + $0x168] sm:$0xff] %vm37, %v548
    %667 = vst.msk [vmem:[#allocation4 + $0x170] sm:$0xff] %vm37, %v549
    %668 = vst.msk [vmem:[#allocation4 + $0x178] sm:$0xff] %vm37, %v550
    %669 = vst.msk [vmem:[#allocation4 + $0x180] sm:$0xff] %vm37, %v551
    %670 = vst.msk [vmem:[#allocation4 + $0x188] sm:$0xff] %vm37, %v552
    %671 = vst.msk [vmem:[#allocation4 + $0x190] sm:$0xff] %vm37, %v553
    %672 = vst.msk [vmem:[#allocation4 + $0x198] sm:$0xff] %vm37, %v554
    %673 = vst.msk [vmem:[#allocation4 + $0x1a0] sm:$0xff] %vm37, %v555
    %674 = vst.msk [vmem:[#allocation4 + $0x1a8] sm:$0xff] %vm37, %v556
    %675 = vst.msk [vmem:[#allocation4 + $0x1b0] sm:$0xff] %vm37, %v557
    %676 = vst.msk [vmem:[#allocation4 + $0x1b8] sm:$0xff] %vm37, %v558
    %677 = vst.msk [vmem:[#allocation4 + $0x1c0] sm:$0xff] %vm37, %v559
    %678 = vst.msk [vmem:[#allocation4 + $0x1c8] sm:$0xff] %vm37, %v560
    %vm679 = vcmask 257024
    %680 = vst.msk [vmem:[#allocation4 + $0x1d0] sm:$0xf] %vm679, %v561
    %v681 = vld [vmem:[%s0] sm:$0xf]
    %v682 = vld [vmem:[%s0 + $0x4] sm:$0xf]
    %v683 = vld [vmem:[%s0 + $0x8] sm:$0xf]
    %v684 = vld [vmem:[%s0 + $0xc] sm:$0xf]
    %v685 = vld [vmem:[%s0 + $0x10] sm:$0xf]
    %v686 = vld [vmem:[%s0 + $0x14] sm:$0xf]
    %v687 = vld [vmem:[%s0 + $0x18] sm:$0xf]
    %v688 = vld [vmem:[%s0 + $0x1c] sm:$0xf]
    %v689 = vld [vmem:[%s0 + $0x20] sm:$0xf]
    %v690 = vld [vmem:[%s0 + $0x24] sm:$0xf]
    %v691 = vld [vmem:[%s0 + $0x28] sm:$0xf]
    %v692 = vld [vmem:[%s0 + $0x2c] sm:$0xf]
    %v693 = vld [vmem:[%s0 + $0x30] sm:$0xf]
    %v694 = vld [vmem:[%s0 + $0x34] sm:$0xf]
    %v695 = vld [vmem:[%s0 + $0x38] sm:$0xf]
    %v696 = vld [vmem:[%s0 + $0x3c] sm:$0xf]
    %v697 = vld [vmem:[%s0 + $0x40] sm:$0xf]
    %v698 = vld [vmem:[%s0 + $0x44] sm:$0xf]
    %v699 = vld [vmem:[%s0 + $0x48] sm:$0xf]
    %v700 = vld [vmem:[%s0 + $0x4c] sm:$0xf]
    %v701 = vld [vmem:[%s0 + $0x50] sm:$0xf]
    %v702 = vld [vmem:[%s0 + $0x54] sm:$0xf]
    %v703 = vld [vmem:[%s0 + $0x58] sm:$0xf]
    %v704 = vld [vmem:[%s0 + $0x5c] sm:$0xf]
    %v705 = vld [vmem:[%s0 + $0x60] sm:$0xf]
    %v706 = vld [vmem:[%s0 + $0x64] sm:$0xf]
    %v707 = vld [vmem:[%s0 + $0x68] sm:$0xf]
    %v708 = vld [vmem:[%s0 + $0x6c] sm:$0xf]
    %v709 = vld [vmem:[%s0 + $0x70] sm:$0xf]
    %v710 = vld [vmem:[%s0 + $0x74] sm:$0xf]
    %v711 = vld [vmem:[%s0 + $0x78] sm:$0xf]
    %v712 = vld [vmem:[%s0 + $0x7c] sm:$0xf]
    %v713 = vld [vmem:[%s0 + $0x80] sm:$0xf]
    %v714 = vld [vmem:[%s0 + $0x84] sm:$0xf]
    %v715 = vld [vmem:[%s0 + $0x88] sm:$0xf]
    %v716 = vld [vmem:[%s0 + $0x8c] sm:$0xf]
    %v717 = vld [vmem:[%s0 + $0x90] sm:$0xf]
    %v718 = vld [vmem:[%s0 + $0x94] sm:$0xf]
    %v719 = vld [vmem:[%s0 + $0x98] sm:$0xf]
    %v720 = vld [vmem:[%s0 + $0x9c] sm:$0xf]
    %v721 = vld [vmem:[%s0 + $0xa0] sm:$0xf]
    %v722 = vld [vmem:[%s0 + $0xa4] sm:$0xf]
    %v723 = vld [vmem:[%s0 + $0xa8] sm:$0xf]
    %v724 = vld [vmem:[%s0 + $0xac] sm:$0xf]
    %v725 = vld [vmem:[%s0 + $0xb0] sm:$0xf]
    %v726 = vld [vmem:[%s0 + $0xb4] sm:$0xf]
    %v727 = vld [vmem:[%s0 + $0xb8] sm:$0xf]
    %v728 = vld [vmem:[%s0 + $0xbc] sm:$0xf]
    %v729 = vld [vmem:[%s0 + $0xc0] sm:$0xf]
    %v730 = vld [vmem:[%s0 + $0xc4] sm:$0xf]
    %v731 = vld [vmem:[%s0 + $0xc8] sm:$0xf]
    %v732 = vld [vmem:[%s0 + $0xcc] sm:$0xf]
    %v733 = vld [vmem:[%s0 + $0xd0] sm:$0xf]
    %v734 = vld [vmem:[%s0 + $0xd4] sm:$0xf]
    %v735 = vld [vmem:[%s0 + $0xd8] sm:$0xf]
    %v736 = vld [vmem:[%s0 + $0xdc] sm:$0xf]
    %v737 = vld [vmem:[%s0 + $0xe0] sm:$0xf]
    %v738 = vld [vmem:[%s0 + $0xe4] sm:$0xf]
    %v739 = vld [vmem:[%s0 + $0xe8] sm:$0xf]
    %v740 = vld [vmem:[%s0 + $0xec] sm:$0xf]
    %v741 = vld [vmem:[%s0 + $0xf0] sm:$0xf]
    %v742 = vld [vmem:[%s0 + $0xf4] sm:$0xf]
    %v743 = vld [vmem:[%s0 + $0xf8] sm:$0xf]
    %v744 = vld [vmem:[%s0 + $0xfc] sm:$0xf]
    %v745 = vld [vmem:[%s0 + $0x100] sm:$0xf]
    %v746 = vld [vmem:[%s0 + $0x104] sm:$0xf]
    %v747 = vld [vmem:[%s0 + $0x108] sm:$0xf]
    %v748 = vld [vmem:[%s0 + $0x10c] sm:$0xf]
    %v749 = vld [vmem:[%s0 + $0x110] sm:$0xf]
    %v750 = vld [vmem:[%s0 + $0x114] sm:$0xf]
    %v751 = vld [vmem:[%s0 + $0x118] sm:$0xf]
    %v752 = vld [vmem:[%s0 + $0x11c] sm:$0xf]
    %v753 = vld [vmem:[%s0 + $0x120] sm:$0xf]
    %v754 = vld [vmem:[%s0 + $0x124] sm:$0xf]
    %v755 = vld [vmem:[%s0 + $0x128] sm:$0xf]
    %v756 = vld [vmem:[%s0 + $0x12c] sm:$0xf]
    %v757 = vld [vmem:[%s0 + $0x130] sm:$0xf]
    %v758 = vld [vmem:[%s0 + $0x134] sm:$0xf]
    %v759 = vld [vmem:[%s0 + $0x138] sm:$0xf]
    %v760 = vld [vmem:[%s0 + $0x13c] sm:$0xf]
    %v761 = vld [vmem:[%s0 + $0x140] sm:$0xf]
    %v762 = vld [vmem:[%s0 + $0x144] sm:$0xf]
    %v763 = vld [vmem:[%s0 + $0x148] sm:$0xf]
    %v764 = vld [vmem:[%s0 + $0x14c] sm:$0xf]
    %v765 = vld [vmem:[%s0 + $0x150] sm:$0xf]
    %v766 = vld [vmem:[%s0 + $0x154] sm:$0xf]
    %v767 = vld [vmem:[%s0 + $0x158] sm:$0xf]
    %v768 = vld [vmem:[%s0 + $0x15c] sm:$0xf]
    %v769 = vld [vmem:[%s0 + $0x160] sm:$0xf]
    %v770 = vld [vmem:[%s0 + $0x164] sm:$0xf]
    %v771 = vld [vmem:[%s0 + $0x168] sm:$0xf]
    %v772 = vld [vmem:[%s0 + $0x16c] sm:$0xf]
    %v773 = vld [vmem:[%s0 + $0x170] sm:$0xf]
    %v774 = vld [vmem:[%s0 + $0x174] sm:$0xf]
    %v775 = vld [vmem:[%s0 + $0x178] sm:$0xf]
    %v776 = vld [vmem:[%s0 + $0x17c] sm:$0xf]
    %v777 = vld [vmem:[%s0 + $0x180] sm:$0xf]
    %v778 = vld [vmem:[%s0 + $0x184] sm:$0xf]
    %v779 = vld [vmem:[%s0 + $0x188] sm:$0xf]
    %v780 = vld [vmem:[%s0 + $0x18c] sm:$0xf]
    %v781 = vld [vmem:[%s0 + $0x190] sm:$0xf]
    %v782 = vld [vmem:[%s0 + $0x194] sm:$0xf]
    %v783 = vld [vmem:[%s0 + $0x198] sm:$0xf]
    %v784 = vld [vmem:[%s0 + $0x19c] sm:$0xf]
    %v785 = vld [vmem:[%s0 + $0x1a0] sm:$0xf]
    %v786 = vld [vmem:[%s0 + $0x1a4] sm:$0xf]
    %v787 = vld [vmem:[%s0 + $0x1a8] sm:$0xf]
    %v788 = vld [vmem:[%s0 + $0x1ac] sm:$0xf]
    %v789 = vld [vmem:[%s0 + $0x1b0] sm:$0xf]
    %v790 = vld [vmem:[%s0 + $0x1b4] sm:$0xf]
    %v791 = vld [vmem:[%s0 + $0x1b8] sm:$0xf]
    %v792 = vld [vmem:[%s0 + $0x1bc] sm:$0xf]
    %v793 = vld [vmem:[%s0 + $0x1c0] sm:$0xf]
    %v794 = vld [vmem:[%s0 + $0x1c4] sm:$0xf]
    %v795 = vld [vmem:[%s0 + $0x1c8] sm:$0xf]
    %v796 = vld [vmem:[%s0 + $0x1cc] sm:$0xf]
    %v797 = vld [vmem:[%s0 + $0x1d0] sm:$0xf]
    %v798 = vld [vmem:[%s0 + $0x1d4] sm:$0x1]
    %v917 = vunpack.c.l.b16 %v681
    %v918 = vunpack.c.l.b16 %v682
    %v919 = vunpack.c.l.b16 %v683
    %v920 = vunpack.c.l.b16 %v684
    %v921 = vunpack.c.l.b16 %v685
    %v922 = vunpack.c.l.b16 %v686
    %v923 = vunpack.c.l.b16 %v687
    %v924 = vunpack.c.l.b16 %v688
    %v925 = vunpack.c.l.b16 %v689
    %v926 = vunpack.c.l.b16 %v690
    %v927 = vunpack.c.l.b16 %v691
    %v928 = vunpack.c.l.b16 %v692
    %v929 = vunpack.c.l.b16 %v693
    %v930 = vunpack.c.l.b16 %v694
    %v931 = vunpack.c.l.b16 %v695
    %v932 = vunpack.c.l.b16 %v696
    %v933 = vunpack.c.l.b16 %v697
    %v934 = vunpack.c.l.b16 %v698
    %v935 = vunpack.c.l.b16 %v699
    %v936 = vunpack.c.l.b16 %v700
    %v937 = vunpack.c.l.b16 %v701
    %v938 = vunpack.c.l.b16 %v702
    %v939 = vunpack.c.l.b16 %v703
    %v940 = vunpack.c.l.b16 %v704
    %v941 = vunpack.c.l.b16 %v705
    %v942 = vunpack.c.l.b16 %v706
    %v943 = vunpack.c.l.b16 %v707
    %v944 = vunpack.c.l.b16 %v708
    %v945 = vunpack.c.l.b16 %v709
    %v946 = vunpack.c.l.b16 %v710
    %v947 = vunpack.c.l.b16 %v711
    %v948 = vunpack.c.l.b16 %v712
    %v949 = vunpack.c.l.b16 %v713
    %v950 = vunpack.c.l.b16 %v714
    %v951 = vunpack.c.l.b16 %v715
    %v952 = vunpack.c.l.b16 %v716
    %v953 = vunpack.c.l.b16 %v717
    %v954 = vunpack.c.l.b16 %v718
    %v955 = vunpack.c.l.b16 %v719
    %v956 = vunpack.c.l.b16 %v720
    %v957 = vunpack.c.l.b16 %v721
    %v958 = vunpack.c.l.b16 %v722
    %v959 = vunpack.c.l.b16 %v723
    %v960 = vunpack.c.l.b16 %v724
    %v961 = vunpack.c.l.b16 %v725
    %v962 = vunpack.c.l.b16 %v726
    %v963 = vunpack.c.l.b16 %v727
    %v964 = vunpack.c.l.b16 %v728
    %v965 = vunpack.c.l.b16 %v729
    %v966 = vunpack.c.l.b16 %v730
    %v967 = vunpack.c.l.b16 %v731
    %v968 = vunpack.c.l.b16 %v732
    %v969 = vunpack.c.l.b16 %v733
    %v970 = vunpack.c.l.b16 %v734
    %v971 = vunpack.c.l.b16 %v735
    %v972 = vunpack.c.l.b16 %v736
    %v973 = vunpack.c.l.b16 %v737
    %v974 = vunpack.c.l.b16 %v738
    %v975 = vunpack.c.l.b16 %v739
    %v976 = vunpack.c.l.b16 %v740
    %v977 = vunpack.c.l.b16 %v741
    %v978 = vunpack.c.l.b16 %v742
    %v979 = vunpack.c.l.b16 %v743
    %v980 = vunpack.c.l.b16 %v744
    %v981 = vunpack.c.l.b16 %v745
    %v982 = vunpack.c.l.b16 %v746
    %v983 = vunpack.c.l.b16 %v747
    %v984 = vunpack.c.l.b16 %v748
    %v985 = vunpack.c.l.b16 %v749
    %v986 = vunpack.c.l.b16 %v750
    %v987 = vunpack.c.l.b16 %v751
    %v988 = vunpack.c.l.b16 %v752
    %v989 = vunpack.c.l.b16 %v753
    %v990 = vunpack.c.l.b16 %v754
    %v991 = vunpack.c.l.b16 %v755
    %v992 = vunpack.c.l.b16 %v756
    %v993 = vunpack.c.l.b16 %v757
    %v994 = vunpack.c.l.b16 %v758
    %v995 = vunpack.c.l.b16 %v759
    %v996 = vunpack.c.l.b16 %v760
    %v997 = vunpack.c.l.b16 %v761
    %v998 = vunpack.c.l.b16 %v762
    %v999 = vunpack.c.l.b16 %v763
    %v1000 = vunpack.c.l.b16 %v764
    %v1001 = vunpack.c.l.b16 %v765
    %v1002 = vunpack.c.l.b16 %v766
    %v1003 = vunpack.c.l.b16 %v767
    %v1004 = vunpack.c.l.b16 %v768
    %v1005 = vunpack.c.l.b16 %v769
    %v1006 = vunpack.c.l.b16 %v770
    %v1007 = vunpack.c.l.b16 %v771
    %v1008 = vunpack.c.l.b16 %v772
    %v1009 = vunpack.c.l.b16 %v773
    %v1010 = vunpack.c.l.b16 %v774
    %v1011 = vunpack.c.l.b16 %v775
    %v1012 = vunpack.c.l.b16 %v776
    %v1013 = vunpack.c.l.b16 %v777
    %v1014 = vunpack.c.l.b16 %v778
    %v1015 = vunpack.c.l.b16 %v779
    %v1016 = vunpack.c.l.b16 %v780
    %v1017 = vunpack.c.l.b16 %v781
    %v1018 = vunpack.c.l.b16 %v782
    %v1019 = vunpack.c.l.b16 %v783
    %v1020 = vunpack.c.l.b16 %v784
    %v1021 = vunpack.c.l.b16 %v785
    %v1022 = vunpack.c.l.b16 %v786
    %v1023 = vunpack.c.l.b16 %v787
    %v1024 = vunpack.c.l.b16 %v788
    %v1025 = vunpack.c.l.b16 %v789
    %v1026 = vunpack.c.l.b16 %v790
    %v1027 = vunpack.c.l.b16 %v791
    %v1028 = vunpack.c.l.b16 %v792
    %v1029 = vunpack.c.l.b16 %v793
    %v1030 = vunpack.c.l.b16 %v794
    %v1031 = vunpack.c.l.b16 %v795
    %v1032 = vunpack.c.l.b16 %v796
    %v1033 = vunpack.c.l.b16 %v797
    %v1034 = vunpack.c.l.b16 %v798
    %v1035 = vpack.c.b16 %v918, %v917
    %v1036 = vpack.c.b16 %v920, %v919
    %v1037 = vpack.c.b16 %v922, %v921
    %v1038 = vpack.c.b16 %v924, %v923
    %v1039 = vpack.c.b16 %v926, %v925
    %v1040 = vpack.c.b16 %v928, %v927
    %v1041 = vpack.c.b16 %v930, %v929
    %v1042 = vpack.c.b16 %v932, %v931
    %v1043 = vpack.c.b16 %v934, %v933
    %v1044 = vpack.c.b16 %v936, %v935
    %v1045 = vpack.c.b16 %v938, %v937
    %v1046 = vpack.c.b16 %v940, %v939
    %v1047 = vpack.c.b16 %v942, %v941
    %v1048 = vpack.c.b16 %v944, %v943
    %v1049 = vpack.c.b16 %v946, %v945
    %v1050 = vpack.c.b16 %v948, %v947
    %v1051 = vpack.c.b16 %v950, %v949
    %v1052 = vpack.c.b16 %v952, %v951
    %v1053 = vpack.c.b16 %v954, %v953
    %v1054 = vpack.c.b16 %v956, %v955
    %v1055 = vpack.c.b16 %v958, %v957
    %v1056 = vpack.c.b16 %v960, %v959
    %v1057 = vpack.c.b16 %v962, %v961
    %v1058 = vpack.c.b16 %v964, %v963
    %v1059 = vpack.c.b16 %v966, %v965
    %v1060 = vpack.c.b16 %v968, %v967
    %v1061 = vpack.c.b16 %v970, %v969
    %v1062 = vpack.c.b16 %v972, %v971
    %v1063 = vpack.c.b16 %v974, %v973
    %v1064 = vpack.c.b16 %v976, %v975
    %v1065 = vpack.c.b16 %v978, %v977
    %v1066 = vpack.c.b16 %v980, %v979
    %v1067 = vpack.c.b16 %v982, %v981
    %v1068 = vpack.c.b16 %v984, %v983
    %v1069 = vpack.c.b16 %v986, %v985
    %v1070 = vpack.c.b16 %v988, %v987
    %v1071 = vpack.c.b16 %v990, %v989
    %v1072 = vpack.c.b16 %v992, %v991
    %v1073 = vpack.c.b16 %v994, %v993
    %v1074 = vpack.c.b16 %v996, %v995
    %v1075 = vpack.c.b16 %v998, %v997
    %v1076 = vpack.c.b16 %v1000, %v999
    %v1077 = vpack.c.b16 %v1002, %v1001
    %v1078 = vpack.c.b16 %v1004, %v1003
    %v1079 = vpack.c.b16 %v1006, %v1005
    %v1080 = vpack.c.b16 %v1008, %v1007
    %v1081 = vpack.c.b16 %v1010, %v1009
    %v1082 = vpack.c.b16 %v1012, %v1011
    %v1083 = vpack.c.b16 %v1014, %v1013
    %v1084 = vpack.c.b16 %v1016, %v1015
    %v1085 = vpack.c.b16 %v1018, %v1017
    %v1086 = vpack.c.b16 %v1020, %v1019
    %v1087 = vpack.c.b16 %v1022, %v1021
    %v1088 = vpack.c.b16 %v1024, %v1023
    %v1089 = vpack.c.b16 %v1026, %v1025
    %v1090 = vpack.c.b16 %v1028, %v1027
    %v1091 = vpack.c.b16 %v1030, %v1029
    %v1092 = vpack.c.b16 %v1032, %v1031
    %v1093 = vpack.c.b16 %v1034, %v1033
    %vm1094 = vsmask.f32 7424
    %v1096 = vshrl.u32 %v1035, 16
    %v1098 = vshll.u32 %v1035, 16
    %v1100 = vrot.slane %v1098, 1
    %v1101 = vor.u32 %v1096, %v1100
    %v1103 = vshll.u32 %v1036, 16
    %v1105 = vrot.slane %v1103, 1
    %v1106 = vsel %vm1094, %v1101, %v1105
    %v1107 = vshrl.u32 %v1036, 16
    %v1109 = vor.u32 %v1107, %v1105
    %v1111 = vshll.u32 %v1037, 16
    %v1113 = vrot.slane %v1111, 1
    %v1114 = vsel %vm1094, %v1109, %v1113
    %v1115 = vshrl.u32 %v1037, 16
    %v1117 = vor.u32 %v1115, %v1113
    %v1119 = vshll.u32 %v1038, 16
    %v1121 = vrot.slane %v1119, 1
    %v1122 = vsel %vm1094, %v1117, %v1121
    %v1123 = vshrl.u32 %v1038, 16
    %v1125 = vor.u32 %v1123, %v1121
    %v1127 = vshll.u32 %v1039, 16
    %v1129 = vrot.slane %v1127, 1
    %v1130 = vsel %vm1094, %v1125, %v1129
    %v1131 = vshrl.u32 %v1039, 16
    %v1133 = vor.u32 %v1131, %v1129
    %v1135 = vshll.u32 %v1040, 16
    %v1137 = vrot.slane %v1135, 1
    %v1138 = vsel %vm1094, %v1133, %v1137
    %v1139 = vshrl.u32 %v1040, 16
    %v1141 = vor.u32 %v1139, %v1137
    %v1143 = vshll.u32 %v1041, 16
    %v1145 = vrot.slane %v1143, 1
    %v1146 = vsel %vm1094, %v1141, %v1145
    %v1147 = vshrl.u32 %v1041, 16
    %v1149 = vor.u32 %v1147, %v1145
    %v1151 = vshll.u32 %v1042, 16
    %v1153 = vrot.slane %v1151, 1
    %v1154 = vsel %vm1094, %v1149, %v1153
    %v1155 = vshrl.u32 %v1042, 16
    %v1157 = vor.u32 %v1155, %v1153
    %v1159 = vshll.u32 %v1043, 16
    %v1161 = vrot.slane %v1159, 1
    %v1162 = vsel %vm1094, %v1157, %v1161
    %v1163 = vshrl.u32 %v1043, 16
    %v1165 = vor.u32 %v1163, %v1161
    %v1167 = vshll.u32 %v1044, 16
    %v1169 = vrot.slane %v1167, 1
    %v1170 = vsel %vm1094, %v1165, %v1169
    %v1171 = vshrl.u32 %v1044, 16
    %v1173 = vor.u32 %v1171, %v1169
    %v1175 = vshll.u32 %v1045, 16
    %v1177 = vrot.slane %v1175, 1
    %v1178 = vsel %vm1094, %v1173, %v1177
    %v1179 = vshrl.u32 %v1045, 16
    %v1181 = vor.u32 %v1179, %v1177
    %v1183 = vshll.u32 %v1046, 16
    %v1185 = vrot.slane %v1183, 1
    %v1186 = vsel %vm1094, %v1181, %v1185
    %v1187 = vshrl.u32 %v1046, 16
    %v1189 = vor.u32 %v1187, %v1185
    %v1191 = vshll.u32 %v1047, 16
    %v1193 = vrot.slane %v1191, 1
    %v1194 = vsel %vm1094, %v1189, %v1193
    %v1195 = vshrl.u32 %v1047, 16
    %v1197 = vor.u32 %v1195, %v1193
    %v1199 = vshll.u32 %v1048, 16
    %v1201 = vrot.slane %v1199, 1
    %v1202 = vsel %vm1094, %v1197, %v1201
    %v1203 = vshrl.u32 %v1048, 16
    %v1205 = vor.u32 %v1203, %v1201
    %v1207 = vshll.u32 %v1049, 16
    %v1209 = vrot.slane %v1207, 1
    %v1210 = vsel %vm1094, %v1205, %v1209
    %v1211 = vshrl.u32 %v1049, 16
    %v1213 = vor.u32 %v1211, %v1209
    %v1215 = vshll.u32 %v1050, 16
    %v1217 = vrot.slane %v1215, 1
    %v1218 = vsel %vm1094, %v1213, %v1217
    %v1219 = vshrl.u32 %v1050, 16
    %v1221 = vor.u32 %v1219, %v1217
    %v1223 = vshll.u32 %v1051, 16
    %v1225 = vrot.slane %v1223, 1
    %v1226 = vsel %vm1094, %v1221, %v1225
    %v1227 = vshrl.u32 %v1051, 16
    %v1229 = vor.u32 %v1227, %v1225
    %v1231 = vshll.u32 %v1052, 16
    %v1233 = vrot.slane %v1231, 1
    %v1234 = vsel %vm1094, %v1229, %v1233
    %v1235 = vshrl.u32 %v1052, 16
    %v1237 = vor.u32 %v1235, %v1233
    %v1239 = vshll.u32 %v1053, 16
    %v1241 = vrot.slane %v1239, 1
    %v1242 = vsel %vm1094, %v1237, %v1241
    %v1243 = vshrl.u32 %v1053, 16
    %v1245 = vor.u32 %v1243, %v1241
    %v1247 = vshll.u32 %v1054, 16
    %v1249 = vrot.slane %v1247, 1
    %v1250 = vsel %vm1094, %v1245, %v1249
    %v1251 = vshrl.u32 %v1054, 16
    %v1253 = vor.u32 %v1251, %v1249
    %v1255 = vshll.u32 %v1055, 16
    %v1257 = vrot.slane %v1255, 1
    %v1258 = vsel %vm1094, %v1253, %v1257
    %v1259 = vshrl.u32 %v1055, 16
    %v1261 = vor.u32 %v1259, %v1257
    %v1263 = vshll.u32 %v1056, 16
    %v1265 = vrot.slane %v1263, 1
    %v1266 = vsel %vm1094, %v1261, %v1265
    %v1267 = vshrl.u32 %v1056, 16
    %v1269 = vor.u32 %v1267, %v1265
    %v1271 = vshll.u32 %v1057, 16
    %v1273 = vrot.slane %v1271, 1
    %v1274 = vsel %vm1094, %v1269, %v1273
    %v1275 = vshrl.u32 %v1057, 16
    %v1277 = vor.u32 %v1275, %v1273
    %v1279 = vshll.u32 %v1058, 16
    %v1281 = vrot.slane %v1279, 1
    %v1282 = vsel %vm1094, %v1277, %v1281
    %v1283 = vshrl.u32 %v1058, 16
    %v1285 = vor.u32 %v1283, %v1281
    %v1287 = vshll.u32 %v1059, 16
    %v1289 = vrot.slane %v1287, 1
    %v1290 = vsel %vm1094, %v1285, %v1289
    %v1291 = vshrl.u32 %v1059, 16
    %v1293 = vor.u32 %v1291, %v1289
    %v1295 = vshll.u32 %v1060, 16
    %v1297 = vrot.slane %v1295, 1
    %v1298 = vsel %vm1094, %v1293, %v1297
    %v1299 = vshrl.u32 %v1060, 16
    %v1301 = vor.u32 %v1299, %v1297
    %v1303 = vshll.u32 %v1061, 16
    %v1305 = vrot.slane %v1303, 1
    %v1306 = vsel %vm1094, %v1301, %v1305
    %v1307 = vshrl.u32 %v1061, 16
    %v1309 = vor.u32 %v1307, %v1305
    %v1311 = vshll.u32 %v1062, 16
    %v1313 = vrot.slane %v1311, 1
    %v1314 = vsel %vm1094, %v1309, %v1313
    %v1315 = vshrl.u32 %v1062, 16
    %v1317 = vor.u32 %v1315, %v1313
    %v1319 = vshll.u32 %v1063, 16
    %v1321 = vrot.slane %v1319, 1
    %v1322 = vsel %vm1094, %v1317, %v1321
    %v1323 = vshrl.u32 %v1063, 16
    %v1325 = vor.u32 %v1323, %v1321
    %v1327 = vshll.u32 %v1064, 16
    %v1329 = vrot.slane %v1327, 1
    %v1330 = vsel %vm1094, %v1325, %v1329
    %v1331 = vshrl.u32 %v1064, 16
    %v1333 = vor.u32 %v1331, %v1329
    %v1335 = vshll.u32 %v1065, 16
    %v1337 = vrot.slane %v1335, 1
    %v1338 = vsel %vm1094, %v1333, %v1337
    %v1339 = vshrl.u32 %v1065, 16
    %v1341 = vor.u32 %v1339, %v1337
    %v1343 = vshll.u32 %v1066, 16
    %v1345 = vrot.slane %v1343, 1
    %v1346 = vsel %vm1094, %v1341, %v1345
    %v1347 = vshrl.u32 %v1066, 16
    %v1349 = vor.u32 %v1347, %v1345
    %v1351 = vshll.u32 %v1067, 16
    %v1353 = vrot.slane %v1351, 1
    %v1354 = vsel %vm1094, %v1349, %v1353
    %v1355 = vshrl.u32 %v1067, 16
    %v1357 = vor.u32 %v1355, %v1353
    %v1359 = vshll.u32 %v1068, 16
    %v1361 = vrot.slane %v1359, 1
    %v1362 = vsel %vm1094, %v1357, %v1361
    %v1363 = vshrl.u32 %v1068, 16
    %v1365 = vor.u32 %v1363, %v1361
    %v1367 = vshll.u32 %v1069, 16
    %v1369 = vrot.slane %v1367, 1
    %v1370 = vsel %vm1094, %v1365, %v1369
    %v1371 = vshrl.u32 %v1069, 16
    %v1373 = vor.u32 %v1371, %v1369
    %v1375 = vshll.u32 %v1070, 16
    %v1377 = vrot.slane %v1375, 1
    %v1378 = vsel %vm1094, %v1373, %v1377
    %v1379 = vshrl.u32 %v1070, 16
    %v1381 = vor.u32 %v1379, %v1377
    %v1383 = vshll.u32 %v1071, 16
    %v1385 = vrot.slane %v1383, 1
    %v1386 = vsel %vm1094, %v1381, %v1385
    %v1387 = vshrl.u32 %v1071, 16
    %v1389 = vor.u32 %v1387, %v1385
    %v1391 = vshll.u32 %v1072, 16
    %v1393 = vrot.slane %v1391, 1
    %v1394 = vsel %vm1094, %v1389, %v1393
    %v1395 = vshrl.u32 %v1072, 16
    %v1397 = vor.u32 %v1395, %v1393
    %v1399 = vshll.u32 %v1073, 16
    %v1401 = vrot.slane %v1399, 1
    %v1402 = vsel %vm1094, %v1397, %v1401
    %v1403 = vshrl.u32 %v1073, 16
    %v1405 = vor.u32 %v1403, %v1401
    %v1407 = vshll.u32 %v1074, 16
    %v1409 = vrot.slane %v1407, 1
    %v1410 = vsel %vm1094, %v1405, %v1409
    %v1411 = vshrl.u32 %v1074, 16
    %v1413 = vor.u32 %v1411, %v1409
    %v1415 = vshll.u32 %v1075, 16
    %v1417 = vrot.slane %v1415, 1
    %v1418 = vsel %vm1094, %v1413, %v1417
    %v1419 = vshrl.u32 %v1075, 16
    %v1421 = vor.u32 %v1419, %v1417
    %v1423 = vshll.u32 %v1076, 16
    %v1425 = vrot.slane %v1423, 1
    %v1426 = vsel %vm1094, %v1421, %v1425
    %v1427 = vshrl.u32 %v1076, 16
    %v1429 = vor.u32 %v1427, %v1425
    %v1431 = vshll.u32 %v1077, 16
    %v1433 = vrot.slane %v1431, 1
    %v1434 = vsel %vm1094, %v1429, %v1433
    %v1435 = vshrl.u32 %v1077, 16
    %v1437 = vor.u32 %v1435, %v1433
    %v1439 = vshll.u32 %v1078, 16
    %v1441 = vrot.slane %v1439, 1
    %v1442 = vsel %vm1094, %v1437, %v1441
    %v1443 = vshrl.u32 %v1078, 16
    %v1445 = vor.u32 %v1443, %v1441
    %v1447 = vshll.u32 %v1079, 16
    %v1449 = vrot.slane %v1447, 1
    %v1450 = vsel %vm1094, %v1445, %v1449
    %v1451 = vshrl.u32 %v1079, 16
    %v1453 = vor.u32 %v1451, %v1449
    %v1455 = vshll.u32 %v1080, 16
    %v1457 = vrot.slane %v1455, 1
    %v1458 = vsel %vm1094, %v1453, %v1457
    %v1459 = vshrl.u32 %v1080, 16
    %v1461 = vor.u32 %v1459, %v1457
    %v1463 = vshll.u32 %v1081, 16
    %v1465 = vrot.slane %v1463, 1
    %v1466 = vsel %vm1094, %v1461, %v1465
    %v1467 = vshrl.u32 %v1081, 16
    %v1469 = vor.u32 %v1467, %v1465
    %v1471 = vshll.u32 %v1082, 16
    %v1473 = vrot.slane %v1471, 1
    %v1474 = vsel %vm1094, %v1469, %v1473
    %v1475 = vshrl.u32 %v1082, 16
    %v1477 = vor.u32 %v1475, %v1473
    %v1479 = vshll.u32 %v1083, 16
    %v1481 = vrot.slane %v1479, 1
    %v1482 = vsel %vm1094, %v1477, %v1481
    %v1483 = vshrl.u32 %v1083, 16
    %v1485 = vor.u32 %v1483, %v1481
    %v1487 = vshll.u32 %v1084, 16
    %v1489 = vrot.slane %v1487, 1
    %v1490 = vsel %vm1094, %v1485, %v1489
    %v1491 = vshrl.u32 %v1084, 16
    %v1493 = vor.u32 %v1491, %v1489
    %v1495 = vshll.u32 %v1085, 16
    %v1497 = vrot.slane %v1495, 1
    %v1498 = vsel %vm1094, %v1493, %v1497
    %v1499 = vshrl.u32 %v1085, 16
    %v1501 = vor.u32 %v1499, %v1497
    %v1503 = vshll.u32 %v1086, 16
    %v1505 = vrot.slane %v1503, 1
    %v1506 = vsel %vm1094, %v1501, %v1505
    %v1507 = vshrl.u32 %v1086, 16
    %v1509 = vor.u32 %v1507, %v1505
    %v1511 = vshll.u32 %v1087, 16
    %v1513 = vrot.slane %v1511, 1
    %v1514 = vsel %vm1094, %v1509, %v1513
    %v1515 = vshrl.u32 %v1087, 16
    %v1517 = vor.u32 %v1515, %v1513
    %v1519 = vshll.u32 %v1088, 16
    %v1521 = vrot.slane %v1519, 1
    %v1522 = vsel %vm1094, %v1517, %v1521
    %v1523 = vshrl.u32 %v1088, 16
    %v1525 = vor.u32 %v1523, %v1521
    %v1527 = vshll.u32 %v1089, 16
    %v1529 = vrot.slane %v1527, 1
    %v1530 = vsel %vm1094, %v1525, %v1529
    %v1531 = vshrl.u32 %v1089, 16
    %v1533 = vor.u32 %v1531, %v1529
    %v1535 = vshll.u32 %v1090, 16
    %v1537 = vrot.slane %v1535, 1
    %v1538 = vsel %vm1094, %v1533, %v1537
    %v1539 = vshrl.u32 %v1090, 16
    %v1541 = vor.u32 %v1539, %v1537
    %v1543 = vshll.u32 %v1091, 16
    %v1545 = vrot.slane %v1543, 1
    %v1546 = vsel %vm1094, %v1541, %v1545
    %v1547 = vshrl.u32 %v1091, 16
    %v1549 = vor.u32 %v1547, %v1545
    %v1551 = vshll.u32 %v1092, 16
    %v1553 = vrot.slane %v1551, 1
    %v1554 = vsel %vm1094, %v1549, %v1553
    %v1555 = vshrl.u32 %v1092, 16
    %v1557 = vor.u32 %v1555, %v1553
    %v1559 = vshll.u32 %v1093, 16
    %v1561 = vrot.slane %v1559, 1
    %v1562 = vsel %vm1094, %v1557, %v1561
    %v1563 = vshrl.u32 %v1093, 16
    %v1565 = vor.u32 %v1563, %v1561
    %1566 = vrot.lane.b32.xlu0 %v1106, 32
    %v1567 = vpop.permute.xlu0 %1566
    %1568 = vrot.lane.b32.xlu0 %v1114, 32
    %v1569 = vpop.permute.xlu0 %1568
    %1570 = vrot.lane.b32.xlu0 %v1122, 32
    %v1571 = vpop.permute.xlu0 %1570
    %1572 = vrot.lane.b32.xlu0 %v1130, 32
    %v1573 = vpop.permute.xlu0 %1572
    %1574 = vrot.lane.b32.xlu0 %v1138, 32
    %v1575 = vpop.permute.xlu0 %1574
    %1576 = vrot.lane.b32.xlu0 %v1146, 32
    %v1577 = vpop.permute.xlu0 %1576
    %1578 = vrot.lane.b32.xlu0 %v1154, 32
    %v1579 = vpop.permute.xlu0 %1578
    %1580 = vrot.lane.b32.xlu0 %v1162, 32
    %v1581 = vpop.permute.xlu0 %1580
    %1582 = vrot.lane.b32.xlu0 %v1170, 32
    %v1583 = vpop.permute.xlu0 %1582
    %1584 = vrot.lane.b32.xlu0 %v1178, 32
    %v1585 = vpop.permute.xlu0 %1584
    %1586 = vrot.lane.b32.xlu0 %v1186, 32
    %v1587 = vpop.permute.xlu0 %1586
    %1588 = vrot.lane.b32.xlu0 %v1194, 32
    %v1589 = vpop.permute.xlu0 %1588
    %1590 = vrot.lane.b32.xlu0 %v1202, 32
    %v1591 = vpop.permute.xlu0 %1590
    %1592 = vrot.lane.b32.xlu0 %v1210, 32
    %v1593 = vpop.permute.xlu0 %1592
    %1594 = vrot.lane.b32.xlu0 %v1218, 32
    %v1595 = vpop.permute.xlu0 %1594
    %1596 = vrot.lane.b32.xlu0 %v1226, 32
    %v1597 = vpop.permute.xlu0 %1596
    %1598 = vrot.lane.b32.xlu0 %v1234, 32
    %v1599 = vpop.permute.xlu0 %1598
    %1600 = vrot.lane.b32.xlu0 %v1242, 32
    %v1601 = vpop.permute.xlu0 %1600
    %1602 = vrot.lane.b32.xlu0 %v1250, 32
    %v1603 = vpop.permute.xlu0 %1602
    %1604 = vrot.lane.b32.xlu0 %v1258, 32
    %v1605 = vpop.permute.xlu0 %1604
    %1606 = vrot.lane.b32.xlu0 %v1266, 32
    %v1607 = vpop.permute.xlu0 %1606
    %1608 = vrot.lane.b32.xlu0 %v1274, 32
    %v1609 = vpop.permute.xlu0 %1608
    %1610 = vrot.lane.b32.xlu0 %v1282, 32
    %v1611 = vpop.permute.xlu0 %1610
    %1612 = vrot.lane.b32.xlu0 %v1290, 32
    %v1613 = vpop.permute.xlu0 %1612
    %1614 = vrot.lane.b32.xlu0 %v1298, 32
    %v1615 = vpop.permute.xlu0 %1614
    %1616 = vrot.lane.b32.xlu0 %v1306, 32
    %v1617 = vpop.permute.xlu0 %1616
    %1618 = vrot.lane.b32.xlu0 %v1314, 32
    %v1619 = vpop.permute.xlu0 %1618
    %1620 = vrot.lane.b32.xlu0 %v1322, 32
    %v1621 = vpop.permute.xlu0 %1620
    %1622 = vrot.lane.b32.xlu0 %v1330, 32
    %v1623 = vpop.permute.xlu0 %1622
    %1624 = vrot.lane.b32.xlu0 %v1338, 32
    %v1625 = vpop.permute.xlu0 %1624
    %1626 = vrot.lane.b32.xlu0 %v1346, 32
    %v1627 = vpop.permute.xlu0 %1626
    %1628 = vrot.lane.b32.xlu0 %v1354, 32
    %v1629 = vpop.permute.xlu0 %1628
    %1630 = vrot.lane.b32.xlu0 %v1362, 32
    %v1631 = vpop.permute.xlu0 %1630
    %1632 = vrot.lane.b32.xlu0 %v1370, 32
    %v1633 = vpop.permute.xlu0 %1632
    %1634 = vrot.lane.b32.xlu0 %v1378, 32
    %v1635 = vpop.permute.xlu0 %1634
    %1636 = vrot.lane.b32.xlu0 %v1386, 32
    %v1637 = vpop.permute.xlu0 %1636
    %1638 = vrot.lane.b32.xlu0 %v1394, 32
    %v1639 = vpop.permute.xlu0 %1638
    %1640 = vrot.lane.b32.xlu0 %v1402, 32
    %v1641 = vpop.permute.xlu0 %1640
    %1642 = vrot.lane.b32.xlu0 %v1410, 32
    %v1643 = vpop.permute.xlu0 %1642
    %1644 = vrot.lane.b32.xlu0 %v1418, 32
    %v1645 = vpop.permute.xlu0 %1644
    %1646 = vrot.lane.b32.xlu0 %v1426, 32
    %v1647 = vpop.permute.xlu0 %1646
    %1648 = vrot.lane.b32.xlu0 %v1434, 32
    %v1649 = vpop.permute.xlu0 %1648
    %1650 = vrot.lane.b32.xlu0 %v1442, 32
    %v1651 = vpop.permute.xlu0 %1650
    %1652 = vrot.lane.b32.xlu0 %v1450, 32
    %v1653 = vpop.permute.xlu0 %1652
    %1654 = vrot.lane.b32.xlu0 %v1458, 32
    %v1655 = vpop.permute.xlu0 %1654
    %1656 = vrot.lane.b32.xlu0 %v1466, 32
    %v1657 = vpop.permute.xlu0 %1656
    %1658 = vrot.lane.b32.xlu0 %v1474, 32
    %v1659 = vpop.permute.xlu0 %1658
    %1660 = vrot.lane.b32.xlu0 %v1482, 32
    %v1661 = vpop.permute.xlu0 %1660
    %1662 = vrot.lane.b32.xlu0 %v1490, 32
    %v1663 = vpop.permute.xlu0 %1662
    %1664 = vrot.lane.b32.xlu0 %v1498, 32
    %v1665 = vpop.permute.xlu0 %1664
    %1666 = vrot.lane.b32.xlu0 %v1506, 32
    %v1667 = vpop.permute.xlu0 %1666
    %1668 = vrot.lane.b32.xlu0 %v1514, 32
    %v1669 = vpop.permute.xlu0 %1668
    %1670 = vrot.lane.b32.xlu0 %v1522, 32
    %v1671 = vpop.permute.xlu0 %1670
    %1672 = vrot.lane.b32.xlu0 %v1530, 32
    %v1673 = vpop.permute.xlu0 %1672
    %1674 = vrot.lane.b32.xlu0 %v1538, 32
    %v1675 = vpop.permute.xlu0 %1674
    %1676 = vrot.lane.b32.xlu0 %v1546, 32
    %v1677 = vpop.permute.xlu0 %1676
    %1678 = vrot.lane.b32.xlu0 %v1554, 32
    %v1679 = vpop.permute.xlu0 %1678
    %1680 = vrot.lane.b32.xlu0 %v1562, 32
    %v1681 = vpop.permute.xlu0 %1680
    %1682 = vrot.lane.b32.xlu0 %v1565, 32
    %v1683 = vpop.permute.xlu0 %1682
    %vm1743 = vcmask 523520
    %1744 = vst.msk [vmem:[#allocation4] sm:$0xff] %vm1743, %v1567
    %1745 = vst.msk [vmem:[#allocation4 + $0x8] sm:$0xff] %vm1743, %v1569
    %1746 = vst.msk [vmem:[#allocation4 + $0x10] sm:$0xff] %vm1743, %v1571
    %1747 = vst.msk [vmem:[#allocation4 + $0x18] sm:$0xff] %vm1743, %v1573
    %1748 = vst.msk [vmem:[#allocation4 + $0x20] sm:$0xff] %vm1743, %v1575
    %1749 = vst.msk [vmem:[#allocation4 + $0x28] sm:$0xff] %vm1743, %v1577
    %1750 = vst.msk [vmem:[#allocation4 + $0x30] sm:$0xff] %vm1743, %v1579
    %1751 = vst.msk [vmem:[#allocation4 + $0x38] sm:$0xff] %vm1743, %v1581
    %1752 = vst.msk [vmem:[#allocation4 + $0x40] sm:$0xff] %vm1743, %v1583
    %1753 = vst.msk [vmem:[#allocation4 + $0x48] sm:$0xff] %vm1743, %v1585
    %1754 = vst.msk [vmem:[#allocation4 + $0x50] sm:$0xff] %vm1743, %v1587
    %1755 = vst.msk [vmem:[#allocation4 + $0x58] sm:$0xff] %vm1743, %v1589
    %1756 = vst.msk [vmem:[#allocation4 + $0x60] sm:$0xff] %vm1743, %v1591
    %1757 = vst.msk [vmem:[#allocation4 + $0x68] sm:$0xff] %vm1743, %v1593
    %1758 = vst.msk [vmem:[#allocation4 + $0x70] sm:$0xff] %vm1743, %v1595
    %1759 = vst.msk [vmem:[#allocation4 + $0x78] sm:$0xff] %vm1743, %v1597
    %1760 = vst.msk [vmem:[#allocation4 + $0x80] sm:$0xff] %vm1743, %v1599
    %1761 = vst.msk [vmem:[#allocation4 + $0x88] sm:$0xff] %vm1743, %v1601
    %1762 = vst.msk [vmem:[#allocation4 + $0x90] sm:$0xff] %vm1743, %v1603
    %1763 = vst.msk [vmem:[#allocation4 + $0x98] sm:$0xff] %vm1743, %v1605
    %1764 = vst.msk [vmem:[#allocation4 + $0xa0] sm:$0xff] %vm1743, %v1607
    %1765 = vst.msk [vmem:[#allocation4 + $0xa8] sm:$0xff] %vm1743, %v1609
    %1766 = vst.msk [vmem:[#allocation4 + $0xb0] sm:$0xff] %vm1743, %v1611
    %1767 = vst.msk [vmem:[#allocation4 + $0xb8] sm:$0xff] %vm1743, %v1613
    %1768 = vst.msk [vmem:[#allocation4 + $0xc0] sm:$0xff] %vm1743, %v1615
    %1769 = vst.msk [vmem:[#allocation4 + $0xc8] sm:$0xff] %vm1743, %v1617
    %1770 = vst.msk [vmem:[#allocation4 + $0xd0] sm:$0xff] %vm1743, %v1619
    %1771 = vst.msk [vmem:[#allocation4 + $0xd8] sm:$0xff] %vm1743, %v1621
    %1772 = vst.msk [vmem:[#allocation4 + $0xe0] sm:$0xff] %vm1743, %v1623
    %1773 = vst.msk [vmem:[#allocation4 + $0xe8] sm:$0xff] %vm1743, %v1625
    %1774 = vst.msk [vmem:[#allocation4 + $0xf0] sm:$0xff] %vm1743, %v1627
    %1775 = vst.msk [vmem:[#allocation4 + $0xf8] sm:$0xff] %vm1743, %v1629
    %1776 = vst.msk [vmem:[#allocation4 + $0x100] sm:$0xff] %vm1743, %v1631
    %1777 = vst.msk [vmem:[#allocation4 + $0x108] sm:$0xff] %vm1743, %v1633
    %1778 = vst.msk [vmem:[#allocation4 + $0x110] sm:$0xff] %vm1743, %v1635
    %1779 = vst.msk [vmem:[#allocation4 + $0x118] sm:$0xff] %vm1743, %v1637
    %1780 = vst.msk [vmem:[#allocation4 + $0x120] sm:$0xff] %vm1743, %v1639
    %1781 = vst.msk [vmem:[#allocation4 + $0x128] sm:$0xff] %vm1743, %v1641
    %1782 = vst.msk [vmem:[#allocation4 + $0x130] sm:$0xff] %vm1743, %v1643
    %1783 = vst.msk [vmem:[#allocation4 + $0x138] sm:$0xff] %vm1743, %v1645
    %1784 = vst.msk [vmem:[#allocation4 + $0x140] sm:$0xff] %vm1743, %v1647
    %1785 = vst.msk [vmem:[#allocation4 + $0x148] sm:$0xff] %vm1743, %v1649
    %1786 = vst.msk [vmem:[#allocation4 + $0x150] sm:$0xff] %vm1743, %v1651
    %1787 = vst.msk [vmem:[#allocation4 + $0x158] sm:$0xff] %vm1743, %v1653
    %1788 = vst.msk [vmem:[#allocation4 + $0x160] sm:$0xff] %vm1743, %v1655
    %1789 = vst.msk [vmem:[#allocation4 + $0x168] sm:$0xff] %vm1743, %v1657
    %1790 = vst.msk [vmem:[#allocation4 + $0x170] sm:$0xff] %vm1743, %v1659
    %1791 = vst.msk [vmem:[#allocation4 + $0x178] sm:$0xff] %vm1743, %v1661
    %1792 = vst.msk [vmem:[#allocation4 + $0x180] sm:$0xff] %vm1743, %v1663
    %1793 = vst.msk [vmem:[#allocation4 + $0x188] sm:$0xff] %vm1743, %v1665
    %1794 = vst.msk [vmem:[#allocation4 + $0x190] sm:$0xff] %vm1743, %v1667
    %1795 = vst.msk [vmem:[#allocation4 + $0x198] sm:$0xff] %vm1743, %v1669
    %1796 = vst.msk [vmem:[#allocation4 + $0x1a0] sm:$0xff] %vm1743, %v1671
    %1797 = vst.msk [vmem:[#allocation4 + $0x1a8] sm:$0xff] %vm1743, %v1673
    %1798 = vst.msk [vmem:[#allocation4 + $0x1b0] sm:$0xff] %vm1743, %v1675
    %1799 = vst.msk [vmem:[#allocation4 + $0x1b8] sm:$0xff] %vm1743, %v1677
    %1800 = vst.msk [vmem:[#allocation4 + $0x1c0] sm:$0xff] %vm1743, %v1679
    %1801 = vst.msk [vmem:[#allocation4 + $0x1c8] sm:$0xff] %vm1743, %v1681
    %vm1802 = vcmask 519424
    %1803 = vst.msk [vmem:[#allocation4 + $0x1d0] sm:$0xf] %vm1802, %v1683
    %v1804 = vld [vmem:[%s0] sm:$0xe]
    %v1805 = vld [vmem:[%s0 + $0x4] sm:$0xf]
    %v1806 = vld [vmem:[%s0 + $0x8] sm:$0xf]
    %v1807 = vld [vmem:[%s0 + $0xc] sm:$0xf]
    %v1808 = vld [vmem:[%s0 + $0x10] sm:$0xf]
    %v1809 = vld [vmem:[%s0 + $0x14] sm:$0xf]
    %v1810 = vld [vmem:[%s0 + $0x18] sm:$0xf]
    %v1811 = vld [vmem:[%s0 + $0x1c] sm:$0xf]
    %v1812 = vld [vmem:[%s0 + $0x20] sm:$0xf]
    %v1813 = vld [vmem:[%s0 + $0x24] sm:$0xf]
    %v1814 = vld [vmem:[%s0 + $0x28] sm:$0xf]
    %v1815 = vld [vmem:[%s0 + $0x2c] sm:$0xf]
    %v1816 = vld [vmem:[%s0 + $0x30] sm:$0xf]
    %v1817 = vld [vmem:[%s0 + $0x34] sm:$0xf]
    %v1818 = vld [vmem:[%s0 + $0x38] sm:$0xf]
    %v1819 = vld [vmem:[%s0 + $0x3c] sm:$0xf]
    %v1820 = vld [vmem:[%s0 + $0x40] sm:$0xf]
    %v1821 = vld [vmem:[%s0 + $0x44] sm:$0xf]
    %v1822 = vld [vmem:[%s0 + $0x48] sm:$0xf]
    %v1823 = vld [vmem:[%s0 + $0x4c] sm:$0xf]
    %v1824 = vld [vmem:[%s0 + $0x50] sm:$0xf]
    %v1825 = vld [vmem:[%s0 + $0x54] sm:$0xf]
    %v1826 = vld [vmem:[%s0 + $0x58] sm:$0xf]
    %v1827 = vld [vmem:[%s0 + $0x5c] sm:$0xf]
    %v1828 = vld [vmem:[%s0 + $0x60] sm:$0xf]
    %v1829 = vld [vmem:[%s0 + $0x64] sm:$0xf]
    %v1830 = vld [vmem:[%s0 + $0x68] sm:$0xf]
    %v1831 = vld [vmem:[%s0 + $0x6c] sm:$0xf]
    %v1832 = vld [vmem:[%s0 + $0x70] sm:$0xf]
    %v1833 = vld [vmem:[%s0 + $0x74] sm:$0xf]
    %v1834 = vld [vmem:[%s0 + $0x78] sm:$0xf]
    %v1835 = vld [vmem:[%s0 + $0x7c] sm:$0xf]
    %v1836 = vld [vmem:[%s0 + $0x80] sm:$0xf]
    %v1837 = vld [vmem:[%s0 + $0x84] sm:$0xf]
    %v1838 = vld [vmem:[%s0 + $0x88] sm:$0xf]
    %v1839 = vld [vmem:[%s0 + $0x8c] sm:$0xf]
    %v1840 = vld [vmem:[%s0 + $0x90] sm:$0xf]
    %v1841 = vld [vmem:[%s0 + $0x94] sm:$0xf]
    %v1842 = vld [vmem:[%s0 + $0x98] sm:$0xf]
    %v1843 = vld [vmem:[%s0 + $0x9c] sm:$0xf]
    %v1844 = vld [vmem:[%s0 + $0xa0] sm:$0xf]
    %v1845 = vld [vmem:[%s0 + $0xa4] sm:$0xf]
    %v1846 = vld [vmem:[%s0 + $0xa8] sm:$0xf]
    %v1847 = vld [vmem:[%s0 + $0xac] sm:$0xf]
    %v1848 = vld [vmem:[%s0 + $0xb0] sm:$0xf]
    %v1849 = vld [vmem:[%s0 + $0xb4] sm:$0xf]
    %v1850 = vld [vmem:[%s0 + $0xb8] sm:$0xf]
    %v1851 = vld [vmem:[%s0 + $0xbc] sm:$0xf]
    %v1852 = vld [vmem:[%s0 + $0xc0] sm:$0xf]
    %v1853 = vld [vmem:[%s0 + $0xc4] sm:$0xf]
    %v1854 = vld [vmem:[%s0 + $0xc8] sm:$0xf]
    %v1855 = vld [vmem:[%s0 + $0xcc] sm:$0xf]
    %v1856 = vld [vmem:[%s0 + $0xd0] sm:$0xf]
    %v1857 = vld [vmem:[%s0 + $0xd4] sm:$0xf]
    %v1858 = vld [vmem:[%s0 + $0xd8] sm:$0xf]
    %v1859 = vld [vmem:[%s0 + $0xdc] sm:$0xf]
    %v1860 = vld [vmem:[%s0 + $0xe0] sm:$0xf]
    %v1861 = vld [vmem:[%s0 + $0xe4] sm:$0xf]
    %v1862 = vld [vmem:[%s0 + $0xe8] sm:$0xf]
    %v1863 = vld [vmem:[%s0 + $0xec] sm:$0xf]
    %v1864 = vld [vmem:[%s0 + $0xf0] sm:$0xf]
    %v1865 = vld [vmem:[%s0 + $0xf4] sm:$0xf]
    %v1866 = vld [vmem:[%s0 + $0xf8] sm:$0xf]
    %v1867 = vld [vmem:[%s0 + $0xfc] sm:$0xf]
    %v1868 = vld [vmem:[%s0 + $0x100] sm:$0xf]
    %v1869 = vld [vmem:[%s0 + $0x104] sm:$0xf]
    %v1870 = vld [vmem:[%s0 + $0x108] sm:$0xf]
    %v1871 = vld [vmem:[%s0 + $0x10c] sm:$0xf]
    %v1872 = vld [vmem:[%s0 + $0x110] sm:$0xf]
    %v1873 = vld [vmem:[%s0 + $0x114] sm:$0xf]
    %v1874 = vld [vmem:[%s0 + $0x118] sm:$0xf]
    %v1875 = vld [vmem:[%s0 + $0x11c] sm:$0xf]
    %v1876 = vld [vmem:[%s0 + $0x120] sm:$0xf]
    %v1877 = vld [vmem:[%s0 + $0x124] sm:$0xf]
    %v1878 = vld [vmem:[%s0 + $0x128] sm:$0xf]
    %v1879 = vld [vmem:[%s0 + $0x12c] sm:$0xf]
    %v1880 = vld [vmem:[%s0 + $0x130] sm:$0xf]
    %v1881 = vld [vmem:[%s0 + $0x134] sm:$0xf]
    %v1882 = vld [vmem:[%s0 + $0x138] sm:$0xf]
    %v1883 = vld [vmem:[%s0 + $0x13c] sm:$0xf]
    %v1884 = vld [vmem:[%s0 + $0x140] sm:$0xf]
    %v1885 = vld [vmem:[%s0 + $0x144] sm:$0xf]
    %v1886 = vld [vmem:[%s0 + $0x148] sm:$0xf]
    %v1887 = vld [vmem:[%s0 + $0x14c] sm:$0xf]
    %v1888 = vld [vmem:[%s0 + $0x150] sm:$0xf]
    %v1889 = vld [vmem:[%s0 + $0x154] sm:$0xf]
    %v1890 = vld [vmem:[%s0 + $0x158] sm:$0xf]
    %v1891 = vld [vmem:[%s0 + $0x15c] sm:$0xf]
    %v1892 = vld [vmem:[%s0 + $0x160] sm:$0xf]
    %v1893 = vld [vmem:[%s0 + $0x164] sm:$0xf]
    %v1894 = vld [vmem:[%s0 + $0x168] sm:$0xf]
    %v1895 = vld [vmem:[%s0 + $0x16c] sm:$0xf]
    %v1896 = vld [vmem:[%s0 + $0x170] sm:$0xf]
    %v1897 = vld [vmem:[%s0 + $0x174] sm:$0xf]
    %v1898 = vld [vmem:[%s0 + $0x178] sm:$0xf]
    %v1899 = vld [vmem:[%s0 + $0x17c] sm:$0xf]
    %v1900 = vld [vmem:[%s0 + $0x180] sm:$0xf]
    %v1901 = vld [vmem:[%s0 + $0x184] sm:$0xf]
    %v1902 = vld [vmem:[%s0 + $0x188] sm:$0xf]
    %v1903 = vld [vmem:[%s0 + $0x18c] sm:$0xf]
    %v1904 = vld [vmem:[%s0 + $0x190] sm:$0xf]
    %v1905 = vld [vmem:[%s0 + $0x194] sm:$0xf]
    %v1906 = vld [vmem:[%s0 + $0x198] sm:$0xf]
    %v1907 = vld [vmem:[%s0 + $0x19c] sm:$0xf]
    %v1908 = vld [vmem:[%s0 + $0x1a0] sm:$0xf]
    %v1909 = vld [vmem:[%s0 + $0x1a4] sm:$0xf]
    %v1910 = vld [vmem:[%s0 + $0x1a8] sm:$0xf]
    %v1911 = vld [vmem:[%s0 + $0x1ac] sm:$0xf]
    %v1912 = vld [vmem:[%s0 + $0x1b0] sm:$0xf]
    %v1913 = vld [vmem:[%s0 + $0x1b4] sm:$0xf]
    %v1914 = vld [vmem:[%s0 + $0x1b8] sm:$0xf]
    %v1915 = vld [vmem:[%s0 + $0x1bc] sm:$0xf]
    %v1916 = vld [vmem:[%s0 + $0x1c0] sm:$0xf]
    %v1917 = vld [vmem:[%s0 + $0x1c4] sm:$0xf]
    %v1918 = vld [vmem:[%s0 + $0x1c8] sm:$0xf]
    %v1919 = vld [vmem:[%s0 + $0x1cc] sm:$0xf]
    %v1920 = vld [vmem:[%s0 + $0x1d0] sm:$0xf]
    %v1921 = vld [vmem:[%s0 + $0x1d4] sm:$0x1]
    %v2040 = vunpack.c.l.b16 %v1804
    %v2041 = vunpack.c.l.b16 %v1805
    %v2042 = vunpack.c.l.b16 %v1806
    %v2043 = vunpack.c.l.b16 %v1807
    %v2044 = vunpack.c.l.b16 %v1808
    %v2045 = vunpack.c.l.b16 %v1809
    %v2046 = vunpack.c.l.b16 %v1810
    %v2047 = vunpack.c.l.b16 %v1811
    %v2048 = vunpack.c.l.b16 %v1812
    %v2049 = vunpack.c.l.b16 %v1813
    %v2050 = vunpack.c.l.b16 %v1814
    %v2051 = vunpack.c.l.b16 %v1815
    %v2052 = vunpack.c.l.b16 %v1816
    %v2053 = vunpack.c.l.b16 %v1817
    %v2054 = vunpack.c.l.b16 %v1818
    %v2055 = vunpack.c.l.b16 %v1819
    %v2056 = vunpack.c.l.b16 %v1820
    %v2057 = vunpack.c.l.b16 %v1821
    %v2058 = vunpack.c.l.b16 %v1822
    %v2059 = vunpack.c.l.b16 %v1823
    %v2060 = vunpack.c.l.b16 %v1824
    %v2061 = vunpack.c.l.b16 %v1825
    %v2062 = vunpack.c.l.b16 %v1826
    %v2063 = vunpack.c.l.b16 %v1827
    %v2064 = vunpack.c.l.b16 %v1828
    %v2065 = vunpack.c.l.b16 %v1829
    %v2066 = vunpack.c.l.b16 %v1830
    %v2067 = vunpack.c.l.b16 %v1831
    %v2068 = vunpack.c.l.b16 %v1832
    %v2069 = vunpack.c.l.b16 %v1833
    %v2070 = vunpack.c.l.b16 %v1834
    %v2071 = vunpack.c.l.b16 %v1835
    %v2072 = vunpack.c.l.b16 %v1836
    %v2073 = vunpack.c.l.b16 %v1837
    %v2074 = vunpack.c.l.b16 %v1838
    %v2075 = vunpack.c.l.b16 %v1839
    %v2076 = vunpack.c.l.b16 %v1840
    %v2077 = vunpack.c.l.b16 %v1841
    %v2078 = vunpack.c.l.b16 %v1842
    %v2079 = vunpack.c.l.b16 %v1843
    %v2080 = vunpack.c.l.b16 %v1844
    %v2081 = vunpack.c.l.b16 %v1845
    %v2082 = vunpack.c.l.b16 %v1846
    %v2083 = vunpack.c.l.b16 %v1847
    %v2084 = vunpack.c.l.b16 %v1848
    %v2085 = vunpack.c.l.b16 %v1849
    %v2086 = vunpack.c.l.b16 %v1850
    %v2087 = vunpack.c.l.b16 %v1851
    %v2088 = vunpack.c.l.b16 %v1852
    %v2089 = vunpack.c.l.b16 %v1853
    %v2090 = vunpack.c.l.b16 %v1854
    %v2091 = vunpack.c.l.b16 %v1855
    %v2092 = vunpack.c.l.b16 %v1856
    %v2093 = vunpack.c.l.b16 %v1857
    %v2094 = vunpack.c.l.b16 %v1858
    %v2095 = vunpack.c.l.b16 %v1859
    %v2096 = vunpack.c.l.b16 %v1860
    %v2097 = vunpack.c.l.b16 %v1861
    %v2098 = vunpack.c.l.b16 %v1862
    %v2099 = vunpack.c.l.b16 %v1863
    %v2100 = vunpack.c.l.b16 %v1864
    %v2101 = vunpack.c.l.b16 %v1865
    %v2102 = vunpack.c.l.b16 %v1866
    %v2103 = vunpack.c.l.b16 %v1867
    %v2104 = vunpack.c.l.b16 %v1868
    %v2105 = vunpack.c.l.b16 %v1869
    %v2106 = vunpack.c.l.b16 %v1870
    %v2107 = vunpack.c.l.b16 %v1871
    %v2108 = vunpack.c.l.b16 %v1872
    %v2109 = vunpack.c.l.b16 %v1873
    %v2110 = vunpack.c.l.b16 %v1874
    %v2111 = vunpack.c.l.b16 %v1875
    %v2112 = vunpack.c.l.b16 %v1876
    %v2113 = vunpack.c.l.b16 %v1877
    %v2114 = vunpack.c.l.b16 %v1878
    %v2115 = vunpack.c.l.b16 %v1879
    %v2116 = vunpack.c.l.b16 %v1880
    %v2117 = vunpack.c.l.b16 %v1881
    %v2118 = vunpack.c.l.b16 %v1882
    %v2119 = vunpack.c.l.b16 %v1883
    %v2120 = vunpack.c.l.b16 %v1884
    %v2121 = vunpack.c.l.b16 %v1885
    %v2122 = vunpack.c.l.b16 %v1886
    %v2123 = vunpack.c.l.b16 %v1887
    %v2124 = vunpack.c.l.b16 %v1888
    %v2125 = vunpack.c.l.b16 %v1889
    %v2126 = vunpack.c.l.b16 %v1890
    %v2127 = vunpack.c.l.b16 %v1891
    %v2128 = vunpack.c.l.b16 %v1892
    %v2129 = vunpack.c.l.b16 %v1893
    %v2130 = vunpack.c.l.b16 %v1894
    %v2131 = vunpack.c.l.b16 %v1895
    %v2132 = vunpack.c.l.b16 %v1896
    %v2133 = vunpack.c.l.b16 %v1897
    %v2134 = vunpack.c.l.b16 %v1898
    %v2135 = vunpack.c.l.b16 %v1899
    %v2136 = vunpack.c.l.b16 %v1900
    %v2137 = vunpack.c.l.b16 %v1901
    %v2138 = vunpack.c.l.b16 %v1902
    %v2139 = vunpack.c.l.b16 %v1903
    %v2140 = vunpack.c.l.b16 %v1904
    %v2141 = vunpack.c.l.b16 %v1905
    %v2142 = vunpack.c.l.b16 %v1906
    %v2143 = vunpack.c.l.b16 %v1907
    %v2144 = vunpack.c.l.b16 %v1908
    %v2145 = vunpack.c.l.b16 %v1909
    %v2146 = vunpack.c.l.b16 %v1910
    %v2147 = vunpack.c.l.b16 %v1911
    %v2148 = vunpack.c.l.b16 %v1912
    %v2149 = vunpack.c.l.b16 %v1913
    %v2150 = vunpack.c.l.b16 %v1914
    %v2151 = vunpack.c.l.b16 %v1915
    %v2152 = vunpack.c.l.b16 %v1916
    %v2153 = vunpack.c.l.b16 %v1917
    %v2154 = vunpack.c.l.b16 %v1918
    %v2155 = vunpack.c.l.b16 %v1919
    %v2156 = vunpack.c.l.b16 %v1920
    %v2157 = vunpack.c.l.b16 %v1921
    %v2158 = vpack.c.b16 %v2041, %v2040
    %v2159 = vpack.c.b16 %v2043, %v2042
    %v2160 = vpack.c.b16 %v2045, %v2044
    %v2161 = vpack.c.b16 %v2047, %v2046
    %v2162 = vpack.c.b16 %v2049, %v2048
    %v2163 = vpack.c.b16 %v2051, %v2050
    %v2164 = vpack.c.b16 %v2053, %v2052
    %v2165 = vpack.c.b16 %v2055, %v2054
    %v2166 = vpack.c.b16 %v2057, %v2056
    %v2167 = vpack.c.b16 %v2059, %v2058
    %v2168 = vpack.c.b16 %v2061, %v2060
    %v2169 = vpack.c.b16 %v2063, %v2062
    %v2170 = vpack.c.b16 %v2065, %v2064
    %v2171 = vpack.c.b16 %v2067, %v2066
    %v2172 = vpack.c.b16 %v2069, %v2068
    %v2173 = vpack.c.b16 %v2071, %v2070
    %v2174 = vpack.c.b16 %v2073, %v2072
    %v2175 = vpack.c.b16 %v2075, %v2074
    %v2176 = vpack.c.b16 %v2077, %v2076
    %v2177 = vpack.c.b16 %v2079, %v2078
    %v2178 = vpack.c.b16 %v2081, %v2080
    %v2179 = vpack.c.b16 %v2083, %v2082
    %v2180 = vpack.c.b16 %v2085, %v2084
    %v2181 = vpack.c.b16 %v2087, %v2086
    %v2182 = vpack.c.b16 %v2089, %v2088
    %v2183 = vpack.c.b16 %v2091, %v2090
    %v2184 = vpack.c.b16 %v2093, %v2092
    %v2185 = vpack.c.b16 %v2095, %v2094
    %v2186 = vpack.c.b16 %v2097, %v2096
    %v2187 = vpack.c.b16 %v2099, %v2098
    %v2188 = vpack.c.b16 %v2101, %v2100
    %v2189 = vpack.c.b16 %v2103, %v2102
    %v2190 = vpack.c.b16 %v2105, %v2104
    %v2191 = vpack.c.b16 %v2107, %v2106
    %v2192 = vpack.c.b16 %v2109, %v2108
    %v2193 = vpack.c.b16 %v2111, %v2110
    %v2194 = vpack.c.b16 %v2113, %v2112
    %v2195 = vpack.c.b16 %v2115, %v2114
    %v2196 = vpack.c.b16 %v2117, %v2116
    %v2197 = vpack.c.b16 %v2119, %v2118
    %v2198 = vpack.c.b16 %v2121, %v2120
    %v2199 = vpack.c.b16 %v2123, %v2122
    %v2200 = vpack.c.b16 %v2125, %v2124
    %v2201 = vpack.c.b16 %v2127, %v2126
    %v2202 = vpack.c.b16 %v2129, %v2128
    %v2203 = vpack.c.b16 %v2131, %v2130
    %v2204 = vpack.c.b16 %v2133, %v2132
    %v2205 = vpack.c.b16 %v2135, %v2134
    %v2206 = vpack.c.b16 %v2137, %v2136
    %v2207 = vpack.c.b16 %v2139, %v2138
    %v2208 = vpack.c.b16 %v2141, %v2140
    %v2209 = vpack.c.b16 %v2143, %v2142
    %v2210 = vpack.c.b16 %v2145, %v2144
    %v2211 = vpack.c.b16 %v2147, %v2146
    %v2212 = vpack.c.b16 %v2149, %v2148
    %v2213 = vpack.c.b16 %v2151, %v2150
    %v2214 = vpack.c.b16 %v2153, %v2152
    %v2215 = vpack.c.b16 %v2155, %v2154
    %v2216 = vpack.c.b16 %v2157, %v2156
    %vm2217 = vcmask 1046528
    %v2218 = vrot.slane %v2158, 1
    %v2219 = vrot.slane %v2159, 1
    %v2220 = vsel %vm2217, %v2218, %v2219
    %v2221 = vrot.slane %v2160, 1
    %v2222 = vsel %vm2217, %v2219, %v2221
    %v2223 = vrot.slane %v2161, 1
    %v2224 = vsel %vm2217, %v2221, %v2223
    %v2225 = vrot.slane %v2162, 1
    %v2226 = vsel %vm2217, %v2223, %v2225
    %v2227 = vrot.slane %v2163, 1
    %v2228 = vsel %vm2217, %v2225, %v2227
    %v2229 = vrot.slane %v2164, 1
    %v2230 = vsel %vm2217, %v2227, %v2229
    %v2231 = vrot.slane %v2165, 1
    %v2232 = vsel %vm2217, %v2229, %v2231
    %v2233 = vrot.slane %v2166, 1
    %v2234 = vsel %vm2217, %v2231, %v2233
    %v2235 = vrot.slane %v2167, 1
    %v2236 = vsel %vm2217, %v2233, %v2235
    %v2237 = vrot.slane %v2168, 1
    %v2238 = vsel %vm2217, %v2235, %v2237
    %v2239 = vrot.slane %v2169, 1
    %v2240 = vsel %vm2217, %v2237, %v2239
    %v2241 = vrot.slane %v2170, 1
    %v2242 = vsel %vm2217, %v2239, %v2241
    %v2243 = vrot.slane %v2171, 1
    %v2244 = vsel %vm2217, %v2241, %v2243
    %v2245 = vrot.slane %v2172, 1
    %v2246 = vsel %vm2217, %v2243, %v2245
    %v2247 = vrot.slane %v2173, 1
    %v2248 = vsel %vm2217, %v2245, %v2247
    %v2249 = vrot.slane %v2174, 1
    %v2250 = vsel %vm2217, %v2247, %v2249
    %v2251 = vrot.slane %v2175, 1
    %v2252 = vsel %vm2217, %v2249, %v2251
    %v2253 = vrot.slane %v2176, 1
    %v2254 = vsel %vm2217, %v2251, %v2253
    %v2255 = vrot.slane %v2177, 1
    %v2256 = vsel %vm2217, %v2253, %v2255
    %v2257 = vrot.slane %v2178, 1
    %v2258 = vsel %vm2217, %v2255, %v2257
    %v2259 = vrot.slane %v2179, 1
    %v2260 = vsel %vm2217, %v2257, %v2259
    %v2261 = vrot.slane %v2180, 1
    %v2262 = vsel %vm2217, %v2259, %v2261
    %v2263 = vrot.slane %v2181, 1
    %v2264 = vsel %vm2217, %v2261, %v2263
    %v2265 = vrot.slane %v2182, 1
    %v2266 = vsel %vm2217, %v2263, %v2265
    %v2267 = vrot.slane %v2183, 1
    %v2268 = vsel %vm2217, %v2265, %v2267
    %v2269 = vrot.slane %v2184, 1
    %v2270 = vsel %vm2217, %v2267, %v2269
    %v2271 = vrot.slane %v2185, 1
    %v2272 = vsel %vm2217, %v2269, %v2271
    %v2273 = vrot.slane %v2186, 1
    %v2274 = vsel %vm2217, %v2271, %v2273
    %v2275 = vrot.slane %v2187, 1
    %v2276 = vsel %vm2217, %v2273, %v2275
    %v2277 = vrot.slane %v2188, 1
    %v2278 = vsel %vm2217, %v2275, %v2277
    %v2279 = vrot.slane %v2189, 1
    %v2280 = vsel %vm2217, %v2277, %v2279
    %v2281 = vrot.slane %v2190, 1
    %v2282 = vsel %vm2217, %v2279, %v2281
    %v2283 = vrot.slane %v2191, 1
    %v2284 = vsel %vm2217, %v2281, %v2283
    %v2285 = vrot.slane %v2192, 1
    %v2286 = vsel %vm2217, %v2283, %v2285
    %v2287 = vrot.slane %v2193, 1
    %v2288 = vsel %vm2217, %v2285, %v2287
    %v2289 = vrot.slane %v2194, 1
    %v2290 = vsel %vm2217, %v2287, %v2289
    %v2291 = vrot.slane %v2195, 1
    %v2292 = vsel %vm2217, %v2289, %v2291
    %v2293 = vrot.slane %v2196, 1
    %v2294 = vsel %vm2217, %v2291, %v2293
    %v2295 = vrot.slane %v2197, 1
    %v2296 = vsel %vm2217, %v2293, %v2295
    %v2297 = vrot.slane %v2198, 1
    %v2298 = vsel %vm2217, %v2295, %v2297
    %v2299 = vrot.slane %v2199, 1
    %v2300 = vsel %vm2217, %v2297, %v2299
    %v2301 = vrot.slane %v2200, 1
    %v2302 = vsel %vm2217, %v2299, %v2301
    %v2303 = vrot.slane %v2201, 1
    %v2304 = vsel %vm2217, %v2301, %v2303
    %v2305 = vrot.slane %v2202, 1
    %v2306 = vsel %vm2217, %v2303, %v2305
    %v2307 = vrot.slane %v2203, 1
    %v2308 = vsel %vm2217, %v2305, %v2307
    %v2309 = vrot.slane %v2204, 1
    %v2310 = vsel %vm2217, %v2307, %v2309
    %v2311 = vrot.slane %v2205, 1
    %v2312 = vsel %vm2217, %v2309, %v2311
    %v2313 = vrot.slane %v2206, 1
    %v2314 = vsel %vm2217, %v2311, %v2313
    %v2315 = vrot.slane %v2207, 1
    %v2316 = vsel %vm2217, %v2313, %v2315
    %v2317 = vrot.slane %v2208, 1
    %v2318 = vsel %vm2217, %v2315, %v2317
    %v2319 = vrot.slane %v2209, 1
    %v2320 = vsel %vm2217, %v2317, %v2319
    %v2321 = vrot.slane %v2210, 1
    %v2322 = vsel %vm2217, %v2319, %v2321
    %v2323 = vrot.slane %v2211, 1
    %v2324 = vsel %vm2217, %v2321, %v2323
    %v2325 = vrot.slane %v2212, 1
    %v2326 = vsel %vm2217, %v2323, %v2325
    %v2327 = vrot.slane %v2213, 1
    %v2328 = vsel %vm2217, %v2325, %v2327
    %v2329 = vrot.slane %v2214, 1
    %v2330 = vsel %vm2217, %v2327, %v2329
    %v2331 = vrot.slane %v2215, 1
    %v2332 = vsel %vm2217, %v2329, %v2331
    %v2333 = vrot.slane %v2216, 1
    %v2334 = vsel %vm2217, %v2331, %v2333
    %2335 = vrot.lane.b32.xlu0 %v2220, 64
    %v2336 = vpop.permute.xlu0 %2335
    %2337 = vrot.lane.b32.xlu0 %v2222, 64
    %v2338 = vpop.permute.xlu0 %2337
    %2339 = vrot.lane.b32.xlu0 %v2224, 64
    %v2340 = vpop.permute.xlu0 %2339
    %2341 = vrot.lane.b32.xlu0 %v2226, 64
    %v2342 = vpop.permute.xlu0 %2341
    %2343 = vrot.lane.b32.xlu0 %v2228, 64
    %v2344 = vpop.permute.xlu0 %2343
    %2345 = vrot.lane.b32.xlu0 %v2230, 64
    %v2346 = vpop.permute.xlu0 %2345
    %2347 = vrot.lane.b32.xlu0 %v2232, 64
    %v2348 = vpop.permute.xlu0 %2347
    %2349 = vrot.lane.b32.xlu0 %v2234, 64
    %v2350 = vpop.permute.xlu0 %2349
    %2351 = vrot.lane.b32.xlu0 %v2236, 64
    %v2352 = vpop.permute.xlu0 %2351
    %2353 = vrot.lane.b32.xlu0 %v2238, 64
    %v2354 = vpop.permute.xlu0 %2353
    %2355 = vrot.lane.b32.xlu0 %v2240, 64
    %v2356 = vpop.permute.xlu0 %2355
    %2357 = vrot.lane.b32.xlu0 %v2242, 64
    %v2358 = vpop.permute.xlu0 %2357
    %2359 = vrot.lane.b32.xlu0 %v2244, 64
    %v2360 = vpop.permute.xlu0 %2359
    %2361 = vrot.lane.b32.xlu0 %v2246, 64
    %v2362 = vpop.permute.xlu0 %2361
    %2363 = vrot.lane.b32.xlu0 %v2248, 64
    %v2364 = vpop.permute.xlu0 %2363
    %2365 = vrot.lane.b32.xlu0 %v2250, 64
    %v2366 = vpop.permute.xlu0 %2365
    %2367 = vrot.lane.b32.xlu0 %v2252, 64
    %v2368 = vpop.permute.xlu0 %2367
    %2369 = vrot.lane.b32.xlu0 %v2254, 64
    %v2370 = vpop.permute.xlu0 %2369
    %2371 = vrot.lane.b32.xlu0 %v2256, 64
    %v2372 = vpop.permute.xlu0 %2371
    %2373 = vrot.lane.b32.xlu0 %v2258, 64
    %v2374 = vpop.permute.xlu0 %2373
    %2375 = vrot.lane.b32.xlu0 %v2260, 64
    %v2376 = vpop.permute.xlu0 %2375
    %2377 = vrot.lane.b32.xlu0 %v2262, 64
    %v2378 = vpop.permute.xlu0 %2377
    %2379 = vrot.lane.b32.xlu0 %v2264, 64
    %v2380 = vpop.permute.xlu0 %2379
    %2381 = vrot.lane.b32.xlu0 %v2266, 64
    %v2382 = vpop.permute.xlu0 %2381
    %2383 = vrot.lane.b32.xlu0 %v2268, 64
    %v2384 = vpop.permute.xlu0 %2383
    %2385 = vrot.lane.b32.xlu0 %v2270, 64
    %v2386 = vpop.permute.xlu0 %2385
    %2387 = vrot.lane.b32.xlu0 %v2272, 64
    %v2388 = vpop.permute.xlu0 %2387
    %2389 = vrot.lane.b32.xlu0 %v2274, 64
    %v2390 = vpop.permute.xlu0 %2389
    %2391 = vrot.lane.b32.xlu0 %v2276, 64
    %v2392 = vpop.permute.xlu0 %2391
    %2393 = vrot.lane.b32.xlu0 %v2278, 64
    %v2394 = vpop.permute.xlu0 %2393
    %2395 = vrot.lane.b32.xlu0 %v2280, 64
    %v2396 = vpop.permute.xlu0 %2395
    %2397 = vrot.lane.b32.xlu0 %v2282, 64
    %v2398 = vpop.permute.xlu0 %2397
    %2399 = vrot.lane.b32.xlu0 %v2284, 64
    %v2400 = vpop.permute.xlu0 %2399
    %2401 = vrot.lane.b32.xlu0 %v2286, 64
    %v2402 = vpop.permute.xlu0 %2401
    %2403 = vrot.lane.b32.xlu0 %v2288, 64
    %v2404 = vpop.permute.xlu0 %2403
    %2405 = vrot.lane.b32.xlu0 %v2290, 64
    %v2406 = vpop.permute.xlu0 %2405
    %2407 = vrot.lane.b32.xlu0 %v2292, 64
    %v2408 = vpop.permute.xlu0 %2407
    %2409 = vrot.lane.b32.xlu0 %v2294, 64
    %v2410 = vpop.permute.xlu0 %2409
    %2411 = vrot.lane.b32.xlu0 %v2296, 64
    %v2412 = vpop.permute.xlu0 %2411
    %2413 = vrot.lane.b32.xlu0 %v2298, 64
    %v2414 = vpop.permute.xlu0 %2413
    %2415 = vrot.lane.b32.xlu0 %v2300, 64
    %v2416 = vpop.permute.xlu0 %2415
    %2417 = vrot.lane.b32.xlu0 %v2302, 64
    %v2418 = vpop.permute.xlu0 %2417
    %2419 = vrot.lane.b32.xlu0 %v2304, 64
    %v2420 = vpop.permute.xlu0 %2419
    %2421 = vrot.lane.b32.xlu0 %v2306, 64
    %v2422 = vpop.permute.xlu0 %2421
    %2423 = vrot.lane.b32.xlu0 %v2308, 64
    %v2424 = vpop.permute.xlu0 %2423
    %2425 = vrot.lane.b32.xlu0 %v2310, 64
    %v2426 = vpop.permute.xlu0 %2425
    %2427 = vrot.lane.b32.xlu0 %v2312, 64
    %v2428 = vpop.permute.xlu0 %2427
    %2429 = vrot.lane.b32.xlu0 %v2314, 64
    %v2430 = vpop.permute.xlu0 %2429
    %2431 = vrot.lane.b32.xlu0 %v2316, 64
    %v2432 = vpop.permute.xlu0 %2431
    %2433 = vrot.lane.b32.xlu0 %v2318, 64
    %v2434 = vpop.permute.xlu0 %2433
    %2435 = vrot.lane.b32.xlu0 %v2320, 64
    %v2436 = vpop.permute.xlu0 %2435
    %2437 = vrot.lane.b32.xlu0 %v2322, 64
    %v2438 = vpop.permute.xlu0 %2437
    %2439 = vrot.lane.b32.xlu0 %v2324, 64
    %v2440 = vpop.permute.xlu0 %2439
    %2441 = vrot.lane.b32.xlu0 %v2326, 64
    %v2442 = vpop.permute.xlu0 %2441
    %2443 = vrot.lane.b32.xlu0 %v2328, 64
    %v2444 = vpop.permute.xlu0 %2443
    %2445 = vrot.lane.b32.xlu0 %v2330, 64
    %v2446 = vpop.permute.xlu0 %2445
    %2447 = vrot.lane.b32.xlu0 %v2332, 64
    %v2448 = vpop.permute.xlu0 %2447
    %2449 = vrot.lane.b32.xlu0 %v2334, 64
    %v2450 = vpop.permute.xlu0 %2449
    %2451 = vrot.lane.b32.xlu0 %v2333, 64
    %v2452 = vpop.permute.xlu0 %2451
    %vm2512 = vcmask 785920
    %2513 = vst.msk [vmem:[#allocation4] sm:$0xff] %vm2512, %v2336
    %2514 = vst.msk [vmem:[#allocation4 + $0x8] sm:$0xff] %vm2512, %v2338
    %2515 = vst.msk [vmem:[#allocation4 + $0x10] sm:$0xff] %vm2512, %v2340
    %2516 = vst.msk [vmem:[#allocation4 + $0x18] sm:$0xff] %vm2512, %v2342
    %2517 = vst.msk [vmem:[#allocation4 + $0x20] sm:$0xff] %vm2512, %v2344
    %2518 = vst.msk [vmem:[#allocation4 + $0x28] sm:$0xff] %vm2512, %v2346
    %2519 = vst.msk [vmem:[#allocation4 + $0x30] sm:$0xff] %vm2512, %v2348
    %2520 = vst.msk [vmem:[#allocation4 + $0x38] sm:$0xff] %vm2512, %v2350
    %2521 = vst.msk [vmem:[#allocation4 + $0x40] sm:$0xff] %vm2512, %v2352
    %2522 = vst.msk [vmem:[#allocation4 + $0x48] sm:$0xff] %vm2512, %v2354
    %2523 = vst.msk [vmem:[#allocation4 + $0x50] sm:$0xff] %vm2512, %v2356
    %2524 = vst.msk [vmem:[#allocation4 + $0x58] sm:$0xff] %vm2512, %v2358
    %2525 = vst.msk [vmem:[#allocation4 + $0x60] sm:$0xff] %vm2512, %v2360
    %2526 = vst.msk [vmem:[#allocation4 + $0x68] sm:$0xff] %vm2512, %v2362
    %2527 = vst.msk [vmem:[#allocation4 + $0x70] sm:$0xff] %vm2512, %v2364
    %2528 = vst.msk [vmem:[#allocation4 + $0x78] sm:$0xff] %vm2512, %v2366
    %2529 = vst.msk [vmem:[#allocation4 + $0x80] sm:$0xff] %vm2512, %v2368
    %2530 = vst.msk [vmem:[#allocation4 + $0x88] sm:$0xff] %vm2512, %v2370
    %2531 = vst.msk [vmem:[#allocation4 + $0x90] sm:$0xff] %vm2512, %v2372
    %2532 = vst.msk [vmem:[#allocation4 + $0x98] sm:$0xff] %vm2512, %v2374
    %2533 = vst.msk [vmem:[#allocation4 + $0xa0] sm:$0xff] %vm2512, %v2376
    %2534 = vst.msk [vmem:[#allocation4 + $0xa8] sm:$0xff] %vm2512, %v2378
    %2535 = vst.msk [vmem:[#allocation4 + $0xb0] sm:$0xff] %vm2512, %v2380
    %2536 = vst.msk [vmem:[#allocation4 + $0xb8] sm:$0xff] %vm2512, %v2382
    %2537 = vst.msk [vmem:[#allocation4 + $0xc0] sm:$0xff] %vm2512, %v2384
    %2538 = vst.msk [vmem:[#allocation4 + $0xc8] sm:$0xff] %vm2512, %v2386
    %2539 = vst.msk [vmem:[#allocation4 + $0xd0] sm:$0xff] %vm2512, %v2388
    %2540 = vst.msk [vmem:[#allocation4 + $0xd8] sm:$0xff] %vm2512, %v2390
    %2541 = vst.msk [vmem:[#allocation4 + $0xe0] sm:$0xff] %vm2512, %v2392
    %2542 = vst.msk [vmem:[#allocation4 + $0xe8] sm:$0xff] %vm2512, %v2394
    %2543 = vst.msk [vmem:[#allocation4 + $0xf0] sm:$0xff] %vm2512, %v2396
    %2544 = vst.msk [vmem:[#allocation4 + $0xf8] sm:$0xff] %vm2512, %v2398
    %2545 = vst.msk [vmem:[#allocation4 + $0x100] sm:$0xff] %vm2512, %v2400
    %2546 = vst.msk [vmem:[#allocation4 + $0x108] sm:$0xff] %vm2512, %v2402
    %2547 = vst.msk [vmem:[#allocation4 + $0x110] sm:$0xff] %vm2512, %v2404
    %2548 = vst.msk [vmem:[#allocation4 + $0x118] sm:$0xff] %vm2512, %v2406
    %2549 = vst.msk [vmem:[#allocation4 + $0x120] sm:$0xff] %vm2512, %v2408
    %2550 = vst.msk [vmem:[#allocation4 + $0x128] sm:$0xff] %vm2512, %v2410
    %2551 = vst.msk [vmem:[#allocation4 + $0x130] sm:$0xff] %vm2512, %v2412
    %2552 = vst.msk [vmem:[#allocation4 + $0x138] sm:$0xff] %vm2512, %v2414
    %2553 = vst.msk [vmem:[#allocation4 + $0x140] sm:$0xff] %vm2512, %v2416
    %2554 = vst.msk [vmem:[#allocation4 + $0x148] sm:$0xff] %vm2512, %v2418
    %2555 = vst.msk [vmem:[#allocation4 + $0x150] sm:$0xff] %vm2512, %v2420
    %2556 = vst.msk [vmem:[#allocation4 + $0x158] sm:$0xff] %vm2512, %v2422
    %2557 = vst.msk [vmem:[#allocation4 + $0x160] sm:$0xff] %vm2512, %v2424
    %2558 = vst.msk [vmem:[#allocation4 + $0x168] sm:$0xff] %vm2512, %v2426
    %2559 = vst.msk [vmem:[#allocation4 + $0x170] sm:$0xff] %vm2512, %v2428
    %2560 = vst.msk [vmem:[#allocation4 + $0x178] sm:$0xff] %vm2512, %v2430
    %2561 = vst.msk [vmem:[#allocation4 + $0x180] sm:$0xff] %vm2512, %v2432
    %2562 = vst.msk [vmem:[#allocation4 + $0x188] sm:$0xff] %vm2512, %v2434
    %2563 = vst.msk [vmem:[#allocation4 + $0x190] sm:$0xff] %vm2512, %v2436
    %2564 = vst.msk [vmem:[#allocation4 + $0x198] sm:$0xff] %vm2512, %v2438
    %2565 = vst.msk [vmem:[#allocation4 + $0x1a0] sm:$0xff] %vm2512, %v2440
    %2566 = vst.msk [vmem:[#allocation4 + $0x1a8] sm:$0xff] %vm2512, %v2442
    %2567 = vst.msk [vmem:[#allocation4 + $0x1b0] sm:$0xff] %vm2512, %v2444
    %2568 = vst.msk [vmem:[#allocation4 + $0x1b8] sm:$0xff] %vm2512, %v2446
    %2569 = vst.msk [vmem:[#allocation4 + $0x1c0] sm:$0xff] %vm2512, %v2448
    %2570 = vst.msk [vmem:[#allocation4 + $0x1c8] sm:$0xff] %vm2512, %v2450
    %vm2571 = vcmask 781824
    %2572 = vst.msk [vmem:[#allocation4 + $0x1d0] sm:$0xf] %vm2571, %v2452
    %v2573 = vld [vmem:[#allocation4] sm:$0xff]
    %v2574 = vld [vmem:[#allocation4 + $0x8] sm:$0xff]
    %v2575 = vld [vmem:[#allocation4 + $0x10] sm:$0xff]
    %v2576 = vld [vmem:[#allocation4 + $0x18] sm:$0xff]
    %v2577 = vld [vmem:[#allocation4 + $0x20] sm:$0xff]
    %v2578 = vld [vmem:[#allocation4 + $0x28] sm:$0xff]
    %v2579 = vld [vmem:[#allocation4 + $0x30] sm:$0xff]
    %v2580 = vld [vmem:[#allocation4 + $0x38] sm:$0xff]
    %v2581 = vld [vmem:[#allocation4 + $0x40] sm:$0xff]
    %v2582 = vld [vmem:[#allocation4 + $0x48] sm:$0xff]
    %v2583 = vld [vmem:[#allocation4 + $0x50] sm:$0xff]
    %v2584 = vld [vmem:[#allocation4 + $0x58] sm:$0xff]
    %v2585 = vld [vmem:[#allocation4 + $0x60] sm:$0xff]
    %v2586 = vld [vmem:[#allocation4 + $0x68] sm:$0xff]
    %v2587 = vld [vmem:[#allocation4 + $0x70] sm:$0xff]
    %v2588 = vld [vmem:[#allocation4 + $0x78] sm:$0xff]
    %v2589 = vld [vmem:[#allocation4 + $0x80] sm:$0xff]
    %v2590 = vld [vmem:[#allocation4 + $0x88] sm:$0xff]
    %v2591 = vld [vmem:[#allocation4 + $0x90] sm:$0xff]
    %v2592 = vld [vmem:[#allocation4 + $0x98] sm:$0xff]
    %v2593 = vld [vmem:[#allocation4 + $0xa0] sm:$0xff]
    %v2594 = vld [vmem:[#allocation4 + $0xa8] sm:$0xff]
    %v2595 = vld [vmem:[#allocation4 + $0xb0] sm:$0xff]
    %v2596 = vld [vmem:[#allocation4 + $0xb8] sm:$0xff]
    %v2597 = vld [vmem:[#allocation4 + $0xc0] sm:$0xff]
    %v2598 = vld [vmem:[#allocation4 + $0xc8] sm:$0xff]
    %v2599 = vld [vmem:[#allocation4 + $0xd0] sm:$0xff]
    %v2600 = vld [vmem:[#allocation4 + $0xd8] sm:$0xff]
    %v2601 = vld [vmem:[#allocation4 + $0xe0] sm:$0xff]
    %v2602 = vld [vmem:[#allocation4 + $0xe8] sm:$0xff]
    %v2603 = vld [vmem:[#allocation4 + $0xf0] sm:$0xff]
    %v2604 = vld [vmem:[#allocation4 + $0xf8] sm:$0xff]
    %v2605 = vld [vmem:[#allocation4 + $0x100] sm:$0xff]
    %v2606 = vld [vmem:[#allocation4 + $0x108] sm:$0xff]
    %v2607 = vld [vmem:[#allocation4 + $0x110] sm:$0xff]
    %v2608 = vld [vmem:[#allocation4 + $0x118] sm:$0xff]
    %v2609 = vld [vmem:[#allocation4 + $0x120] sm:$0xff]
    %v2610 = vld [vmem:[#allocation4 + $0x128] sm:$0xff]
    %v2611 = vld [vmem:[#allocation4 + $0x130] sm:$0xff]
    %v2612 = vld [vmem:[#allocation4 + $0x138] sm:$0xff]
    %v2613 = vld [vmem:[#allocation4 + $0x140] sm:$0xff]
    %v2614 = vld [vmem:[#allocation4 + $0x148] sm:$0xff]
    %v2615 = vld [vmem:[#allocation4 + $0x150] sm:$0xff]
    %v2616 = vld [vmem:[#allocation4 + $0x158] sm:$0xff]
    %v2617 = vld [vmem:[#allocation4 + $0x160] sm:$0xff]
    %v2618 = vld [vmem:[#allocation4 + $0x168] sm:$0xff]
    %v2619 = vld [vmem:[#allocation4 + $0x170] sm:$0xff]
    %v2620 = vld [vmem:[#allocation4 + $0x178] sm:$0xff]
    %v2621 = vld [vmem:[#allocation4 + $0x180] sm:$0xff]
    %v2622 = vld [vmem:[#allocation4 + $0x188] sm:$0xff]
    %v2623 = vld [vmem:[#allocation4 + $0x190] sm:$0xff]
    %v2624 = vld [vmem:[#allocation4 + $0x198] sm:$0xff]
    %v2625 = vld [vmem:[#allocation4 + $0x1a0] sm:$0xff]
    %v2626 = vld [vmem:[#allocation4 + $0x1a8] sm:$0xff]
    %v2627 = vld [vmem:[#allocation4 + $0x1b0] sm:$0xff]
    %v2628 = vld [vmem:[#allocation4 + $0x1b8] sm:$0x3]
    %v2629 = vld [vmem:[%s2] sm:$0xf]
    %v2630 = vld [vmem:[%s2 + $0x4] sm:$0xf]
    %v2631 = vld [vmem:[%s2 + $0x8] sm:$0xf]
    %v2632 = vld [vmem:[%s2 + $0xc] sm:$0xf]
    %v2633 = vld [vmem:[%s2 + $0x10] sm:$0xf]
    %v2634 = vld [vmem:[%s2 + $0x14] sm:$0xf]
    %v2635 = vld [vmem:[%s2 + $0x18] sm:$0xf]
    %v2636 = vld [vmem:[%s2 + $0x1c] sm:$0xf]
    %v2637 = vld [vmem:[%s2 + $0x20] sm:$0xf]
    %v2638 = vld [vmem:[%s2 + $0x24] sm:$0xf]
    %v2639 = vld [vmem:[%s2 + $0x28] sm:$0xf]
    %v2640 = vld [vmem:[%s2 + $0x2c] sm:$0xf]
    %v2641 = vld [vmem:[%s2 + $0x30] sm:$0xf]
    %v2642 = vld [vmem:[%s2 + $0x34] sm:$0xf]
    %v2643 = vld [vmem:[%s2 + $0x38] sm:$0xf]
    %v2644 = vld [vmem:[%s2 + $0x3c] sm:$0xf]
    %v2645 = vld [vmem:[#allocation4 + $0x8] sm:$0xe0]
    %v2646 = vld [vmem:[#allocation4 + $0x1b8] sm:$0xff]
    %v2647 = vld [vmem:[#allocation4 + $0x1c0] sm:$0x7f]
    %s2648 = scalar_lea.vmem %s2, 64
    %v2649 = vld [vmem:[%s2648] sm:$0xf]
    %v2650 = vld [vmem:[%s2648 + $0x4] sm:$0xf]
    %v2651 = vld [vmem:[%s2648 + $0x8] sm:$0xf]
    %v2652 = vld [vmem:[%s2648 + $0xc] sm:$0xf]
    %v2653 = vld [vmem:[%s2648 + $0x10] sm:$0xf]
    %v2654 = vld [vmem:[%s2648 + $0x14] sm:$0xf]
    %v2655 = vld [vmem:[%s2648 + $0x18] sm:$0xf]
    %v2656 = vld [vmem:[%s2648 + $0x1c] sm:$0xf]
    %v2657 = vld [vmem:[%s2648 + $0x20] sm:$0xf]
    %v2658 = vld [vmem:[%s2648 + $0x24] sm:$0xf]
    %v2659 = vld [vmem:[%s2648 + $0x28] sm:$0xf]
    %v2660 = vld [vmem:[%s2648 + $0x2c] sm:$0xf]
    %v2661 = vld [vmem:[%s2648 + $0x30] sm:$0xf]
    %v2662 = vld [vmem:[%s2648 + $0x34] sm:$0xf]
    %v2663 = vld [vmem:[%s2648 + $0x38] sm:$0xf]
    %v2664 = vld [vmem:[%s2648 + $0x3c] sm:$0xf]
    %vm2721 = vcmask 1042432
    %v2722 = vrot.slane %v2645, 5
    %v2723 = vrot.slane %v2575, 5
    %v2724 = vsel %vm2721, %v2722, %v2723
    %v2725 = vrot.slane %v2576, 5
    %v2726 = vsel %vm2721, %v2723, %v2725
    %v2727 = vrot.slane %v2577, 5
    %v2728 = vsel %vm2721, %v2725, %v2727
    %v2729 = vrot.slane %v2578, 5
    %v2730 = vsel %vm2721, %v2727, %v2729
    %v2731 = vrot.slane %v2579, 5
    %v2732 = vsel %vm2721, %v2729, %v2731
    %v2733 = vrot.slane %v2580, 5
    %v2734 = vsel %vm2721, %v2731, %v2733
    %v2735 = vrot.slane %v2581, 5
    %v2736 = vsel %vm2721, %v2733, %v2735
    %v2737 = vrot.slane %v2582, 5
    %v2738 = vsel %vm2721, %v2735, %v2737
    %v2739 = vrot.slane %v2583, 5
    %v2740 = vsel %vm2721, %v2737, %v2739
    %v2741 = vrot.slane %v2584, 5
    %v2742 = vsel %vm2721, %v2739, %v2741
    %v2743 = vrot.slane %v2585, 5
    %v2744 = vsel %vm2721, %v2741, %v2743
    %v2745 = vrot.slane %v2586, 5
    %v2746 = vsel %vm2721, %v2743, %v2745
    %v2747 = vrot.slane %v2587, 5
    %v2748 = vsel %vm2721, %v2745, %v2747
    %v2749 = vrot.slane %v2588, 5
    %v2750 = vsel %vm2721, %v2747, %v2749
    %v2751 = vrot.slane %v2589, 5
    %v2752 = vsel %vm2721, %v2749, %v2751
    %v2753 = vrot.slane %v2590, 5
    %v2754 = vsel %vm2721, %v2751, %v2753
    %v2755 = vrot.slane %v2591, 5
    %v2756 = vsel %vm2721, %v2753, %v2755
    %v2757 = vrot.slane %v2592, 5
    %v2758 = vsel %vm2721, %v2755, %v2757
    %v2759 = vrot.slane %v2593, 5
    %v2760 = vsel %vm2721, %v2757, %v2759
    %v2761 = vrot.slane %v2594, 5
    %v2762 = vsel %vm2721, %v2759, %v2761
    %v2763 = vrot.slane %v2595, 5
    %v2764 = vsel %vm2721, %v2761, %v2763
    %v2765 = vrot.slane %v2596, 5
    %v2766 = vsel %vm2721, %v2763, %v2765
    %v2767 = vrot.slane %v2597, 5
    %v2768 = vsel %vm2721, %v2765, %v2767
    %v2769 = vrot.slane %v2598, 5
    %v2770 = vsel %vm2721, %v2767, %v2769
    %v2771 = vrot.slane %v2599, 5
    %v2772 = vsel %vm2721, %v2769, %v2771
    %v2773 = vrot.slane %v2600, 5
    %v2774 = vsel %vm2721, %v2771, %v2773
    %v2775 = vrot.slane %v2601, 5
    %v2776 = vsel %vm2721, %v2773, %v2775
    %v2777 = vrot.slane %v2602, 5
    %v2778 = vsel %vm2721, %v2775, %v2777
    %v2779 = vrot.slane %v2603, 5
    %v2780 = vsel %vm2721, %v2777, %v2779
    %v2781 = vrot.slane %v2604, 5
    %v2782 = vsel %vm2721, %v2779, %v2781
    %v2783 = vrot.slane %v2605, 5
    %v2784 = vsel %vm2721, %v2781, %v2783
    %v2785 = vrot.slane %v2606, 5
    %v2786 = vsel %vm2721, %v2783, %v2785
    %v2787 = vrot.slane %v2607, 5
    %v2788 = vsel %vm2721, %v2785, %v2787
    %v2789 = vrot.slane %v2608, 5
    %v2790 = vsel %vm2721, %v2787, %v2789
    %v2791 = vrot.slane %v2609, 5
    %v2792 = vsel %vm2721, %v2789, %v2791
    %v2793 = vrot.slane %v2610, 5
    %v2794 = vsel %vm2721, %v2791, %v2793
    %v2795 = vrot.slane %v2611, 5
    %v2796 = vsel %vm2721, %v2793, %v2795
    %v2797 = vrot.slane %v2612, 5
    %v2798 = vsel %vm2721, %v2795, %v2797
    %v2799 = vrot.slane %v2613, 5
    %v2800 = vsel %vm2721, %v2797, %v2799
    %v2801 = vrot.slane %v2614, 5
    %v2802 = vsel %vm2721, %v2799, %v2801
    %v2803 = vrot.slane %v2615, 5
    %v2804 = vsel %vm2721, %v2801, %v2803
    %v2805 = vrot.slane %v2616, 5
    %v2806 = vsel %vm2721, %v2803, %v2805
    %v2807 = vrot.slane %v2617, 5
    %v2808 = vsel %vm2721, %v2805, %v2807
    %v2809 = vrot.slane %v2618, 5
    %v2810 = vsel %vm2721, %v2807, %v2809
    %v2811 = vrot.slane %v2619, 5
    %v2812 = vsel %vm2721, %v2809, %v2811
    %v2813 = vrot.slane %v2620, 5
    %v2814 = vsel %vm2721, %v2811, %v2813
    %v2815 = vrot.slane %v2621, 5
    %v2816 = vsel %vm2721, %v2813, %v2815
    %v2817 = vrot.slane %v2622, 5
    %v2818 = vsel %vm2721, %v2815, %v2817
    %v2819 = vrot.slane %v2623, 5
    %v2820 = vsel %vm2721, %v2817, %v2819
    %v2821 = vrot.slane %v2624, 5
    %v2822 = vsel %vm2721, %v2819, %v2821
    %v2823 = vrot.slane %v2625, 5
    %v2824 = vsel %vm2721, %v2821, %v2823
    %v2825 = vrot.slane %v2626, 5
    %v2826 = vsel %vm2721, %v2823, %v2825
    %v2827 = vrot.slane %v2627, 5
    %v2828 = vsel %vm2721, %v2825, %v2827
    %v2829 = vrot.slane %v2646, 5
    %v2830 = vsel %vm2721, %v2827, %v2829
    %v2831 = vrot.slane %v2647, 5
    %v2832 = vsel %vm2721, %v2829, %v2831
    %v2905 = vunpack.c.l.b16 %v2649
    %v2906 = vunpack.c.l.b16 %v2650
    %v2907 = vunpack.c.l.b16 %v2651
    %v2908 = vunpack.c.l.b16 %v2652
    %v2909 = vunpack.c.l.b16 %v2653
    %v2910 = vunpack.c.l.b16 %v2654
    %v2911 = vunpack.c.l.b16 %v2655
    %v2912 = vunpack.c.l.b16 %v2656
    %v2913 = vunpack.c.l.b16 %v2657
    %v2914 = vunpack.c.l.b16 %v2658
    %v2915 = vunpack.c.l.b16 %v2659
    %v2916 = vunpack.c.l.b16 %v2660
    %v2917 = vunpack.c.l.b16 %v2661
    %v2918 = vunpack.c.l.b16 %v2662
    %v2919 = vunpack.c.l.b16 %v2663
    %v2920 = vunpack.c.l.b16 %v2664
    %v2921 = vpack.c.b16 %v2906, %v2905
    %v2922 = vpack.c.b16 %v2908, %v2907
    %v2923 = vpack.c.b16 %v2910, %v2909
    %v2924 = vpack.c.b16 %v2912, %v2911
    %v2925 = vpack.c.b16 %v2914, %v2913
    %v2926 = vpack.c.b16 %v2916, %v2915
    %v2927 = vpack.c.b16 %v2918, %v2917
    %v2928 = vpack.c.b16 %v2920, %v2919
    %2937 = vmatprep.subr.bf16.mxu0 0
    %2938 = vmatpush1.bf16.msra.mxu0 %v2921
    %2939 = vmatprep.subr.bf16.mxu0 0
    %2940 = vmatpush1.bf16.msra.mxu0 %v2922
    %2941 = vmatprep.subr.bf16.mxu0 0
    %2942 = vmatpush1.bf16.msra.mxu0 %v2923
    %2943 = vmatprep.subr.bf16.mxu0 0
    %2944 = vmatpush1.bf16.msra.mxu0 %v2924
    %2945 = vmatprep.subr.bf16.mxu0 0
    %2946 = vmatpush1.bf16.msra.mxu0 %v2925
    %2947 = vmatprep.subr.bf16.mxu0 0
    %2948 = vmatpush1.bf16.msra.mxu0 %v2926
    %2949 = vmatprep.subr.bf16.mxu0 0
    %2950 = vmatpush1.bf16.msra.mxu0 %v2927
    %2951 = vmatprep.subr.bf16.mxu0 0
    %2952 = vmatpush1.bf16.msra.mxu0 %v2928
    %2953 = vmatprep.subr.bf16.mxu0 0
    %2954 = vmatpush1.bf16.msra.mxu0 0
    %2955 = vmatprep.subr.bf16.mxu0 0
    %2956 = vmatpush1.bf16.msra.mxu0 0
    %2957 = vmatprep.subr.bf16.mxu0 0
    %2958 = vmatpush1.bf16.msra.mxu0 0
    %2959 = vmatprep.subr.bf16.mxu0 0
    %2960 = vmatpush1.bf16.msra.mxu0 0
    %2961 = vmatprep.subr.bf16.mxu0 0
    %2962 = vmatpush1.bf16.msra.mxu0 0
    %2963 = vmatprep.subr.bf16.mxu0 0
    %2964 = vmatpush1.bf16.msra.mxu0 0
    %2965 = vmatprep.subr.bf16.mxu0 0
    %2966 = vmatpush1.bf16.msra.mxu0 0
    %2967 = vmatprep.subr.bf16.mxu0 0
    %2968 = vmatpush1.bf16.msra.mxu0 0
    %2969 = vmatprep.mubr.bf16.mxu0 0
    %2970 = vmatmul.mubr.bf16.gmra.mrb[0].mxu0 %v2724
    %v2971 = vpop.f32.mrb[0].mxu0
    %v2972 = vadd.f32 0.0, %v2971
    %v2973 = vpop.f32.mrb[0].mxu0
    %v2974 = vpop.f32.mrb[0].mxu0
    %v2975 = vadd.f32 0.0, %v2974
    %v2976 = vpop.f32.mrb[0].mxu0
    %2977 = vmatprep.mubr.bf16.mxu0 0
    %2978 = vmatmul.mubr.bf16.gmra.mrb[0].mxu0 %v2726
    %v2979 = vpop.f32.mrb[0].mxu0
    %v2980 = vadd.f32 0.0, %v2979
    %v2981 = vpop.f32.mrb[0].mxu0
    %v2982 = vpop.f32.mrb[0].mxu0
    %v2983 = vadd.f32 0.0, %v2982
    %v2984 = vpop.f32.mrb[0].mxu0
    %2985 = vmatprep.mubr.bf16.mxu0 0
    %2986 = vmatmul.mubr.bf16.gmra.mrb[0].mxu0 %v2728
    %v2987 = vpop.f32.mrb[0].mxu0
    %v2988 = vadd.f32 0.0, %v2987
    %v2989 = vpop.f32.mrb[0].mxu0
    %v2990 = vpop.f32.mrb[0].mxu0
    %v2991 = vadd.f32 0.0, %v2990
    %v2992 = vpop.f32.mrb[0].mxu0
    %2993 = vmatprep.mubr.bf16.mxu0 0
    %2994 = vmatmul.mubr.bf16.gmra.mrb[0].mxu0 %v2730
    %v2995 = vpop.f32.mrb[0].mxu0
    %v2996 = vadd.f32 0.0, %v2995
    %v2997 = vpop.f32.mrb[0].mxu0
    %v2998 = vpop.f32.mrb[0].mxu0
    %v2999 = vadd.f32 0.0, %v2998
    %v3000 = vpop.f32.mrb[0].mxu0
    %3001 = vmatprep.mubr.bf16.mxu0 0
    %3002 = vmatmul.mubr.bf16.gmra.mrb[0].mxu0 %v2732
    %v3003 = vpop.f32.mrb[0].mxu0
    %v3004 = vadd.f32 0.0, %v3003
    %v3005 = vpop.f32.mrb[0].mxu0
    %v3006 = vpop.f32.mrb[0].mxu0
    %v3007 = vadd.f32 0.0, %v3006
    %v3008 = vpop.f32.mrb[0].mxu0
    %3009 = vmatprep.mubr.bf16.mxu0 0
    %3010 = vmatmul.mubr.bf16.gmra.mrb[0].mxu0 %v2734
    %v3011 = vpop.f32.mrb[0].mxu0
    %v3012 = vadd.f32 0.0, %v3011
    %v3013 = vpop.f32.mrb[0].mxu0
    %v3014 = vpop.f32.mrb[0].mxu0
    %v3015 = vadd.f32 0.0, %v3014
    %v3016 = vpop.f32.mrb[0].mxu0
    %3017 = vmatprep.mubr.bf16.mxu0 0
    %3018 = vmatmul.mubr.bf16.gmra.mrb[0].mxu0 %v2736
    %v3019 = vpop.f32.mrb[0].mxu0
    %v3020 = vadd.f32 0.0, %v3019
    %v3021 = vpop.f32.mrb[0].mxu0
    %v3022 = vpop.f32.mrb[0].mxu0
    %v3023 = vadd.f32 0.0, %v3022
    %v3024 = vpop.f32.mrb[0].mxu0
    %3025 = vmatprep.mubr.bf16.mxu0 0
    %3026 = vmatmul.mubr.bf16.gmra.mrb[0].mxu0 %v2738
    %v3027 = vpop.f32.mrb[0].mxu0
    %v3028 = vadd.f32 0.0, %v3027
    %v3029 = vpop.f32.mrb[0].mxu0
    %v3030 = vpop.f32.mrb[0].mxu0
    %v3031 = vadd.f32 0.0, %v3030
    %v3032 = vpop.f32.mrb[0].mxu0
    %3033 = vmatprep.mubr.bf16.mxu0 0
    %3034 = vmatmul.mubr.bf16.gmra.mrb[0].mxu0 %v2740
    %v3035 = vpop.f32.mrb[0].mxu0
    %v3036 = vadd.f32 0.0, %v3035
    %v3037 = vpop.f32.mrb[0].mxu0
    %v3038 = vpop.f32.mrb[0].mxu0
    %v3039 = vadd.f32 0.0, %v3038
    %v3040 = vpop.f32.mrb[0].mxu0
    %3041 = vmatprep.mubr.bf16.mxu0 0
    %3042 = vmatmul.mubr.bf16.gmra.mrb[0].mxu0 %v2742
    %v3043 = vpop.f32.mrb[0].mxu0
    %v3044 = vadd.f32 0.0, %v3043
    %v3045 = vpop.f32.mrb[0].mxu0
    %v3046 = vpop.f32.mrb[0].mxu0
    %v3047 = vadd.f32 0.0, %v3046
    %v3048 = vpop.f32.mrb[0].mxu0
    %3049 = vmatprep.mubr.bf16.mxu0 0
    %3050 = vmatmul.mubr.bf16.gmra.mrb[0].mxu0 %v2744
    %v3051 = vpop.f32.mrb[0].mxu0
    %v3052 = vadd.f32 0.0, %v3051
    %v3053 = vpop.f32.mrb[0].mxu0
    %v3054 = vpop.f32.mrb[0].mxu0
    %v3055 = vadd.f32 0.0, %v3054
    %v3056 = vpop.f32.mrb[0].mxu0
    %3057 = vmatprep.mubr.bf16.mxu0 0
    %3058 = vmatmul.mubr.bf16.gmra.mrb[0].mxu0 %v2746
    %v3059 = vpop.f32.mrb[0].mxu0
    %v3060 = vadd.f32 0.0, %v3059
    %v3061 = vpop.f32.mrb[0].mxu0
    %v3062 = vpop.f32.mrb[0].mxu0
    %v3063 = vadd.f32 0.0, %v3062
    %v3064 = vpop.f32.mrb[0].mxu0
    %3065 = vmatprep.mubr.bf16.mxu0 0
    %3066 = vmatmul.mubr.bf16.gmra.mrb[0].mxu0 %v2748
    %v3067 = vpop.f32.mrb[0].mxu0
    %v3068 = vadd.f32 0.0, %v3067
    %v3069 = vpop.f32.mrb[0].mxu0
    %v3070 = vpop.f32.mrb[0].mxu0
    %v3071 = vadd.f32 0.0, %v3070
    %v3072 = vpop.f32.mrb[0].mxu0
    %3073 = vmatprep.mubr.bf16.mxu0 0
    %3074 = vmatmul.mubr.bf16.gmra.mrb[0].mxu0 %v2750
    %v3075 = vpop.f32.mrb[0].mxu0
    %v3076 = vadd.f32 0.0, %v3075
    %v3077 = vpop.f32.mrb[0].mxu0
    %v3078 = vpop.f32.mrb[0].mxu0
    %v3079 = vadd.f32 0.0, %v3078
    %v3080 = vpop.f32.mrb[0].mxu0
    %3081 = vmatprep.mubr.bf16.mxu0 0
    %3082 = vmatmul.mubr.bf16.gmra.mrb[0].mxu0 %v2752
    %v3083 = vpop.f32.mrb[0].mxu0
    %v3084 = vadd.f32 0.0, %v3083
    %v3085 = vpop.f32.mrb[0].mxu0
    %v3086 = vpop.f32.mrb[0].mxu0
    %v3087 = vadd.f32 0.0, %v3086
    %v3088 = vpop.f32.mrb[0].mxu0
    %3089 = vmatprep.mubr.bf16.mxu0 0
    %3090 = vmatmul.mubr.bf16.gmra.mrb[0].mxu0 %v2754
    %v3091 = vpop.f32.mrb[0].mxu0
    %v3092 = vadd.f32 0.0, %v3091
    %v3093 = vpop.f32.mrb[0].mxu0
    %v3094 = vpop.f32.mrb[0].mxu0
    %v3095 = vadd.f32 0.0, %v3094
    %v3096 = vpop.f32.mrb[0].mxu0
    %3097 = vmatprep.mubr.bf16.mxu0 0
    %3098 = vmatmul.mubr.bf16.gmra.mrb[0].mxu0 %v2756
    %v3099 = vpop.f32.mrb[0].mxu0
    %v3100 = vadd.f32 0.0, %v3099
    %v3101 = vpop.f32.mrb[0].mxu0
    %v3102 = vpop.f32.mrb[0].mxu0
    %v3103 = vadd.f32 0.0, %v3102
    %v3104 = vpop.f32.mrb[0].mxu0
    %3105 = vmatprep.mubr.bf16.mxu0 0
    %3106 = vmatmul.mubr.bf16.gmra.mrb[0].mxu0 %v2758
    %v3107 = vpop.f32.mrb[0].mxu0
    %v3108 = vadd.f32 0.0, %v3107
    %v3109 = vpop.f32.mrb[0].mxu0
    %v3110 = vpop.f32.mrb[0].mxu0
    %v3111 = vadd.f32 0.0, %v3110
    %v3112 = vpop.f32.mrb[0].mxu0
    %3113 = vmatprep.mubr.bf16.mxu0 0
    %3114 = vmatmul.mubr.bf16.gmra.mrb[0].mxu0 %v2760
    %v3115 = vpop.f32.mrb[0].mxu0
    %v3116 = vadd.f32 0.0, %v3115
    %v3117 = vpop.f32.mrb[0].mxu0
    %v3118 = vpop.f32.mrb[0].mxu0
    %v3119 = vadd.f32 0.0, %v3118
    %v3120 = vpop.f32.mrb[0].mxu0
    %3121 = vmatprep.mubr.bf16.mxu0 0
    %3122 = vmatmul.mubr.bf16.gmra.mrb[0].mxu0 %v2762
    %v3123 = vpop.f32.mrb[0].mxu0
    %v3124 = vadd.f32 0.0, %v3123
    %v3125 = vpop.f32.mrb[0].mxu0
    %v3126 = vpop.f32.mrb[0].mxu0
    %v3127 = vadd.f32 0.0, %v3126
    %v3128 = vpop.f32.mrb[0].mxu0
    %3129 = vmatprep.mubr.bf16.mxu0 0
    %3130 = vmatmul.mubr.bf16.gmra.mrb[0].mxu0 %v2764
    %v3131 = vpop.f32.mrb[0].mxu0
    %v3132 = vadd.f32 0.0, %v3131
    %v3133 = vpop.f32.mrb[0].mxu0
    %v3134 = vpop.f32.mrb[0].mxu0
    %v3135 = vadd.f32 0.0, %v3134
    %v3136 = vpop.f32.mrb[0].mxu0
    %3137 = vmatprep.mubr.bf16.mxu0 0
    %3138 = vmatmul.mubr.bf16.gmra.mrb[0].mxu0 %v2766
    %v3139 = vpop.f32.mrb[0].mxu0
    %v3140 = vadd.f32 0.0, %v3139
    %v3141 = vpop.f32.mrb[0].mxu0
    %v3142 = vpop.f32.mrb[0].mxu0
    %v3143 = vadd.f32 0.0, %v3142
    %v3144 = vpop.f32.mrb[0].mxu0
    %3145 = vmatprep.mubr.bf16.mxu0 0
    %3146 = vmatmul.mubr.bf16.gmra.mrb[0].mxu0 %v2768
    %v3147 = vpop.f32.mrb[0].mxu0
    %v3148 = vadd.f32 0.0, %v3147
    %v3149 = vpop.f32.mrb[0].mxu0
    %v3150 = vpop.f32.mrb[0].mxu0
    %v3151 = vadd.f32 0.0, %v3150
    %v3152 = vpop.f32.mrb[0].mxu0
    %3153 = vmatprep.mubr.bf16.mxu0 0
    %3154 = vmatmul.mubr.bf16.gmra.mrb[0].mxu0 %v2770
    %v3155 = vpop.f32.mrb[0].mxu0
    %v3156 = vadd.f32 0.0, %v3155
    %v3157 = vpop.f32.mrb[0].mxu0
    %v3158 = vpop.f32.mrb[0].mxu0
    %v3159 = vadd.f32 0.0, %v3158
    %v3160 = vpop.f32.mrb[0].mxu0
    %3161 = vmatprep.mubr.bf16.mxu0 0
    %3162 = vmatmul.mubr.bf16.gmra.mrb[0].mxu0 %v2772
    %v3163 = vpop.f32.mrb[0].mxu0
    %v3164 = vadd.f32 0.0, %v3163
    %v3165 = vpop.f32.mrb[0].mxu0
    %v3166 = vpop.f32.mrb[0].mxu0
    %v3167 = vadd.f32 0.0, %v3166
    %v3168 = vpop.f32.mrb[0].mxu0
    %3169 = vmatprep.mubr.bf16.mxu0 0
    %3170 = vmatmul.mubr.bf16.gmra.mrb[0].mxu0 %v2774
    %v3171 = vpop.f32.mrb[0].mxu0
    %v3172 = vadd.f32 0.0, %v3171
    %v3173 = vpop.f32.mrb[0].mxu0
    %v3174 = vpop.f32.mrb[0].mxu0
    %v3175 = vadd.f32 0.0, %v3174
    %v3176 = vpop.f32.mrb[0].mxu0
    %3177 = vmatprep.mubr.bf16.mxu0 0
    %3178 = vmatmul.mubr.bf16.gmra.mrb[0].mxu0 %v2776
    %v3179 = vpop.f32.mrb[0].mxu0
    %v3180 = vadd.f32 0.0, %v3179
    %v3181 = vpop.f32.mrb[0].mxu0
    %v3182 = vpop.f32.mrb[0].mxu0
    %v3183 = vadd.f32 0.0, %v3182
    %v3184 = vpop.f32.mrb[0].mxu0
    %3185 = vmatprep.mubr.bf16.mxu0 0
    %3186 = vmatmul.mubr.bf16.gmra.mrb[0].mxu0 %v2778
    %v3187 = vpop.f32.mrb[0].mxu0
    %v3188 = vadd.f32 0.0, %v3187
    %v3189 = vpop.f32.mrb[0].mxu0
    %v3190 = vpop.f32.mrb[0].mxu0
    %v3191 = vadd.f32 0.0, %v3190
    %v3192 = vpop.f32.mrb[0].mxu0
    %3193 = vmatprep.mubr.bf16.mxu0 0
    %3194 = vmatmul.mubr.bf16.gmra.mrb[0].mxu0 %v2780
    %v3195 = vpop.f32.mrb[0].mxu0
    %v3196 = vadd.f32 0.0, %v3195
    %v3197 = vpop.f32.mrb[0].mxu0
    %v3198 = vpop.f32.mrb[0].mxu0
    %v3199 = vadd.f32 0.0, %v3198
    %v3200 = vpop.f32.mrb[0].mxu0
    %3201 = vmatprep.mubr.bf16.mxu0 0
    %3202 = vmatmul.mubr.bf16.gmra.mrb[0].mxu0 %v2782
    %v3203 = vpop.f32.mrb[0].mxu0
    %v3204 = vadd.f32 0.0, %v3203
    %v3205 = vpop.f32.mrb[0].mxu0
    %v3206 = vpop.f32.mrb[0].mxu0
    %v3207 = vadd.f32 0.0, %v3206
    %v3208 = vpop.f32.mrb[0].mxu0
    %3209 = vmatprep.mubr.bf16.mxu0 0
    %3210 = vmatmul.mubr.bf16.gmra.mrb[0].mxu0 %v2784
    %v3211 = vpop.f32.mrb[0].mxu0
    %v3212 = vadd.f32 0.0, %v3211
    %v3213 = vpop.f32.mrb[0].mxu0
    %v3214 = vpop.f32.mrb[0].mxu0
    %v3215 = vadd.f32 0.0, %v3214
    %v3216 = vpop.f32.mrb[0].mxu0
    %3217 = vmatprep.mubr.bf16.mxu0 0
    %3218 = vmatmul.mubr.bf16.gmra.mrb[0].mxu0 %v2786
    %v3219 = vpop.f32.mrb[0].mxu0
    %v3220 = vadd.f32 0.0, %v3219
    %v3221 = vpop.f32.mrb[0].mxu0
    %v3222 = vpop.f32.mrb[0].mxu0
    %v3223 = vadd.f32 0.0, %v3222
    %v3224 = vpop.f32.mrb[0].mxu0
    %3225 = vmatprep.mubr.bf16.mxu0 0
    %3226 = vmatmul.mubr.bf16.gmra.mrb[0].mxu0 %v2788
    %v3227 = vpop.f32.mrb[0].mxu0
    %v3228 = vadd.f32 0.0, %v3227
    %v3229 = vpop.f32.mrb[0].mxu0
    %v3230 = vpop.f32.mrb[0].mxu0
    %v3231 = vadd.f32 0.0, %v3230
    %v3232 = vpop.f32.mrb[0].mxu0
    %3233 = vmatprep.mubr.bf16.mxu0 0
    %3234 = vmatmul.mubr.bf16.gmra.mrb[0].mxu0 %v2790
    %v3235 = vpop.f32.mrb[0].mxu0
    %v3236 = vadd.f32 0.0, %v3235
    %v3237 = vpop.f32.mrb[0].mxu0
    %v3238 = vpop.f32.mrb[0].mxu0
    %v3239 = vadd.f32 0.0, %v3238
    %v3240 = vpop.f32.mrb[0].mxu0
    %3241 = vmatprep.mubr.bf16.mxu0 0
    %3242 = vmatmul.mubr.bf16.gmra.mrb[0].mxu0 %v2792
    %v3243 = vpop.f32.mrb[0].mxu0
    %v3244 = vadd.f32 0.0, %v3243
    %v3245 = vpop.f32.mrb[0].mxu0
    %v3246 = vpop.f32.mrb[0].mxu0
    %v3247 = vadd.f32 0.0, %v3246
    %v3248 = vpop.f32.mrb[0].mxu0
    %3249 = vmatprep.mubr.bf16.mxu0 0
    %3250 = vmatmul.mubr.bf16.gmra.mrb[0].mxu0 %v2794
    %v3251 = vpop.f32.mrb[0].mxu0
    %v3252 = vadd.f32 0.0, %v3251
    %v3253 = vpop.f32.mrb[0].mxu0
    %v3254 = vpop.f32.mrb[0].mxu0
    %v3255 = vadd.f32 0.0, %v3254
    %v3256 = vpop.f32.mrb[0].mxu0
    %3257 = vmatprep.mubr.bf16.mxu0 0
    %3258 = vmatmul.mubr.bf16.gmra.mrb[0].mxu0 %v2796
    %v3259 = vpop.f32.mrb[0].mxu0
    %v3260 = vadd.f32 0.0, %v3259
    %v3261 = vpop.f32.mrb[0].mxu0
    %v3262 = vpop.f32.mrb[0].mxu0
    %v3263 = vadd.f32 0.0, %v3262
    %v3264 = vpop.f32.mrb[0].mxu0
    %3265 = vmatprep.mubr.bf16.mxu0 0
    %3266 = vmatmul.mubr.bf16.gmra.mrb[0].mxu0 %v2798
    %v3267 = vpop.f32.mrb[0].mxu0
    %v3268 = vadd.f32 0.0, %v3267
    %v3269 = vpop.f32.mrb[0].mxu0
    %v3270 = vpop.f32.mrb[0].mxu0
    %v3271 = vadd.f32 0.0, %v3270
    %v3272 = vpop.f32.mrb[0].mxu0
    %3273 = vmatprep.mubr.bf16.mxu0 0
    %3274 = vmatmul.mubr.bf16.gmra.mrb[0].mxu0 %v2800
    %v3275 = vpop.f32.mrb[0].mxu0
    %v3276 = vadd.f32 0.0, %v3275
    %v3277 = vpop.f32.mrb[0].mxu0
    %v3278 = vpop.f32.mrb[0].mxu0
    %v3279 = vadd.f32 0.0, %v3278
    %v3280 = vpop.f32.mrb[0].mxu0
    %3281 = vmatprep.mubr.bf16.mxu0 0
    %3282 = vmatmul.mubr.bf16.gmra.mrb[0].mxu0 %v2802
    %v3283 = vpop.f32.mrb[0].mxu0
    %v3284 = vadd.f32 0.0, %v3283
    %v3285 = vpop.f32.mrb[0].mxu0
    %v3286 = vpop.f32.mrb[0].mxu0
    %v3287 = vadd.f32 0.0, %v3286
    %v3288 = vpop.f32.mrb[0].mxu0
    %3289 = vmatprep.mubr.bf16.mxu0 0
    %3290 = vmatmul.mubr.bf16.gmra.mrb[0].mxu0 %v2804
    %v3291 = vpop.f32.mrb[0].mxu0
    %v3292 = vadd.f32 0.0, %v3291
    %v3293 = vpop.f32.mrb[0].mxu0
    %v3294 = vpop.f32.mrb[0].mxu0
    %v3295 = vadd.f32 0.0, %v3294
    %v3296 = vpop.f32.mrb[0].mxu0
    %3297 = vmatprep.mubr.bf16.mxu0 0
    %3298 = vmatmul.mubr.bf16.gmra.mrb[0].mxu0 %v2806
    %v3299 = vpop.f32.mrb[0].mxu0
    %v3300 = vadd.f32 0.0, %v3299
    %v3301 = vpop.f32.mrb[0].mxu0
    %v3302 = vpop.f32.mrb[0].mxu0
    %v3303 = vadd.f32 0.0, %v3302
    %v3304 = vpop.f32.mrb[0].mxu0
    %3305 = vmatprep.mubr.bf16.mxu0 0
    %3306 = vmatmul.mubr.bf16.gmra.mrb[0].mxu0 %v2808
    %v3307 = vpop.f32.mrb[0].mxu0
    %v3308 = vadd.f32 0.0, %v3307
    %v3309 = vpop.f32.mrb[0].mxu0
    %v3310 = vpop.f32.mrb[0].mxu0
    %v3311 = vadd.f32 0.0, %v3310
    %v3312 = vpop.f32.mrb[0].mxu0
    %3313 = vmatprep.mubr.bf16.mxu0 0
    %3314 = vmatmul.mubr.bf16.gmra.mrb[0].mxu0 %v2810
    %v3315 = vpop.f32.mrb[0].mxu0
    %v3316 = vadd.f32 0.0, %v3315
    %v3317 = vpop.f32.mrb[0].mxu0
    %v3318 = vpop.f32.mrb[0].mxu0
    %v3319 = vadd.f32 0.0, %v3318
    %v3320 = vpop.f32.mrb[0].mxu0
    %3321 = vmatprep.mubr.bf16.mxu0 0
    %3322 = vmatmul.mubr.bf16.gmra.mrb[0].mxu0 %v2812
    %v3323 = vpop.f32.mrb[0].mxu0
    %v3324 = vadd.f32 0.0, %v3323
    %v3325 = vpop.f32.mrb[0].mxu0
    %v3326 = vpop.f32.mrb[0].mxu0
    %v3327 = vadd.f32 0.0, %v3326
    %v3328 = vpop.f32.mrb[0].mxu0
    %3329 = vmatprep.mubr.bf16.mxu0 0
    %3330 = vmatmul.mubr.bf16.gmra.mrb[0].mxu0 %v2814
    %v3331 = vpop.f32.mrb[0].mxu0
    %v3332 = vadd.f32 0.0, %v3331
    %v3333 = vpop.f32.mrb[0].mxu0
    %v3334 = vpop.f32.mrb[0].mxu0
    %v3335 = vadd.f32 0.0, %v3334
    %v3336 = vpop.f32.mrb[0].mxu0
    %3337 = vmatprep.mubr.bf16.mxu0 0
    %3338 = vmatmul.mubr.bf16.gmra.mrb[0].mxu0 %v2816
    %v3339 = vpop.f32.mrb[0].mxu0
    %v3340 = vadd.f32 0.0, %v3339
    %v3341 = vpop.f32.mrb[0].mxu0
    %v3342 = vpop.f32.mrb[0].mxu0
    %v3343 = vadd.f32 0.0, %v3342
    %v3344 = vpop.f32.mrb[0].mxu0
    %3345 = vmatprep.mubr.bf16.mxu0 0
    %3346 = vmatmul.mubr.bf16.gmra.mrb[0].mxu0 %v2818
    %v3347 = vpop.f32.mrb[0].mxu0
    %v3348 = vadd.f32 0.0, %v3347
    %v3349 = vpop.f32.mrb[0].mxu0
    %v3350 = vpop.f32.mrb[0].mxu0
    %v3351 = vadd.f32 0.0, %v3350
    %v3352 = vpop.f32.mrb[0].mxu0
    %3353 = vmatprep.mubr.bf16.mxu0 0
    %3354 = vmatmul.mubr.bf16.gmra.mrb[0].mxu0 %v2820
    %v3355 = vpop.f32.mrb[0].mxu0
    %v3356 = vadd.f32 0.0, %v3355
    %v3357 = vpop.f32.mrb[0].mxu0
    %v3358 = vpop.f32.mrb[0].mxu0
    %v3359 = vadd.f32 0.0, %v3358
    %v3360 = vpop.f32.mrb[0].mxu0
    %3361 = vmatprep.mubr.bf16.mxu0 0
    %3362 = vmatmul.mubr.bf16.gmra.mrb[0].mxu0 %v2822
    %v3363 = vpop.f32.mrb[0].mxu0
    %v3364 = vadd.f32 0.0, %v3363
    %v3365 = vpop.f32.mrb[0].mxu0
    %v3366 = vpop.f32.mrb[0].mxu0
    %v3367 = vadd.f32 0.0, %v3366
    %v3368 = vpop.f32.mrb[0].mxu0
    %3369 = vmatprep.mubr.bf16.mxu0 0
    %3370 = vmatmul.mubr.bf16.gmra.mrb[0].mxu0 %v2824
    %v3371 = vpop.f32.mrb[0].mxu0
    %v3372 = vadd.f32 0.0, %v3371
    %v3373 = vpop.f32.mrb[0].mxu0
    %v3374 = vpop.f32.mrb[0].mxu0
    %v3375 = vadd.f32 0.0, %v3374
    %v3376 = vpop.f32.mrb[0].mxu0
    %3377 = vmatprep.mubr.bf16.mxu0 0
    %3378 = vmatmul.mubr.bf16.gmra.mrb[0].mxu0 %v2826
    %v3379 = vpop.f32.mrb[0].mxu0
    %v3380 = vadd.f32 0.0, %v3379
    %v3381 = vpop.f32.mrb[0].mxu0
    %v3382 = vpop.f32.mrb[0].mxu0
    %v3383 = vadd.f32 0.0, %v3382
    %v3384 = vpop.f32.mrb[0].mxu0
    %3385 = vmatprep.mubr.bf16.mxu0 0
    %3386 = vmatmul.mubr.bf16.gmra.mrb[0].mxu0 %v2828
    %v3387 = vpop.f32.mrb[0].mxu0
    %v3388 = vadd.f32 0.0, %v3387
    %v3389 = vpop.f32.mrb[0].mxu0
    %v3390 = vpop.f32.mrb[0].mxu0
    %v3391 = vadd.f32 0.0, %v3390
    %v3392 = vpop.f32.mrb[0].mxu0
    %3393 = vmatprep.mubr.bf16.mxu0 0
    %3394 = vmatmul.mubr.bf16.gmra.mrb[0].mxu0 %v2830
    %v3395 = vpop.f32.mrb[0].mxu0
    %v3396 = vadd.f32 0.0, %v3395
    %v3397 = vpop.f32.mrb[0].mxu0
    %v3398 = vpop.f32.mrb[0].mxu0
    %v3399 = vadd.f32 0.0, %v3398
    %v3400 = vpop.f32.mrb[0].mxu0
    %3401 = vmatprep.mubr.bf16.mxu0 0
    %3402 = vmatmul.mubr.bf16.gmra.mrb[0].mxu0 %v2832
    %v3403 = vpop.f32.mrb[0].mxu0
    %v3404 = vadd.f32 0.0, %v3403
    %v3405 = vpop.f32.mrb[0].mxu0
    %v3406 = vpop.f32.mrb[0].mxu0
    %v3407 = vadd.f32 0.0, %v3406
    %v3408 = vpop.f32.mrb[0].mxu0
    %3409 = vmatprep.mubr.bf16.mxu0 0
    %3410 = vmatmul.mubr.bf16.gmra.mrb[0].mxu0 %v2831
    %v3411 = vpop.f32.mrb[0].mxu0
    %v3412 = vadd.f32 0.0, %v3411
    %v3413 = vpop.f32.mrb[0].mxu0
    %v3414 = vpop.f32.mrb[0].mxu0
    %v3415 = vpop.f32.mrb[0].mxu0
    %3416 = vdwg.mxu0
    %v3433 = vunpack.c.l.b16 %v2629
    %v3434 = vunpack.c.l.b16 %v2630
    %v3435 = vunpack.c.l.b16 %v2631
    %v3436 = vunpack.c.l.b16 %v2632
    %v3437 = vunpack.c.l.b16 %v2633
    %v3438 = vunpack.c.l.b16 %v2634
    %v3439 = vunpack.c.l.b16 %v2635
    %v3440 = vunpack.c.l.b16 %v2636
    %v3441 = vunpack.c.l.b16 %v2637
    %v3442 = vunpack.c.l.b16 %v2638
    %v3443 = vunpack.c.l.b16 %v2639
    %v3444 = vunpack.c.l.b16 %v2640
    %v3445 = vunpack.c.l.b16 %v2641
    %v3446 = vunpack.c.l.b16 %v2642
    %v3447 = vunpack.c.l.b16 %v2643
    %v3448 = vunpack.c.l.b16 %v2644
    %v3449 = vpack.c.b16 %v3434, %v3433
    %v3450 = vpack.c.b16 %v3436, %v3435
    %v3451 = vpack.c.b16 %v3438, %v3437
    %v3452 = vpack.c.b16 %v3440, %v3439
    %v3453 = vpack.c.b16 %v3442, %v3441
    %v3454 = vpack.c.b16 %v3444, %v3443
    %v3455 = vpack.c.b16 %v3446, %v3445
    %v3456 = vpack.c.b16 %v3448, %v3447
    %3465 = vmatprep.subr.bf16.mxu0 0
    %3466 = vmatpush1.bf16.msra.mxu0 %v3449
    %3467 = vmatprep.subr.bf16.mxu0 0
    %3468 = vmatpush1.bf16.msra.mxu0 %v3450
    %3469 = vmatprep.subr.bf16.mxu0 0
    %3470 = vmatpush1.bf16.msra.mxu0 %v3451
    %3471 = vmatprep.subr.bf16.mxu0 0
    %3472 = vmatpush1.bf16.msra.mxu0 %v3452
    %3473 = vmatprep.subr.bf16.mxu0 0
    %3474 = vmatpush1.bf16.msra.mxu0 %v3453
    %3475 = vmatprep.subr.bf16.mxu0 0
    %3476 = vmatpush1.bf16.msra.mxu0 %v3454
    %3477 = vmatprep.subr.bf16.mxu0 0
    %3478 = vmatpush1.bf16.msra.mxu0 %v3455
    %3479 = vmatprep.subr.bf16.mxu0 0
    %3480 = vmatpush1.bf16.msra.mxu0 %v3456
    %3481 = vmatprep.subr.bf16.mxu0 0
    %3482 = vmatpush1.bf16.msra.mxu0 0
    %3483 = vmatprep.subr.bf16.mxu0 0
    %3484 = vmatpush1.bf16.msra.mxu0 0
    %3485 = vmatprep.subr.bf16.mxu0 0
    %3486 = vmatpush1.bf16.msra.mxu0 0
    %3487 = vmatprep.subr.bf16.mxu0 0
    %3488 = vmatpush1.bf16.msra.mxu0 0
    %3489 = vmatprep.subr.bf16.mxu0 0
    %3490 = vmatpush1.bf16.msra.mxu0 0
    %3491 = vmatprep.subr.bf16.mxu0 0
    %3492 = vmatpush1.bf16.msra.mxu0 0
    %3493 = vmatprep.subr.bf16.mxu0 0
    %3494 = vmatpush1.bf16.msra.mxu0 0
    %3495 = vmatprep.subr.bf16.mxu0 0
    %3496 = vmatpush1.bf16.msra.mxu0 0
    %3497 = vmatprep.mubr.bf16.mxu0 0
    %3498 = vmatmul.mubr.bf16.gmra.mrb[0].mxu0 %v2573
    %v3499 = vpop.f32.mrb[0].mxu0
    %v3500 = vadd.f32 %v2972, %v3499
    %v3501 = vpop.f32.mrb[0].mxu0
    %v3502 = vpop.f32.mrb[0].mxu0
    %v3503 = vadd.f32 %v2975, %v3502
    %v3504 = vpop.f32.mrb[0].mxu0
    %3505 = vmatprep.mubr.bf16.mxu0 0
    %3506 = vmatmul.mubr.bf16.gmra.mrb[0].mxu0 %v2574
    %v3507 = vpop.f32.mrb[0].mxu0
    %v3508 = vadd.f32 %v2980, %v3507
    %v3509 = vpop.f32.mrb[0].mxu0
    %v3510 = vpop.f32.mrb[0].mxu0
    %v3511 = vadd.f32 %v2983, %v3510
    %v3512 = vpop.f32.mrb[0].mxu0
    %3513 = vmatprep.mubr.bf16.mxu0 0
    %3514 = vmatmul.mubr.bf16.gmra.mrb[0].mxu0 %v2575
    %v3515 = vpop.f32.mrb[0].mxu0
    %v3516 = vadd.f32 %v2988, %v3515
    %v3517 = vpop.f32.mrb[0].mxu0
    %v3518 = vpop.f32.mrb[0].mxu0
    %v3519 = vadd.f32 %v2991, %v3518
    %v3520 = vpop.f32.mrb[0].mxu0
    %3521 = vmatprep.mubr.bf16.mxu0 0
    %3522 = vmatmul.mubr.bf16.gmra.mrb[0].mxu0 %v2576
    %v3523 = vpop.f32.mrb[0].mxu0
    %v3524 = vadd.f32 %v2996, %v3523
    %v3525 = vpop.f32.mrb[0].mxu0
    %v3526 = vpop.f32.mrb[0].mxu0
    %v3527 = vadd.f32 %v2999, %v3526
    %v3528 = vpop.f32.mrb[0].mxu0
    %3529 = vmatprep.mubr.bf16.mxu0 0
    %3530 = vmatmul.mubr.bf16.gmra.mrb[0].mxu0 %v2577
    %v3531 = vpop.f32.mrb[0].mxu0
    %v3532 = vadd.f32 %v3004, %v3531
    %v3533 = vpop.f32.mrb[0].mxu0
    %v3534 = vpop.f32.mrb[0].mxu0
    %v3535 = vadd.f32 %v3007, %v3534
    %v3536 = vpop.f32.mrb[0].mxu0
    %3537 = vmatprep.mubr.bf16.mxu0 0
    %3538 = vmatmul.mubr.bf16.gmra.mrb[0].mxu0 %v2578
    %v3539 = vpop.f32.mrb[0].mxu0
    %v3540 = vadd.f32 %v3012, %v3539
    %v3541 = vpop.f32.mrb[0].mxu0
    %v3542 = vpop.f32.mrb[0].mxu0
    %v3543 = vadd.f32 %v3015, %v3542
    %v3544 = vpop.f32.mrb[0].mxu0
    %3545 = vmatprep.mubr.bf16.mxu0 0
    %3546 = vmatmul.mubr.bf16.gmra.mrb[0].mxu0 %v2579
    %v3547 = vpop.f32.mrb[0].mxu0
    %v3548 = vadd.f32 %v3020, %v3547
    %v3549 = vpop.f32.mrb[0].mxu0
    %v3550 = vpop.f32.mrb[0].mxu0
    %v3551 = vadd.f32 %v3023, %v3550
    %v3552 = vpop.f32.mrb[0].mxu0
    %3553 = vmatprep.mubr.bf16.mxu0 0
    %3554 = vmatmul.mubr.bf16.gmra.mrb[0].mxu0 %v2580
    %v3555 = vpop.f32.mrb[0].mxu0
    %v3556 = vadd.f32 %v3028, %v3555
    %v3557 = vpop.f32.mrb[0].mxu0
    %v3558 = vpop.f32.mrb[0].mxu0
    %v3559 = vadd.f32 %v3031, %v3558
    %v3560 = vpop.f32.mrb[0].mxu0
    %3561 = vmatprep.mubr.bf16.mxu0 0
    %3562 = vmatmul.mubr.bf16.gmra.mrb[0].mxu0 %v2581
    %v3563 = vpop.f32.mrb[0].mxu0
    %v3564 = vadd.f32 %v3036, %v3563
    %v3565 = vpop.f32.mrb[0].mxu0
    %v3566 = vpop.f32.mrb[0].mxu0
    %v3567 = vadd.f32 %v3039, %v3566
    %v3568 = vpop.f32.mrb[0].mxu0
    %3569 = vmatprep.mubr.bf16.mxu0 0
    %3570 = vmatmul.mubr.bf16.gmra.mrb[0].mxu0 %v2582
    %v3571 = vpop.f32.mrb[0].mxu0
    %v3572 = vadd.f32 %v3044, %v3571
    %v3573 = vpop.f32.mrb[0].mxu0
    %v3574 = vpop.f32.mrb[0].mxu0
    %v3575 = vadd.f32 %v3047, %v3574
    %v3576 = vpop.f32.mrb[0].mxu0
    %3577 = vmatprep.mubr.bf16.mxu0 0
    %3578 = vmatmul.mubr.bf16.gmra.mrb[0].mxu0 %v2583
    %v3579 = vpop.f32.mrb[0].mxu0
    %v3580 = vadd.f32 %v3052, %v3579
    %v3581 = vpop.f32.mrb[0].mxu0
    %v3582 = vpop.f32.mrb[0].mxu0
    %v3583 = vadd.f32 %v3055, %v3582
    %v3584 = vpop.f32.mrb[0].mxu0
    %3585 = vmatprep.mubr.bf16.mxu0 0
    %3586 = vmatmul.mubr.bf16.gmra.mrb[0].mxu0 %v2584
    %v3587 = vpop.f32.mrb[0].mxu0
    %v3588 = vadd.f32 %v3060, %v3587
    %v3589 = vpop.f32.mrb[0].mxu0
    %v3590 = vpop.f32.mrb[0].mxu0
    %v3591 = vadd.f32 %v3063, %v3590
    %v3592 = vpop.f32.mrb[0].mxu0
    %3593 = vmatprep.mubr.bf16.mxu0 0
    %3594 = vmatmul.mubr.bf16.gmra.mrb[0].mxu0 %v2585
    %v3595 = vpop.f32.mrb[0].mxu0
    %v3596 = vadd.f32 %v3068, %v3595
    %v3597 = vpop.f32.mrb[0].mxu0
    %v3598 = vpop.f32.mrb[0].mxu0
    %v3599 = vadd.f32 %v3071, %v3598
    %v3600 = vpop.f32.mrb[0].mxu0
    %3601 = vmatprep.mubr.bf16.mxu0 0
    %3602 = vmatmul.mubr.bf16.gmra.mrb[0].mxu0 %v2586
    %v3603 = vpop.f32.mrb[0].mxu0
    %v3604 = vadd.f32 %v3076, %v3603
    %v3605 = vpop.f32.mrb[0].mxu0
    %v3606 = vpop.f32.mrb[0].mxu0
    %v3607 = vadd.f32 %v3079, %v3606
    %v3608 = vpop.f32.mrb[0].mxu0
    %3609 = vmatprep.mubr.bf16.mxu0 0
    %3610 = vmatmul.mubr.bf16.gmra.mrb[0].mxu0 %v2587
    %v3611 = vpop.f32.mrb[0].mxu0
    %v3612 = vadd.f32 %v3084, %v3611
    %v3613 = vpop.f32.mrb[0].mxu0
    %v3614 = vpop.f32.mrb[0].mxu0
    %v3615 = vadd.f32 %v3087, %v3614
    %v3616 = vpop.f32.mrb[0].mxu0
    %3617 = vmatprep.mubr.bf16.mxu0 0
    %3618 = vmatmul.mubr.bf16.gmra.mrb[0].mxu0 %v2588
    %v3619 = vpop.f32.mrb[0].mxu0
    %v3620 = vadd.f32 %v3092, %v3619
    %v3621 = vpop.f32.mrb[0].mxu0
    %v3622 = vpop.f32.mrb[0].mxu0
    %v3623 = vadd.f32 %v3095, %v3622
    %v3624 = vpop.f32.mrb[0].mxu0
    %3625 = vmatprep.mubr.bf16.mxu0 0
    %3626 = vmatmul.mubr.bf16.gmra.mrb[0].mxu0 %v2589
    %v3627 = vpop.f32.mrb[0].mxu0
    %v3628 = vadd.f32 %v3100, %v3627
    %v3629 = vpop.f32.mrb[0].mxu0
    %v3630 = vpop.f32.mrb[0].mxu0
    %v3631 = vadd.f32 %v3103, %v3630
    %v3632 = vpop.f32.mrb[0].mxu0
    %3633 = vmatprep.mubr.bf16.mxu0 0
    %3634 = vmatmul.mubr.bf16.gmra.mrb[0].mxu0 %v2590
    %v3635 = vpop.f32.mrb[0].mxu0
    %v3636 = vadd.f32 %v3108, %v3635
    %v3637 = vpop.f32.mrb[0].mxu0
    %v3638 = vpop.f32.mrb[0].mxu0
    %v3639 = vadd.f32 %v3111, %v3638
    %v3640 = vpop.f32.mrb[0].mxu0
    %3641 = vmatprep.mubr.bf16.mxu0 0
    %3642 = vmatmul.mubr.bf16.gmra.mrb[0].mxu0 %v2591
    %v3643 = vpop.f32.mrb[0].mxu0
    %v3644 = vadd.f32 %v3116, %v3643
    %v3645 = vpop.f32.mrb[0].mxu0
    %v3646 = vpop.f32.mrb[0].mxu0
    %v3647 = vadd.f32 %v3119, %v3646
    %v3648 = vpop.f32.mrb[0].mxu0
    %3649 = vmatprep.mubr.bf16.mxu0 0
    %3650 = vmatmul.mubr.bf16.gmra.mrb[0].mxu0 %v2592
    %v3651 = vpop.f32.mrb[0].mxu0
    %v3652 = vadd.f32 %v3124, %v3651
    %v3653 = vpop.f32.mrb[0].mxu0
    %v3654 = vpop.f32.mrb[0].mxu0
    %v3655 = vadd.f32 %v3127, %v3654
    %v3656 = vpop.f32.mrb[0].mxu0
    %3657 = vmatprep.mubr.bf16.mxu0 0
    %3658 = vmatmul.mubr.bf16.gmra.mrb[0].mxu0 %v2593
    %v3659 = vpop.f32.mrb[0].mxu0
    %v3660 = vadd.f32 %v3132, %v3659
    %v3661 = vpop.f32.mrb[0].mxu0
    %v3662 = vpop.f32.mrb[0].mxu0
    %v3663 = vadd.f32 %v3135, %v3662
    %v3664 = vpop.f32.mrb[0].mxu0
    %3665 = vmatprep.mubr.bf16.mxu0 0
    %3666 = vmatmul.mubr.bf16.gmra.mrb[0].mxu0 %v2594
    %v3667 = vpop.f32.mrb[0].mxu0
    %v3668 = vadd.f32 %v3140, %v3667
    %v3669 = vpop.f32.mrb[0].mxu0
    %v3670 = vpop.f32.mrb[0].mxu0
    %v3671 = vadd.f32 %v3143, %v3670
    %v3672 = vpop.f32.mrb[0].mxu0
    %3673 = vmatprep.mubr.bf16.mxu0 0
    %3674 = vmatmul.mubr.bf16.gmra.mrb[0].mxu0 %v2595
    %v3675 = vpop.f32.mrb[0].mxu0
    %v3676 = vadd.f32 %v3148, %v3675
    %v3677 = vpop.f32.mrb[0].mxu0
    %v3678 = vpop.f32.mrb[0].mxu0
    %v3679 = vadd.f32 %v3151, %v3678
    %v3680 = vpop.f32.mrb[0].mxu0
    %3681 = vmatprep.mubr.bf16.mxu0 0
    %3682 = vmatmul.mubr.bf16.gmra.mrb[0].mxu0 %v2596
    %v3683 = vpop.f32.mrb[0].mxu0
    %v3684 = vadd.f32 %v3156, %v3683
    %v3685 = vpop.f32.mrb[0].mxu0
    %v3686 = vpop.f32.mrb[0].mxu0
    %v3687 = vadd.f32 %v3159, %v3686
    %v3688 = vpop.f32.mrb[0].mxu0
    %3689 = vmatprep.mubr.bf16.mxu0 0
    %3690 = vmatmul.mubr.bf16.gmra.mrb[0].mxu0 %v2597
    %v3691 = vpop.f32.mrb[0].mxu0
    %v3692 = vadd.f32 %v3164, %v3691
    %v3693 = vpop.f32.mrb[0].mxu0
    %v3694 = vpop.f32.mrb[0].mxu0
    %v3695 = vadd.f32 %v3167, %v3694
    %v3696 = vpop.f32.mrb[0].mxu0
    %3697 = vmatprep.mubr.bf16.mxu0 0
    %3698 = vmatmul.mubr.bf16.gmra.mrb[0].mxu0 %v2598
    %v3699 = vpop.f32.mrb[0].mxu0
    %v3700 = vadd.f32 %v3172, %v3699
    %v3701 = vpop.f32.mrb[0].mxu0
    %v3702 = vpop.f32.mrb[0].mxu0
    %v3703 = vadd.f32 %v3175, %v3702
    %v3704 = vpop.f32.mrb[0].mxu0
    %3705 = vmatprep.mubr.bf16.mxu0 0
    %3706 = vmatmul.mubr.bf16.gmra.mrb[0].mxu0 %v2599
    %v3707 = vpop.f32.mrb[0].mxu0
    %v3708 = vadd.f32 %v3180, %v3707
    %v3709 = vpop.f32.mrb[0].mxu0
    %v3710 = vpop.f32.mrb[0].mxu0
    %v3711 = vadd.f32 %v3183, %v3710
    %v3712 = vpop.f32.mrb[0].mxu0
    %3713 = vmatprep.mubr.bf16.mxu0 0
    %3714 = vmatmul.mubr.bf16.gmra.mrb[0].mxu0 %v2600
    %v3715 = vpop.f32.mrb[0].mxu0
    %v3716 = vadd.f32 %v3188, %v3715
    %v3717 = vpop.f32.mrb[0].mxu0
    %v3718 = vpop.f32.mrb[0].mxu0
    %v3719 = vadd.f32 %v3191, %v3718
    %v3720 = vpop.f32.mrb[0].mxu0
    %3721 = vmatprep.mubr.bf16.mxu0 0
    %3722 = vmatmul.mubr.bf16.gmra.mrb[0].mxu0 %v2601
    %v3723 = vpop.f32.mrb[0].mxu0
    %v3724 = vadd.f32 %v3196, %v3723
    %v3725 = vpop.f32.mrb[0].mxu0
    %v3726 = vpop.f32.mrb[0].mxu0
    %v3727 = vadd.f32 %v3199, %v3726
    %v3728 = vpop.f32.mrb[0].mxu0
    %3729 = vmatprep.mubr.bf16.mxu0 0
    %3730 = vmatmul.mubr.bf16.gmra.mrb[0].mxu0 %v2602
    %v3731 = vpop.f32.mrb[0].mxu0
    %v3732 = vadd.f32 %v3204, %v3731
    %v3733 = vpop.f32.mrb[0].mxu0
    %v3734 = vpop.f32.mrb[0].mxu0
    %v3735 = vadd.f32 %v3207, %v3734
    %v3736 = vpop.f32.mrb[0].mxu0
    %3737 = vmatprep.mubr.bf16.mxu0 0
    %3738 = vmatmul.mubr.bf16.gmra.mrb[0].mxu0 %v2603
    %v3739 = vpop.f32.mrb[0].mxu0
    %v3740 = vadd.f32 %v3212, %v3739
    %v3741 = vpop.f32.mrb[0].mxu0
    %v3742 = vpop.f32.mrb[0].mxu0
    %v3743 = vadd.f32 %v3215, %v3742
    %v3744 = vpop.f32.mrb[0].mxu0
    %3745 = vmatprep.mubr.bf16.mxu0 0
    %3746 = vmatmul.mubr.bf16.gmra.mrb[0].mxu0 %v2604
    %v3747 = vpop.f32.mrb[0].mxu0
    %v3748 = vadd.f32 %v3220, %v3747
    %v3749 = vpop.f32.mrb[0].mxu0
    %v3750 = vpop.f32.mrb[0].mxu0
    %v3751 = vadd.f32 %v3223, %v3750
    %v3752 = vpop.f32.mrb[0].mxu0
    %3753 = vmatprep.mubr.bf16.mxu0 0
    %3754 = vmatmul.mubr.bf16.gmra.mrb[0].mxu0 %v2605
    %v3755 = vpop.f32.mrb[0].mxu0
    %v3756 = vadd.f32 %v3228, %v3755
    %v3757 = vpop.f32.mrb[0].mxu0
    %v3758 = vpop.f32.mrb[0].mxu0
    %v3759 = vadd.f32 %v3231, %v3758
    %v3760 = vpop.f32.mrb[0].mxu0
    %3761 = vmatprep.mubr.bf16.mxu0 0
    %3762 = vmatmul.mubr.bf16.gmra.mrb[0].mxu0 %v2606
    %v3763 = vpop.f32.mrb[0].mxu0
    %v3764 = vadd.f32 %v3236, %v3763
    %v3765 = vpop.f32.mrb[0].mxu0
    %v3766 = vpop.f32.mrb[0].mxu0
    %v3767 = vadd.f32 %v3239, %v3766
    %v3768 = vpop.f32.mrb[0].mxu0
    %3769 = vmatprep.mubr.bf16.mxu0 0
    %3770 = vmatmul.mubr.bf16.gmra.mrb[0].mxu0 %v2607
    %v3771 = vpop.f32.mrb[0].mxu0
    %v3772 = vadd.f32 %v3244, %v3771
    %v3773 = vpop.f32.mrb[0].mxu0
    %v3774 = vpop.f32.mrb[0].mxu0
    %v3775 = vadd.f32 %v3247, %v3774
    %v3776 = vpop.f32.mrb[0].mxu0
    %3777 = vmatprep.mubr.bf16.mxu0 0
    %3778 = vmatmul.mubr.bf16.gmra.mrb[0].mxu0 %v2608
    %v3779 = vpop.f32.mrb[0].mxu0
    %v3780 = vadd.f32 %v3252, %v3779
    %v3781 = vpop.f32.mrb[0].mxu0
    %v3782 = vpop.f32.mrb[0].mxu0
    %v3783 = vadd.f32 %v3255, %v3782
    %v3784 = vpop.f32.mrb[0].mxu0
    %3785 = vmatprep.mubr.bf16.mxu0 0
    %3786 = vmatmul.mubr.bf16.gmra.mrb[0].mxu0 %v2609
    %v3787 = vpop.f32.mrb[0].mxu0
    %v3788 = vadd.f32 %v3260, %v3787
    %v3789 = vpop.f32.mrb[0].mxu0
    %v3790 = vpop.f32.mrb[0].mxu0
    %v3791 = vadd.f32 %v3263, %v3790
    %v3792 = vpop.f32.mrb[0].mxu0
    %3793 = vmatprep.mubr.bf16.mxu0 0
    %3794 = vmatmul.mubr.bf16.gmra.mrb[0].mxu0 %v2610
    %v3795 = vpop.f32.mrb[0].mxu0
    %v3796 = vadd.f32 %v3268, %v3795
    %v3797 = vpop.f32.mrb[0].mxu0
    %v3798 = vpop.f32.mrb[0].mxu0
    %v3799 = vadd.f32 %v3271, %v3798
    %v3800 = vpop.f32.mrb[0].mxu0
    %3801 = vmatprep.mubr.bf16.mxu0 0
    %3802 = vmatmul.mubr.bf16.gmra.mrb[0].mxu0 %v2611
    %v3803 = vpop.f32.mrb[0].mxu0
    %v3804 = vadd.f32 %v3276, %v3803
    %v3805 = vpop.f32.mrb[0].mxu0
    %v3806 = vpop.f32.mrb[0].mxu0
    %v3807 = vadd.f32 %v3279, %v3806
    %v3808 = vpop.f32.mrb[0].mxu0
    %3809 = vmatprep.mubr.bf16.mxu0 0
    %3810 = vmatmul.mubr.bf16.gmra.mrb[0].mxu0 %v2612
    %v3811 = vpop.f32.mrb[0].mxu0
    %v3812 = vadd.f32 %v3284, %v3811
    %v3813 = vpop.f32.mrb[0].mxu0
    %v3814 = vpop.f32.mrb[0].mxu0
    %v3815 = vadd.f32 %v3287, %v3814
    %v3816 = vpop.f32.mrb[0].mxu0
    %3817 = vmatprep.mubr.bf16.mxu0 0
    %3818 = vmatmul.mubr.bf16.gmra.mrb[0].mxu0 %v2613
    %v3819 = vpop.f32.mrb[0].mxu0
    %v3820 = vadd.f32 %v3292, %v3819
    %v3821 = vpop.f32.mrb[0].mxu0
    %v3822 = vpop.f32.mrb[0].mxu0
    %v3823 = vadd.f32 %v3295, %v3822
    %v3824 = vpop.f32.mrb[0].mxu0
    %3825 = vmatprep.mubr.bf16.mxu0 0
    %3826 = vmatmul.mubr.bf16.gmra.mrb[0].mxu0 %v2614
    %v3827 = vpop.f32.mrb[0].mxu0
    %v3828 = vadd.f32 %v3300, %v3827
    %v3829 = vpop.f32.mrb[0].mxu0
    %v3830 = vpop.f32.mrb[0].mxu0
    %v3831 = vadd.f32 %v3303, %v3830
    %v3832 = vpop.f32.mrb[0].mxu0
    %3833 = vmatprep.mubr.bf16.mxu0 0
    %3834 = vmatmul.mubr.bf16.gmra.mrb[0].mxu0 %v2615
    %v3835 = vpop.f32.mrb[0].mxu0
    %v3836 = vadd.f32 %v3308, %v3835
    %v3837 = vpop.f32.mrb[0].mxu0
    %v3838 = vpop.f32.mrb[0].mxu0
    %v3839 = vadd.f32 %v3311, %v3838
    %v3840 = vpop.f32.mrb[0].mxu0
    %3841 = vmatprep.mubr.bf16.mxu0 0
    %3842 = vmatmul.mubr.bf16.gmra.mrb[0].mxu0 %v2616
    %v3843 = vpop.f32.mrb[0].mxu0
    %v3844 = vadd.f32 %v3316, %v3843
    %v3845 = vpop.f32.mrb[0].mxu0
    %v3846 = vpop.f32.mrb[0].mxu0
    %v3847 = vadd.f32 %v3319, %v3846
    %v3848 = vpop.f32.mrb[0].mxu0
    %3849 = vmatprep.mubr.bf16.mxu0 0
    %3850 = vmatmul.mubr.bf16.gmra.mrb[0].mxu0 %v2617
    %v3851 = vpop.f32.mrb[0].mxu0
    %v3852 = vadd.f32 %v3324, %v3851
    %v3853 = vpop.f32.mrb[0].mxu0
    %v3854 = vpop.f32.mrb[0].mxu0
    %v3855 = vadd.f32 %v3327, %v3854
    %v3856 = vpop.f32.mrb[0].mxu0
    %3857 = vmatprep.mubr.bf16.mxu0 0
    %3858 = vmatmul.mubr.bf16.gmra.mrb[0].mxu0 %v2618
    %v3859 = vpop.f32.mrb[0].mxu0
    %v3860 = vadd.f32 %v3332, %v3859
    %v3861 = vpop.f32.mrb[0].mxu0
    %v3862 = vpop.f32.mrb[0].mxu0
    %v3863 = vadd.f32 %v3335, %v3862
    %v3864 = vpop.f32.mrb[0].mxu0
    %3865 = vmatprep.mubr.bf16.mxu0 0
    %3866 = vmatmul.mubr.bf16.gmra.mrb[0].mxu0 %v2619
    %v3867 = vpop.f32.mrb[0].mxu0
    %v3868 = vadd.f32 %v3340, %v3867
    %v3869 = vpop.f32.mrb[0].mxu0
    %v3870 = vpop.f32.mrb[0].mxu0
    %v3871 = vadd.f32 %v3343, %v3870
    %v3872 = vpop.f32.mrb[0].mxu0
    %3873 = vmatprep.mubr.bf16.mxu0 0
    %3874 = vmatmul.mubr.bf16.gmra.mrb[0].mxu0 %v2620
    %v3875 = vpop.f32.mrb[0].mxu0
    %v3876 = vadd.f32 %v3348, %v3875
    %v3877 = vpop.f32.mrb[0].mxu0
    %v3878 = vpop.f32.mrb[0].mxu0
    %v3879 = vadd.f32 %v3351, %v3878
    %v3880 = vpop.f32.mrb[0].mxu0
    %3881 = vmatprep.mubr.bf16.mxu0 0
    %3882 = vmatmul.mubr.bf16.gmra.mrb[0].mxu0 %v2621
    %v3883 = vpop.f32.mrb[0].mxu0
    %v3884 = vadd.f32 %v3356, %v3883
    %v3885 = vpop.f32.mrb[0].mxu0
    %v3886 = vpop.f32.mrb[0].mxu0
    %v3887 = vadd.f32 %v3359, %v3886
    %v3888 = vpop.f32.mrb[0].mxu0
    %3889 = vmatprep.mubr.bf16.mxu0 0
    %3890 = vmatmul.mubr.bf16.gmra.mrb[0].mxu0 %v2622
    %v3891 = vpop.f32.mrb[0].mxu0
    %v3892 = vadd.f32 %v3364, %v3891
    %v3893 = vpop.f32.mrb[0].mxu0
    %v3894 = vpop.f32.mrb[0].mxu0
    %v3895 = vadd.f32 %v3367, %v3894
    %v3896 = vpop.f32.mrb[0].mxu0
    %3897 = vmatprep.mubr.bf16.mxu0 0
    %3898 = vmatmul.mubr.bf16.gmra.mrb[0].mxu0 %v2623
    %v3899 = vpop.f32.mrb[0].mxu0
    %v3900 = vadd.f32 %v3372, %v3899
    %v3901 = vpop.f32.mrb[0].mxu0
    %v3902 = vpop.f32.mrb[0].mxu0
    %v3903 = vadd.f32 %v3375, %v3902
    %v3904 = vpop.f32.mrb[0].mxu0
    %3905 = vmatprep.mubr.bf16.mxu0 0
    %3906 = vmatmul.mubr.bf16.gmra.mrb[0].mxu0 %v2624
    %v3907 = vpop.f32.mrb[0].mxu0
    %v3908 = vadd.f32 %v3380, %v3907
    %v3909 = vpop.f32.mrb[0].mxu0
    %v3910 = vpop.f32.mrb[0].mxu0
    %v3911 = vadd.f32 %v3383, %v3910
    %v3912 = vpop.f32.mrb[0].mxu0
    %3913 = vmatprep.mubr.bf16.mxu0 0
    %3914 = vmatmul.mubr.bf16.gmra.mrb[0].mxu0 %v2625
    %v3915 = vpop.f32.mrb[0].mxu0
    %v3916 = vadd.f32 %v3388, %v3915
    %v3917 = vpop.f32.mrb[0].mxu0
    %v3918 = vpop.f32.mrb[0].mxu0
    %v3919 = vadd.f32 %v3391, %v3918
    %v3920 = vpop.f32.mrb[0].mxu0
    %3921 = vmatprep.mubr.bf16.mxu0 0
    %3922 = vmatmul.mubr.bf16.gmra.mrb[0].mxu0 %v2626
    %v3923 = vpop.f32.mrb[0].mxu0
    %v3924 = vadd.f32 %v3396, %v3923
    %v3925 = vpop.f32.mrb[0].mxu0
    %v3926 = vpop.f32.mrb[0].mxu0
    %v3927 = vadd.f32 %v3399, %v3926
    %v3928 = vpop.f32.mrb[0].mxu0
    %3929 = vmatprep.mubr.bf16.mxu0 0
    %3930 = vmatmul.mubr.bf16.gmra.mrb[0].mxu0 %v2627
    %v3931 = vpop.f32.mrb[0].mxu0
    %v3932 = vadd.f32 %v3404, %v3931
    %v3933 = vpop.f32.mrb[0].mxu0
    %v3934 = vpop.f32.mrb[0].mxu0
    %v3935 = vadd.f32 %v3407, %v3934
    %v3936 = vpop.f32.mrb[0].mxu0
    %3937 = vmatprep.mubr.bf16.mxu0 0
    %3938 = vmatmul.mubr.bf16.gmra.mrb[0].mxu0 %v2628
    %v3939 = vpop.f32.mrb[0].mxu0
    %v3940 = vadd.f32 %v3412, %v3939
    %v3941 = vpop.f32.mrb[0].mxu0
    %v3942 = vpop.f32.mrb[0].mxu0
    %v3943 = vpop.f32.mrb[0].mxu0
    %3944 = vdwg.mxu0
    %v3945 = vld [vmem:[#allocation4 + $0x18] sm:$0xfc]
    %v3946 = vld [vmem:[#allocation4 + $0x20] sm:$0xff]
    %v3947 = vld [vmem:[#allocation4 + $0x28] sm:$0xff]
    %v3948 = vld [vmem:[#allocation4 + $0x30] sm:$0xff]
    %v3949 = vld [vmem:[#allocation4 + $0x38] sm:$0xff]
    %v3950 = vld [vmem:[#allocation4 + $0x40] sm:$0xff]
    %v3951 = vld [vmem:[#allocation4 + $0x48] sm:$0xff]
    %v3952 = vld [vmem:[#allocation4 + $0x50] sm:$0xff]
    %v3953 = vld [vmem:[#allocation4 + $0x58] sm:$0xff]
    %v3954 = vld [vmem:[#allocation4 + $0x60] sm:$0xff]
    %v3955 = vld [vmem:[#allocation4 + $0x68] sm:$0xff]
    %v3956 = vld [vmem:[#allocation4 + $0x70] sm:$0xff]
    %v3957 = vld [vmem:[#allocation4 + $0x78] sm:$0xff]
    %v3958 = vld [vmem:[#allocation4 + $0x80] sm:$0xff]
    %v3959 = vld [vmem:[#allocation4 + $0x88] sm:$0xff]
    %v3960 = vld [vmem:[#allocation4 + $0x90] sm:$0xff]
    %v3961 = vld [vmem:[#allocation4 + $0x98] sm:$0xff]
    %v3962 = vld [vmem:[#allocation4 + $0xa0] sm:$0xff]
    %v3963 = vld [vmem:[#allocation4 + $0xa8] sm:$0xff]
    %v3964 = vld [vmem:[#allocation4 + $0xb0] sm:$0xff]
    %v3965 = vld [vmem:[#allocation4 + $0xb8] sm:$0xff]
    %v3966 = vld [vmem:[#allocation4 + $0xc0] sm:$0xff]
    %v3967 = vld [vmem:[#allocation4 + $0xc8] sm:$0xff]
    %v3968 = vld [vmem:[#allocation4 + $0xd0] sm:$0xff]
    %v3969 = vld [vmem:[#allocation4 + $0xd8] sm:$0xff]
    %v3970 = vld [vmem:[#allocation4 + $0xe0] sm:$0xff]
    %v3971 = vld [vmem:[#allocation4 + $0xe8] sm:$0xff]
    %v3972 = vld [vmem:[#allocation4 + $0xf0] sm:$0xff]
    %v3973 = vld [vmem:[#allocation4 + $0xf8] sm:$0xff]
    %v3974 = vld [vmem:[#allocation4 + $0x100] sm:$0xff]
    %v3975 = vld [vmem:[#allocation4 + $0x108] sm:$0xff]
    %v3976 = vld [vmem:[#allocation4 + $0x110] sm:$0xff]
    %v3977 = vld [vmem:[#allocation4 + $0x118] sm:$0xff]
    %v3978 = vld [vmem:[#allocation4 + $0x120] sm:$0xff]
    %v3979 = vld [vmem:[#allocation4 + $0x128] sm:$0xff]
    %v3980 = vld [vmem:[#allocation4 + $0x130] sm:$0xff]
    %v3981 = vld [vmem:[#allocation4 + $0x138] sm:$0xff]
    %v3982 = vld [vmem:[#allocation4 + $0x140] sm:$0xff]
    %v3983 = vld [vmem:[#allocation4 + $0x148] sm:$0xff]
    %v3984 = vld [vmem:[#allocation4 + $0x150] sm:$0xff]
    %v3985 = vld [vmem:[#allocation4 + $0x158] sm:$0xff]
    %v3986 = vld [vmem:[#allocation4 + $0x160] sm:$0xff]
    %v3987 = vld [vmem:[#allocation4 + $0x168] sm:$0xff]
    %v3988 = vld [vmem:[#allocation4 + $0x170] sm:$0xff]
    %v3989 = vld [vmem:[#allocation4 + $0x178] sm:$0xff]
    %v3990 = vld [vmem:[#allocation4 + $0x180] sm:$0xff]
    %v3991 = vld [vmem:[#allocation4 + $0x188] sm:$0xff]
    %v3992 = vld [vmem:[#allocation4 + $0x190] sm:$0xff]
    %v3993 = vld [vmem:[#allocation4 + $0x198] sm:$0xff]
    %v3994 = vld [vmem:[#allocation4 + $0x1a0] sm:$0xff]
    %v3995 = vld [vmem:[#allocation4 + $0x1a8] sm:$0xff]
    %v3996 = vld [vmem:[#allocation4 + $0x1b0] sm:$0xff]
    %v3997 = vld [vmem:[#allocation4 + $0x1b8] sm:$0xff]
    %v3998 = vld [vmem:[#allocation4 + $0x1c0] sm:$0xff]
    %v3999 = vld [vmem:[#allocation4 + $0x1c8] sm:$0xff]
    %v4000 = vld [vmem:[#allocation4 + $0x1d0] sm:$0xf]
    %s4001 = scalar_lea.vmem %s2, 128
    %v4002 = vld [vmem:[%s4001] sm:$0xf]
    %v4003 = vld [vmem:[%s4001 + $0x4] sm:$0xf]
    %v4004 = vld [vmem:[%s4001 + $0x8] sm:$0xf]
    %v4005 = vld [vmem:[%s4001 + $0xc] sm:$0xf]
    %v4006 = vld [vmem:[%s4001 + $0x10] sm:$0xf]
    %v4007 = vld [vmem:[%s4001 + $0x14] sm:$0xf]
    %v4008 = vld [vmem:[%s4001 + $0x18] sm:$0xf]
    %v4009 = vld [vmem:[%s4001 + $0x1c] sm:$0xf]
    %v4010 = vld [vmem:[%s4001 + $0x20] sm:$0xf]
    %v4011 = vld [vmem:[%s4001 + $0x24] sm:$0xf]
    %v4012 = vld [vmem:[%s4001 + $0x28] sm:$0xf]
    %v4013 = vld [vmem:[%s4001 + $0x2c] sm:$0xf]
    %v4014 = vld [vmem:[%s4001 + $0x30] sm:$0xf]
    %v4015 = vld [vmem:[%s4001 + $0x34] sm:$0xf]
    %v4016 = vld [vmem:[%s4001 + $0x38] sm:$0xf]
    %v4017 = vld [vmem:[%s4001 + $0x3c] sm:$0xf]
    %vm4074 = vcmask 1045504
    %v4075 = vrot.slane %v3945, 2
    %v4076 = vrot.slane %v3946, 2
    %v4077 = vsel %vm4074, %v4075, %v4076
    %v4078 = vrot.slane %v3947, 2
    %v4079 = vsel %vm4074, %v4076, %v4078
    %v4080 = vrot.slane %v3948, 2
    %v4081 = vsel %vm4074, %v4078, %v4080
    %v4082 = vrot.slane %v3949, 2
    %v4083 = vsel %vm4074, %v4080, %v4082
    %v4084 = vrot.slane %v3950, 2
    %v4085 = vsel %vm4074, %v4082, %v4084
    %v4086 = vrot.slane %v3951, 2
    %v4087 = vsel %vm4074, %v4084, %v4086
    %v4088 = vrot.slane %v3952, 2
    %v4089 = vsel %vm4074, %v4086, %v4088
    %v4090 = vrot.slane %v3953, 2
    %v4091 = vsel %vm4074, %v4088, %v4090
    %v4092 = vrot.slane %v3954, 2
    %v4093 = vsel %vm4074, %v4090, %v4092
    %v4094 = vrot.slane %v3955, 2
    %v4095 = vsel %vm4074, %v4092, %v4094
    %v4096 = vrot.slane %v3956, 2
    %v4097 = vsel %vm4074, %v4094, %v4096
    %v4098 = vrot.slane %v3957, 2
    %v4099 = vsel %vm4074, %v4096, %v4098
    %v4100 = vrot.slane %v3958, 2
    %v4101 = vsel %vm4074, %v4098, %v4100
    %v4102 = vrot.slane %v3959, 2
    %v4103 = vsel %vm4074, %v4100, %v4102
    %v4104 = vrot.slane %v3960, 2
    %v4105 = vsel %vm4074, %v4102, %v4104
    %v4106 = vrot.slane %v3961, 2
    %v4107 = vsel %vm4074, %v4104, %v4106
    %v4108 = vrot.slane %v3962, 2
    %v4109 = vsel %vm4074, %v4106, %v4108
    %v4110 = vrot.slane %v3963, 2
    %v4111 = vsel %vm4074, %v4108, %v4110
    %v4112 = vrot.slane %v3964, 2
    %v4113 = vsel %vm4074, %v4110, %v4112
    %v4114 = vrot.slane %v3965, 2
    %v4115 = vsel %vm4074, %v4112, %v4114
    %v4116 = vrot.slane %v3966, 2
    %v4117 = vsel %vm4074, %v4114, %v4116
    %v4118 = vrot.slane %v3967, 2
    %v4119 = vsel %vm4074, %v4116, %v4118
    %v4120 = vrot.slane %v3968, 2
    %v4121 = vsel %vm4074, %v4118, %v4120
    %v4122 = vrot.slane %v3969, 2
    %v4123 = vsel %vm4074, %v4120, %v4122
    %v4124 = vrot.slane %v3970, 2
    %v4125 = vsel %vm4074, %v4122, %v4124
    %v4126 = vrot.slane %v3971, 2
    %v4127 = vsel %vm4074, %v4124, %v4126
    %v4128 = vrot.slane %v3972, 2
    %v4129 = vsel %vm4074, %v4126, %v4128
    %v4130 = vrot.slane %v3973, 2
    %v4131 = vsel %vm4074, %v4128, %v4130
    %v4132 = vrot.slane %v3974, 2
    %v4133 = vsel %vm4074, %v4130, %v4132
    %v4134 = vrot.slane %v3975, 2
    %v4135 = vsel %vm4074, %v4132, %v4134
    %v4136 = vrot.slane %v3976, 2
    %v4137 = vsel %vm4074, %v4134, %v4136
    %v4138 = vrot.slane %v3977, 2
    %v4139 = vsel %vm4074, %v4136, %v4138
    %v4140 = vrot.slane %v3978, 2
    %v4141 = vsel %vm4074, %v4138, %v4140
    %v4142 = vrot.slane %v3979, 2
    %v4143 = vsel %vm4074, %v4140, %v4142
    %v4144 = vrot.slane %v3980, 2
    %v4145 = vsel %vm4074, %v4142, %v4144
    %v4146 = vrot.slane %v3981, 2
    %v4147 = vsel %vm4074, %v4144, %v4146
    %v4148 = vrot.slane %v3982, 2
    %v4149 = vsel %vm4074, %v4146, %v4148
    %v4150 = vrot.slane %v3983, 2
    %v4151 = vsel %vm4074, %v4148, %v4150
    %v4152 = vrot.slane %v3984, 2
    %v4153 = vsel %vm4074, %v4150, %v4152
    %v4154 = vrot.slane %v3985, 2
    %v4155 = vsel %vm4074, %v4152, %v4154
    %v4156 = vrot.slane %v3986, 2
    %v4157 = vsel %vm4074, %v4154, %v4156
    %v4158 = vrot.slane %v3987, 2
    %v4159 = vsel %vm4074, %v4156, %v4158
    %v4160 = vrot.slane %v3988, 2
    %v4161 = vsel %vm4074, %v4158, %v4160
    %v4162 = vrot.slane %v3989, 2
    %v4163 = vsel %vm4074, %v4160, %v4162
    %v4164 = vrot.slane %v3990, 2
    %v4165 = vsel %vm4074, %v4162, %v4164
    %v4166 = vrot.slane %v3991, 2
    %v4167 = vsel %vm4074, %v4164, %v4166
    %v4168 = vrot.slane %v3992, 2
    %v4169 = vsel %vm4074, %v4166, %v4168
    %v4170 = vrot.slane %v3993, 2
    %v4171 = vsel %vm4074, %v4168, %v4170
    %v4172 = vrot.slane %v3994, 2
    %v4173 = vsel %vm4074, %v4170, %v4172
    %v4174 = vrot.slane %v3995, 2
    %v4175 = vsel %vm4074, %v4172, %v4174
    %v4176 = vrot.slane %v3996, 2
    %v4177 = vsel %vm4074, %v4174, %v4176
    %v4178 = vrot.slane %v3997, 2
    %v4179 = vsel %vm4074, %v4176, %v4178
    %v4180 = vrot.slane %v3998, 2
    %v4181 = vsel %vm4074, %v4178, %v4180
    %v4182 = vrot.slane %v3999, 2
    %v4183 = vsel %vm4074, %v4180, %v4182
    %v4184 = vrot.slane %v4000, 2
    %v4185 = vsel %vm4074, %v4182, %v4184
    %v4258 = vunpack.c.l.b16 %v4002
    %v4259 = vunpack.c.l.b16 %v4003
    %v4260 = vunpack.c.l.b16 %v4004
    %v4261 = vunpack.c.l.b16 %v4005
    %v4262 = vunpack.c.l.b16 %v4006
    %v4263 = vunpack.c.l.b16 %v4007
    %v4264 = vunpack.c.l.b16 %v4008
    %v4265 = vunpack.c.l.b16 %v4009
    %v4266 = vunpack.c.l.b16 %v4010
    %v4267 = vunpack.c.l.b16 %v4011
    %v4268 = vunpack.c.l.b16 %v4012
    %v4269 = vunpack.c.l.b16 %v4013
    %v4270 = vunpack.c.l.b16 %v4014
    %v4271 = vunpack.c.l.b16 %v4015
    %v4272 = vunpack.c.l.b16 %v4016
    %v4273 = vunpack.c.l.b16 %v4017
    %v4274 = vpack.c.b16 %v4259, %v4258
    %v4275 = vpack.c.b16 %v4261, %v4260
    %v4276 = vpack.c.b16 %v4263, %v4262
    %v4277 = vpack.c.b16 %v4265, %v4264
    %v4278 = vpack.c.b16 %v4267, %v4266
    %v4279 = vpack.c.b16 %v4269, %v4268
    %v4280 = vpack.c.b16 %v4271, %v4270
    %v4281 = vpack.c.b16 %v4273, %v4272
    %4290 = vmatprep.subr.bf16.mxu0 0
    %4291 = vmatpush1.bf16.msra.mxu0 %v4274
    %4292 = vmatprep.subr.bf16.mxu0 0
    %4293 = vmatpush1.bf16.msra.mxu0 %v4275
    %4294 = vmatprep.subr.bf16.mxu0 0
    %4295 = vmatpush1.bf16.msra.mxu0 %v4276
    %4296 = vmatprep.subr.bf16.mxu0 0
    %4297 = vmatpush1.bf16.msra.mxu0 %v4277
    %4298 = vmatprep.subr.bf16.mxu0 0
    %4299 = vmatpush1.bf16.msra.mxu0 %v4278
    %4300 = vmatprep.subr.bf16.mxu0 0
    %4301 = vmatpush1.bf16.msra.mxu0 %v4279
    %4302 = vmatprep.subr.bf16.mxu0 0
    %4303 = vmatpush1.bf16.msra.mxu0 %v4280
    %4304 = vmatprep.subr.bf16.mxu0 0
    %4305 = vmatpush1.bf16.msra.mxu0 %v4281
    %4306 = vmatprep.subr.bf16.mxu0 0
    %4307 = vmatpush1.bf16.msra.mxu0 0
    %4308 = vmatprep.subr.bf16.mxu0 0
    %4309 = vmatpush1.bf16.msra.mxu0 0
    %4310 = vmatprep.subr.bf16.mxu0 0
    %4311 = vmatpush1.bf16.msra.mxu0 0
    %4312 = vmatprep.subr.bf16.mxu0 0
    %4313 = vmatpush1.bf16.msra.mxu0 0
    %4314 = vmatprep.subr.bf16.mxu0 0
    %4315 = vmatpush1.bf16.msra.mxu0 0
    %4316 = vmatprep.subr.bf16.mxu0 0
    %4317 = vmatpush1.bf16.msra.mxu0 0
    %4318 = vmatprep.subr.bf16.mxu0 0
    %4319 = vmatpush1.bf16.msra.mxu0 0
    %4320 = vmatprep.subr.bf16.mxu0 0
    %4321 = vmatpush1.bf16.msra.mxu0 0
    %4322 = vmatprep.mubr.bf16.mxu0 0
    %4323 = vmatmul.mubr.bf16.gmra.mrb[0].mxu0 %v4077
    %v4324 = vpop.f32.mrb[0].mxu0
    %v4325 = vadd.f32 0.0, %v4324
    %v4326 = vpop.f32.mrb[0].mxu0
    %v4327 = vpop.f32.mrb[0].mxu0
    %v4328 = vadd.f32 0.0, %v4327
    %v4329 = vpop.f32.mrb[0].mxu0
    %4330 = vmatprep.mubr.bf16.mxu0 0
    %4331 = vmatmul.mubr.bf16.gmra.mrb[0].mxu0 %v4079
    %v4332 = vpop.f32.mrb[0].mxu0
    %v4333 = vadd.f32 0.0, %v4332
    %v4334 = vpop.f32.mrb[0].mxu0
    %v4335 = vpop.f32.mrb[0].mxu0
    %v4336 = vadd.f32 0.0, %v4335
    %v4337 = vpop.f32.mrb[0].mxu0
    %4338 = vmatprep.mubr.bf16.mxu0 0
    %4339 = vmatmul.mubr.bf16.gmra.mrb[0].mxu0 %v4081
    %v4340 = vpop.f32.mrb[0].mxu0
    %v4341 = vadd.f32 0.0, %v4340
    %v4342 = vpop.f32.mrb[0].mxu0
    %v4343 = vpop.f32.mrb[0].mxu0
    %v4344 = vadd.f32 0.0, %v4343
    %v4345 = vpop.f32.mrb[0].mxu0
    %4346 = vmatprep.mubr.bf16.mxu0 0
    %4347 = vmatmul.mubr.bf16.gmra.mrb[0].mxu0 %v4083
    %v4348 = vpop.f32.mrb[0].mxu0
    %v4349 = vadd.f32 0.0, %v4348
    %v4350 = vpop.f32.mrb[0].mxu0
    %v4351 = vpop.f32.mrb[0].mxu0
    %v4352 = vadd.f32 0.0, %v4351
    %v4353 = vpop.f32.mrb[0].mxu0
    %4354 = vmatprep.mubr.bf16.mxu0 0
    %4355 = vmatmul.mubr.bf16.gmra.mrb[0].mxu0 %v4085
    %v4356 = vpop.f32.mrb[0].mxu0
    %v4357 = vadd.f32 0.0, %v4356
    %v4358 = vpop.f32.mrb[0].mxu0
    %v4359 = vpop.f32.mrb[0].mxu0
    %v4360 = vadd.f32 0.0, %v4359
    %v4361 = vpop.f32.mrb[0].mxu0
    %4362 = vmatprep.mubr.bf16.mxu0 0
    %4363 = vmatmul.mubr.bf16.gmra.mrb[0].mxu0 %v4087
    %v4364 = vpop.f32.mrb[0].mxu0
    %v4365 = vadd.f32 0.0, %v4364
    %v4366 = vpop.f32.mrb[0].mxu0
    %v4367 = vpop.f32.mrb[0].mxu0
    %v4368 = vadd.f32 0.0, %v4367
    %v4369 = vpop.f32.mrb[0].mxu0
    %4370 = vmatprep.mubr.bf16.mxu0 0
    %4371 = vmatmul.mubr.bf16.gmra.mrb[0].mxu0 %v4089
    %v4372 = vpop.f32.mrb[0].mxu0
    %v4373 = vadd.f32 0.0, %v4372
    %v4374 = vpop.f32.mrb[0].mxu0
    %v4375 = vpop.f32.mrb[0].mxu0
    %v4376 = vadd.f32 0.0, %v4375
    %v4377 = vpop.f32.mrb[0].mxu0
    %4378 = vmatprep.mubr.bf16.mxu0 0
    %4379 = vmatmul.mubr.bf16.gmra.mrb[0].mxu0 %v4091
    %v4380 = vpop.f32.mrb[0].mxu0
    %v4381 = vadd.f32 0.0, %v4380
    %v4382 = vpop.f32.mrb[0].mxu0
    %v4383 = vpop.f32.mrb[0].mxu0
    %v4384 = vadd.f32 0.0, %v4383
    %v4385 = vpop.f32.mrb[0].mxu0
    %4386 = vmatprep.mubr.bf16.mxu0 0
    %4387 = vmatmul.mubr.bf16.gmra.mrb[0].mxu0 %v4093
    %v4388 = vpop.f32.mrb[0].mxu0
    %v4389 = vadd.f32 0.0, %v4388
    %v4390 = vpop.f32.mrb[0].mxu0
    %v4391 = vpop.f32.mrb[0].mxu0
    %v4392 = vadd.f32 0.0, %v4391
    %v4393 = vpop.f32.mrb[0].mxu0
    %4394 = vmatprep.mubr.bf16.mxu0 0
    %4395 = vmatmul.mubr.bf16.gmra.mrb[0].mxu0 %v4095
    %v4396 = vpop.f32.mrb[0].mxu0
    %v4397 = vadd.f32 0.0, %v4396
    %v4398 = vpop.f32.mrb[0].mxu0
    %v4399 = vpop.f32.mrb[0].mxu0
    %v4400 = vadd.f32 0.0, %v4399
    %v4401 = vpop.f32.mrb[0].mxu0
    %4402 = vmatprep.mubr.bf16.mxu0 0
    %4403 = vmatmul.mubr.bf16.gmra.mrb[0].mxu0 %v4097
    %v4404 = vpop.f32.mrb[0].mxu0
    %v4405 = vadd.f32 0.0, %v4404
    %v4406 = vpop.f32.mrb[0].mxu0
    %v4407 = vpop.f32.mrb[0].mxu0
    %v4408 = vadd.f32 0.0, %v4407
    %v4409 = vpop.f32.mrb[0].mxu0
    %4410 = vmatprep.mubr.bf16.mxu0 0
    %4411 = vmatmul.mubr.bf16.gmra.mrb[0].mxu0 %v4099
    %v4412 = vpop.f32.mrb[0].mxu0
    %v4413 = vadd.f32 0.0, %v4412
    %v4414 = vpop.f32.mrb[0].mxu0
    %v4415 = vpop.f32.mrb[0].mxu0
    %v4416 = vadd.f32 0.0, %v4415
    %v4417 = vpop.f32.mrb[0].mxu0
    %4418 = vmatprep.mubr.bf16.mxu0 0
    %4419 = vmatmul.mubr.bf16.gmra.mrb[0].mxu0 %v4101
    %v4420 = vpop.f32.mrb[0].mxu0
    %v4421 = vadd.f32 0.0, %v4420
    %v4422 = vpop.f32.mrb[0].mxu0
    %v4423 = vpop.f32.mrb[0].mxu0
    %v4424 = vadd.f32 0.0, %v4423
    %v4425 = vpop.f32.mrb[0].mxu0
    %4426 = vmatprep.mubr.bf16.mxu0 0
    %4427 = vmatmul.mubr.bf16.gmra.mrb[0].mxu0 %v4103
    %v4428 = vpop.f32.mrb[0].mxu0
    %v4429 = vadd.f32 0.0, %v4428
    %v4430 = vpop.f32.mrb[0].mxu0
    %v4431 = vpop.f32.mrb[0].mxu0
    %v4432 = vadd.f32 0.0, %v4431
    %v4433 = vpop.f32.mrb[0].mxu0
    %4434 = vmatprep.mubr.bf16.mxu0 0
    %4435 = vmatmul.mubr.bf16.gmra.mrb[0].mxu0 %v4105
    %v4436 = vpop.f32.mrb[0].mxu0
    %v4437 = vadd.f32 0.0, %v4436
    %v4438 = vpop.f32.mrb[0].mxu0
    %v4439 = vpop.f32.mrb[0].mxu0
    %v4440 = vadd.f32 0.0, %v4439
    %v4441 = vpop.f32.mrb[0].mxu0
    %4442 = vmatprep.mubr.bf16.mxu0 0
    %4443 = vmatmul.mubr.bf16.gmra.mrb[0].mxu0 %v4107
    %v4444 = vpop.f32.mrb[0].mxu0
    %v4445 = vadd.f32 0.0, %v4444
    %v4446 = vpop.f32.mrb[0].mxu0
    %v4447 = vpop.f32.mrb[0].mxu0
    %v4448 = vadd.f32 0.0, %v4447
    %v4449 = vpop.f32.mrb[0].mxu0
    %4450 = vmatprep.mubr.bf16.mxu0 0
    %4451 = vmatmul.mubr.bf16.gmra.mrb[0].mxu0 %v4109
    %v4452 = vpop.f32.mrb[0].mxu0
    %v4453 = vadd.f32 0.0, %v4452
    %v4454 = vpop.f32.mrb[0].mxu0
    %v4455 = vpop.f32.mrb[0].mxu0
    %v4456 = vadd.f32 0.0, %v4455
    %v4457 = vpop.f32.mrb[0].mxu0
    %4458 = vmatprep.mubr.bf16.mxu0 0
    %4459 = vmatmul.mubr.bf16.gmra.mrb[0].mxu0 %v4111
    %v4460 = vpop.f32.mrb[0].mxu0
    %v4461 = vadd.f32 0.0, %v4460
    %v4462 = vpop.f32.mrb[0].mxu0
    %v4463 = vpop.f32.mrb[0].mxu0
    %v4464 = vadd.f32 0.0, %v4463
    %v4465 = vpop.f32.mrb[0].mxu0
    %4466 = vmatprep.mubr.bf16.mxu0 0
    %4467 = vmatmul.mubr.bf16.gmra.mrb[0].mxu0 %v4113
    %v4468 = vpop.f32.mrb[0].mxu0
    %v4469 = vadd.f32 0.0, %v4468
    %v4470 = vpop.f32.mrb[0].mxu0
    %v4471 = vpop.f32.mrb[0].mxu0
    %v4472 = vadd.f32 0.0, %v4471
    %v4473 = vpop.f32.mrb[0].mxu0
    %4474 = vmatprep.mubr.bf16.mxu0 0
    %4475 = vmatmul.mubr.bf16.gmra.mrb[0].mxu0 %v4115
    %v4476 = vpop.f32.mrb[0].mxu0
    %v4477 = vadd.f32 0.0, %v4476
    %v4478 = vpop.f32.mrb[0].mxu0
    %v4479 = vpop.f32.mrb[0].mxu0
    %v4480 = vadd.f32 0.0, %v4479
    %v4481 = vpop.f32.mrb[0].mxu0
    %4482 = vmatprep.mubr.bf16.mxu0 0
    %4483 = vmatmul.mubr.bf16.gmra.mrb[0].mxu0 %v4117
    %v4484 = vpop.f32.mrb[0].mxu0
    %v4485 = vadd.f32 0.0, %v4484
    %v4486 = vpop.f32.mrb[0].mxu0
    %v4487 = vpop.f32.mrb[0].mxu0
    %v4488 = vadd.f32 0.0, %v4487
    %v4489 = vpop.f32.mrb[0].mxu0
    %4490 = vmatprep.mubr.bf16.mxu0 0
    %4491 = vmatmul.mubr.bf16.gmra.mrb[0].mxu0 %v4119
    %v4492 = vpop.f32.mrb[0].mxu0
    %v4493 = vadd.f32 0.0, %v4492
    %v4494 = vpop.f32.mrb[0].mxu0
    %v4495 = vpop.f32.mrb[0].mxu0
    %v4496 = vadd.f32 0.0, %v4495
    %v4497 = vpop.f32.mrb[0].mxu0
    %4498 = vmatprep.mubr.bf16.mxu0 0
    %4499 = vmatmul.mubr.bf16.gmra.mrb[0].mxu0 %v4121
    %v4500 = vpop.f32.mrb[0].mxu0
    %v4501 = vadd.f32 0.0, %v4500
    %v4502 = vpop.f32.mrb[0].mxu0
    %v4503 = vpop.f32.mrb[0].mxu0
    %v4504 = vadd.f32 0.0, %v4503
    %v4505 = vpop.f32.mrb[0].mxu0
    %4506 = vmatprep.mubr.bf16.mxu0 0
    %4507 = vmatmul.mubr.bf16.gmra.mrb[0].mxu0 %v4123
    %v4508 = vpop.f32.mrb[0].mxu0
    %v4509 = vadd.f32 0.0, %v4508
    %v4510 = vpop.f32.mrb[0].mxu0
    %v4511 = vpop.f32.mrb[0].mxu0
    %v4512 = vadd.f32 0.0, %v4511
    %v4513 = vpop.f32.mrb[0].mxu0
    %4514 = vmatprep.mubr.bf16.mxu0 0
    %4515 = vmatmul.mubr.bf16.gmra.mrb[0].mxu0 %v4125
    %v4516 = vpop.f32.mrb[0].mxu0
    %v4517 = vadd.f32 0.0, %v4516
    %v4518 = vpop.f32.mrb[0].mxu0
    %v4519 = vpop.f32.mrb[0].mxu0
    %v4520 = vadd.f32 0.0, %v4519
    %v4521 = vpop.f32.mrb[0].mxu0
    %4522 = vmatprep.mubr.bf16.mxu0 0
    %4523 = vmatmul.mubr.bf16.gmra.mrb[0].mxu0 %v4127
    %v4524 = vpop.f32.mrb[0].mxu0
    %v4525 = vadd.f32 0.0, %v4524
    %v4526 = vpop.f32.mrb[0].mxu0
    %v4527 = vpop.f32.mrb[0].mxu0
    %v4528 = vadd.f32 0.0, %v4527
    %v4529 = vpop.f32.mrb[0].mxu0
    %4530 = vmatprep.mubr.bf16.mxu0 0
    %4531 = vmatmul.mubr.bf16.gmra.mrb[0].mxu0 %v4129
    %v4532 = vpop.f32.mrb[0].mxu0
    %v4533 = vadd.f32 0.0, %v4532
    %v4534 = vpop.f32.mrb[0].mxu0
    %v4535 = vpop.f32.mrb[0].mxu0
    %v4536 = vadd.f32 0.0, %v4535
    %v4537 = vpop.f32.mrb[0].mxu0
    %4538 = vmatprep.mubr.bf16.mxu0 0
    %4539 = vmatmul.mubr.bf16.gmra.mrb[0].mxu0 %v4131
    %v4540 = vpop.f32.mrb[0].mxu0
    %v4541 = vadd.f32 0.0, %v4540
    %v4542 = vpop.f32.mrb[0].mxu0
    %v4543 = vpop.f32.mrb[0].mxu0
    %v4544 = vadd.f32 0.0, %v4543
    %v4545 = vpop.f32.mrb[0].mxu0
    %4546 = vmatprep.mubr.bf16.mxu0 0
    %4547 = vmatmul.mubr.bf16.gmra.mrb[0].mxu0 %v4133
    %v4548 = vpop.f32.mrb[0].mxu0
    %v4549 = vadd.f32 0.0, %v4548
    %v4550 = vpop.f32.mrb[0].mxu0
    %v4551 = vpop.f32.mrb[0].mxu0
    %v4552 = vadd.f32 0.0, %v4551
    %v4553 = vpop.f32.mrb[0].mxu0
    %4554 = vmatprep.mubr.bf16.mxu0 0
    %4555 = vmatmul.mubr.bf16.gmra.mrb[0].mxu0 %v4135
    %v4556 = vpop.f32.mrb[0].mxu0
    %v4557 = vadd.f32 0.0, %v4556
    %v4558 = vpop.f32.mrb[0].mxu0
    %v4559 = vpop.f32.mrb[0].mxu0
    %v4560 = vadd.f32 0.0, %v4559
    %v4561 = vpop.f32.mrb[0].mxu0
    %4562 = vmatprep.mubr.bf16.mxu0 0
    %4563 = vmatmul.mubr.bf16.gmra.mrb[0].mxu0 %v4137
    %v4564 = vpop.f32.mrb[0].mxu0
    %v4565 = vadd.f32 0.0, %v4564
    %v4566 = vpop.f32.mrb[0].mxu0
    %v4567 = vpop.f32.mrb[0].mxu0
    %v4568 = vadd.f32 0.0, %v4567
    %v4569 = vpop.f32.mrb[0].mxu0
    %4570 = vmatprep.mubr.bf16.mxu0 0
    %4571 = vmatmul.mubr.bf16.gmra.mrb[0].mxu0 %v4139
    %v4572 = vpop.f32.mrb[0].mxu0
    %v4573 = vadd.f32 0.0, %v4572
    %v4574 = vpop.f32.mrb[0].mxu0
    %v4575 = vpop.f32.mrb[0].mxu0
    %v4576 = vadd.f32 0.0, %v4575
    %v4577 = vpop.f32.mrb[0].mxu0
    %4578 = vmatprep.mubr.bf16.mxu0 0
    %4579 = vmatmul.mubr.bf16.gmra.mrb[0].mxu0 %v4141
    %v4580 = vpop.f32.mrb[0].mxu0
    %v4581 = vadd.f32 0.0, %v4580
    %v4582 = vpop.f32.mrb[0].mxu0
    %v4583 = vpop.f32.mrb[0].mxu0
    %v4584 = vadd.f32 0.0, %v4583
    %v4585 = vpop.f32.mrb[0].mxu0
    %4586 = vmatprep.mubr.bf16.mxu0 0
    %4587 = vmatmul.mubr.bf16.gmra.mrb[0].mxu0 %v4143
    %v4588 = vpop.f32.mrb[0].mxu0
    %v4589 = vadd.f32 0.0, %v4588
    %v4590 = vpop.f32.mrb[0].mxu0
    %v4591 = vpop.f32.mrb[0].mxu0
    %v4592 = vadd.f32 0.0, %v4591
    %v4593 = vpop.f32.mrb[0].mxu0
    %4594 = vmatprep.mubr.bf16.mxu0 0
    %4595 = vmatmul.mubr.bf16.gmra.mrb[0].mxu0 %v4145
    %v4596 = vpop.f32.mrb[0].mxu0
    %v4597 = vadd.f32 0.0, %v4596
    %v4598 = vpop.f32.mrb[0].mxu0
    %v4599 = vpop.f32.mrb[0].mxu0
    %v4600 = vadd.f32 0.0, %v4599
    %v4601 = vpop.f32.mrb[0].mxu0
    %4602 = vmatprep.mubr.bf16.mxu0 0
    %4603 = vmatmul.mubr.bf16.gmra.mrb[0].mxu0 %v4147
    %v4604 = vpop.f32.mrb[0].mxu0
    %v4605 = vadd.f32 0.0, %v4604
    %v4606 = vpop.f32.mrb[0].mxu0
    %v4607 = vpop.f32.mrb[0].mxu0
    %v4608 = vadd.f32 0.0, %v4607
    %v4609 = vpop.f32.mrb[0].mxu0
    %4610 = vmatprep.mubr.bf16.mxu0 0
    %4611 = vmatmul.mubr.bf16.gmra.mrb[0].mxu0 %v4149
    %v4612 = vpop.f32.mrb[0].mxu0
    %v4613 = vadd.f32 0.0, %v4612
    %v4614 = vpop.f32.mrb[0].mxu0
    %v4615 = vpop.f32.mrb[0].mxu0
    %v4616 = vadd.f32 0.0, %v4615
    %v4617 = vpop.f32.mrb[0].mxu0
    %4618 = vmatprep.mubr.bf16.mxu0 0
    %4619 = vmatmul.mubr.bf16.gmra.mrb[0].mxu0 %v4151
    %v4620 = vpop.f32.mrb[0].mxu0
    %v4621 = vadd.f32 0.0, %v4620
    %v4622 = vpop.f32.mrb[0].mxu0
    %v4623 = vpop.f32.mrb[0].mxu0
    %v4624 = vadd.f32 0.0, %v4623
    %v4625 = vpop.f32.mrb[0].mxu0
    %4626 = vmatprep.mubr.bf16.mxu0 0
    %4627 = vmatmul.mubr.bf16.gmra.mrb[0].mxu0 %v4153
    %v4628 = vpop.f32.mrb[0].mxu0
    %v4629 = vadd.f32 0.0, %v4628
    %v4630 = vpop.f32.mrb[0].mxu0
    %v4631 = vpop.f32.mrb[0].mxu0
    %v4632 = vadd.f32 0.0, %v4631
    %v4633 = vpop.f32.mrb[0].mxu0
    %4634 = vmatprep.mubr.bf16.mxu0 0
    %4635 = vmatmul.mubr.bf16.gmra.mrb[0].mxu0 %v4155
    %v4636 = vpop.f32.mrb[0].mxu0
    %v4637 = vadd.f32 0.0, %v4636
    %v4638 = vpop.f32.mrb[0].mxu0
    %v4639 = vpop.f32.mrb[0].mxu0
    %v4640 = vadd.f32 0.0, %v4639
    %v4641 = vpop.f32.mrb[0].mxu0
    %4642 = vmatprep.mubr.bf16.mxu0 0
    %4643 = vmatmul.mubr.bf16.gmra.mrb[0].mxu0 %v4157
    %v4644 = vpop.f32.mrb[0].mxu0
    %v4645 = vadd.f32 0.0, %v4644
    %v4646 = vpop.f32.mrb[0].mxu0
    %v4647 = vpop.f32.mrb[0].mxu0
    %v4648 = vadd.f32 0.0, %v4647
    %v4649 = vpop.f32.mrb[0].mxu0
    %4650 = vmatprep.mubr.bf16.mxu0 0
    %4651 = vmatmul.mubr.bf16.gmra.mrb[0].mxu0 %v4159
    %v4652 = vpop.f32.mrb[0].mxu0
    %v4653 = vadd.f32 0.0, %v4652
    %v4654 = vpop.f32.mrb[0].mxu0
    %v4655 = vpop.f32.mrb[0].mxu0
    %v4656 = vadd.f32 0.0, %v4655
    %v4657 = vpop.f32.mrb[0].mxu0
    %4658 = vmatprep.mubr.bf16.mxu0 0
    %4659 = vmatmul.mubr.bf16.gmra.mrb[0].mxu0 %v4161
    %v4660 = vpop.f32.mrb[0].mxu0
    %v4661 = vadd.f32 0.0, %v4660
    %v4662 = vpop.f32.mrb[0].mxu0
    %v4663 = vpop.f32.mrb[0].mxu0
    %v4664 = vadd.f32 0.0, %v4663
    %v4665 = vpop.f32.mrb[0].mxu0
    %4666 = vmatprep.mubr.bf16.mxu0 0
    %4667 = vmatmul.mubr.bf16.gmra.mrb[0].mxu0 %v4163
    %v4668 = vpop.f32.mrb[0].mxu0
    %v4669 = vadd.f32 0.0, %v4668
    %v4670 = vpop.f32.mrb[0].mxu0
    %v4671 = vpop.f32.mrb[0].mxu0
    %v4672 = vadd.f32 0.0, %v4671
    %v4673 = vpop.f32.mrb[0].mxu0
    %4674 = vmatprep.mubr.bf16.mxu0 0
    %4675 = vmatmul.mubr.bf16.gmra.mrb[0].mxu0 %v4165
    %v4676 = vpop.f32.mrb[0].mxu0
    %v4677 = vadd.f32 0.0, %v4676
    %v4678 = vpop.f32.mrb[0].mxu0
    %v4679 = vpop.f32.mrb[0].mxu0
    %v4680 = vadd.f32 0.0, %v4679
    %v4681 = vpop.f32.mrb[0].mxu0
    %4682 = vmatprep.mubr.bf16.mxu0 0
    %4683 = vmatmul.mubr.bf16.gmra.mrb[0].mxu0 %v4167
    %v4684 = vpop.f32.mrb[0].mxu0
    %v4685 = vadd.f32 0.0, %v4684
    %v4686 = vpop.f32.mrb[0].mxu0
    %v4687 = vpop.f32.mrb[0].mxu0
    %v4688 = vadd.f32 0.0, %v4687
    %v4689 = vpop.f32.mrb[0].mxu0
    %4690 = vmatprep.mubr.bf16.mxu0 0
    %4691 = vmatmul.mubr.bf16.gmra.mrb[0].mxu0 %v4169
    %v4692 = vpop.f32.mrb[0].mxu0
    %v4693 = vadd.f32 0.0, %v4692
    %v4694 = vpop.f32.mrb[0].mxu0
    %v4695 = vpop.f32.mrb[0].mxu0
    %v4696 = vadd.f32 0.0, %v4695
    %v4697 = vpop.f32.mrb[0].mxu0
    %4698 = vmatprep.mubr.bf16.mxu0 0
    %4699 = vmatmul.mubr.bf16.gmra.mrb[0].mxu0 %v4171
    %v4700 = vpop.f32.mrb[0].mxu0
    %v4701 = vadd.f32 0.0, %v4700
    %v4702 = vpop.f32.mrb[0].mxu0
    %v4703 = vpop.f32.mrb[0].mxu0
    %v4704 = vadd.f32 0.0, %v4703
    %v4705 = vpop.f32.mrb[0].mxu0
    %4706 = vmatprep.mubr.bf16.mxu0 0
    %4707 = vmatmul.mubr.bf16.gmra.mrb[0].mxu0 %v4173
    %v4708 = vpop.f32.mrb[0].mxu0
    %v4709 = vadd.f32 0.0, %v4708
    %v4710 = vpop.f32.mrb[0].mxu0
    %v4711 = vpop.f32.mrb[0].mxu0
    %v4712 = vadd.f32 0.0, %v4711
    %v4713 = vpop.f32.mrb[0].mxu0
    %4714 = vmatprep.mubr.bf16.mxu0 0
    %4715 = vmatmul.mubr.bf16.gmra.mrb[0].mxu0 %v4175
    %v4716 = vpop.f32.mrb[0].mxu0
    %v4717 = vadd.f32 0.0, %v4716
    %v4718 = vpop.f32.mrb[0].mxu0
    %v4719 = vpop.f32.mrb[0].mxu0
    %v4720 = vadd.f32 0.0, %v4719
    %v4721 = vpop.f32.mrb[0].mxu0
    %4722 = vmatprep.mubr.bf16.mxu0 0
    %4723 = vmatmul.mubr.bf16.gmra.mrb[0].mxu0 %v4177
    %v4724 = vpop.f32.mrb[0].mxu0
    %v4725 = vadd.f32 0.0, %v4724
    %v4726 = vpop.f32.mrb[0].mxu0
    %v4727 = vpop.f32.mrb[0].mxu0
    %v4728 = vadd.f32 0.0, %v4727
    %v4729 = vpop.f32.mrb[0].mxu0
    %4730 = vmatprep.mubr.bf16.mxu0 0
    %4731 = vmatmul.mubr.bf16.gmra.mrb[0].mxu0 %v4179
    %v4732 = vpop.f32.mrb[0].mxu0
    %v4733 = vadd.f32 0.0, %v4732
    %v4734 = vpop.f32.mrb[0].mxu0
    %v4735 = vpop.f32.mrb[0].mxu0
    %v4736 = vadd.f32 0.0, %v4735
    %v4737 = vpop.f32.mrb[0].mxu0
    %4738 = vmatprep.mubr.bf16.mxu0 0
    %4739 = vmatmul.mubr.bf16.gmra.mrb[0].mxu0 %v4181
    %v4740 = vpop.f32.mrb[0].mxu0
    %v4741 = vadd.f32 0.0, %v4740
    %v4742 = vpop.f32.mrb[0].mxu0
    %v4743 = vpop.f32.mrb[0].mxu0
    %v4744 = vadd.f32 0.0, %v4743
    %v4745 = vpop.f32.mrb[0].mxu0
    %4746 = vmatprep.mubr.bf16.mxu0 0
    %4747 = vmatmul.mubr.bf16.gmra.mrb[0].mxu0 %v4183
    %v4748 = vpop.f32.mrb[0].mxu0
    %v4749 = vadd.f32 0.0, %v4748
    %v4750 = vpop.f32.mrb[0].mxu0
    %v4751 = vpop.f32.mrb[0].mxu0
    %v4752 = vadd.f32 0.0, %v4751
    %v4753 = vpop.f32.mrb[0].mxu0
    %4754 = vmatprep.mubr.bf16.mxu0 0
    %4755 = vmatmul.mubr.bf16.gmra.mrb[0].mxu0 %v4185
    %v4756 = vpop.f32.mrb[0].mxu0
    %v4757 = vadd.f32 0.0, %v4756
    %v4758 = vpop.f32.mrb[0].mxu0
    %v4759 = vpop.f32.mrb[0].mxu0
    %v4760 = vadd.f32 0.0, %v4759
    %v4761 = vpop.f32.mrb[0].mxu0
    %4762 = vmatprep.mubr.bf16.mxu0 0
    %4763 = vmatmul.mubr.bf16.gmra.mrb[0].mxu0 %v4184
    %v4764 = vpop.f32.mrb[0].mxu0
    %v4765 = vadd.f32 0.0, %v4764
    %v4766 = vpop.f32.mrb[0].mxu0
    %v4767 = vpop.f32.mrb[0].mxu0
    %v4768 = vpop.f32.mrb[0].mxu0
    %4769 = vdwg.mxu0
    %v4770 = vadd.f32 %v3500, %v4325
    %v4771 = vadd.f32 %v3503, %v4328
    %v4772 = vadd.f32 %v3508, %v4333
    %v4773 = vadd.f32 %v3511, %v4336
    %v4774 = vadd.f32 %v3516, %v4341
    %v4775 = vadd.f32 %v3519, %v4344
    %v4776 = vadd.f32 %v3524, %v4349
    %v4777 = vadd.f32 %v3527, %v4352
    %v4778 = vadd.f32 %v3532, %v4357
    %v4779 = vadd.f32 %v3535, %v4360
    %v4780 = vadd.f32 %v3540, %v4365
    %v4781 = vadd.f32 %v3543, %v4368
    %v4782 = vadd.f32 %v3548, %v4373
    %v4783 = vadd.f32 %v3551, %v4376
    %v4784 = vadd.f32 %v3556, %v4381
    %v4785 = vadd.f32 %v3559, %v4384
    %v4786 = vadd.f32 %v3564, %v4389
    %v4787 = vadd.f32 %v3567, %v4392
    %v4788 = vadd.f32 %v3572, %v4397
    %v4789 = vadd.f32 %v3575, %v4400
    %v4790 = vadd.f32 %v3580, %v4405
    %v4791 = vadd.f32 %v3583, %v4408
    %v4792 = vadd.f32 %v3588, %v4413
    %v4793 = vadd.f32 %v3591, %v4416
    %v4794 = vadd.f32 %v3596, %v4421
    %v4795 = vadd.f32 %v3599, %v4424
    %v4796 = vadd.f32 %v3604, %v4429
    %v4797 = vadd.f32 %v3607, %v4432
    %v4798 = vadd.f32 %v3612, %v4437
    %v4799 = vadd.f32 %v3615, %v4440
    %v4800 = vadd.f32 %v3620, %v4445
    %v4801 = vadd.f32 %v3623, %v4448
    %v4802 = vadd.f32 %v3628, %v4453
    %v4803 = vadd.f32 %v3631, %v4456
    %v4804 = vadd.f32 %v3636, %v4461
    %v4805 = vadd.f32 %v3639, %v4464
    %v4806 = vadd.f32 %v3644, %v4469
    %v4807 = vadd.f32 %v3647, %v4472
    %v4808 = vadd.f32 %v3652, %v4477
    %v4809 = vadd.f32 %v3655, %v4480
    %v4810 = vadd.f32 %v3660, %v4485
    %v4811 = vadd.f32 %v3663, %v4488
    %v4812 = vadd.f32 %v3668, %v4493
    %v4813 = vadd.f32 %v3671, %v4496
    %v4814 = vadd.f32 %v3676, %v4501
    %v4815 = vadd.f32 %v3679, %v4504
    %v4816 = vadd.f32 %v3684, %v4509
    %v4817 = vadd.f32 %v3687, %v4512
    %v4818 = vadd.f32 %v3692, %v4517
    %v4819 = vadd.f32 %v3695, %v4520
    %v4820 = vadd.f32 %v3700, %v4525
    %v4821 = vadd.f32 %v3703, %v4528
    %v4822 = vadd.f32 %v3708, %v4533
    %v4823 = vadd.f32 %v3711, %v4536
    %v4824 = vadd.f32 %v3716, %v4541
    %v4825 = vadd.f32 %v3719, %v4544
    %v4826 = vadd.f32 %v3724, %v4549
    %v4827 = vadd.f32 %v3727, %v4552
    %v4828 = vadd.f32 %v3732, %v4557
    %v4829 = vadd.f32 %v3735, %v4560
    %v4830 = vadd.f32 %v3740, %v4565
    %v4831 = vadd.f32 %v3743, %v4568
    %v4832 = vadd.f32 %v3748, %v4573
    %v4833 = vadd.f32 %v3751, %v4576
    %v4834 = vadd.f32 %v3756, %v4581
    %v4835 = vadd.f32 %v3759, %v4584
    %v4836 = vadd.f32 %v3764, %v4589
    %v4837 = vadd.f32 %v3767, %v4592
    %v4838 = vadd.f32 %v3772, %v4597
    %v4839 = vadd.f32 %v3775, %v4600
    %v4840 = vadd.f32 %v3780, %v4605
    %v4841 = vadd.f32 %v3783, %v4608
    %v4842 = vadd.f32 %v3788, %v4613
    %v4843 = vadd.f32 %v3791, %v4616
    %v4844 = vadd.f32 %v3796, %v4621
    %v4845 = vadd.f32 %v3799, %v4624
    %v4846 = vadd.f32 %v3804, %v4629
    %v4847 = vadd.f32 %v3807, %v4632
    %v4848 = vadd.f32 %v3812, %v4637
    %v4849 = vadd.f32 %v3815, %v4640
    %v4850 = vadd.f32 %v3820, %v4645
    %v4851 = vadd.f32 %v3823, %v4648
    %v4852 = vadd.f32 %v3828, %v4653
    %v4853 = vadd.f32 %v3831, %v4656
    %v4854 = vadd.f32 %v3836, %v4661
    %v4855 = vadd.f32 %v3839, %v4664
    %v4856 = vadd.f32 %v3844, %v4669
    %v4857 = vadd.f32 %v3847, %v4672
    %v4858 = vadd.f32 %v3852, %v4677
    %v4859 = vadd.f32 %v3855, %v4680
    %v4860 = vadd.f32 %v3860, %v4685
    %v4861 = vadd.f32 %v3863, %v4688
    %v4862 = vadd.f32 %v3868, %v4693
    %v4863 = vadd.f32 %v3871, %v4696
    %v4864 = vadd.f32 %v3876, %v4701
    %v4865 = vadd.f32 %v3879, %v4704
    %v4866 = vadd.f32 %v3884, %v4709
    %v4867 = vadd.f32 %v3887, %v4712
    %v4868 = vadd.f32 %v3892, %v4717
    %v4869 = vadd.f32 %v3895, %v4720
    %v4870 = vadd.f32 %v3900, %v4725
    %v4871 = vadd.f32 %v3903, %v4728
    %v4872 = vadd.f32 %v3908, %v4733
    %v4873 = vadd.f32 %v3911, %v4736
    %v4874 = vadd.f32 %v3916, %v4741
    %v4875 = vadd.f32 %v3919, %v4744
    %v4876 = vadd.f32 %v3924, %v4749
    %v4877 = vadd.f32 %v3927, %v4752
    %v4878 = vadd.f32 %v3932, %v4757
    %v4879 = vadd.f32 %v3935, %v4760
    %v4880 = vadd.f32 %v3940, %v4765
    %4881 = vst.msk [vmem:[#allocation2] sm:$0xff] %vm37, %v4770
    %4882 = vst.msk [vmem:[#allocation2 + $0x8] sm:$0xff] %vm37, %v4771
    %4883 = vst.msk [vmem:[#allocation2 + $0x10] sm:$0xff] %vm37, %v4772
    %4884 = vst.msk [vmem:[#allocation2 + $0x18] sm:$0xff] %vm37, %v4773
    %4885 = vst.msk [vmem:[#allocation2 + $0x20] sm:$0xff] %vm37, %v4774
    %4886 = vst.msk [vmem:[#allocation2 + $0x28] sm:$0xff] %vm37, %v4775
    %4887 = vst.msk [vmem:[#allocation2 + $0x30] sm:$0xff] %vm37, %v4776
    %4888 = vst.msk [vmem:[#allocation2 + $0x38] sm:$0xff] %vm37, %v4777
    %4889 = vst.msk [vmem:[#allocation2 + $0x40] sm:$0xff] %vm37, %v4778
    %4890 = vst.msk [vmem:[#allocation2 + $0x48] sm:$0xff] %vm37, %v4779
    %4891 = vst.msk [vmem:[#allocation2 + $0x50] sm:$0xff] %vm37, %v4780
    %4892 = vst.msk [vmem:[#allocation2 + $0x58] sm:$0xff] %vm37, %v4781
    %4893 = vst.msk [vmem:[#allocation2 + $0x60] sm:$0xff] %vm37, %v4782
    %4894 = vst.msk [vmem:[#allocation2 + $0x68] sm:$0xff] %vm37, %v4783
    %4895 = vst.msk [vmem:[#allocation2 + $0x70] sm:$0xff] %vm37, %v4784
    %4896 = vst.msk [vmem:[#allocation2 + $0x78] sm:$0xff] %vm37, %v4785
    %4897 = vst.msk [vmem:[#allocation2 + $0x80] sm:$0xff] %vm37, %v4786
    %4898 = vst.msk [vmem:[#allocation2 + $0x88] sm:$0xff] %vm37, %v4787
    %4899 = vst.msk [vmem:[#allocation2 + $0x90] sm:$0xff] %vm37, %v4788
    %4900 = vst.msk [vmem:[#allocation2 + $0x98] sm:$0xff] %vm37, %v4789
    %4901 = vst.msk [vmem:[#allocation2 + $0xa0] sm:$0xff] %vm37, %v4790
    %4902 = vst.msk [vmem:[#allocation2 + $0xa8] sm:$0xff] %vm37, %v4791
    %4903 = vst.msk [vmem:[#allocation2 + $0xb0] sm:$0xff] %vm37, %v4792
    %4904 = vst.msk [vmem:[#allocation2 + $0xb8] sm:$0xff] %vm37, %v4793
    %4905 = vst.msk [vmem:[#allocation2 + $0xc0] sm:$0xff] %vm37, %v4794
    %4906 = vst.msk [vmem:[#allocation2 + $0xc8] sm:$0xff] %vm37, %v4795
    %4907 = vst.msk [vmem:[#allocation2 + $0xd0] sm:$0xff] %vm37, %v4796
    %4908 = vst.msk [vmem:[#allocation2 + $0xd8] sm:$0xff] %vm37, %v4797
    %4909 = vst.msk [vmem:[#allocation2 + $0xe0] sm:$0xff] %vm37, %v4798
    %4910 = vst.msk [vmem:[#allocation2 + $0xe8] sm:$0xff] %vm37, %v4799
    %4911 = vst.msk [vmem:[#allocation2 + $0xf0] sm:$0xff] %vm37, %v4800
    %4912 = vst.msk [vmem:[#allocation2 + $0xf8] sm:$0xff] %vm37, %v4801
    %4913 = vst.msk [vmem:[#allocation2 + $0x100] sm:$0xff] %vm37, %v4802
    %4914 = vst.msk [vmem:[#allocation2 + $0x108] sm:$0xff] %vm37, %v4803
    %4915 = vst.msk [vmem:[#allocation2 + $0x110] sm:$0xff] %vm37, %v4804
    %4916 = vst.msk [vmem:[#allocation2 + $0x118] sm:$0xff] %vm37, %v4805
    %4917 = vst.msk [vmem:[#allocation2 + $0x120] sm:$0xff] %vm37, %v4806
    %4918 = vst.msk [vmem:[#allocation2 + $0x128] sm:$0xff] %vm37, %v4807
    %4919 = vst.msk [vmem:[#allocation2 + $0x130] sm:$0xff] %vm37, %v4808
    %4920 = vst.msk [vmem:[#allocation2 + $0x138] sm:$0xff] %vm37, %v4809
    %4921 = vst.msk [vmem:[#allocation2 + $0x140] sm:$0xff] %vm37, %v4810
    %4922 = vst.msk [vmem:[#allocation2 + $0x148] sm:$0xff] %vm37, %v4811
    %4923 = vst.msk [vmem:[#allocation2 + $0x150] sm:$0xff] %vm37, %v4812
    %4924 = vst.msk [vmem:[#allocation2 + $0x158] sm:$0xff] %vm37, %v4813
    %4925 = vst.msk [vmem:[#allocation2 + $0x160] sm:$0xff] %vm37, %v4814
    %4926 = vst.msk [vmem:[#allocation2 + $0x168] sm:$0xff] %vm37, %v4815
    %4927 = vst.msk [vmem:[#allocation2 + $0x170] sm:$0xff] %vm37, %v4816
    %4928 = vst.msk [vmem:[#allocation2 + $0x178] sm:$0xff] %vm37, %v4817
    %4929 = vst.msk [vmem:[#allocation2 + $0x180] sm:$0xff] %vm37, %v4818
    %4930 = vst.msk [vmem:[#allocation2 + $0x188] sm:$0xff] %vm37, %v4819
    %4931 = vst.msk [vmem:[#allocation2 + $0x190] sm:$0xff] %vm37, %v4820
    %4932 = vst.msk [vmem:[#allocation2 + $0x198] sm:$0xff] %vm37, %v4821
    %4933 = vst.msk [vmem:[#allocation2 + $0x1a0] sm:$0xff] %vm37, %v4822
    %4934 = vst.msk [vmem:[#allocation2 + $0x1a8] sm:$0xff] %vm37, %v4823
    %4935 = vst.msk [vmem:[#allocation2 + $0x1b0] sm:$0xff] %vm37, %v4824
    %4936 = vst.msk [vmem:[#allocation2 + $0x1b8] sm:$0xff] %vm37, %v4825
    %4937 = vst.msk [vmem:[#allocation2 + $0x1c0] sm:$0xff] %vm37, %v4826
    %4938 = vst.msk [vmem:[#allocation2 + $0x1c8] sm:$0xff] %vm37, %v4827
    %4939 = vst.msk [vmem:[#allocation2 + $0x1d0] sm:$0xff] %vm37, %v4828
    %4940 = vst.msk [vmem:[#allocation2 + $0x1d8] sm:$0xff] %vm37, %v4829
    %4941 = vst.msk [vmem:[#allocation2 + $0x1e0] sm:$0xff] %vm37, %v4830
    %4942 = vst.msk [vmem:[#allocation2 + $0x1e8] sm:$0xff] %vm37, %v4831
    %4943 = vst.msk [vmem:[#allocation2 + $0x1f0] sm:$0xff] %vm37, %v4832
    %4944 = vst.msk [vmem:[#allocation2 + $0x1f8] sm:$0xff] %vm37, %v4833
    %4945 = vst.msk [vmem:[#allocation2 + $0x200] sm:$0xff] %vm37, %v4834
    %4946 = vst.msk [vmem:[#allocation2 + $0x208] sm:$0xff] %vm37, %v4835
    %4947 = vst.msk [vmem:[#allocation2 + $0x210] sm:$0xff] %vm37, %v4836
    %4948 = vst.msk [vmem:[#allocation2 + $0x218] sm:$0xff] %vm37, %v4837
    %4949 = vst.msk [vmem:[#allocation2 + $0x220] sm:$0xff] %vm37, %v4838
    %4950 = vst.msk [vmem:[#allocation2 + $0x228] sm:$0xff] %vm37, %v4839
    %4951 = vst.msk [vmem:[#allocation2 + $0x230] sm:$0xff] %vm37, %v4840
    %4952 = vst.msk [vmem:[#allocation2 + $0x238] sm:$0xff] %vm37, %v4841
    %4953 = vst.msk [vmem:[#allocation2 + $0x240] sm:$0xff] %vm37, %v4842
    %4954 = vst.msk [vmem:[#allocation2 + $0x248] sm:$0xff] %vm37, %v4843
    %4955 = vst.msk [vmem:[#allocation2 + $0x250] sm:$0xff] %vm37, %v4844
    %4956 = vst.msk [vmem:[#allocation2 + $0x258] sm:$0xff] %vm37, %v4845
    %4957 = vst.msk [vmem:[#allocation2 + $0x260] sm:$0xff] %vm37, %v4846
    %4958 = vst.msk [vmem:[#allocation2 + $0x268] sm:$0xff] %vm37, %v4847
    %4959 = vst.msk [vmem:[#allocation2 + $0x270] sm:$0xff] %vm37, %v4848
    %4960 = vst.msk [vmem:[#allocation2 + $0x278] sm:$0xff] %vm37, %v4849
    %4961 = vst.msk [vmem:[#allocation2 + $0x280] sm:$0xff] %vm37, %v4850
    %4962 = vst.msk [vmem:[#allocation2 + $0x288] sm:$0xff] %vm37, %v4851
    %4963 = vst.msk [vmem:[#allocation2 + $0x290] sm:$0xff] %vm37, %v4852
    %4964 = vst.msk [vmem:[#allocation2 + $0x298] sm:$0xff] %vm37, %v4853
    %4965 = vst.msk [vmem:[#allocation2 + $0x2a0] sm:$0xff] %vm37, %v4854
    %4966 = vst.msk [vmem:[#allocation2 + $0x2a8] sm:$0xff] %vm37, %v4855
    %4967 = vst.msk [vmem:[#allocation2 + $0x2b0] sm:$0xff] %vm37, %v4856
    %4968 = vst.msk [vmem:[#allocation2 + $0x2b8] sm:$0xff] %vm37, %v4857
    %4969 = vst.msk [vmem:[#allocation2 + $0x2c0] sm:$0xff] %vm37, %v4858
    %4970 = vst.msk [vmem:[#allocation2 + $0x2c8] sm:$0xff] %vm37, %v4859
    %4971 = vst.msk [vmem:[#allocation2 + $0x2d0] sm:$0xff] %vm37, %v4860
    %4972 = vst.msk [vmem:[#allocation2 + $0x2d8] sm:$0xff] %vm37, %v4861
    %4973 = vst.msk [vmem:[#allocation2 + $0x2e0] sm:$0xff] %vm37, %v4862
    %4974 = vst.msk [vmem:[#allocation2 + $0x2e8] sm:$0xff] %vm37, %v4863
    %4975 = vst.msk [vmem:[#allocation2 + $0x2f0] sm:$0xff] %vm37, %v4864
    %4976 = vst.msk [vmem:[#allocation2 + $0x2f8] sm:$0xff] %vm37, %v4865
    %4977 = vst.msk [vmem:[#allocation2 + $0x300] sm:$0xff] %vm37, %v4866
    %4978 = vst.msk [vmem:[#allocation2 + $0x308] sm:$0xff] %vm37, %v4867
    %4979 = vst.msk [vmem:[#allocation2 + $0x310] sm:$0xff] %vm37, %v4868
    %4980 = vst.msk [vmem:[#allocation2 + $0x318] sm:$0xff] %vm37, %v4869
    %4981 = vst.msk [vmem:[#allocation2 + $0x320] sm:$0xff] %vm37, %v4870
    %4982 = vst.msk [vmem:[#allocation2 + $0x328] sm:$0xff] %vm37, %v4871
    %4983 = vst.msk [vmem:[#allocation2 + $0x330] sm:$0xff] %vm37, %v4872
    %4984 = vst.msk [vmem:[#allocation2 + $0x338] sm:$0xff] %vm37, %v4873
    %4985 = vst.msk [vmem:[#allocation2 + $0x340] sm:$0xff] %vm37, %v4874
    %4986 = vst.msk [vmem:[#allocation2 + $0x348] sm:$0xff] %vm37, %v4875
    %4987 = vst.msk [vmem:[#allocation2 + $0x350] sm:$0xff] %vm37, %v4876
    %4988 = vst.msk [vmem:[#allocation2 + $0x358] sm:$0xff] %vm37, %v4877
    %4989 = vst.msk [vmem:[#allocation2 + $0x360] sm:$0xff] %vm37, %v4878
    %4990 = vst.msk [vmem:[#allocation2 + $0x368] sm:$0xff] %vm37, %v4879
    %4991 = vst.msk [vmem:[#allocation2 + $0x370] sm:$0xf] %vm679, %v4880
    %v4992 = vld [vmem:[#allocation2] ss:$2 sm:$0xff]
    %s4993 = scalar_lea.vmem [#allocation2], 16
    %v4994 = vld [vmem:[%s4993] ss:$2 sm:$0xff]
    %s4995 = scalar_lea.vmem [#allocation2], 32
    %v4996 = vld [vmem:[%s4995] ss:$2 sm:$0xff]
    %s4997 = scalar_lea.vmem [#allocation2], 48
    %v4998 = vld [vmem:[%s4997] ss:$2 sm:$0xff]
    %s4999 = scalar_lea.vmem [#allocation2], 64
    %v5000 = vld [vmem:[%s4999] ss:$2 sm:$0xff]
    %s5001 = scalar_lea.vmem [#allocation2], 80
    %v5002 = vld [vmem:[%s5001] ss:$2 sm:$0xff]
    %s5003 = scalar_lea.vmem [#allocation2], 96
    %v5004 = vld [vmem:[%s5003] ss:$2 sm:$0xff]
    %s5005 = scalar_lea.vmem [#allocation2], 112
    %v5006 = vld [vmem:[%s5005] ss:$2 sm:$0xff]
    %s5007 = scalar_lea.vmem [#allocation2], 128
    %v5008 = vld [vmem:[%s5007] ss:$2 sm:$0xff]
    %s5009 = scalar_lea.vmem [#allocation2], 144
    %v5010 = vld [vmem:[%s5009] ss:$2 sm:$0xff]
    %s5011 = scalar_lea.vmem [#allocation2], 160
    %v5012 = vld [vmem:[%s5011] ss:$2 sm:$0xff]
    %s5013 = scalar_lea.vmem [#allocation2], 176
    %v5014 = vld [vmem:[%s5013] ss:$2 sm:$0xff]
    %s5015 = scalar_lea.vmem [#allocation2], 192
    %v5016 = vld [vmem:[%s5015] ss:$2 sm:$0xff]
    %s5017 = scalar_lea.vmem [#allocation2], 208
    %v5018 = vld [vmem:[%s5017] ss:$2 sm:$0xff]
    %s5019 = scalar_lea.vmem [#allocation2], 224
    %v5020 = vld [vmem:[%s5019] ss:$2 sm:$0xff]
    %s5021 = scalar_lea.vmem [#allocation2], 240
    %v5022 = vld [vmem:[%s5021] ss:$2 sm:$0xff]
    %s5023 = scalar_lea.vmem [#allocation2], 256
    %v5024 = vld [vmem:[%s5023] ss:$2 sm:$0xff]
    %s5025 = scalar_lea.vmem [#allocation2], 272
    %v5026 = vld [vmem:[%s5025] ss:$2 sm:$0xff]
    %s5027 = scalar_lea.vmem [#allocation2], 288
    %v5028 = vld [vmem:[%s5027] ss:$2 sm:$0xff]
    %s5029 = scalar_lea.vmem [#allocation2], 304
    %v5030 = vld [vmem:[%s5029] ss:$2 sm:$0xff]
    %s5031 = scalar_lea.vmem [#allocation2], 320
    %v5032 = vld [vmem:[%s5031] ss:$2 sm:$0xff]
    %s5033 = scalar_lea.vmem [#allocation2], 336
    %v5034 = vld [vmem:[%s5033] ss:$2 sm:$0xff]
    %s5035 = scalar_lea.vmem [#allocation2], 352
    %v5036 = vld [vmem:[%s5035] ss:$2 sm:$0xff]
    %s5037 = scalar_lea.vmem [#allocation2], 368
    %v5038 = vld [vmem:[%s5037] ss:$2 sm:$0xff]
    %s5039 = scalar_lea.vmem [#allocation2], 384
    %v5040 = vld [vmem:[%s5039] ss:$2 sm:$0xff]
    %s5041 = scalar_lea.vmem [#allocation2], 400
    %v5042 = vld [vmem:[%s5041] ss:$2 sm:$0xff]
    %s5043 = scalar_lea.vmem [#allocation2], 416
    %v5044 = vld [vmem:[%s5043] ss:$2 sm:$0xff]
    %s5045 = scalar_lea.vmem [#allocation2], 432
    %v5046 = vld [vmem:[%s5045] ss:$2 sm:$0xff]
    %s5047 = scalar_lea.vmem [#allocation2], 448
    %v5048 = vld [vmem:[%s5047] ss:$2 sm:$0xff]
    %s5049 = scalar_lea.vmem [#allocation2], 464
    %v5050 = vld [vmem:[%s5049] ss:$2 sm:$0xff]
    %s5051 = scalar_lea.vmem [#allocation2], 480
    %v5052 = vld [vmem:[%s5051] ss:$2 sm:$0xff]
    %s5053 = scalar_lea.vmem [#allocation2], 496
    %v5054 = vld [vmem:[%s5053] ss:$2 sm:$0xff]
    %s5055 = scalar_lea.vmem [#allocation2], 512
    %v5056 = vld [vmem:[%s5055] ss:$2 sm:$0xff]
    %s5057 = scalar_lea.vmem [#allocation2], 528
    %v5058 = vld [vmem:[%s5057] ss:$2 sm:$0xff]
    %s5059 = scalar_lea.vmem [#allocation2], 544
    %v5060 = vld [vmem:[%s5059] ss:$2 sm:$0xff]
    %s5061 = scalar_lea.vmem [#allocation2], 560
    %v5062 = vld [vmem:[%s5061] ss:$2 sm:$0xff]
    %s5063 = scalar_lea.vmem [#allocation2], 576
    %v5064 = vld [vmem:[%s5063] ss:$2 sm:$0xff]
    %s5065 = scalar_lea.vmem [#allocation2], 592
    %v5066 = vld [vmem:[%s5065] ss:$2 sm:$0xff]
    %s5067 = scalar_lea.vmem [#allocation2], 608
    %v5068 = vld [vmem:[%s5067] ss:$2 sm:$0xff]
    %s5069 = scalar_lea.vmem [#allocation2], 624
    %v5070 = vld [vmem:[%s5069] ss:$2 sm:$0xff]
    %s5071 = scalar_lea.vmem [#allocation2], 640
    %v5072 = vld [vmem:[%s5071] ss:$2 sm:$0xff]
    %s5073 = scalar_lea.vmem [#allocation2], 656
    %v5074 = vld [vmem:[%s5073] ss:$2 sm:$0xff]
    %s5075 = scalar_lea.vmem [#allocation2], 672
    %v5076 = vld [vmem:[%s5075] ss:$2 sm:$0xff]
    %s5077 = scalar_lea.vmem [#allocation2], 688
    %v5078 = vld [vmem:[%s5077] ss:$2 sm:$0xff]
    %s5079 = scalar_lea.vmem [#allocation2], 704
    %v5080 = vld [vmem:[%s5079] ss:$2 sm:$0xff]
    %s5081 = scalar_lea.vmem [#allocation2], 720
    %v5082 = vld [vmem:[%s5081] ss:$2 sm:$0xff]
    %s5083 = scalar_lea.vmem [#allocation2], 736
    %v5084 = vld [vmem:[%s5083] ss:$2 sm:$0xff]
    %s5085 = scalar_lea.vmem [#allocation2], 752
    %v5086 = vld [vmem:[%s5085] ss:$2 sm:$0xff]
    %s5087 = scalar_lea.vmem [#allocation2], 768
    %v5088 = vld [vmem:[%s5087] ss:$2 sm:$0xff]
    %s5089 = scalar_lea.vmem [#allocation2], 784
    %v5090 = vld [vmem:[%s5089] ss:$2 sm:$0xff]
    %s5091 = scalar_lea.vmem [#allocation2], 800
    %v5092 = vld [vmem:[%s5091] ss:$2 sm:$0xff]
    %s5093 = scalar_lea.vmem [#allocation2], 816
    %v5094 = vld [vmem:[%s5093] ss:$2 sm:$0xff]
    %s5095 = scalar_lea.vmem [#allocation2], 832
    %v5096 = vld [vmem:[%s5095] ss:$2 sm:$0xff]
    %s5097 = scalar_lea.vmem [#allocation2], 848
    %v5098 = vld [vmem:[%s5097] ss:$2 sm:$0xff]
    %s5099 = scalar_lea.vmem [#allocation2], 864
    %v5100 = vld [vmem:[%s5099] ss:$2 sm:$0xff]
    %s5101 = scalar_lea.vmem [#allocation2], 880
    %v5102 = vld [vmem:[%s5101] ss:$2 sm:$0x3]
    %s5103 = scalar_lea.vmem [#allocation2], 1
    %v5104 = vld [vmem:[%s5103] ss:$2 sm:$0xff]
    %s5105 = scalar_lea.vmem [#allocation2], 17
    %v5106 = vld [vmem:[%s5105] ss:$2 sm:$0xff]
    %s5107 = scalar_lea.vmem [#allocation2], 33
    %v5108 = vld [vmem:[%s5107] ss:$2 sm:$0xff]
    %s5109 = scalar_lea.vmem [#allocation2], 49
    %v5110 = vld [vmem:[%s5109] ss:$2 sm:$0xff]
    %s5111 = scalar_lea.vmem [#allocation2], 65
    %v5112 = vld [vmem:[%s5111] ss:$2 sm:$0xff]
    %s5113 = scalar_lea.vmem [#allocation2], 81
    %v5114 = vld [vmem:[%s5113] ss:$2 sm:$0xff]
    %s5115 = scalar_lea.vmem [#allocation2], 97
    %v5116 = vld [vmem:[%s5115] ss:$2 sm:$0xff]
    %s5117 = scalar_lea.vmem [#allocation2], 113
    %v5118 = vld [vmem:[%s5117] ss:$2 sm:$0xff]
    %s5119 = scalar_lea.vmem [#allocation2], 129
    %v5120 = vld [vmem:[%s5119] ss:$2 sm:$0xff]
    %s5121 = scalar_lea.vmem [#allocation2], 145
    %v5122 = vld [vmem:[%s5121] ss:$2 sm:$0xff]
    %s5123 = scalar_lea.vmem [#allocation2], 161
    %v5124 = vld [vmem:[%s5123] ss:$2 sm:$0xff]
    %s5125 = scalar_lea.vmem [#allocation2], 177
    %v5126 = vld [vmem:[%s5125] ss:$2 sm:$0xff]
    %s5127 = scalar_lea.vmem [#allocation2], 193
    %v5128 = vld [vmem:[%s5127] ss:$2 sm:$0xff]
    %s5129 = scalar_lea.vmem [#allocation2], 209
    %v5130 = vld [vmem:[%s5129] ss:$2 sm:$0xff]
    %s5131 = scalar_lea.vmem [#allocation2], 225
    %v5132 = vld [vmem:[%s5131] ss:$2 sm:$0xff]
    %s5133 = scalar_lea.vmem [#allocation2], 241
    %v5134 = vld [vmem:[%s5133] ss:$2 sm:$0xff]
    %s5135 = scalar_lea.vmem [#allocation2], 257
    %v5136 = vld [vmem:[%s5135] ss:$2 sm:$0xff]
    %s5137 = scalar_lea.vmem [#allocation2], 273
    %v5138 = vld [vmem:[%s5137] ss:$2 sm:$0xff]
    %s5139 = scalar_lea.vmem [#allocation2], 289
    %v5140 = vld [vmem:[%s5139] ss:$2 sm:$0xff]
    %s5141 = scalar_lea.vmem [#allocation2], 305
    %v5142 = vld [vmem:[%s5141] ss:$2 sm:$0xff]
    %s5143 = scalar_lea.vmem [#allocation2], 321
    %v5144 = vld [vmem:[%s5143] ss:$2 sm:$0xff]
    %s5145 = scalar_lea.vmem [#allocation2], 337
    %v5146 = vld [vmem:[%s5145] ss:$2 sm:$0xff]
    %s5147 = scalar_lea.vmem [#allocation2], 353
    %v5148 = vld [vmem:[%s5147] ss:$2 sm:$0xff]
    %s5149 = scalar_lea.vmem [#allocation2], 369
    %v5150 = vld [vmem:[%s5149] ss:$2 sm:$0xff]
    %s5151 = scalar_lea.vmem [#allocation2], 385
    %v5152 = vld [vmem:[%s5151] ss:$2 sm:$0xff]
    %s5153 = scalar_lea.vmem [#allocation2], 401
    %v5154 = vld [vmem:[%s5153] ss:$2 sm:$0xff]
    %s5155 = scalar_lea.vmem [#allocation2], 417
    %v5156 = vld [vmem:[%s5155] ss:$2 sm:$0xff]
    %s5157 = scalar_lea.vmem [#allocation2], 433
    %v5158 = vld [vmem:[%s5157] ss:$2 sm:$0xff]
    %s5159 = scalar_lea.vmem [#allocation2], 449
    %v5160 = vld [vmem:[%s5159] ss:$2 sm:$0xff]
    %s5161 = scalar_lea.vmem [#allocation2], 465
    %v5162 = vld [vmem:[%s5161] ss:$2 sm:$0xff]
    %s5163 = scalar_lea.vmem [#allocation2], 481
    %v5164 = vld [vmem:[%s5163] ss:$2 sm:$0xff]
    %s5165 = scalar_lea.vmem [#allocation2], 497
    %v5166 = vld [vmem:[%s5165] ss:$2 sm:$0xff]
    %s5167 = scalar_lea.vmem [#allocation2], 513
    %v5168 = vld [vmem:[%s5167] ss:$2 sm:$0xff]
    %s5169 = scalar_lea.vmem [#allocation2], 529
    %v5170 = vld [vmem:[%s5169] ss:$2 sm:$0xff]
    %s5171 = scalar_lea.vmem [#allocation2], 545
    %v5172 = vld [vmem:[%s5171] ss:$2 sm:$0xff]
    %s5173 = scalar_lea.vmem [#allocation2], 561
    %v5174 = vld [vmem:[%s5173] ss:$2 sm:$0xff]
    %s5175 = scalar_lea.vmem [#allocation2], 577
    %v5176 = vld [vmem:[%s5175] ss:$2 sm:$0xff]
    %s5177 = scalar_lea.vmem [#allocation2], 593
    %v5178 = vld [vmem:[%s5177] ss:$2 sm:$0xff]
    %s5179 = scalar_lea.vmem [#allocation2], 609
    %v5180 = vld [vmem:[%s5179] ss:$2 sm:$0xff]
    %s5181 = scalar_lea.vmem [#allocation2], 625
    %v5182 = vld [vmem:[%s5181] ss:$2 sm:$0xff]
    %s5183 = scalar_lea.vmem [#allocation2], 641
    %v5184 = vld [vmem:[%s5183] ss:$2 sm:$0xff]
    %s5185 = scalar_lea.vmem [#allocation2], 657
    %v5186 = vld [vmem:[%s5185] ss:$2 sm:$0xff]
    %s5187 = scalar_lea.vmem [#allocation2], 673
    %v5188 = vld [vmem:[%s5187] ss:$2 sm:$0xff]
    %s5189 = scalar_lea.vmem [#allocation2], 689
    %v5190 = vld [vmem:[%s5189] ss:$2 sm:$0xff]
    %s5191 = scalar_lea.vmem [#allocation2], 705
    %v5192 = vld [vmem:[%s5191] ss:$2 sm:$0xff]
    %s5193 = scalar_lea.vmem [#allocation2], 721
    %v5194 = vld [vmem:[%s5193] ss:$2 sm:$0xff]
    %s5195 = scalar_lea.vmem [#allocation2], 737
    %v5196 = vld [vmem:[%s5195] ss:$2 sm:$0xff]
    %s5197 = scalar_lea.vmem [#allocation2], 753
    %v5198 = vld [vmem:[%s5197] ss:$2 sm:$0xff]
    %s5199 = scalar_lea.vmem [#allocation2], 769
    %v5200 = vld [vmem:[%s5199] ss:$2 sm:$0xff]
    %s5201 = scalar_lea.vmem [#allocation2], 785
    %v5202 = vld [vmem:[%s5201] ss:$2 sm:$0xff]
    %s5203 = scalar_lea.vmem [#allocation2], 801
    %v5204 = vld [vmem:[%s5203] ss:$2 sm:$0xff]
    %s5205 = scalar_lea.vmem [#allocation2], 817
    %v5206 = vld [vmem:[%s5205] ss:$2 sm:$0xff]
    %s5207 = scalar_lea.vmem [#allocation2], 833
    %v5208 = vld [vmem:[%s5207] ss:$2 sm:$0xff]
    %s5209 = scalar_lea.vmem [#allocation2], 849
    %v5210 = vld [vmem:[%s5209] ss:$2 sm:$0xff]
    %s5211 = scalar_lea.vmem [#allocation2], 865
    %v5212 = vld [vmem:[%s5211] ss:$2 sm:$0xff]
    %s5213 = scalar_lea.vmem [#allocation2], 881
    %v5214 = vld [vmem:[%s5213] ss:$2 sm:$0x3]
    %v5215 = vmax.f32 %v4992, %v5104
    %v5216 = vmax.f32 %v4994, %v5106
    %v5217 = vmax.f32 %v4996, %v5108
    %v5218 = vmax.f32 %v4998, %v5110
    %v5219 = vmax.f32 %v5000, %v5112
    %v5220 = vmax.f32 %v5002, %v5114
    %v5221 = vmax.f32 %v5004, %v5116
    %v5222 = vmax.f32 %v5006, %v5118
    %v5223 = vmax.f32 %v5008, %v5120
    %v5224 = vmax.f32 %v5010, %v5122
    %v5225 = vmax.f32 %v5012, %v5124
    %v5226 = vmax.f32 %v5014, %v5126
    %v5227 = vmax.f32 %v5016, %v5128
    %v5228 = vmax.f32 %v5018, %v5130
    %v5229 = vmax.f32 %v5020, %v5132
    %v5230 = vmax.f32 %v5022, %v5134
    %v5231 = vmax.f32 %v5024, %v5136
    %v5232 = vmax.f32 %v5026, %v5138
    %v5233 = vmax.f32 %v5028, %v5140
    %v5234 = vmax.f32 %v5030, %v5142
    %v5235 = vmax.f32 %v5032, %v5144
    %v5236 = vmax.f32 %v5034, %v5146
    %v5237 = vmax.f32 %v5036, %v5148
    %v5238 = vmax.f32 %v5038, %v5150
    %v5239 = vmax.f32 %v5040, %v5152
    %v5240 = vmax.f32 %v5042, %v5154
    %v5241 = vmax.f32 %v5044, %v5156
    %v5242 = vmax.f32 %v5046, %v5158
    %v5243 = vmax.f32 %v5048, %v5160
    %v5244 = vmax.f32 %v5050, %v5162
    %v5245 = vmax.f32 %v5052, %v5164
    %v5246 = vmax.f32 %v5054, %v5166
    %v5247 = vmax.f32 %v5056, %v5168
    %v5248 = vmax.f32 %v5058, %v5170
    %v5249 = vmax.f32 %v5060, %v5172
    %v5250 = vmax.f32 %v5062, %v5174
    %v5251 = vmax.f32 %v5064, %v5176
    %v5252 = vmax.f32 %v5066, %v5178
    %v5253 = vmax.f32 %v5068, %v5180
    %v5254 = vmax.f32 %v5070, %v5182
    %v5255 = vmax.f32 %v5072, %v5184
    %v5256 = vmax.f32 %v5074, %v5186
    %v5257 = vmax.f32 %v5076, %v5188
    %v5258 = vmax.f32 %v5078, %v5190
    %v5259 = vmax.f32 %v5080, %v5192
    %v5260 = vmax.f32 %v5082, %v5194
    %v5261 = vmax.f32 %v5084, %v5196
    %v5262 = vmax.f32 %v5086, %v5198
    %v5263 = vmax.f32 %v5088, %v5200
    %v5264 = vmax.f32 %v5090, %v5202
    %v5265 = vmax.f32 %v5092, %v5204
    %v5266 = vmax.f32 %v5094, %v5206
    %v5267 = vmax.f32 %v5096, %v5208
    %v5268 = vmax.f32 %v5098, %v5210
    %v5269 = vmax.f32 %v5100, %v5212
    %v5270 = vmax.f32 %v5102, %v5214
    %5271 = vst.msk [vmem:[#allocation3] sm:$0xff] %vm37, %v5215
    %5272 = vst.msk [vmem:[#allocation3 + $0x8] sm:$0xff] %vm37, %v5216
    %5273 = vst.msk [vmem:[#allocation3 + $0x10] sm:$0xff] %vm37, %v5217
    %5274 = vst.msk [vmem:[#allocation3 + $0x18] sm:$0xff] %vm37, %v5218
    %5275 = vst.msk [vmem:[#allocation3 + $0x20] sm:$0xff] %vm37, %v5219
    %5276 = vst.msk [vmem:[#allocation3 + $0x28] sm:$0xff] %vm37, %v5220
    %5277 = vst.msk [vmem:[#allocation3 + $0x30] sm:$0xff] %vm37, %v5221
    %5278 = vst.msk [vmem:[#allocation3 + $0x38] sm:$0xff] %vm37, %v5222
    %5279 = vst.msk [vmem:[#allocation3 + $0x40] sm:$0xff] %vm37, %v5223
    %5280 = vst.msk [vmem:[#allocation3 + $0x48] sm:$0xff] %vm37, %v5224
    %5281 = vst.msk [vmem:[#allocation3 + $0x50] sm:$0xff] %vm37, %v5225
    %5282 = vst.msk [vmem:[#allocation3 + $0x58] sm:$0xff] %vm37, %v5226
    %5283 = vst.msk [vmem:[#allocation3 + $0x60] sm:$0xff] %vm37, %v5227
    %5284 = vst.msk [vmem:[#allocation3 + $0x68] sm:$0xff] %vm37, %v5228
    %5285 = vst.msk [vmem:[#allocation3 + $0x70] sm:$0xff] %vm37, %v5229
    %5286 = vst.msk [vmem:[#allocation3 + $0x78] sm:$0xff] %vm37, %v5230
    %5287 = vst.msk [vmem:[#allocation3 + $0x80] sm:$0xff] %vm37, %v5231
    %5288 = vst.msk [vmem:[#allocation3 + $0x88] sm:$0xff] %vm37, %v5232
    %5289 = vst.msk [vmem:[#allocation3 + $0x90] sm:$0xff] %vm37, %v5233
    %5290 = vst.msk [vmem:[#allocation3 + $0x98] sm:$0xff] %vm37, %v5234
    %5291 = vst.msk [vmem:[#allocation3 + $0xa0] sm:$0xff] %vm37, %v5235
    %5292 = vst.msk [vmem:[#allocation3 + $0xa8] sm:$0xff] %vm37, %v5236
    %5293 = vst.msk [vmem:[#allocation3 + $0xb0] sm:$0xff] %vm37, %v5237
    %5294 = vst.msk [vmem:[#allocation3 + $0xb8] sm:$0xff] %vm37, %v5238
    %5295 = vst.msk [vmem:[#allocation3 + $0xc0] sm:$0xff] %vm37, %v5239
    %5296 = vst.msk [vmem:[#allocation3 + $0xc8] sm:$0xff] %vm37, %v5240
    %5297 = vst.msk [vmem:[#allocation3 + $0xd0] sm:$0xff] %vm37, %v5241
    %5298 = vst.msk [vmem:[#allocation3 + $0xd8] sm:$0xff] %vm37, %v5242
    %5299 = vst.msk [vmem:[#allocation3 + $0xe0] sm:$0xff] %vm37, %v5243
    %5300 = vst.msk [vmem:[#allocation3 + $0xe8] sm:$0xff] %vm37, %v5244
    %5301 = vst.msk [vmem:[#allocation3 + $0xf0] sm:$0xff] %vm37, %v5245
    %5302 = vst.msk [vmem:[#allocation3 + $0xf8] sm:$0xff] %vm37, %v5246
    %5303 = vst.msk [vmem:[#allocation3 + $0x100] sm:$0xff] %vm37, %v5247
    %5304 = vst.msk [vmem:[#allocation3 + $0x108] sm:$0xff] %vm37, %v5248
    %5305 = vst.msk [vmem:[#allocation3 + $0x110] sm:$0xff] %vm37, %v5249
    %5306 = vst.msk [vmem:[#allocation3 + $0x118] sm:$0xff] %vm37, %v5250
    %5307 = vst.msk [vmem:[#allocation3 + $0x120] sm:$0xff] %vm37, %v5251
    %5308 = vst.msk [vmem:[#allocation3 + $0x128] sm:$0xff] %vm37, %v5252
    %5309 = vst.msk [vmem:[#allocation3 + $0x130] sm:$0xff] %vm37, %v5253
    %5310 = vst.msk [vmem:[#allocation3 + $0x138] sm:$0xff] %vm37, %v5254
    %5311 = vst.msk [vmem:[#allocation3 + $0x140] sm:$0xff] %vm37, %v5255
    %5312 = vst.msk [vmem:[#allocation3 + $0x148] sm:$0xff] %vm37, %v5256
    %5313 = vst.msk [vmem:[#allocation3 + $0x150] sm:$0xff] %vm37, %v5257
    %5314 = vst.msk [vmem:[#allocation3 + $0x158] sm:$0xff] %vm37, %v5258
    %5315 = vst.msk [vmem:[#allocation3 + $0x160] sm:$0xff] %vm37, %v5259
    %5316 = vst.msk [vmem:[#allocation3 + $0x168] sm:$0xff] %vm37, %v5260
    %5317 = vst.msk [vmem:[#allocation3 + $0x170] sm:$0xff] %vm37, %v5261
    %5318 = vst.msk [vmem:[#allocation3 + $0x178] sm:$0xff] %vm37, %v5262
    %5319 = vst.msk [vmem:[#allocation3 + $0x180] sm:$0xff] %vm37, %v5263
    %5320 = vst.msk [vmem:[#allocation3 + $0x188] sm:$0xff] %vm37, %v5264
    %5321 = vst.msk [vmem:[#allocation3 + $0x190] sm:$0xff] %vm37, %v5265
    %5322 = vst.msk [vmem:[#allocation3 + $0x198] sm:$0xff] %vm37, %v5266
    %5323 = vst.msk [vmem:[#allocation3 + $0x1a0] sm:$0xff] %vm37, %v5267
    %5324 = vst.msk [vmem:[#allocation3 + $0x1a8] sm:$0xff] %vm37, %v5268
    %5325 = vst.msk [vmem:[#allocation3 + $0x1b0] sm:$0xff] %vm37, %v5269
    %vm5326 = vcmask 254976
    %5327 = vst.msk [vmem:[#allocation3 + $0x1b8] sm:$0x3] %vm5326, %v5270
    %v5328 = vld [vmem:[%s4] sm:$0x1]
    %v5329 = vld [vmem:[%s5] sm:$0x1]
    %v5330 = vld [vmem:[#allocation3] sm:$0xff]
    %v5331 = vld [vmem:[#allocation3 + $0x8] sm:$0xff]
    %v5332 = vld [vmem:[#allocation3 + $0x10] sm:$0xff]
    %v5333 = vld [vmem:[#allocation3 + $0x18] sm:$0xff]
    %v5334 = vld [vmem:[#allocation3 + $0x20] sm:$0xff]
    %v5335 = vld [vmem:[#allocation3 + $0x28] sm:$0xff]
    %v5336 = vld [vmem:[#allocation3 + $0x30] sm:$0xff]
    %v5337 = vld [vmem:[#allocation3 + $0x38] sm:$0xff]
    %v5338 = vld [vmem:[#allocation3 + $0x40] sm:$0xff]
    %v5339 = vld [vmem:[#allocation3 + $0x48] sm:$0xff]
    %v5340 = vld [vmem:[#allocation3 + $0x50] sm:$0xff]
    %v5341 = vld [vmem:[#allocation3 + $0x58] sm:$0xff]
    %v5342 = vld [vmem:[#allocation3 + $0x60] sm:$0xff]
    %v5343 = vld [vmem:[#allocation3 + $0x68] sm:$0xff]
    %v5344 = vld [vmem:[#allocation3 + $0x70] sm:$0xff]
    %v5345 = vld [vmem:[#allocation3 + $0x78] sm:$0xff]
    %v5346 = vld [vmem:[#allocation3 + $0x80] sm:$0xff]
    %v5347 = vld [vmem:[#allocation3 + $0x88] sm:$0xff]
    %v5348 = vld [vmem:[#allocation3 + $0x90] sm:$0xff]
    %v5349 = vld [vmem:[#allocation3 + $0x98] sm:$0xff]
    %v5350 = vld [vmem:[#allocation3 + $0xa0] sm:$0xff]
    %v5351 = vld [vmem:[#allocation3 + $0xa8] sm:$0xff]
    %v5352 = vld [vmem:[#allocation3 + $0xb0] sm:$0xff]
    %v5353 = vld [vmem:[#allocation3 + $0xb8] sm:$0xff]
    %v5354 = vld [vmem:[#allocation3 + $0xc0] sm:$0xff]
    %v5355 = vld [vmem:[#allocation3 + $0xc8] sm:$0xff]
    %v5356 = vld [vmem:[#allocation3 + $0xd0] sm:$0xff]
    %v5357 = vld [vmem:[#allocation3 + $0xd8] sm:$0xff]
    %v5358 = vld [vmem:[#allocation3 + $0xe0] sm:$0xff]
    %v5359 = vld [vmem:[#allocation3 + $0xe8] sm:$0xff]
    %v5360 = vld [vmem:[#allocation3 + $0xf0] sm:$0xff]
    %v5361 = vld [vmem:[#allocation3 + $0xf8] sm:$0xff]
    %v5362 = vld [vmem:[#allocation3 + $0x100] sm:$0xff]
    %v5363 = vld [vmem:[#allocation3 + $0x108] sm:$0xff]
    %v5364 = vld [vmem:[#allocation3 + $0x110] sm:$0xff]
    %v5365 = vld [vmem:[#allocation3 + $0x118] sm:$0xff]
    %v5366 = vld [vmem:[#allocation3 + $0x120] sm:$0xff]
    %v5367 = vld [vmem:[#allocation3 + $0x128] sm:$0xff]
    %v5368 = vld [vmem:[#allocation3 + $0x130] sm:$0xff]
    %v5369 = vld [vmem:[#allocation3 + $0x138] sm:$0xff]
    %v5370 = vld [vmem:[#allocation3 + $0x140] sm:$0xff]
    %v5371 = vld [vmem:[#allocation3 + $0x148] sm:$0xff]
    %v5372 = vld [vmem:[#allocation3 + $0x150] sm:$0xff]
    %v5373 = vld [vmem:[#allocation3 + $0x158] sm:$0xff]
    %v5374 = vld [vmem:[#allocation3 + $0x160] sm:$0xff]
    %v5375 = vld [vmem:[#allocation3 + $0x168] sm:$0xff]
    %v5376 = vld [vmem:[#allocation3 + $0x170] sm:$0xff]
    %v5377 = vld [vmem:[#allocation3 + $0x178] sm:$0xff]
    %v5378 = vld [vmem:[#allocation3 + $0x180] sm:$0xff]
    %v5379 = vld [vmem:[#allocation3 + $0x188] sm:$0xff]
    %v5380 = vld [vmem:[#allocation3 + $0x190] sm:$0xff]
    %v5381 = vld [vmem:[#allocation3 + $0x198] sm:$0xff]
    %v5382 = vld [vmem:[#allocation3 + $0x1a0] sm:$0xff]
    %v5383 = vld [vmem:[#allocation3 + $0x1a8] sm:$0x1f]
    %v5384 = vld [vmem:[#allocation3 + $0xd] sm:$0xff]
    %v5385 = vld [vmem:[#allocation3 + $0x15] sm:$0xff]
    %v5386 = vld [vmem:[#allocation3 + $0x1d] sm:$0xff]
    %v5387 = vld [vmem:[#allocation3 + $0x25] sm:$0xff]
    %v5388 = vld [vmem:[#allocation3 + $0x2d] sm:$0xff]
    %v5389 = vld [vmem:[#allocation3 + $0x35] sm:$0xff]
    %v5390 = vld [vmem:[#allocation3 + $0x3d] sm:$0xff]
    %v5391 = vld [vmem:[#allocation3 + $0x45] sm:$0xff]
    %v5392 = vld [vmem:[#allocation3 + $0x4d] sm:$0xff]
    %v5393 = vld [vmem:[#allocation3 + $0x55] sm:$0xff]
    %v5394 = vld [vmem:[#allocation3 + $0x5d] sm:$0xff]
    %v5395 = vld [vmem:[#allocation3 + $0x65] sm:$0xff]
    %v5396 = vld [vmem:[#allocation3 + $0x6d] sm:$0xff]
    %v5397 = vld [vmem:[#allocation3 + $0x75] sm:$0xff]
    %v5398 = vld [vmem:[#allocation3 + $0x7d] sm:$0xff]
    %v5399 = vld [vmem:[#allocation3 + $0x85] sm:$0xff]
    %v5400 = vld [vmem:[#allocation3 + $0x8d] sm:$0xff]
    %v5401 = vld [vmem:[#allocation3 + $0x95] sm:$0xff]
    %v5402 = vld [vmem:[#allocation3 + $0x9d] sm:$0xff]
    %v5403 = vld [vmem:[#allocation3 + $0xa5] sm:$0xff]
    %v5404 = vld [vmem:[#allocation3 + $0xad] sm:$0xff]
    %v5405 = vld [vmem:[#allocation3 + $0xb5] sm:$0xff]
    %v5406 = vld [vmem:[#allocation3 + $0xbd] sm:$0xff]
    %v5407 = vld [vmem:[#allocation3 + $0xc5] sm:$0xff]
    %v5408 = vld [vmem:[#allocation3 + $0xcd] sm:$0xff]
    %v5409 = vld [vmem:[#allocation3 + $0xd5] sm:$0xff]
    %v5410 = vld [vmem:[#allocation3 + $0xdd] sm:$0xff]
    %v5411 = vld [vmem:[#allocation3 + $0xe5] sm:$0xff]
    %v5412 = vld [vmem:[#allocation3 + $0xed] sm:$0xff]
    %v5413 = vld [vmem:[#allocation3 + $0xf5] sm:$0xff]
    %v5414 = vld [vmem:[#allocation3 + $0xfd] sm:$0xff]
    %v5415 = vld [vmem:[#allocation3 + $0x105] sm:$0xff]
    %v5416 = vld [vmem:[#allocation3 + $0x10d] sm:$0xff]
    %v5417 = vld [vmem:[#allocation3 + $0x115] sm:$0xff]
    %v5418 = vld [vmem:[#allocation3 + $0x11d] sm:$0xff]
    %v5419 = vld [vmem:[#allocation3 + $0x125] sm:$0xff]
    %v5420 = vld [vmem:[#allocation3 + $0x12d] sm:$0xff]
    %v5421 = vld [vmem:[#allocation3 + $0x135] sm:$0xff]
    %v5422 = vld [vmem:[#allocation3 + $0x13d] sm:$0xff]
    %v5423 = vld [vmem:[#allocation3 + $0x145] sm:$0xff]
    %v5424 = vld [vmem:[#allocation3 + $0x14d] sm:$0xff]
    %v5425 = vld [vmem:[#allocation3 + $0x155] sm:$0xff]
    %v5426 = vld [vmem:[#allocation3 + $0x15d] sm:$0xff]
    %v5427 = vld [vmem:[#allocation3 + $0x165] sm:$0xff]
    %v5428 = vld [vmem:[#allocation3 + $0x16d] sm:$0xff]
    %v5429 = vld [vmem:[#allocation3 + $0x175] sm:$0xff]
    %v5430 = vld [vmem:[#allocation3 + $0x17d] sm:$0xff]
    %v5431 = vld [vmem:[#allocation3 + $0x185] sm:$0xff]
    %v5432 = vld [vmem:[#allocation3 + $0x18d] sm:$0xff]
    %v5433 = vld [vmem:[#allocation3 + $0x195] sm:$0xff]
    %v5434 = vld [vmem:[#allocation3 + $0x19d] sm:$0xff]
    %v5435 = vld [vmem:[#allocation3 + $0x1a5] sm:$0xff]
    %v5436 = vld [vmem:[#allocation3 + $0x1ad] sm:$0xff]
    %v5437 = vld [vmem:[#allocation3 + $0x1b5] sm:$0x1f]
    %v5438 = vmax.f32 %v5330, %v5384
    %v5439 = vmax.f32 %v5331, %v5385
    %v5440 = vmax.f32 %v5332, %v5386
    %v5441 = vmax.f32 %v5333, %v5387
    %v5442 = vmax.f32 %v5334, %v5388
    %v5443 = vmax.f32 %v5335, %v5389
    %v5444 = vmax.f32 %v5336, %v5390
    %v5445 = vmax.f32 %v5337, %v5391
    %v5446 = vmax.f32 %v5338, %v5392
    %v5447 = vmax.f32 %v5339, %v5393
    %v5448 = vmax.f32 %v5340, %v5394
    %v5449 = vmax.f32 %v5341, %v5395
    %v5450 = vmax.f32 %v5342, %v5396
    %v5451 = vmax.f32 %v5343, %v5397
    %v5452 = vmax.f32 %v5344, %v5398
    %v5453 = vmax.f32 %v5345, %v5399
    %v5454 = vmax.f32 %v5346, %v5400
    %v5455 = vmax.f32 %v5347, %v5401
    %v5456 = vmax.f32 %v5348, %v5402
    %v5457 = vmax.f32 %v5349, %v5403
    %v5458 = vmax.f32 %v5350, %v5404
    %v5459 = vmax.f32 %v5351, %v5405
    %v5460 = vmax.f32 %v5352, %v5406
    %v5461 = vmax.f32 %v5353, %v5407
    %v5462 = vmax.f32 %v5354, %v5408
    %v5463 = vmax.f32 %v5355, %v5409
    %v5464 = vmax.f32 %v5356, %v5410
    %v5465 = vmax.f32 %v5357, %v5411
    %v5466 = vmax.f32 %v5358, %v5412
    %v5467 = vmax.f32 %v5359, %v5413
    %v5468 = vmax.f32 %v5360, %v5414
    %v5469 = vmax.f32 %v5361, %v5415
    %v5470 = vmax.f32 %v5362, %v5416
    %v5471 = vmax.f32 %v5363, %v5417
    %v5472 = vmax.f32 %v5364, %v5418
    %v5473 = vmax.f32 %v5365, %v5419
    %v5474 = vmax.f32 %v5366, %v5420
    %v5475 = vmax.f32 %v5367, %v5421
    %v5476 = vmax.f32 %v5368, %v5422
    %v5477 = vmax.f32 %v5369, %v5423
    %v5478 = vmax.f32 %v5370, %v5424
    %v5479 = vmax.f32 %v5371, %v5425
    %v5480 = vmax.f32 %v5372, %v5426
    %v5481 = vmax.f32 %v5373, %v5427
    %v5482 = vmax.f32 %v5374, %v5428
    %v5483 = vmax.f32 %v5375, %v5429
    %v5484 = vmax.f32 %v5376, %v5430
    %v5485 = vmax.f32 %v5377, %v5431
    %v5486 = vmax.f32 %v5378, %v5432
    %v5487 = vmax.f32 %v5379, %v5433
    %v5488 = vmax.f32 %v5380, %v5434
    %v5489 = vmax.f32 %v5381, %v5435
    %v5490 = vmax.f32 %v5382, %v5436
    %v5491 = vmax.f32 %v5383, %v5437
    %v5493 = vlaneseq
    %v5494 = vshrl.u32 %v5493, 7
    %v5495 = vsub.s32 0, %v5494
    %v5496 = vrot.slane %v5328, %v5495
    %v5498 = vmul.f32 %v5438, %v5496
    %v5499 = vmul.f32 %v5439, %v5496
    %v5500 = vmul.f32 %v5440, %v5496
    %v5501 = vmul.f32 %v5441, %v5496
    %v5502 = vmul.f32 %v5442, %v5496
    %v5503 = vmul.f32 %v5443, %v5496
    %v5504 = vmul.f32 %v5444, %v5496
    %v5505 = vmul.f32 %v5445, %v5496
    %v5506 = vmul.f32 %v5446, %v5496
    %v5507 = vmul.f32 %v5447, %v5496
    %v5508 = vmul.f32 %v5448, %v5496
    %v5509 = vmul.f32 %v5449, %v5496
    %v5510 = vmul.f32 %v5450, %v5496
    %v5511 = vmul.f32 %v5451, %v5496
    %v5512 = vmul.f32 %v5452, %v5496
    %v5513 = vmul.f32 %v5453, %v5496
    %v5514 = vmul.f32 %v5454, %v5496
    %v5515 = vmul.f32 %v5455, %v5496
    %v5516 = vmul.f32 %v5456, %v5496
    %v5517 = vmul.f32 %v5457, %v5496
    %v5518 = vmul.f32 %v5458, %v5496
    %v5519 = vmul.f32 %v5459, %v5496
    %v5520 = vmul.f32 %v5460, %v5496
    %v5521 = vmul.f32 %v5461, %v5496
    %v5522 = vmul.f32 %v5462, %v5496
    %v5523 = vmul.f32 %v5463, %v5496
    %v5524 = vmul.f32 %v5464, %v5496
    %v5525 = vmul.f32 %v5465, %v5496
    %v5526 = vmul.f32 %v5466, %v5496
    %v5527 = vmul.f32 %v5467, %v5496
    %v5528 = vmul.f32 %v5468, %v5496
    %v5529 = vmul.f32 %v5469, %v5496
    %v5530 = vmul.f32 %v5470, %v5496
    %v5531 = vmul.f32 %v5471, %v5496
    %v5532 = vmul.f32 %v5472, %v5496
    %v5533 = vmul.f32 %v5473, %v5496
    %v5534 = vmul.f32 %v5474, %v5496
    %v5535 = vmul.f32 %v5475, %v5496
    %v5536 = vmul.f32 %v5476, %v5496
    %v5537 = vmul.f32 %v5477, %v5496
    %v5538 = vmul.f32 %v5478, %v5496
    %v5539 = vmul.f32 %v5479, %v5496
    %v5540 = vmul.f32 %v5480, %v5496
    %v5541 = vmul.f32 %v5481, %v5496
    %v5542 = vmul.f32 %v5482, %v5496
    %v5543 = vmul.f32 %v5483, %v5496
    %v5544 = vmul.f32 %v5484, %v5496
    %v5545 = vmul.f32 %v5485, %v5496
    %v5546 = vmul.f32 %v5486, %v5496
    %v5547 = vmul.f32 %v5487, %v5496
    %v5548 = vmul.f32 %v5488, %v5496
    %v5549 = vmul.f32 %v5489, %v5496
    %v5550 = vmul.f32 %v5490, %v5496
    %v5551 = vmul.f32 %v5491, %v5496
    %v5553 = vlaneseq
    %v5554 = vshrl.u32 %v5553, 7
    %v5555 = vsub.s32 0, %v5554
    %v5556 = vrot.slane %v5329, %v5555
    %v5558 = vadd.f32 %v5498, %v5556
    %v5559 = vadd.f32 %v5499, %v5556
    %v5560 = vadd.f32 %v5500, %v5556
    %v5561 = vadd.f32 %v5501, %v5556
    %v5562 = vadd.f32 %v5502, %v5556
    %v5563 = vadd.f32 %v5503, %v5556
    %v5564 = vadd.f32 %v5504, %v5556
    %v5565 = vadd.f32 %v5505, %v5556
    %v5566 = vadd.f32 %v5506, %v5556
    %v5567 = vadd.f32 %v5507, %v5556
    %v5568 = vadd.f32 %v5508, %v5556
    %v5569 = vadd.f32 %v5509, %v5556
    %v5570 = vadd.f32 %v5510, %v5556
    %v5571 = vadd.f32 %v5511, %v5556
    %v5572 = vadd.f32 %v5512, %v5556
    %v5573 = vadd.f32 %v5513, %v5556
    %v5574 = vadd.f32 %v5514, %v5556
    %v5575 = vadd.f32 %v5515, %v5556
    %v5576 = vadd.f32 %v5516, %v5556
    %v5577 = vadd.f32 %v5517, %v5556
    %v5578 = vadd.f32 %v5518, %v5556
    %v5579 = vadd.f32 %v5519, %v5556
    %v5580 = vadd.f32 %v5520, %v5556
    %v5581 = vadd.f32 %v5521, %v5556
    %v5582 = vadd.f32 %v5522, %v5556
    %v5583 = vadd.f32 %v5523, %v5556
    %v5584 = vadd.f32 %v5524, %v5556
    %v5585 = vadd.f32 %v5525, %v5556
    %v5586 = vadd.f32 %v5526, %v5556
    %v5587 = vadd.f32 %v5527, %v5556
    %v5588 = vadd.f32 %v5528, %v5556
    %v5589 = vadd.f32 %v5529, %v5556
    %v5590 = vadd.f32 %v5530, %v5556
    %v5591 = vadd.f32 %v5531, %v5556
    %v5592 = vadd.f32 %v5532, %v5556
    %v5593 = vadd.f32 %v5533, %v5556
    %v5594 = vadd.f32 %v5534, %v5556
    %v5595 = vadd.f32 %v5535, %v5556
    %v5596 = vadd.f32 %v5536, %v5556
    %v5597 = vadd.f32 %v5537, %v5556
    %v5598 = vadd.f32 %v5538, %v5556
    %v5599 = vadd.f32 %v5539, %v5556
    %v5600 = vadd.f32 %v5540, %v5556
    %v5601 = vadd.f32 %v5541, %v5556
    %v5602 = vadd.f32 %v5542, %v5556
    %v5603 = vadd.f32 %v5543, %v5556
    %v5604 = vadd.f32 %v5544, %v5556
    %v5605 = vadd.f32 %v5545, %v5556
    %v5606 = vadd.f32 %v5546, %v5556
    %v5607 = vadd.f32 %v5547, %v5556
    %v5608 = vadd.f32 %v5548, %v5556
    %v5609 = vadd.f32 %v5549, %v5556
    %v5610 = vadd.f32 %v5550, %v5556
    %v5611 = vadd.f32 %v5551, %v5556
    %v5612 = vmax.f32 %v5558, 0.0
    %v5613 = vmax.f32 %v5559, 0.0
    %v5614 = vmax.f32 %v5560, 0.0
    %v5615 = vmax.f32 %v5561, 0.0
    %v5616 = vmax.f32 %v5562, 0.0
    %v5617 = vmax.f32 %v5563, 0.0
    %v5618 = vmax.f32 %v5564, 0.0
    %v5619 = vmax.f32 %v5565, 0.0
    %v5620 = vmax.f32 %v5566, 0.0
    %v5621 = vmax.f32 %v5567, 0.0
    %v5622 = vmax.f32 %v5568, 0.0
    %v5623 = vmax.f32 %v5569, 0.0
    %v5624 = vmax.f32 %v5570, 0.0
    %v5625 = vmax.f32 %v5571, 0.0
    %v5626 = vmax.f32 %v5572, 0.0
    %v5627 = vmax.f32 %v5573, 0.0
    %v5628 = vmax.f32 %v5574, 0.0
    %v5629 = vmax.f32 %v5575, 0.0
    %v5630 = vmax.f32 %v5576, 0.0
    %v5631 = vmax.f32 %v5577, 0.0
    %v5632 = vmax.f32 %v5578, 0.0
    %v5633 = vmax.f32 %v5579, 0.0
    %v5634 = vmax.f32 %v5580, 0.0
    %v5635 = vmax.f32 %v5581, 0.0
    %v5636 = vmax.f32 %v5582, 0.0
    %v5637 = vmax.f32 %v5583, 0.0
    %v5638 = vmax.f32 %v5584, 0.0
    %v5639 = vmax.f32 %v5585, 0.0
    %v5640 = vmax.f32 %v5586, 0.0
    %v5641 = vmax.f32 %v5587, 0.0
    %v5642 = vmax.f32 %v5588, 0.0
    %v5643 = vmax.f32 %v5589, 0.0
    %v5644 = vmax.f32 %v5590, 0.0
    %v5645 = vmax.f32 %v5591, 0.0
    %v5646 = vmax.f32 %v5592, 0.0
    %v5647 = vmax.f32 %v5593, 0.0
    %v5648 = vmax.f32 %v5594, 0.0
    %v5649 = vmax.f32 %v5595, 0.0
    %v5650 = vmax.f32 %v5596, 0.0
    %v5651 = vmax.f32 %v5597, 0.0
    %v5652 = vmax.f32 %v5598, 0.0
    %v5653 = vmax.f32 %v5599, 0.0
    %v5654 = vmax.f32 %v5600, 0.0
    %v5655 = vmax.f32 %v5601, 0.0
    %v5656 = vmax.f32 %v5602, 0.0
    %v5657 = vmax.f32 %v5603, 0.0
    %v5658 = vmax.f32 %v5604, 0.0
    %v5659 = vmax.f32 %v5605, 0.0
    %v5660 = vmax.f32 %v5606, 0.0
    %v5661 = vmax.f32 %v5607, 0.0
    %v5662 = vmax.f32 %v5608, 0.0
    %v5663 = vmax.f32 %v5609, 0.0
    %v5664 = vmax.f32 %v5610, 0.0
    %v5665 = vmax.f32 %v5611, 0.0
    %5666 = vst.msk [vmem:[#allocation2] sm:$0xff] %vm37, %v5612
    %5667 = vst.msk [vmem:[#allocation2 + $0x8] sm:$0xff] %vm37, %v5613
    %5668 = vst.msk [vmem:[#allocation2 + $0x10] sm:$0xff] %vm37, %v5614
    %5669 = vst.msk [vmem:[#allocation2 + $0x18] sm:$0xff] %vm37, %v5615
    %5670 = vst.msk [vmem:[#allocation2 + $0x20] sm:$0xff] %vm37, %v5616
    %5671 = vst.msk [vmem:[#allocation2 + $0x28] sm:$0xff] %vm37, %v5617
    %5672 = vst.msk [vmem:[#allocation2 + $0x30] sm:$0xff] %vm37, %v5618
    %5673 = vst.msk [vmem:[#allocation2 + $0x38] sm:$0xff] %vm37, %v5619
    %5674 = vst.msk [vmem:[#allocation2 + $0x40] sm:$0xff] %vm37, %v5620
    %5675 = vst.msk [vmem:[#allocation2 + $0x48] sm:$0xff] %vm37, %v5621
    %5676 = vst.msk [vmem:[#allocation2 + $0x50] sm:$0xff] %vm37, %v5622
    %5677 = vst.msk [vmem:[#allocation2 + $0x58] sm:$0xff] %vm37, %v5623
    %5678 = vst.msk [vmem:[#allocation2 + $0x60] sm:$0xff] %vm37, %v5624
    %5679 = vst.msk [vmem:[#allocation2 + $0x68] sm:$0xff] %vm37, %v5625
    %5680 = vst.msk [vmem:[#allocation2 + $0x70] sm:$0xff] %vm37, %v5626
    %5681 = vst.msk [vmem:[#allocation2 + $0x78] sm:$0xff] %vm37, %v5627
    %5682 = vst.msk [vmem:[#allocation2 + $0x80] sm:$0xff] %vm37, %v5628
    %5683 = vst.msk [vmem:[#allocation2 + $0x88] sm:$0xff] %vm37, %v5629
    %5684 = vst.msk [vmem:[#allocation2 + $0x90] sm:$0xff] %vm37, %v5630
    %5685 = vst.msk [vmem:[#allocation2 + $0x98] sm:$0xff] %vm37, %v5631
    %5686 = vst.msk [vmem:[#allocation2 + $0xa0] sm:$0xff] %vm37, %v5632
    %5687 = vst.msk [vmem:[#allocation2 + $0xa8] sm:$0xff] %vm37, %v5633
    %5688 = vst.msk [vmem:[#allocation2 + $0xb0] sm:$0xff] %vm37, %v5634
    %5689 = vst.msk [vmem:[#allocation2 + $0xb8] sm:$0xff] %vm37, %v5635
    %5690 = vst.msk [vmem:[#allocation2 + $0xc0] sm:$0xff] %vm37, %v5636
    %5691 = vst.msk [vmem:[#allocation2 + $0xc8] sm:$0xff] %vm37, %v5637
    %5692 = vst.msk [vmem:[#allocation2 + $0xd0] sm:$0xff] %vm37, %v5638
    %5693 = vst.msk [vmem:[#allocation2 + $0xd8] sm:$0xff] %vm37, %v5639
    %5694 = vst.msk [vmem:[#allocation2 + $0xe0] sm:$0xff] %vm37, %v5640
    %5695 = vst.msk [vmem:[#allocation2 + $0xe8] sm:$0xff] %vm37, %v5641
    %5696 = vst.msk [vmem:[#allocation2 + $0xf0] sm:$0xff] %vm37, %v5642
    %5697 = vst.msk [vmem:[#allocation2 + $0xf8] sm:$0xff] %vm37, %v5643
    %5698 = vst.msk [vmem:[#allocation2 + $0x100] sm:$0xff] %vm37, %v5644
    %5699 = vst.msk [vmem:[#allocation2 + $0x108] sm:$0xff] %vm37, %v5645
    %5700 = vst.msk [vmem:[#allocation2 + $0x110] sm:$0xff] %vm37, %v5646
    %5701 = vst.msk [vmem:[#allocation2 + $0x118] sm:$0xff] %vm37, %v5647
    %5702 = vst.msk [vmem:[#allocation2 + $0x120] sm:$0xff] %vm37, %v5648
    %5703 = vst.msk [vmem:[#allocation2 + $0x128] sm:$0xff] %vm37, %v5649
    %5704 = vst.msk [vmem:[#allocation2 + $0x130] sm:$0xff] %vm37, %v5650
    %5705 = vst.msk [vmem:[#allocation2 + $0x138] sm:$0xff] %vm37, %v5651
    %5706 = vst.msk [vmem:[#allocation2 + $0x140] sm:$0xff] %vm37, %v5652
    %5707 = vst.msk [vmem:[#allocation2 + $0x148] sm:$0xff] %vm37, %v5653
    %5708 = vst.msk [vmem:[#allocation2 + $0x150] sm:$0xff] %vm37, %v5654
    %5709 = vst.msk [vmem:[#allocation2 + $0x158] sm:$0xff] %vm37, %v5655
    %5710 = vst.msk [vmem:[#allocation2 + $0x160] sm:$0xff] %vm37, %v5656
    %5711 = vst.msk [vmem:[#allocation2 + $0x168] sm:$0xff] %vm37, %v5657
    %5712 = vst.msk [vmem:[#allocation2 + $0x170] sm:$0xff] %vm37, %v5658
    %5713 = vst.msk [vmem:[#allocation2 + $0x178] sm:$0xff] %vm37, %v5659
    %5714 = vst.msk [vmem:[#allocation2 + $0x180] sm:$0xff] %vm37, %v5660
    %5715 = vst.msk [vmem:[#allocation2 + $0x188] sm:$0xff] %vm37, %v5661
    %5716 = vst.msk [vmem:[#allocation2 + $0x190] sm:$0xff] %vm37, %v5662
    %5717 = vst.msk [vmem:[#allocation2 + $0x198] sm:$0xff] %vm37, %v5663
    %5718 = vst.msk [vmem:[#allocation2 + $0x1a0] sm:$0xff] %vm37, %v5664
    %vm5719 = vcmask 258048
    %5720 = vst.msk [vmem:[#allocation2 + $0x1a8] sm:$0x1f] %vm5719, %v5665
    %v5721 = vld [vmem:[#allocation2] sm:$0xff]
    %v5722 = vld [vmem:[#allocation2 + $0x8] sm:$0xf]
    %5723 = vst.msk [vmem:[#allocation6 + $0xf] sm:$0xff] %vm37, %v5721
    %5724 = vst.msk [vmem:[#allocation6 + $0x17] sm:$0xf] %vm679, %v5722
    %v5725 = vld [vmem:[#allocation2 + $0x1a] sm:$0xff]
    %v5726 = vld [vmem:[#allocation2 + $0x22] sm:$0xf]
    %5727 = vst.msk [vmem:[#allocation6 + $0x1d] sm:$0xff] %vm37, %v5725
    %5728 = vst.msk [vmem:[#allocation6 + $0x25] sm:$0xf] %vm679, %v5726
    %v5729 = vld [vmem:[#allocation2 + $0x34] sm:$0xff]
    %v5730 = vld [vmem:[#allocation2 + $0x3c] sm:$0xf]
    %5731 = vst.msk [vmem:[#allocation6 + $0x2b] sm:$0xff] %vm37, %v5729
    %5732 = vst.msk [vmem:[#allocation6 + $0x33] sm:$0xf] %vm679, %v5730
    %v5733 = vld [vmem:[#allocation2 + $0x4e] sm:$0xff]
    %v5734 = vld [vmem:[#allocation2 + $0x56] sm:$0xf]
    %5735 = vst.msk [vmem:[#allocation6 + $0x39] sm:$0xff] %vm37, %v5733
    %5736 = vst.msk [vmem:[#allocation6 + $0x41] sm:$0xf] %vm679, %v5734
    %v5737 = vld [vmem:[#allocation2 + $0x68] sm:$0xff]
    %v5738 = vld [vmem:[#allocation2 + $0x70] sm:$0xf]
    %5739 = vst.msk [vmem:[#allocation6 + $0x47] sm:$0xff] %vm37, %v5737
    %5740 = vst.msk [vmem:[#allocation6 + $0x4f] sm:$0xf] %vm679, %v5738
    %v5741 = vld [vmem:[#allocation2 + $0x82] sm:$0xff]
    %v5742 = vld [vmem:[#allocation2 + $0x8a] sm:$0xf]
    %5743 = vst.msk [vmem:[#allocation6 + $0x55] sm:$0xff] %vm37, %v5741
    %5744 = vst.msk [vmem:[#allocation6 + $0x5d] sm:$0xf] %vm679, %v5742
    %v5745 = vld [vmem:[#allocation2 + $0x9c] sm:$0xff]
    %v5746 = vld [vmem:[#allocation2 + $0xa4] sm:$0xf]
    %5747 = vst.msk [vmem:[#allocation6 + $0x63] sm:$0xff] %vm37, %v5745
    %5748 = vst.msk [vmem:[#allocation6 + $0x6b] sm:$0xf] %vm679, %v5746
    %v5749 = vld [vmem:[#allocation2 + $0xdd] sm:$0xff]
    %v5750 = vld [vmem:[#allocation2 + $0xe5] sm:$0xf]
    %5751 = vst.msk [vmem:[#allocation6 + $0x8d] sm:$0xff] %vm37, %v5749
    %5752 = vst.msk [vmem:[#allocation6 + $0x95] sm:$0xf] %vm679, %v5750
    %v5753 = vld [vmem:[#allocation2 + $0xf7] sm:$0xff]
    %v5754 = vld [vmem:[#allocation2 + $0xff] sm:$0xf]
    %5755 = vst.msk [vmem:[#allocation6 + $0x9b] sm:$0xff] %vm37, %v5753
    %5756 = vst.msk [vmem:[#allocation6 + $0xa3] sm:$0xf] %vm679, %v5754
    %v5757 = vld [vmem:[#allocation2 + $0x111] sm:$0xff]
    %v5758 = vld [vmem:[#allocation2 + $0x119] sm:$0xf]
    %5759 = vst.msk [vmem:[#allocation6 + $0xa9] sm:$0xff] %vm37, %v5757
    %5760 = vst.msk [vmem:[#allocation6 + $0xb1] sm:$0xf] %vm679, %v5758
    %v5761 = vld [vmem:[#allocation2 + $0x12b] sm:$0xff]
    %v5762 = vld [vmem:[#allocation2 + $0x133] sm:$0xf]
    %5763 = vst.msk [vmem:[#allocation6 + $0xb7] sm:$0xff] %vm37, %v5761
    %5764 = vst.msk [vmem:[#allocation6 + $0xbf] sm:$0xf] %vm679, %v5762
    %v5765 = vld [vmem:[#allocation2 + $0x145] sm:$0xff]
    %v5766 = vld [vmem:[#allocation2 + $0x14d] sm:$0xf]
    %5767 = vst.msk [vmem:[#allocation6 + $0xc5] sm:$0xff] %vm37, %v5765
    %5768 = vst.msk [vmem:[#allocation6 + $0xcd] sm:$0xf] %vm679, %v5766
    %v5769 = vld [vmem:[#allocation2 + $0x15f] sm:$0xff]
    %v5770 = vld [vmem:[#allocation2 + $0x167] sm:$0xf]
    %5771 = vst.msk [vmem:[#allocation6 + $0xd3] sm:$0xff] %vm37, %v5769
    %5772 = vst.msk [vmem:[#allocation6 + $0xdb] sm:$0xf] %vm679, %v5770
    %v5773 = vld [vmem:[#allocation2 + $0x179] sm:$0xff]
    %v5774 = vld [vmem:[#allocation2 + $0x181] sm:$0xf]
    %5775 = vst.msk [vmem:[#allocation6 + $0xe1] sm:$0xff] %vm37, %v5773
    %5776 = vst.msk [vmem:[#allocation6 + $0xe9] sm:$0xf] %vm679, %v5774
    %v5777 = vld [vmem:[#allocation6] sm:$0xff]
    %v5778 = vld [vmem:[#allocation6 + $0x8] sm:$0xff]
    %v5779 = vld [vmem:[#allocation6 + $0x10] sm:$0xff]
    %v5780 = vld [vmem:[#allocation6 + $0x18] sm:$0xff]
    %v5781 = vld [vmem:[#allocation6 + $0x20] sm:$0xff]
    %v5782 = vld [vmem:[#allocation6 + $0x28] sm:$0xff]
    %v5783 = vld [vmem:[#allocation6 + $0x30] sm:$0xff]
    %v5784 = vld [vmem:[#allocation6 + $0x38] sm:$0xff]
    %v5785 = vld [vmem:[#allocation6 + $0x40] sm:$0xff]
    %v5786 = vld [vmem:[#allocation6 + $0x48] sm:$0xff]
    %v5787 = vld [vmem:[#allocation6 + $0x50] sm:$0xff]
    %v5788 = vld [vmem:[#allocation6 + $0x58] sm:$0xff]
    %v5789 = vld [vmem:[#allocation6 + $0x60] sm:$0xff]
    %v5790 = vld [vmem:[#allocation6 + $0x68] sm:$0xff]
    %v5791 = vld [vmem:[#allocation6 + $0x70] sm:$0xff]
    %v5792 = vld [vmem:[#allocation6 + $0x78] sm:$0xff]
    %v5793 = vld [vmem:[#allocation6 + $0x80] sm:$0xff]
    %v5794 = vld [vmem:[#allocation6 + $0x88] sm:$0xff]
    %v5795 = vld [vmem:[#allocation6 + $0x90] sm:$0xff]
    %v5796 = vld [vmem:[#allocation6 + $0x98] sm:$0xff]
    %v5797 = vld [vmem:[#allocation6 + $0xa0] sm:$0xff]
    %v5798 = vld [vmem:[#allocation6 + $0xa8] sm:$0xff]
    %v5799 = vld [vmem:[#allocation6 + $0xb0] sm:$0xff]
    %v5800 = vld [vmem:[#allocation6 + $0xb8] sm:$0xff]
    %v5801 = vld [vmem:[#allocation6 + $0xc0] sm:$0xff]
    %v5802 = vld [vmem:[#allocation6 + $0xc8] sm:$0xff]
    %v5803 = vld [vmem:[#allocation6 + $0xd0] sm:$0xff]
    %v5804 = vld [vmem:[#allocation6 + $0xd8] sm:$0xff]
    %v5805 = vld [vmem:[#allocation6 + $0xe0] sm:$0xff]
    %v5806 = vld [vmem:[#allocation6 + $0xe8] sm:$0xff]
    %v5807 = vld [vmem:[#allocation6 + $0xf0] sm:$0xff]
    %v5808 = vld [vmem:[#allocation6 + $0xf8] sm:$0xff]
    %v5809 = vld [vmem:[#allocation6 + $0x100] sm:$0xff]
    %v5810 = vld [vmem:[#allocation6 + $0x108] sm:$0xff]
    %v5811 = vld [vmem:[#allocation6 + $0x110] sm:$0xff]
    %v5812 = vpack.c.bf16 %v5778, %v5777
    %v5813 = vpack.c.bf16 %v5780, %v5779
    %v5814 = vpack.c.bf16 %v5782, %v5781
    %v5815 = vpack.c.bf16 %v5784, %v5783
    %v5816 = vpack.c.bf16 %v5786, %v5785
    %v5817 = vpack.c.bf16 %v5788, %v5787
    %v5818 = vpack.c.bf16 %v5790, %v5789
    %v5819 = vpack.c.bf16 %v5792, %v5791
    %v5820 = vpack.c.bf16 %v5794, %v5793
    %v5821 = vpack.c.bf16 %v5796, %v5795
    %v5822 = vpack.c.bf16 %v5798, %v5797
    %v5823 = vpack.c.bf16 %v5800, %v5799
    %v5824 = vpack.c.bf16 %v5802, %v5801
    %v5825 = vpack.c.bf16 %v5804, %v5803
    %v5826 = vpack.c.bf16 %v5806, %v5805
    %v5827 = vpack.c.bf16 %v5808, %v5807
    %v5828 = vpack.c.bf16 %v5810, %v5809
    %v5829 = vpack.c.bf16 %v5811, %v5811
    %5830 = vst.msk [vmem:[#allocation4] sm:$0xff] %vm37, %v5812
    %5831 = vst.msk [vmem:[#allocation4 + $0x8] sm:$0xff] %vm37, %v5813
    %5832 = vst.msk [vmem:[#allocation4 + $0x10] sm:$0xff] %vm37, %v5814
    %5833 = vst.msk [vmem:[#allocation4 + $0x18] sm:$0xff] %vm37, %v5815
    %5834 = vst.msk [vmem:[#allocation4 + $0x20] sm:$0xff] %vm37, %v5816
    %5835 = vst.msk [vmem:[#allocation4 + $0x28] sm:$0xff] %vm37, %v5817
    %5836 = vst.msk [vmem:[#allocation4 + $0x30] sm:$0xff] %vm37, %v5818
    %5837 = vst.msk [vmem:[#allocation4 + $0x38] sm:$0xff] %vm37, %v5819
    %5838 = vst.msk [vmem:[#allocation4 + $0x40] sm:$0xff] %vm37, %v5820
    %5839 = vst.msk [vmem:[#allocation4 + $0x48] sm:$0xff] %vm37, %v5821
    %5840 = vst.msk [vmem:[#allocation4 + $0x50] sm:$0xff] %vm37, %v5822
    %5841 = vst.msk [vmem:[#allocation4 + $0x58] sm:$0xff] %vm37, %v5823
    %5842 = vst.msk [vmem:[#allocation4 + $0x60] sm:$0xff] %vm37, %v5824
    %5843 = vst.msk [vmem:[#allocation4 + $0x68] sm:$0xff] %vm37, %v5825
    %5844 = vst.msk [vmem:[#allocation4 + $0x70] sm:$0xff] %vm37, %v5826
    %5845 = vst.msk [vmem:[#allocation4 + $0x78] sm:$0xff] %vm37, %v5827
    %5846 = vst.msk [vmem:[#allocation4 + $0x80] sm:$0xff] %vm37, %v5828
    %5847 = vst.msk [vmem:[#allocation4 + $0x88] sm:$0xf] %vm679, %v5829
    %v5848 = vld [vmem:[#allocation6 + $0x1] sm:$0xff]
    %v5849 = vld [vmem:[#allocation6 + $0x9] sm:$0xff]
    %v5850 = vld [vmem:[#allocation6 + $0x11] sm:$0xff]
    %v5851 = vld [vmem:[#allocation6 + $0x19] sm:$0xff]
    %v5852 = vld [vmem:[#allocation6 + $0x21] sm:$0xff]
    %v5853 = vld [vmem:[#allocation6 + $0x29] sm:$0xff]
    %v5854 = vld [vmem:[#allocation6 + $0x31] sm:$0xff]
    %v5855 = vld [vmem:[#allocation6 + $0x39] sm:$0xff]
    %v5856 = vld [vmem:[#allocation6 + $0x41] sm:$0xff]
    %v5857 = vld [vmem:[#allocation6 + $0x49] sm:$0xff]
    %v5858 = vld [vmem:[#allocation6 + $0x51] sm:$0xff]
    %v5859 = vld [vmem:[#allocation6 + $0x59] sm:$0xff]
    %v5860 = vld [vmem:[#allocation6 + $0x61] sm:$0xff]
    %v5861 = vld [vmem:[#allocation6 + $0x69] sm:$0xff]
    %v5862 = vld [vmem:[#allocation6 + $0x71] sm:$0xff]
    %v5863 = vld [vmem:[#allocation6 + $0x79] sm:$0xff]
    %v5864 = vld [vmem:[#allocation6 + $0x81] sm:$0xff]
    %v5865 = vld [vmem:[#allocation6 + $0x89] sm:$0xff]
    %v5866 = vld [vmem:[#allocation6 + $0x91] sm:$0xff]
    %v5867 = vld [vmem:[#allocation6 + $0x99] sm:$0xff]
    %v5868 = vld [vmem:[#allocation6 + $0xa1] sm:$0xff]
    %v5869 = vld [vmem:[#allocation6 + $0xa9] sm:$0xff]
    %v5870 = vld [vmem:[#allocation6 + $0xb1] sm:$0xff]
    %v5871 = vld [vmem:[#allocation6 + $0xb9] sm:$0xff]
    %v5872 = vld [vmem:[#allocation6 + $0xc1] sm:$0xff]
    %v5873 = vld [vmem:[#allocation6 + $0xc9] sm:$0xff]
    %v5874 = vld [vmem:[#allocation6 + $0xd1] sm:$0xff]
    %v5875 = vld [vmem:[#allocation6 + $0xd9] sm:$0xff]
    %v5876 = vld [vmem:[#allocation6 + $0xe1] sm:$0xff]
    %v5877 = vld [vmem:[#allocation6 + $0xe9] sm:$0xff]
    %v5878 = vld [vmem:[#allocation6 + $0xf1] sm:$0xff]
    %v5879 = vld [vmem:[#allocation6 + $0xf9] sm:$0xff]
    %v5880 = vld [vmem:[#allocation6 + $0x101] sm:$0xff]
    %v5881 = vld [vmem:[#allocation6 + $0x109] sm:$0xff]
    %v5882 = vld [vmem:[#allocation6 + $0x111] sm:$0xff]
    %v5883 = vpack.c.bf16 %v5849, %v5848
    %v5884 = vpack.c.bf16 %v5851, %v5850
    %v5885 = vpack.c.bf16 %v5853, %v5852
    %v5886 = vpack.c.bf16 %v5855, %v5854
    %v5887 = vpack.c.bf16 %v5857, %v5856
    %v5888 = vpack.c.bf16 %v5859, %v5858
    %v5889 = vpack.c.bf16 %v5861, %v5860
    %v5890 = vpack.c.bf16 %v5863, %v5862
    %v5891 = vpack.c.bf16 %v5865, %v5864
    %v5892 = vpack.c.bf16 %v5867, %v5866
    %v5893 = vpack.c.bf16 %v5869, %v5868
    %v5894 = vpack.c.bf16 %v5871, %v5870
    %v5895 = vpack.c.bf16 %v5873, %v5872
    %v5896 = vpack.c.bf16 %v5875, %v5874
    %v5897 = vpack.c.bf16 %v5877, %v5876
    %v5898 = vpack.c.bf16 %v5879, %v5878
    %v5899 = vpack.c.bf16 %v5881, %v5880
    %v5900 = vpack.c.bf16 %v5882, %v5882
    %5919 = vrot.lane.b32.xlu0 %v5883, 32
    %v5920 = vpop.permute.xlu0 %5919
    %5921 = vrot.lane.b32.xlu0 %v5884, 32
    %v5922 = vpop.permute.xlu0 %5921
    %5923 = vrot.lane.b32.xlu0 %v5885, 32
    %v5924 = vpop.permute.xlu0 %5923
    %5925 = vrot.lane.b32.xlu0 %v5886, 32
    %v5926 = vpop.permute.xlu0 %5925
    %5927 = vrot.lane.b32.xlu0 %v5887, 32
    %v5928 = vpop.permute.xlu0 %5927
    %5929 = vrot.lane.b32.xlu0 %v5888, 32
    %v5930 = vpop.permute.xlu0 %5929
    %5931 = vrot.lane.b32.xlu0 %v5889, 32
    %v5932 = vpop.permute.xlu0 %5931
    %5933 = vrot.lane.b32.xlu0 %v5890, 32
    %v5934 = vpop.permute.xlu0 %5933
    %5935 = vrot.lane.b32.xlu0 %v5891, 32
    %v5936 = vpop.permute.xlu0 %5935
    %5937 = vrot.lane.b32.xlu0 %v5892, 32
    %v5938 = vpop.permute.xlu0 %5937
    %5939 = vrot.lane.b32.xlu0 %v5893, 32
    %v5940 = vpop.permute.xlu0 %5939
    %5941 = vrot.lane.b32.xlu0 %v5894, 32
    %v5942 = vpop.permute.xlu0 %5941
    %5943 = vrot.lane.b32.xlu0 %v5895, 32
    %v5944 = vpop.permute.xlu0 %5943
    %5945 = vrot.lane.b32.xlu0 %v5896, 32
    %v5946 = vpop.permute.xlu0 %5945
    %5947 = vrot.lane.b32.xlu0 %v5897, 32
    %v5948 = vpop.permute.xlu0 %5947
    %5949 = vrot.lane.b32.xlu0 %v5898, 32
    %v5950 = vpop.permute.xlu0 %5949
    %5951 = vrot.lane.b32.xlu0 %v5899, 32
    %v5952 = vpop.permute.xlu0 %5951
    %5953 = vrot.lane.b32.xlu0 %v5900, 32
    %v5954 = vpop.permute.xlu0 %5953
    %5973 = vst.msk [vmem:[#allocation4] sm:$0xff] %vm1743, %v5920
    %5974 = vst.msk [vmem:[#allocation4 + $0x8] sm:$0xff] %vm1743, %v5922
    %5975 = vst.msk [vmem:[#allocation4 + $0x10] sm:$0xff] %vm1743, %v5924
    %5976 = vst.msk [vmem:[#allocation4 + $0x18] sm:$0xff] %vm1743, %v5926
    %5977 = vst.msk [vmem:[#allocation4 + $0x20] sm:$0xff] %vm1743, %v5928
    %5978 = vst.msk [vmem:[#allocation4 + $0x28] sm:$0xff] %vm1743, %v5930
    %5979 = vst.msk [vmem:[#allocation4 + $0x30] sm:$0xff] %vm1743, %v5932
    %5980 = vst.msk [vmem:[#allocation4 + $0x38] sm:$0xff] %vm1743, %v5934
    %5981 = vst.msk [vmem:[#allocation4 + $0x40] sm:$0xff] %vm1743, %v5936
    %5982 = vst.msk [vmem:[#allocation4 + $0x48] sm:$0xff] %vm1743, %v5938
    %5983 = vst.msk [vmem:[#allocation4 + $0x50] sm:$0xff] %vm1743, %v5940
    %5984 = vst.msk [vmem:[#allocation4 + $0x58] sm:$0xff] %vm1743, %v5942
    %5985 = vst.msk [vmem:[#allocation4 + $0x60] sm:$0xff] %vm1743, %v5944
    %5986 = vst.msk [vmem:[#allocation4 + $0x68] sm:$0xff] %vm1743, %v5946
    %5987 = vst.msk [vmem:[#allocation4 + $0x70] sm:$0xff] %vm1743, %v5948
    %5988 = vst.msk [vmem:[#allocation4 + $0x78] sm:$0xff] %vm1743, %v5950
    %5989 = vst.msk [vmem:[#allocation4 + $0x80] sm:$0xff] %vm1743, %v5952
    %5990 = vst.msk [vmem:[#allocation4 + $0x88] sm:$0xf] %vm1802, %v5954
    %v5991 = vld [vmem:[#allocation6 + $0x2] sm:$0xff]
    %v5992 = vld [vmem:[#allocation6 + $0xa] sm:$0xff]
    %v5993 = vld [vmem:[#allocation6 + $0x12] sm:$0xff]
    %v5994 = vld [vmem:[#allocation6 + $0x1a] sm:$0xff]
    %v5995 = vld [vmem:[#allocation6 + $0x22] sm:$0xff]
    %v5996 = vld [vmem:[#allocation6 + $0x2a] sm:$0xff]
    %v5997 = vld [vmem:[#allocation6 + $0x32] sm:$0xff]
    %v5998 = vld [vmem:[#allocation6 + $0x3a] sm:$0xff]
    %v5999 = vld [vmem:[#allocation6 + $0x42] sm:$0xff]
    %v6000 = vld [vmem:[#allocation6 + $0x4a] sm:$0xff]
    %v6001 = vld [vmem:[#allocation6 + $0x52] sm:$0xff]
    %v6002 = vld [vmem:[#allocation6 + $0x5a] sm:$0xff]
    %v6003 = vld [vmem:[#allocation6 + $0x62] sm:$0xff]
    %v6004 = vld [vmem:[#allocation6 + $0x6a] sm:$0xff]
    %v6005 = vld [vmem:[#allocation6 + $0x72] sm:$0xff]
    %v6006 = vld [vmem:[#allocation6 + $0x7a] sm:$0xff]
    %v6007 = vld [vmem:[#allocation6 + $0x82] sm:$0xff]
    %v6008 = vld [vmem:[#allocation6 + $0x8a] sm:$0xff]
    %v6009 = vld [vmem:[#allocation6 + $0x92] sm:$0xff]
    %v6010 = vld [vmem:[#allocation6 + $0x9a] sm:$0xff]
    %v6011 = vld [vmem:[#allocation6 + $0xa2] sm:$0xff]
    %v6012 = vld [vmem:[#allocation6 + $0xaa] sm:$0xff]
    %v6013 = vld [vmem:[#allocation6 + $0xb2] sm:$0xff]
    %v6014 = vld [vmem:[#allocation6 + $0xba] sm:$0xff]
    %v6015 = vld [vmem:[#allocation6 + $0xc2] sm:$0xff]
    %v6016 = vld [vmem:[#allocation6 + $0xca] sm:$0xff]
    %v6017 = vld [vmem:[#allocation6 + $0xd2] sm:$0xff]
    %v6018 = vld [vmem:[#allocation6 + $0xda] sm:$0xff]
    %v6019 = vld [vmem:[#allocation6 + $0xe2] sm:$0xff]
    %v6020 = vld [vmem:[#allocation6 + $0xea] sm:$0xff]
    %v6021 = vld [vmem:[#allocation6 + $0xf2] sm:$0xff]
    %v6022 = vld [vmem:[#allocation6 + $0xfa] sm:$0xff]
    %v6023 = vld [vmem:[#allocation6 + $0x102] sm:$0xff]
    %v6024 = vld [vmem:[#allocation6 + $0x10a] sm:$0xff]
    %v6025 = vld [vmem:[#allocation6 + $0x112] sm:$0xff]
    %v6026 = vpack.c.bf16 %v5992, %v5991
    %v6027 = vpack.c.bf16 %v5994, %v5993
    %v6028 = vpack.c.bf16 %v5996, %v5995
    %v6029 = vpack.c.bf16 %v5998, %v5997
    %v6030 = vpack.c.bf16 %v6000, %v5999
    %v6031 = vpack.c.bf16 %v6002, %v6001
    %v6032 = vpack.c.bf16 %v6004, %v6003
    %v6033 = vpack.c.bf16 %v6006, %v6005
    %v6034 = vpack.c.bf16 %v6008, %v6007
    %v6035 = vpack.c.bf16 %v6010, %v6009
    %v6036 = vpack.c.bf16 %v6012, %v6011
    %v6037 = vpack.c.bf16 %v6014, %v6013
    %v6038 = vpack.c.bf16 %v6016, %v6015
    %v6039 = vpack.c.bf16 %v6018, %v6017
    %v6040 = vpack.c.bf16 %v6020, %v6019
    %v6041 = vpack.c.bf16 %v6022, %v6021
    %v6042 = vpack.c.bf16 %v6024, %v6023
    %v6043 = vpack.c.bf16 %v6025, %v6025
    %6062 = vrot.lane.b32.xlu0 %v6026, 64
    %v6063 = vpop.permute.xlu0 %6062
    %6064 = vrot.lane.b32.xlu0 %v6027, 64
    %v6065 = vpop.permute.xlu0 %6064
    %6066 = vrot.lane.b32.xlu0 %v6028, 64
    %v6067 = vpop.permute.xlu0 %6066
    %6068 = vrot.lane.b32.xlu0 %v6029, 64
    %v6069 = vpop.permute.xlu0 %6068
    %6070 = vrot.lane.b32.xlu0 %v6030, 64
    %v6071 = vpop.permute.xlu0 %6070
    %6072 = vrot.lane.b32.xlu0 %v6031, 64
    %v6073 = vpop.permute.xlu0 %6072
    %6074 = vrot.lane.b32.xlu0 %v6032, 64
    %v6075 = vpop.permute.xlu0 %6074
    %6076 = vrot.lane.b32.xlu0 %v6033, 64
    %v6077 = vpop.permute.xlu0 %6076
    %6078 = vrot.lane.b32.xlu0 %v6034, 64
    %v6079 = vpop.permute.xlu0 %6078
    %6080 = vrot.lane.b32.xlu0 %v6035, 64
    %v6081 = vpop.permute.xlu0 %6080
    %6082 = vrot.lane.b32.xlu0 %v6036, 64
    %v6083 = vpop.permute.xlu0 %6082
    %6084 = vrot.lane.b32.xlu0 %v6037, 64
    %v6085 = vpop.permute.xlu0 %6084
    %6086 = vrot.lane.b32.xlu0 %v6038, 64
    %v6087 = vpop.permute.xlu0 %6086
    %6088 = vrot.lane.b32.xlu0 %v6039, 64
    %v6089 = vpop.permute.xlu0 %6088
    %6090 = vrot.lane.b32.xlu0 %v6040, 64
    %v6091 = vpop.permute.xlu0 %6090
    %6092 = vrot.lane.b32.xlu0 %v6041, 64
    %v6093 = vpop.permute.xlu0 %6092
    %6094 = vrot.lane.b32.xlu0 %v6042, 64
    %v6095 = vpop.permute.xlu0 %6094
    %6096 = vrot.lane.b32.xlu0 %v6043, 64
    %v6097 = vpop.permute.xlu0 %6096
    %6116 = vst.msk [vmem:[#allocation4] sm:$0xff] %vm2512, %v6063
    %6117 = vst.msk [vmem:[#allocation4 + $0x8] sm:$0xff] %vm2512, %v6065
    %6118 = vst.msk [vmem:[#allocation4 + $0x10] sm:$0xff] %vm2512, %v6067
    %6119 = vst.msk [vmem:[#allocation4 + $0x18] sm:$0xff] %vm2512, %v6069
    %6120 = vst.msk [vmem:[#allocation4 + $0x20] sm:$0xff] %vm2512, %v6071
    %6121 = vst.msk [vmem:[#allocation4 + $0x28] sm:$0xff] %vm2512, %v6073
    %6122 = vst.msk [vmem:[#allocation4 + $0x30] sm:$0xff] %vm2512, %v6075
    %6123 = vst.msk [vmem:[#allocation4 + $0x38] sm:$0xff] %vm2512, %v6077
    %6124 = vst.msk [vmem:[#allocation4 + $0x40] sm:$0xff] %vm2512, %v6079
    %6125 = vst.msk [vmem:[#allocation4 + $0x48] sm:$0xff] %vm2512, %v6081
    %6126 = vst.msk [vmem:[#allocation4 + $0x50] sm:$0xff] %vm2512, %v6083
    %6127 = vst.msk [vmem:[#allocation4 + $0x58] sm:$0xff] %vm2512, %v6085
    %6128 = vst.msk [vmem:[#allocation4 + $0x60] sm:$0xff] %vm2512, %v6087
    %6129 = vst.msk [vmem:[#allocation4 + $0x68] sm:$0xff] %vm2512, %v6089
    %6130 = vst.msk [vmem:[#allocation4 + $0x70] sm:$0xff] %vm2512, %v6091
    %6131 = vst.msk [vmem:[#allocation4 + $0x78] sm:$0xff] %vm2512, %v6093
    %6132 = vst.msk [vmem:[#allocation4 + $0x80] sm:$0xff] %vm2512, %v6095
    %6133 = vst.msk [vmem:[#allocation4 + $0x88] sm:$0xf] %vm2571, %v6097
    %v6134 = vld [vmem:[#allocation4] sm:$0xff]
    %v6135 = vld [vmem:[#allocation4 + $0x8] sm:$0xff]
    %v6136 = vld [vmem:[#allocation4 + $0x10] sm:$0xff]
    %v6137 = vld [vmem:[#allocation4 + $0x18] sm:$0xff]
    %v6138 = vld [vmem:[#allocation4 + $0x20] sm:$0xff]
    %v6139 = vld [vmem:[#allocation4 + $0x28] sm:$0xff]
    %v6140 = vld [vmem:[#allocation4 + $0x30] sm:$0xff]
    %v6141 = vld [vmem:[#allocation4 + $0x38] sm:$0xff]
    %v6142 = vld [vmem:[#allocation4 + $0x40] sm:$0xff]
    %v6143 = vld [vmem:[#allocation4 + $0x48] sm:$0xff]
    %v6144 = vld [vmem:[#allocation4 + $0x50] sm:$0xff]
    %v6145 = vld [vmem:[#allocation4 + $0x58] sm:$0xff]
    %v6146 = vld [vmem:[#allocation4 + $0x60] sm:$0xff]
    %v6147 = vld [vmem:[#allocation4 + $0x68] sm:$0xff]
    %v6148 = vld [vmem:[#allocation4 + $0x70] sm:$0xff]
    %v6149 = vld [vmem:[#allocation4 + $0x78] sm:$0x3f]
    %s6150 = scalar_lea.vmem %s2, 192
    %v6151 = vld [vmem:[%s6150] sm:$0xf]
    %v6152 = vld [vmem:[%s6150 + $0x4] sm:$0xf]
    %v6153 = vld [vmem:[%s6150 + $0x8] sm:$0xf]
    %v6154 = vld [vmem:[%s6150 + $0xc] sm:$0xf]
    %v6155 = vld [vmem:[%s6150 + $0x10] sm:$0xf]
    %v6156 = vld [vmem:[%s6150 + $0x14] sm:$0xf]
    %v6157 = vld [vmem:[%s6150 + $0x18] sm:$0xf]
    %v6158 = vld [vmem:[%s6150 + $0x1c] sm:$0xf]
    %v6159 = vld [vmem:[%s6150 + $0x20] sm:$0xf]
    %v6160 = vld [vmem:[%s6150 + $0x24] sm:$0xf]
    %v6161 = vld [vmem:[%s6150 + $0x28] sm:$0xf]
    %v6162 = vld [vmem:[%s6150 + $0x2c] sm:$0xf]
    %v6163 = vld [vmem:[%s6150 + $0x30] sm:$0xf]
    %v6164 = vld [vmem:[%s6150 + $0x34] sm:$0xf]
    %v6165 = vld [vmem:[%s6150 + $0x38] sm:$0xf]
    %v6166 = vld [vmem:[%s6150 + $0x3c] sm:$0xf]
    %v6167 = vld [vmem:[#allocation4] sm:$0x80]
    %v6168 = vld [vmem:[#allocation4 + $0x78] sm:$0xff]
    %v6169 = vld [vmem:[#allocation4 + $0x80] sm:$0x1f]
    %s6170 = scalar_lea.vmem %s2, 256
    %v6171 = vld [vmem:[%s6170] sm:$0xf]
    %v6172 = vld [vmem:[%s6170 + $0x4] sm:$0xf]
    %v6173 = vld [vmem:[%s6170 + $0x8] sm:$0xf]
    %v6174 = vld [vmem:[%s6170 + $0xc] sm:$0xf]
    %v6175 = vld [vmem:[%s6170 + $0x10] sm:$0xf]
    %v6176 = vld [vmem:[%s6170 + $0x14] sm:$0xf]
    %v6177 = vld [vmem:[%s6170 + $0x18] sm:$0xf]
    %v6178 = vld [vmem:[%s6170 + $0x1c] sm:$0xf]
    %v6179 = vld [vmem:[%s6170 + $0x20] sm:$0xf]
    %v6180 = vld [vmem:[%s6170 + $0x24] sm:$0xf]
    %v6181 = vld [vmem:[%s6170 + $0x28] sm:$0xf]
    %v6182 = vld [vmem:[%s6170 + $0x2c] sm:$0xf]
    %v6183 = vld [vmem:[%s6170 + $0x30] sm:$0xf]
    %v6184 = vld [vmem:[%s6170 + $0x34] sm:$0xf]
    %v6185 = vld [vmem:[%s6170 + $0x38] sm:$0xf]
    %v6186 = vld [vmem:[%s6170 + $0x3c] sm:$0xf]
    %vm6204 = vcmask 1040384
    %v6205 = vrot.slane %v6167, 7
    %v6206 = vrot.slane %v6135, 7
    %v6207 = vsel %vm6204, %v6205, %v6206
    %v6208 = vrot.slane %v6136, 7
    %v6209 = vsel %vm6204, %v6206, %v6208
    %v6210 = vrot.slane %v6137, 7
    %v6211 = vsel %vm6204, %v6208, %v6210
    %v6212 = vrot.slane %v6138, 7
    %v6213 = vsel %vm6204, %v6210, %v6212
    %v6214 = vrot.slane %v6139, 7
    %v6215 = vsel %vm6204, %v6212, %v6214
    %v6216 = vrot.slane %v6140, 7
    %v6217 = vsel %vm6204, %v6214, %v6216
    %v6218 = vrot.slane %v6141, 7
    %v6219 = vsel %vm6204, %v6216, %v6218
    %v6220 = vrot.slane %v6142, 7
    %v6221 = vsel %vm6204, %v6218, %v6220
    %v6222 = vrot.slane %v6143, 7
    %v6223 = vsel %vm6204, %v6220, %v6222
    %v6224 = vrot.slane %v6144, 7
    %v6225 = vsel %vm6204, %v6222, %v6224
    %v6226 = vrot.slane %v6145, 7
    %v6227 = vsel %vm6204, %v6224, %v6226
    %v6228 = vrot.slane %v6146, 7
    %v6229 = vsel %vm6204, %v6226, %v6228
    %v6230 = vrot.slane %v6147, 7
    %v6231 = vsel %vm6204, %v6228, %v6230
    %v6232 = vrot.slane %v6148, 7
    %v6233 = vsel %vm6204, %v6230, %v6232
    %v6234 = vrot.slane %v6168, 7
    %v6235 = vsel %vm6204, %v6232, %v6234
    %v6236 = vrot.slane %v6169, 7
    %v6237 = vsel %vm6204, %v6234, %v6236
    %v6270 = vunpack.c.l.b16 %v6171
    %v6271 = vunpack.c.l.b16 %v6172
    %v6272 = vunpack.c.l.b16 %v6173
    %v6273 = vunpack.c.l.b16 %v6174
    %v6274 = vunpack.c.l.b16 %v6175
    %v6275 = vunpack.c.l.b16 %v6176
    %v6276 = vunpack.c.l.b16 %v6177
    %v6277 = vunpack.c.l.b16 %v6178
    %v6278 = vunpack.c.l.b16 %v6179
    %v6279 = vunpack.c.l.b16 %v6180
    %v6280 = vunpack.c.l.b16 %v6181
    %v6281 = vunpack.c.l.b16 %v6182
    %v6282 = vunpack.c.l.b16 %v6183
    %v6283 = vunpack.c.l.b16 %v6184
    %v6284 = vunpack.c.l.b16 %v6185
    %v6285 = vunpack.c.l.b16 %v6186
    %v6286 = vpack.c.b16 %v6271, %v6270
    %v6287 = vpack.c.b16 %v6273, %v6272
    %v6288 = vpack.c.b16 %v6275, %v6274
    %v6289 = vpack.c.b16 %v6277, %v6276
    %v6290 = vpack.c.b16 %v6279, %v6278
    %v6291 = vpack.c.b16 %v6281, %v6280
    %v6292 = vpack.c.b16 %v6283, %v6282
    %v6293 = vpack.c.b16 %v6285, %v6284
    %6302 = vmatprep.subr.bf16.mxu0 0
    %6303 = vmatpush1.bf16.msra.mxu0 %v6286
    %6304 = vmatprep.subr.bf16.mxu0 0
    %6305 = vmatpush1.bf16.msra.mxu0 %v6287
    %6306 = vmatprep.subr.bf16.mxu0 0
    %6307 = vmatpush1.bf16.msra.mxu0 %v6288
    %6308 = vmatprep.subr.bf16.mxu0 0
    %6309 = vmatpush1.bf16.msra.mxu0 %v6289
    %6310 = vmatprep.subr.bf16.mxu0 0
    %6311 = vmatpush1.bf16.msra.mxu0 %v6290
    %6312 = vmatprep.subr.bf16.mxu0 0
    %6313 = vmatpush1.bf16.msra.mxu0 %v6291
    %6314 = vmatprep.subr.bf16.mxu0 0
    %6315 = vmatpush1.bf16.msra.mxu0 %v6292
    %6316 = vmatprep.subr.bf16.mxu0 0
    %6317 = vmatpush1.bf16.msra.mxu0 %v6293
    %6318 = vmatprep.subr.bf16.mxu0 0
    %6319 = vmatpush1.bf16.msra.mxu0 0
    %6320 = vmatprep.subr.bf16.mxu0 0
    %6321 = vmatpush1.bf16.msra.mxu0 0
    %6322 = vmatprep.subr.bf16.mxu0 0
    %6323 = vmatpush1.bf16.msra.mxu0 0
    %6324 = vmatprep.subr.bf16.mxu0 0
    %6325 = vmatpush1.bf16.msra.mxu0 0
    %6326 = vmatprep.subr.bf16.mxu0 0
    %6327 = vmatpush1.bf16.msra.mxu0 0
    %6328 = vmatprep.subr.bf16.mxu0 0
    %6329 = vmatpush1.bf16.msra.mxu0 0
    %6330 = vmatprep.subr.bf16.mxu0 0
    %6331 = vmatpush1.bf16.msra.mxu0 0
    %6332 = vmatprep.subr.bf16.mxu0 0
    %6333 = vmatpush1.bf16.msra.mxu0 0
    %6334 = vmatprep.mubr.bf16.mxu0 0
    %6335 = vmatmul.mubr.bf16.gmra.mrb[0].mxu0 %v6207
    %v6336 = vpop.f32.mrb[0].mxu0
    %v6337 = vadd.f32 0.0, %v6336
    %v6338 = vpop.f32.mrb[0].mxu0
    %v6339 = vpop.f32.mrb[0].mxu0
    %v6340 = vadd.f32 0.0, %v6339
    %v6341 = vpop.f32.mrb[0].mxu0
    %6342 = vmatprep.mubr.bf16.mxu0 0
    %6343 = vmatmul.mubr.bf16.gmra.mrb[0].mxu0 %v6209
    %v6344 = vpop.f32.mrb[0].mxu0
    %v6345 = vadd.f32 0.0, %v6344
    %v6346 = vpop.f32.mrb[0].mxu0
    %v6347 = vpop.f32.mrb[0].mxu0
    %v6348 = vadd.f32 0.0, %v6347
    %v6349 = vpop.f32.mrb[0].mxu0
    %6350 = vmatprep.mubr.bf16.mxu0 0
    %6351 = vmatmul.mubr.bf16.gmra.mrb[0].mxu0 %v6211
    %v6352 = vpop.f32.mrb[0].mxu0
    %v6353 = vadd.f32 0.0, %v6352
    %v6354 = vpop.f32.mrb[0].mxu0
    %v6355 = vpop.f32.mrb[0].mxu0
    %v6356 = vadd.f32 0.0, %v6355
    %v6357 = vpop.f32.mrb[0].mxu0
    %6358 = vmatprep.mubr.bf16.mxu0 0
    %6359 = vmatmul.mubr.bf16.gmra.mrb[0].mxu0 %v6213
    %v6360 = vpop.f32.mrb[0].mxu0
    %v6361 = vadd.f32 0.0, %v6360
    %v6362 = vpop.f32.mrb[0].mxu0
    %v6363 = vpop.f32.mrb[0].mxu0
    %v6364 = vadd.f32 0.0, %v6363
    %v6365 = vpop.f32.mrb[0].mxu0
    %6366 = vmatprep.mubr.bf16.mxu0 0
    %6367 = vmatmul.mubr.bf16.gmra.mrb[0].mxu0 %v6215
    %v6368 = vpop.f32.mrb[0].mxu0
    %v6369 = vadd.f32 0.0, %v6368
    %v6370 = vpop.f32.mrb[0].mxu0
    %v6371 = vpop.f32.mrb[0].mxu0
    %v6372 = vadd.f32 0.0, %v6371
    %v6373 = vpop.f32.mrb[0].mxu0
    %6374 = vmatprep.mubr.bf16.mxu0 0
    %6375 = vmatmul.mubr.bf16.gmra.mrb[0].mxu0 %v6217
    %v6376 = vpop.f32.mrb[0].mxu0
    %v6377 = vadd.f32 0.0, %v6376
    %v6378 = vpop.f32.mrb[0].mxu0
    %v6379 = vpop.f32.mrb[0].mxu0
    %v6380 = vadd.f32 0.0, %v6379
    %v6381 = vpop.f32.mrb[0].mxu0
    %6382 = vmatprep.mubr.bf16.mxu0 0
    %6383 = vmatmul.mubr.bf16.gmra.mrb[0].mxu0 %v6219
    %v6384 = vpop.f32.mrb[0].mxu0
    %v6385 = vadd.f32 0.0, %v6384
    %v6386 = vpop.f32.mrb[0].mxu0
    %v6387 = vpop.f32.mrb[0].mxu0
    %v6388 = vadd.f32 0.0, %v6387
    %v6389 = vpop.f32.mrb[0].mxu0
    %6390 = vmatprep.mubr.bf16.mxu0 0
    %6391 = vmatmul.mubr.bf16.gmra.mrb[0].mxu0 %v6221
    %v6392 = vpop.f32.mrb[0].mxu0
    %v6393 = vadd.f32 0.0, %v6392
    %v6394 = vpop.f32.mrb[0].mxu0
    %v6395 = vpop.f32.mrb[0].mxu0
    %v6396 = vadd.f32 0.0, %v6395
    %v6397 = vpop.f32.mrb[0].mxu0
    %6398 = vmatprep.mubr.bf16.mxu0 0
    %6399 = vmatmul.mubr.bf16.gmra.mrb[0].mxu0 %v6223
    %v6400 = vpop.f32.mrb[0].mxu0
    %v6401 = vadd.f32 0.0, %v6400
    %v6402 = vpop.f32.mrb[0].mxu0
    %v6403 = vpop.f32.mrb[0].mxu0
    %v6404 = vadd.f32 0.0, %v6403
    %v6405 = vpop.f32.mrb[0].mxu0
    %6406 = vmatprep.mubr.bf16.mxu0 0
    %6407 = vmatmul.mubr.bf16.gmra.mrb[0].mxu0 %v6225
    %v6408 = vpop.f32.mrb[0].mxu0
    %v6409 = vadd.f32 0.0, %v6408
    %v6410 = vpop.f32.mrb[0].mxu0
    %v6411 = vpop.f32.mrb[0].mxu0
    %v6412 = vadd.f32 0.0, %v6411
    %v6413 = vpop.f32.mrb[0].mxu0
    %6414 = vmatprep.mubr.bf16.mxu0 0
    %6415 = vmatmul.mubr.bf16.gmra.mrb[0].mxu0 %v6227
    %v6416 = vpop.f32.mrb[0].mxu0
    %v6417 = vadd.f32 0.0, %v6416
    %v6418 = vpop.f32.mrb[0].mxu0
    %v6419 = vpop.f32.mrb[0].mxu0
    %v6420 = vadd.f32 0.0, %v6419
    %v6421 = vpop.f32.mrb[0].mxu0
    %6422 = vmatprep.mubr.bf16.mxu0 0
    %6423 = vmatmul.mubr.bf16.gmra.mrb[0].mxu0 %v6229
    %v6424 = vpop.f32.mrb[0].mxu0
    %v6425 = vadd.f32 0.0, %v6424
    %v6426 = vpop.f32.mrb[0].mxu0
    %v6427 = vpop.f32.mrb[0].mxu0
    %v6428 = vadd.f32 0.0, %v6427
    %v6429 = vpop.f32.mrb[0].mxu0
    %6430 = vmatprep.mubr.bf16.mxu0 0
    %6431 = vmatmul.mubr.bf16.gmra.mrb[0].mxu0 %v6231
    %v6432 = vpop.f32.mrb[0].mxu0
    %v6433 = vadd.f32 0.0, %v6432
    %v6434 = vpop.f32.mrb[0].mxu0
    %v6435 = vpop.f32.mrb[0].mxu0
    %v6436 = vadd.f32 0.0, %v6435
    %v6437 = vpop.f32.mrb[0].mxu0
    %6438 = vmatprep.mubr.bf16.mxu0 0
    %6439 = vmatmul.mubr.bf16.gmra.mrb[0].mxu0 %v6233
    %v6440 = vpop.f32.mrb[0].mxu0
    %v6441 = vadd.f32 0.0, %v6440
    %v6442 = vpop.f32.mrb[0].mxu0
    %v6443 = vpop.f32.mrb[0].mxu0
    %v6444 = vadd.f32 0.0, %v6443
    %v6445 = vpop.f32.mrb[0].mxu0
    %6446 = vmatprep.mubr.bf16.mxu0 0
    %6447 = vmatmul.mubr.bf16.gmra.mrb[0].mxu0 %v6235
    %v6448 = vpop.f32.mrb[0].mxu0
    %v6449 = vadd.f32 0.0, %v6448
    %v6450 = vpop.f32.mrb[0].mxu0
    %v6451 = vpop.f32.mrb[0].mxu0
    %v6452 = vadd.f32 0.0, %v6451
    %v6453 = vpop.f32.mrb[0].mxu0
    %6454 = vmatprep.mubr.bf16.mxu0 0
    %6455 = vmatmul.mubr.bf16.gmra.mrb[0].mxu0 %v6237
    %v6456 = vpop.f32.mrb[0].mxu0
    %v6457 = vadd.f32 0.0, %v6456
    %v6458 = vpop.f32.mrb[0].mxu0
    %v6459 = vpop.f32.mrb[0].mxu0
    %v6460 = vadd.f32 0.0, %v6459
    %v6461 = vpop.f32.mrb[0].mxu0
    %6462 = vdwg.mxu0
    %v6479 = vunpack.c.l.b16 %v6151
    %v6480 = vunpack.c.l.b16 %v6152
    %v6481 = vunpack.c.l.b16 %v6153
    %v6482 = vunpack.c.l.b16 %v6154
    %v6483 = vunpack.c.l.b16 %v6155
    %v6484 = vunpack.c.l.b16 %v6156
    %v6485 = vunpack.c.l.b16 %v6157
    %v6486 = vunpack.c.l.b16 %v6158
    %v6487 = vunpack.c.l.b16 %v6159
    %v6488 = vunpack.c.l.b16 %v6160
    %v6489 = vunpack.c.l.b16 %v6161
    %v6490 = vunpack.c.l.b16 %v6162
    %v6491 = vunpack.c.l.b16 %v6163
    %v6492 = vunpack.c.l.b16 %v6164
    %v6493 = vunpack.c.l.b16 %v6165
    %v6494 = vunpack.c.l.b16 %v6166
    %v6495 = vpack.c.b16 %v6480, %v6479
    %v6496 = vpack.c.b16 %v6482, %v6481
    %v6497 = vpack.c.b16 %v6484, %v6483
    %v6498 = vpack.c.b16 %v6486, %v6485
    %v6499 = vpack.c.b16 %v6488, %v6487
    %v6500 = vpack.c.b16 %v6490, %v6489
    %v6501 = vpack.c.b16 %v6492, %v6491
    %v6502 = vpack.c.b16 %v6494, %v6493
    %6511 = vmatprep.subr.bf16.mxu0 0
    %6512 = vmatpush1.bf16.msra.mxu0 %v6495
    %6513 = vmatprep.subr.bf16.mxu0 0
    %6514 = vmatpush1.bf16.msra.mxu0 %v6496
    %6515 = vmatprep.subr.bf16.mxu0 0
    %6516 = vmatpush1.bf16.msra.mxu0 %v6497
    %6517 = vmatprep.subr.bf16.mxu0 0
    %6518 = vmatpush1.bf16.msra.mxu0 %v6498
    %6519 = vmatprep.subr.bf16.mxu0 0
    %6520 = vmatpush1.bf16.msra.mxu0 %v6499
    %6521 = vmatprep.subr.bf16.mxu0 0
    %6522 = vmatpush1.bf16.msra.mxu0 %v6500
    %6523 = vmatprep.subr.bf16.mxu0 0
    %6524 = vmatpush1.bf16.msra.mxu0 %v6501
    %6525 = vmatprep.subr.bf16.mxu0 0
    %6526 = vmatpush1.bf16.msra.mxu0 %v6502
    %6527 = vmatprep.subr.bf16.mxu0 0
    %6528 = vmatpush1.bf16.msra.mxu0 0
    %6529 = vmatprep.subr.bf16.mxu0 0
    %6530 = vmatpush1.bf16.msra.mxu0 0
    %6531 = vmatprep.subr.bf16.mxu0 0
    %6532 = vmatpush1.bf16.msra.mxu0 0
    %6533 = vmatprep.subr.bf16.mxu0 0
    %6534 = vmatpush1.bf16.msra.mxu0 0
    %6535 = vmatprep.subr.bf16.mxu0 0
    %6536 = vmatpush1.bf16.msra.mxu0 0
    %6537 = vmatprep.subr.bf16.mxu0 0
    %6538 = vmatpush1.bf16.msra.mxu0 0
    %6539 = vmatprep.subr.bf16.mxu0 0
    %6540 = vmatpush1.bf16.msra.mxu0 0
    %6541 = vmatprep.subr.bf16.mxu0 0
    %6542 = vmatpush1.bf16.msra.mxu0 0
    %6543 = vmatprep.mubr.bf16.mxu0 0
    %6544 = vmatmul.mubr.bf16.gmra.mrb[0].mxu0 %v6134
    %v6545 = vpop.f32.mrb[0].mxu0
    %v6546 = vadd.f32 %v6337, %v6545
    %v6547 = vpop.f32.mrb[0].mxu0
    %v6548 = vpop.f32.mrb[0].mxu0
    %v6549 = vadd.f32 %v6340, %v6548
    %v6550 = vpop.f32.mrb[0].mxu0
    %6551 = vmatprep.mubr.bf16.mxu0 0
    %6552 = vmatmul.mubr.bf16.gmra.mrb[0].mxu0 %v6135
    %v6553 = vpop.f32.mrb[0].mxu0
    %v6554 = vadd.f32 %v6345, %v6553
    %v6555 = vpop.f32.mrb[0].mxu0
    %v6556 = vpop.f32.mrb[0].mxu0
    %v6557 = vadd.f32 %v6348, %v6556
    %v6558 = vpop.f32.mrb[0].mxu0
    %6559 = vmatprep.mubr.bf16.mxu0 0
    %6560 = vmatmul.mubr.bf16.gmra.mrb[0].mxu0 %v6136
    %v6561 = vpop.f32.mrb[0].mxu0
    %v6562 = vadd.f32 %v6353, %v6561
    %v6563 = vpop.f32.mrb[0].mxu0
    %v6564 = vpop.f32.mrb[0].mxu0
    %v6565 = vadd.f32 %v6356, %v6564
    %v6566 = vpop.f32.mrb[0].mxu0
    %6567 = vmatprep.mubr.bf16.mxu0 0
    %6568 = vmatmul.mubr.bf16.gmra.mrb[0].mxu0 %v6137
    %v6569 = vpop.f32.mrb[0].mxu0
    %v6570 = vadd.f32 %v6361, %v6569
    %v6571 = vpop.f32.mrb[0].mxu0
    %v6572 = vpop.f32.mrb[0].mxu0
    %v6573 = vadd.f32 %v6364, %v6572
    %v6574 = vpop.f32.mrb[0].mxu0
    %6575 = vmatprep.mubr.bf16.mxu0 0
    %6576 = vmatmul.mubr.bf16.gmra.mrb[0].mxu0 %v6138
    %v6577 = vpop.f32.mrb[0].mxu0
    %v6578 = vadd.f32 %v6369, %v6577
    %v6579 = vpop.f32.mrb[0].mxu0
    %v6580 = vpop.f32.mrb[0].mxu0
    %v6581 = vadd.f32 %v6372, %v6580
    %v6582 = vpop.f32.mrb[0].mxu0
    %6583 = vmatprep.mubr.bf16.mxu0 0
    %6584 = vmatmul.mubr.bf16.gmra.mrb[0].mxu0 %v6139
    %v6585 = vpop.f32.mrb[0].mxu0
    %v6586 = vadd.f32 %v6377, %v6585
    %v6587 = vpop.f32.mrb[0].mxu0
    %v6588 = vpop.f32.mrb[0].mxu0
    %v6589 = vadd.f32 %v6380, %v6588
    %v6590 = vpop.f32.mrb[0].mxu0
    %6591 = vmatprep.mubr.bf16.mxu0 0
    %6592 = vmatmul.mubr.bf16.gmra.mrb[0].mxu0 %v6140
    %v6593 = vpop.f32.mrb[0].mxu0
    %v6594 = vadd.f32 %v6385, %v6593
    %v6595 = vpop.f32.mrb[0].mxu0
    %v6596 = vpop.f32.mrb[0].mxu0
    %v6597 = vadd.f32 %v6388, %v6596
    %v6598 = vpop.f32.mrb[0].mxu0
    %6599 = vmatprep.mubr.bf16.mxu0 0
    %6600 = vmatmul.mubr.bf16.gmra.mrb[0].mxu0 %v6141
    %v6601 = vpop.f32.mrb[0].mxu0
    %v6602 = vadd.f32 %v6393, %v6601
    %v6603 = vpop.f32.mrb[0].mxu0
    %v6604 = vpop.f32.mrb[0].mxu0
    %v6605 = vadd.f32 %v6396, %v6604
    %v6606 = vpop.f32.mrb[0].mxu0
    %6607 = vmatprep.mubr.bf16.mxu0 0
    %6608 = vmatmul.mubr.bf16.gmra.mrb[0].mxu0 %v6142
    %v6609 = vpop.f32.mrb[0].mxu0
    %v6610 = vadd.f32 %v6401, %v6609
    %v6611 = vpop.f32.mrb[0].mxu0
    %v6612 = vpop.f32.mrb[0].mxu0
    %v6613 = vadd.f32 %v6404, %v6612
    %v6614 = vpop.f32.mrb[0].mxu0
    %6615 = vmatprep.mubr.bf16.mxu0 0
    %6616 = vmatmul.mubr.bf16.gmra.mrb[0].mxu0 %v6143
    %v6617 = vpop.f32.mrb[0].mxu0
    %v6618 = vadd.f32 %v6409, %v6617
    %v6619 = vpop.f32.mrb[0].mxu0
    %v6620 = vpop.f32.mrb[0].mxu0
    %v6621 = vadd.f32 %v6412, %v6620
    %v6622 = vpop.f32.mrb[0].mxu0
    %6623 = vmatprep.mubr.bf16.mxu0 0
    %6624 = vmatmul.mubr.bf16.gmra.mrb[0].mxu0 %v6144
    %v6625 = vpop.f32.mrb[0].mxu0
    %v6626 = vadd.f32 %v6417, %v6625
    %v6627 = vpop.f32.mrb[0].mxu0
    %v6628 = vpop.f32.mrb[0].mxu0
    %v6629 = vadd.f32 %v6420, %v6628
    %v6630 = vpop.f32.mrb[0].mxu0
    %6631 = vmatprep.mubr.bf16.mxu0 0
    %6632 = vmatmul.mubr.bf16.gmra.mrb[0].mxu0 %v6145
    %v6633 = vpop.f32.mrb[0].mxu0
    %v6634 = vadd.f32 %v6425, %v6633
    %v6635 = vpop.f32.mrb[0].mxu0
    %v6636 = vpop.f32.mrb[0].mxu0
    %v6637 = vadd.f32 %v6428, %v6636
    %v6638 = vpop.f32.mrb[0].mxu0
    %6639 = vmatprep.mubr.bf16.mxu0 0
    %6640 = vmatmul.mubr.bf16.gmra.mrb[0].mxu0 %v6146
    %v6641 = vpop.f32.mrb[0].mxu0
    %v6642 = vadd.f32 %v6433, %v6641
    %v6643 = vpop.f32.mrb[0].mxu0
    %v6644 = vpop.f32.mrb[0].mxu0
    %v6645 = vadd.f32 %v6436, %v6644
    %v6646 = vpop.f32.mrb[0].mxu0
    %6647 = vmatprep.mubr.bf16.mxu0 0
    %6648 = vmatmul.mubr.bf16.gmra.mrb[0].mxu0 %v6147
    %v6649 = vpop.f32.mrb[0].mxu0
    %v6650 = vadd.f32 %v6441, %v6649
    %v6651 = vpop.f32.mrb[0].mxu0
    %v6652 = vpop.f32.mrb[0].mxu0
    %v6653 = vadd.f32 %v6444, %v6652
    %v6654 = vpop.f32.mrb[0].mxu0
    %6655 = vmatprep.mubr.bf16.mxu0 0
    %6656 = vmatmul.mubr.bf16.gmra.mrb[0].mxu0 %v6148
    %v6657 = vpop.f32.mrb[0].mxu0
    %v6658 = vadd.f32 %v6449, %v6657
    %v6659 = vpop.f32.mrb[0].mxu0
    %v6660 = vpop.f32.mrb[0].mxu0
    %v6661 = vadd.f32 %v6452, %v6660
    %v6662 = vpop.f32.mrb[0].mxu0
    %6663 = vmatprep.mubr.bf16.mxu0 0
    %6664 = vmatmul.mubr.bf16.gmra.mrb[0].mxu0 %v6149
    %v6665 = vpop.f32.mrb[0].mxu0
    %v6666 = vadd.f32 %v6457, %v6665
    %v6667 = vpop.f32.mrb[0].mxu0
    %v6668 = vpop.f32.mrb[0].mxu0
    %v6669 = vadd.f32 %v6460, %v6668
    %v6670 = vpop.f32.mrb[0].mxu0
    %6671 = vdwg.mxu0
    %v6672 = vld [vmem:[#allocation4 + $0x8] sm:$0xc0]
    %v6673 = vld [vmem:[#allocation4 + $0x10] sm:$0xff]
    %v6674 = vld [vmem:[#allocation4 + $0x18] sm:$0xff]
    %v6675 = vld [vmem:[#allocation4 + $0x20] sm:$0xff]
    %v6676 = vld [vmem:[#allocation4 + $0x28] sm:$0xff]
    %v6677 = vld [vmem:[#allocation4 + $0x30] sm:$0xff]
    %v6678 = vld [vmem:[#allocation4 + $0x38] sm:$0xff]
    %v6679 = vld [vmem:[#allocation4 + $0x40] sm:$0xff]
    %v6680 = vld [vmem:[#allocation4 + $0x48] sm:$0xff]
    %v6681 = vld [vmem:[#allocation4 + $0x50] sm:$0xff]
    %v6682 = vld [vmem:[#allocation4 + $0x58] sm:$0xff]
    %v6683 = vld [vmem:[#allocation4 + $0x60] sm:$0xff]
    %v6684 = vld [vmem:[#allocation4 + $0x68] sm:$0xff]
    %v6685 = vld [vmem:[#allocation4 + $0x70] sm:$0xff]
    %v6686 = vld [vmem:[#allocation4 + $0x78] sm:$0xff]
    %v6687 = vld [vmem:[#allocation4 + $0x80] sm:$0xff]
    %v6688 = vld [vmem:[#allocation4 + $0x88] sm:$0xf]
    %s6689 = scalar_lea.vmem %s2, 320
    %v6690 = vld [vmem:[%s6689] sm:$0xf]
    %v6691 = vld [vmem:[%s6689 + $0x4] sm:$0xf]
    %v6692 = vld [vmem:[%s6689 + $0x8] sm:$0xf]
    %v6693 = vld [vmem:[%s6689 + $0xc] sm:$0xf]
    %v6694 = vld [vmem:[%s6689 + $0x10] sm:$0xf]
    %v6695 = vld [vmem:[%s6689 + $0x14] sm:$0xf]
    %v6696 = vld [vmem:[%s6689 + $0x18] sm:$0xf]
    %v6697 = vld [vmem:[%s6689 + $0x1c] sm:$0xf]
    %v6698 = vld [vmem:[%s6689 + $0x20] sm:$0xf]
    %v6699 = vld [vmem:[%s6689 + $0x24] sm:$0xf]
    %v6700 = vld [vmem:[%s6689 + $0x28] sm:$0xf]
    %v6701 = vld [vmem:[%s6689 + $0x2c] sm:$0xf]
    %v6702 = vld [vmem:[%s6689 + $0x30] sm:$0xf]
    %v6703 = vld [vmem:[%s6689 + $0x34] sm:$0xf]
    %v6704 = vld [vmem:[%s6689 + $0x38] sm:$0xf]
    %v6705 = vld [vmem:[%s6689 + $0x3c] sm:$0xf]
    %vm6723 = vcmask 1041408
    %v6724 = vrot.slane %v6672, 6
    %v6725 = vrot.slane %v6673, 6
    %v6726 = vsel %vm6723, %v6724, %v6725
    %v6727 = vrot.slane %v6674, 6
    %v6728 = vsel %vm6723, %v6725, %v6727
    %v6729 = vrot.slane %v6675, 6
    %v6730 = vsel %vm6723, %v6727, %v6729
    %v6731 = vrot.slane %v6676, 6
    %v6732 = vsel %vm6723, %v6729, %v6731
    %v6733 = vrot.slane %v6677, 6
    %v6734 = vsel %vm6723, %v6731, %v6733
    %v6735 = vrot.slane %v6678, 6
    %v6736 = vsel %vm6723, %v6733, %v6735
    %v6737 = vrot.slane %v6679, 6
    %v6738 = vsel %vm6723, %v6735, %v6737
    %v6739 = vrot.slane %v6680, 6
    %v6740 = vsel %vm6723, %v6737, %v6739
    %v6741 = vrot.slane %v6681, 6
    %v6742 = vsel %vm6723, %v6739, %v6741
    %v6743 = vrot.slane %v6682, 6
    %v6744 = vsel %vm6723, %v6741, %v6743
    %v6745 = vrot.slane %v6683, 6
    %v6746 = vsel %vm6723, %v6743, %v6745
    %v6747 = vrot.slane %v6684, 6
    %v6748 = vsel %vm6723, %v6745, %v6747
    %v6749 = vrot.slane %v6685, 6
    %v6750 = vsel %vm6723, %v6747, %v6749
    %v6751 = vrot.slane %v6686, 6
    %v6752 = vsel %vm6723, %v6749, %v6751
    %v6753 = vrot.slane %v6687, 6
    %v6754 = vsel %vm6723, %v6751, %v6753
    %v6755 = vrot.slane %v6688, 6
    %v6756 = vsel %vm6723, %v6753, %v6755
    %v6789 = vunpack.c.l.b16 %v6690
    %v6790 = vunpack.c.l.b16 %v6691
    %v6791 = vunpack.c.l.b16 %v6692
    %v6792 = vunpack.c.l.b16 %v6693
    %v6793 = vunpack.c.l.b16 %v6694
    %v6794 = vunpack.c.l.b16 %v6695
    %v6795 = vunpack.c.l.b16 %v6696
    %v6796 = vunpack.c.l.b16 %v6697
    %v6797 = vunpack.c.l.b16 %v6698
    %v6798 = vunpack.c.l.b16 %v6699
    %v6799 = vunpack.c.l.b16 %v6700
    %v6800 = vunpack.c.l.b16 %v6701
    %v6801 = vunpack.c.l.b16 %v6702
    %v6802 = vunpack.c.l.b16 %v6703
    %v6803 = vunpack.c.l.b16 %v6704
    %v6804 = vunpack.c.l.b16 %v6705
    %v6805 = vpack.c.b16 %v6790, %v6789
    %v6806 = vpack.c.b16 %v6792, %v6791
    %v6807 = vpack.c.b16 %v6794, %v6793
    %v6808 = vpack.c.b16 %v6796, %v6795
    %v6809 = vpack.c.b16 %v6798, %v6797
    %v6810 = vpack.c.b16 %v6800, %v6799
    %v6811 = vpack.c.b16 %v6802, %v6801
    %v6812 = vpack.c.b16 %v6804, %v6803
    %6821 = vmatprep.subr.bf16.mxu0 0
    %6822 = vmatpush1.bf16.msra.mxu0 %v6805
    %6823 = vmatprep.subr.bf16.mxu0 0
    %6824 = vmatpush1.bf16.msra.mxu0 %v6806
    %6825 = vmatprep.subr.bf16.mxu0 0
    %6826 = vmatpush1.bf16.msra.mxu0 %v6807
    %6827 = vmatprep.subr.bf16.mxu0 0
    %6828 = vmatpush1.bf16.msra.mxu0 %v6808
    %6829 = vmatprep.subr.bf16.mxu0 0
    %6830 = vmatpush1.bf16.msra.mxu0 %v6809
    %6831 = vmatprep.subr.bf16.mxu0 0
    %6832 = vmatpush1.bf16.msra.mxu0 %v6810
    %6833 = vmatprep.subr.bf16.mxu0 0
    %6834 = vmatpush1.bf16.msra.mxu0 %v6811
    %6835 = vmatprep.subr.bf16.mxu0 0
    %6836 = vmatpush1.bf16.msra.mxu0 %v6812
    %6837 = vmatprep.subr.bf16.mxu0 0
    %6838 = vmatpush1.bf16.msra.mxu0 0
    %6839 = vmatprep.subr.bf16.mxu0 0
    %6840 = vmatpush1.bf16.msra.mxu0 0
    %6841 = vmatprep.subr.bf16.mxu0 0
    %6842 = vmatpush1.bf16.msra.mxu0 0
    %6843 = vmatprep.subr.bf16.mxu0 0
    %6844 = vmatpush1.bf16.msra.mxu0 0
    %6845 = vmatprep.subr.bf16.mxu0 0
    %6846 = vmatpush1.bf16.msra.mxu0 0
    %6847 = vmatprep.subr.bf16.mxu0 0
    %6848 = vmatpush1.bf16.msra.mxu0 0
    %6849 = vmatprep.subr.bf16.mxu0 0
    %6850 = vmatpush1.bf16.msra.mxu0 0
    %6851 = vmatprep.subr.bf16.mxu0 0
    %6852 = vmatpush1.bf16.msra.mxu0 0
    %6853 = vmatprep.mubr.bf16.mxu0 0
    %6854 = vmatmul.mubr.bf16.gmra.mrb[0].mxu0 %v6726
    %v6855 = vpop.f32.mrb[0].mxu0
    %v6856 = vadd.f32 0.0, %v6855
    %v6857 = vpop.f32.mrb[0].mxu0
    %v6858 = vpop.f32.mrb[0].mxu0
    %v6859 = vadd.f32 0.0, %v6858
    %v6860 = vpop.f32.mrb[0].mxu0
    %6861 = vmatprep.mubr.bf16.mxu0 0
    %6862 = vmatmul.mubr.bf16.gmra.mrb[0].mxu0 %v6728
    %v6863 = vpop.f32.mrb[0].mxu0
    %v6864 = vadd.f32 0.0, %v6863
    %v6865 = vpop.f32.mrb[0].mxu0
    %v6866 = vpop.f32.mrb[0].mxu0
    %v6867 = vadd.f32 0.0, %v6866
    %v6868 = vpop.f32.mrb[0].mxu0
    %6869 = vmatprep.mubr.bf16.mxu0 0
    %6870 = vmatmul.mubr.bf16.gmra.mrb[0].mxu0 %v6730
    %v6871 = vpop.f32.mrb[0].mxu0
    %v6872 = vadd.f32 0.0, %v6871
    %v6873 = vpop.f32.mrb[0].mxu0
    %v6874 = vpop.f32.mrb[0].mxu0
    %v6875 = vadd.f32 0.0, %v6874
    %v6876 = vpop.f32.mrb[0].mxu0
    %6877 = vmatprep.mubr.bf16.mxu0 0
    %6878 = vmatmul.mubr.bf16.gmra.mrb[0].mxu0 %v6732
    %v6879 = vpop.f32.mrb[0].mxu0
    %v6880 = vadd.f32 0.0, %v6879
    %v6881 = vpop.f32.mrb[0].mxu0
    %v6882 = vpop.f32.mrb[0].mxu0
    %v6883 = vadd.f32 0.0, %v6882
    %v6884 = vpop.f32.mrb[0].mxu0
    %6885 = vmatprep.mubr.bf16.mxu0 0
    %6886 = vmatmul.mubr.bf16.gmra.mrb[0].mxu0 %v6734
    %v6887 = vpop.f32.mrb[0].mxu0
    %v6888 = vadd.f32 0.0, %v6887
    %v6889 = vpop.f32.mrb[0].mxu0
    %v6890 = vpop.f32.mrb[0].mxu0
    %v6891 = vadd.f32 0.0, %v6890
    %v6892 = vpop.f32.mrb[0].mxu0
    %6893 = vmatprep.mubr.bf16.mxu0 0
    %6894 = vmatmul.mubr.bf16.gmra.mrb[0].mxu0 %v6736
    %v6895 = vpop.f32.mrb[0].mxu0
    %v6896 = vadd.f32 0.0, %v6895
    %v6897 = vpop.f32.mrb[0].mxu0
    %v6898 = vpop.f32.mrb[0].mxu0
    %v6899 = vadd.f32 0.0, %v6898
    %v6900 = vpop.f32.mrb[0].mxu0
    %6901 = vmatprep.mubr.bf16.mxu0 0
    %6902 = vmatmul.mubr.bf16.gmra.mrb[0].mxu0 %v6738
    %v6903 = vpop.f32.mrb[0].mxu0
    %v6904 = vadd.f32 0.0, %v6903
    %v6905 = vpop.f32.mrb[0].mxu0
    %v6906 = vpop.f32.mrb[0].mxu0
    %v6907 = vadd.f32 0.0, %v6906
    %v6908 = vpop.f32.mrb[0].mxu0
    %6909 = vmatprep.mubr.bf16.mxu0 0
    %6910 = vmatmul.mubr.bf16.gmra.mrb[0].mxu0 %v6740
    %v6911 = vpop.f32.mrb[0].mxu0
    %v6912 = vadd.f32 0.0, %v6911
    %v6913 = vpop.f32.mrb[0].mxu0
    %v6914 = vpop.f32.mrb[0].mxu0
    %v6915 = vadd.f32 0.0, %v6914
    %v6916 = vpop.f32.mrb[0].mxu0
    %6917 = vmatprep.mubr.bf16.mxu0 0
    %6918 = vmatmul.mubr.bf16.gmra.mrb[0].mxu0 %v6742
    %v6919 = vpop.f32.mrb[0].mxu0
    %v6920 = vadd.f32 0.0, %v6919
    %v6921 = vpop.f32.mrb[0].mxu0
    %v6922 = vpop.f32.mrb[0].mxu0
    %v6923 = vadd.f32 0.0, %v6922
    %v6924 = vpop.f32.mrb[0].mxu0
    %6925 = vmatprep.mubr.bf16.mxu0 0
    %6926 = vmatmul.mubr.bf16.gmra.mrb[0].mxu0 %v6744
    %v6927 = vpop.f32.mrb[0].mxu0
    %v6928 = vadd.f32 0.0, %v6927
    %v6929 = vpop.f32.mrb[0].mxu0
    %v6930 = vpop.f32.mrb[0].mxu0
    %v6931 = vadd.f32 0.0, %v6930
    %v6932 = vpop.f32.mrb[0].mxu0
    %6933 = vmatprep.mubr.bf16.mxu0 0
    %6934 = vmatmul.mubr.bf16.gmra.mrb[0].mxu0 %v6746
    %v6935 = vpop.f32.mrb[0].mxu0
    %v6936 = vadd.f32 0.0, %v6935
    %v6937 = vpop.f32.mrb[0].mxu0
    %v6938 = vpop.f32.mrb[0].mxu0
    %v6939 = vadd.f32 0.0, %v6938
    %v6940 = vpop.f32.mrb[0].mxu0
    %6941 = vmatprep.mubr.bf16.mxu0 0
    %6942 = vmatmul.mubr.bf16.gmra.mrb[0].mxu0 %v6748
    %v6943 = vpop.f32.mrb[0].mxu0
    %v6944 = vadd.f32 0.0, %v6943
    %v6945 = vpop.f32.mrb[0].mxu0
    %v6946 = vpop.f32.mrb[0].mxu0
    %v6947 = vadd.f32 0.0, %v6946
    %v6948 = vpop.f32.mrb[0].mxu0
    %6949 = vmatprep.mubr.bf16.mxu0 0
    %6950 = vmatmul.mubr.bf16.gmra.mrb[0].mxu0 %v6750
    %v6951 = vpop.f32.mrb[0].mxu0
    %v6952 = vadd.f32 0.0, %v6951
    %v6953 = vpop.f32.mrb[0].mxu0
    %v6954 = vpop.f32.mrb[0].mxu0
    %v6955 = vadd.f32 0.0, %v6954
    %v6956 = vpop.f32.mrb[0].mxu0
    %6957 = vmatprep.mubr.bf16.mxu0 0
    %6958 = vmatmul.mubr.bf16.gmra.mrb[0].mxu0 %v6752
    %v6959 = vpop.f32.mrb[0].mxu0
    %v6960 = vadd.f32 0.0, %v6959
    %v6961 = vpop.f32.mrb[0].mxu0
    %v6962 = vpop.f32.mrb[0].mxu0
    %v6963 = vadd.f32 0.0, %v6962
    %v6964 = vpop.f32.mrb[0].mxu0
    %6965 = vmatprep.mubr.bf16.mxu0 0
    %6966 = vmatmul.mubr.bf16.gmra.mrb[0].mxu0 %v6754
    %v6967 = vpop.f32.mrb[0].mxu0
    %v6968 = vadd.f32 0.0, %v6967
    %v6969 = vpop.f32.mrb[0].mxu0
    %v6970 = vpop.f32.mrb[0].mxu0
    %v6971 = vadd.f32 0.0, %v6970
    %v6972 = vpop.f32.mrb[0].mxu0
    %6973 = vmatprep.mubr.bf16.mxu0 0
    %6974 = vmatmul.mubr.bf16.gmra.mrb[0].mxu0 %v6756
    %v6975 = vpop.f32.mrb[0].mxu0
    %v6976 = vadd.f32 0.0, %v6975
    %v6977 = vpop.f32.mrb[0].mxu0
    %v6978 = vpop.f32.mrb[0].mxu0
    %v6979 = vadd.f32 0.0, %v6978
    %v6980 = vpop.f32.mrb[0].mxu0
    %6981 = vdwg.mxu0
    %v6982 = vadd.f32 %v6546, %v6856
    %v6983 = vadd.f32 %v6549, %v6859
    %v6984 = vadd.f32 %v6554, %v6864
    %v6985 = vadd.f32 %v6557, %v6867
    %v6986 = vadd.f32 %v6562, %v6872
    %v6987 = vadd.f32 %v6565, %v6875
    %v6988 = vadd.f32 %v6570, %v6880
    %v6989 = vadd.f32 %v6573, %v6883
    %v6990 = vadd.f32 %v6578, %v6888
    %v6991 = vadd.f32 %v6581, %v6891
    %v6992 = vadd.f32 %v6586, %v6896
    %v6993 = vadd.f32 %v6589, %v6899
    %v6994 = vadd.f32 %v6594, %v6904
    %v6995 = vadd.f32 %v6597, %v6907
    %v6996 = vadd.f32 %v6602, %v6912
    %v6997 = vadd.f32 %v6605, %v6915
    %v6998 = vadd.f32 %v6610, %v6920
    %v6999 = vadd.f32 %v6613, %v6923
    %v7000 = vadd.f32 %v6618, %v6928
    %v7001 = vadd.f32 %v6621, %v6931
    %v7002 = vadd.f32 %v6626, %v6936
    %v7003 = vadd.f32 %v6629, %v6939
    %v7004 = vadd.f32 %v6634, %v6944
    %v7005 = vadd.f32 %v6637, %v6947
    %v7006 = vadd.f32 %v6642, %v6952
    %v7007 = vadd.f32 %v6645, %v6955
    %v7008 = vadd.f32 %v6650, %v6960
    %v7009 = vadd.f32 %v6653, %v6963
    %v7010 = vadd.f32 %v6658, %v6968
    %v7011 = vadd.f32 %v6661, %v6971
    %v7012 = vadd.f32 %v6666, %v6976
    %v7013 = vadd.f32 %v6669, %v6979
    %7014 = vst.msk [vmem:[#allocation2] sm:$0xff] %vm37, %v6982
    %7015 = vst.msk [vmem:[#allocation2 + $0x8] sm:$0xff] %vm37, %v6983
    %7016 = vst.msk [vmem:[#allocation2 + $0x10] sm:$0xff] %vm37, %v6984
    %7017 = vst.msk [vmem:[#allocation2 + $0x18] sm:$0xff] %vm37, %v6985
    %7018 = vst.msk [vmem:[#allocation2 + $0x20] sm:$0xff] %vm37, %v6986
    %7019 = vst.msk [vmem:[#allocation2 + $0x28] sm:$0xff] %vm37, %v6987
    %7020 = vst.msk [vmem:[#allocation2 + $0x30] sm:$0xff] %vm37, %v6988
    %7021 = vst.msk [vmem:[#allocation2 + $0x38] sm:$0xff] %vm37, %v6989
    %7022 = vst.msk [vmem:[#allocation2 + $0x40] sm:$0xff] %vm37, %v6990
    %7023 = vst.msk [vmem:[#allocation2 + $0x48] sm:$0xff] %vm37, %v6991
    %7024 = vst.msk [vmem:[#allocation2 + $0x50] sm:$0xff] %vm37, %v6992
    %7025 = vst.msk [vmem:[#allocation2 + $0x58] sm:$0xff] %vm37, %v6993
    %7026 = vst.msk [vmem:[#allocation2 + $0x60] sm:$0xff] %vm37, %v6994
    %7027 = vst.msk [vmem:[#allocation2 + $0x68] sm:$0xff] %vm37, %v6995
    %7028 = vst.msk [vmem:[#allocation2 + $0x70] sm:$0xff] %vm37, %v6996
    %7029 = vst.msk [vmem:[#allocation2 + $0x78] sm:$0xff] %vm37, %v6997
    %7030 = vst.msk [vmem:[#allocation2 + $0x80] sm:$0xff] %vm37, %v6998
    %7031 = vst.msk [vmem:[#allocation2 + $0x88] sm:$0xff] %vm37, %v6999
    %7032 = vst.msk [vmem:[#allocation2 + $0x90] sm:$0xff] %vm37, %v7000
    %7033 = vst.msk [vmem:[#allocation2 + $0x98] sm:$0xff] %vm37, %v7001
    %7034 = vst.msk [vmem:[#allocation2 + $0xa0] sm:$0xff] %vm37, %v7002
    %7035 = vst.msk [vmem:[#allocation2 + $0xa8] sm:$0xff] %vm37, %v7003
    %7036 = vst.msk [vmem:[#allocation2 + $0xb0] sm:$0xff] %vm37, %v7004
    %7037 = vst.msk [vmem:[#allocation2 + $0xb8] sm:$0xff] %vm37, %v7005
    %7038 = vst.msk [vmem:[#allocation2 + $0xc0] sm:$0xff] %vm37, %v7006
    %7039 = vst.msk [vmem:[#allocation2 + $0xc8] sm:$0xff] %vm37, %v7007
    %7040 = vst.msk [vmem:[#allocation2 + $0xd0] sm:$0xff] %vm37, %v7008
    %7041 = vst.msk [vmem:[#allocation2 + $0xd8] sm:$0xff] %vm37, %v7009
    %7042 = vst.msk [vmem:[#allocation2 + $0xe0] sm:$0xff] %vm37, %v7010
    %7043 = vst.msk [vmem:[#allocation2 + $0xe8] sm:$0xff] %vm37, %v7011
    %7044 = vst.msk [vmem:[#allocation2 + $0xf0] sm:$0xff] %vm37, %v7012
    %7045 = vst.msk [vmem:[#allocation2 + $0xf8] sm:$0xf] %vm679, %v7013
    %v7046 = vld [vmem:[#allocation2] ss:$2 sm:$0xff]
    %v7047 = vld [vmem:[%s4993] ss:$2 sm:$0xff]
    %v7048 = vld [vmem:[%s4995] ss:$2 sm:$0xff]
    %v7049 = vld [vmem:[%s4997] ss:$2 sm:$0xff]
    %v7050 = vld [vmem:[%s4999] ss:$2 sm:$0xff]
    %v7051 = vld [vmem:[%s5001] ss:$2 sm:$0xff]
    %v7052 = vld [vmem:[%s5003] ss:$2 sm:$0xff]
    %v7053 = vld [vmem:[%s5005] ss:$2 sm:$0xff]
    %v7054 = vld [vmem:[%s5007] ss:$2 sm:$0xff]
    %v7055 = vld [vmem:[%s5009] ss:$2 sm:$0xff]
    %v7056 = vld [vmem:[%s5011] ss:$2 sm:$0xff]
    %v7057 = vld [vmem:[%s5013] ss:$2 sm:$0xff]
    %v7058 = vld [vmem:[%s5015] ss:$2 sm:$0xff]
    %v7059 = vld [vmem:[%s5017] ss:$2 sm:$0xff]
    %v7060 = vld [vmem:[%s5019] ss:$2 sm:$0xff]
    %v7061 = vld [vmem:[%s5021] ss:$2 sm:$0x3f]
    %v7062 = vld [vmem:[%s5103] ss:$2 sm:$0xff]
    %v7063 = vld [vmem:[%s5105] ss:$2 sm:$0xff]
    %v7064 = vld [vmem:[%s5107] ss:$2 sm:$0xff]
    %v7065 = vld [vmem:[%s5109] ss:$2 sm:$0xff]
    %v7066 = vld [vmem:[%s5111] ss:$2 sm:$0xff]
    %v7067 = vld [vmem:[%s5113] ss:$2 sm:$0xff]
    %v7068 = vld [vmem:[%s5115] ss:$2 sm:$0xff]
    %v7069 = vld [vmem:[%s5117] ss:$2 sm:$0xff]
    %v7070 = vld [vmem:[%s5119] ss:$2 sm:$0xff]
    %v7071 = vld [vmem:[%s5121] ss:$2 sm:$0xff]
    %v7072 = vld [vmem:[%s5123] ss:$2 sm:$0xff]
    %v7073 = vld [vmem:[%s5125] ss:$2 sm:$0xff]
    %v7074 = vld [vmem:[%s5127] ss:$2 sm:$0xff]
    %v7075 = vld [vmem:[%s5129] ss:$2 sm:$0xff]
    %v7076 = vld [vmem:[%s5131] ss:$2 sm:$0xff]
    %v7077 = vld [vmem:[%s5133] ss:$2 sm:$0x3f]
    %v7078 = vmax.f32 %v7046, %v7062
    %v7079 = vmax.f32 %v7047, %v7063
    %v7080 = vmax.f32 %v7048, %v7064
    %v7081 = vmax.f32 %v7049, %v7065
    %v7082 = vmax.f32 %v7050, %v7066
    %v7083 = vmax.f32 %v7051, %v7067
    %v7084 = vmax.f32 %v7052, %v7068
    %v7085 = vmax.f32 %v7053, %v7069
    %v7086 = vmax.f32 %v7054, %v7070
    %v7087 = vmax.f32 %v7055, %v7071
    %v7088 = vmax.f32 %v7056, %v7072
    %v7089 = vmax.f32 %v7057, %v7073
    %v7090 = vmax.f32 %v7058, %v7074
    %v7091 = vmax.f32 %v7059, %v7075
    %v7092 = vmax.f32 %v7060, %v7076
    %v7093 = vmax.f32 %v7061, %v7077
    %7094 = vst.msk [vmem:[#allocation3] sm:$0xff] %vm37, %v7078
    %7095 = vst.msk [vmem:[#allocation3 + $0x8] sm:$0xff] %vm37, %v7079
    %7096 = vst.msk [vmem:[#allocation3 + $0x10] sm:$0xff] %vm37, %v7080
    %7097 = vst.msk [vmem:[#allocation3 + $0x18] sm:$0xff] %vm37, %v7081
    %7098 = vst.msk [vmem:[#allocation3 + $0x20] sm:$0xff] %vm37, %v7082
    %7099 = vst.msk [vmem:[#allocation3 + $0x28] sm:$0xff] %vm37, %v7083
    %7100 = vst.msk [vmem:[#allocation3 + $0x30] sm:$0xff] %vm37, %v7084
    %7101 = vst.msk [vmem:[#allocation3 + $0x38] sm:$0xff] %vm37, %v7085
    %7102 = vst.msk [vmem:[#allocation3 + $0x40] sm:$0xff] %vm37, %v7086
    %7103 = vst.msk [vmem:[#allocation3 + $0x48] sm:$0xff] %vm37, %v7087
    %7104 = vst.msk [vmem:[#allocation3 + $0x50] sm:$0xff] %vm37, %v7088
    %7105 = vst.msk [vmem:[#allocation3 + $0x58] sm:$0xff] %vm37, %v7089
    %7106 = vst.msk [vmem:[#allocation3 + $0x60] sm:$0xff] %vm37, %v7090
    %7107 = vst.msk [vmem:[#allocation3 + $0x68] sm:$0xff] %vm37, %v7091
    %7108 = vst.msk [vmem:[#allocation3 + $0x70] sm:$0xff] %vm37, %v7092
    %vm7109 = vcmask 259072
    %7110 = vst.msk [vmem:[#allocation3 + $0x78] sm:$0x3f] %vm7109, %v7093
    %s7111 = scalar_lea.vmem %s4, 1
    %v7112 = vld [vmem:[%s7111] sm:$0x1]
    %s7113 = scalar_lea.vmem %s5, 1
    %v7114 = vld [vmem:[%s7113] sm:$0x1]
    %v7115 = vld [vmem:[#allocation3] sm:$0xff]
    %v7116 = vld [vmem:[#allocation3 + $0x8] sm:$0xff]
    %v7117 = vld [vmem:[#allocation3 + $0x10] sm:$0xff]
    %v7118 = vld [vmem:[#allocation3 + $0x18] sm:$0xff]
    %v7119 = vld [vmem:[#allocation3 + $0x20] sm:$0xff]
    %v7120 = vld [vmem:[#allocation3 + $0x28] sm:$0xff]
    %v7121 = vld [vmem:[#allocation3 + $0x30] sm:$0xff]
    %v7122 = vld [vmem:[#allocation3 + $0x38] sm:$0xff]
    %v7123 = vld [vmem:[#allocation3 + $0x40] sm:$0xff]
    %v7124 = vld [vmem:[#allocation3 + $0x48] sm:$0xff]
    %v7125 = vld [vmem:[#allocation3 + $0x50] sm:$0xff]
    %v7126 = vld [vmem:[#allocation3 + $0x58] sm:$0xff]
    %v7127 = vld [vmem:[#allocation3 + $0x60] sm:$0xff]
    %v7128 = vld [vmem:[#allocation3 + $0x68] sm:$0xff]
    %v7129 = vld [vmem:[#allocation3 + $0x70] sm:$0x7f]
    %v7130 = vld [vmem:[#allocation3 + $0x7] sm:$0xff]
    %v7131 = vld [vmem:[#allocation3 + $0xf] sm:$0xff]
    %v7132 = vld [vmem:[#allocation3 + $0x17] sm:$0xff]
    %v7133 = vld [vmem:[#allocation3 + $0x1f] sm:$0xff]
    %v7134 = vld [vmem:[#allocation3 + $0x27] sm:$0xff]
    %v7135 = vld [vmem:[#allocation3 + $0x2f] sm:$0xff]
    %v7136 = vld [vmem:[#allocation3 + $0x37] sm:$0xff]
    %v7137 = vld [vmem:[#allocation3 + $0x3f] sm:$0xff]
    %v7138 = vld [vmem:[#allocation3 + $0x47] sm:$0xff]
    %v7139 = vld [vmem:[#allocation3 + $0x4f] sm:$0xff]
    %v7140 = vld [vmem:[#allocation3 + $0x57] sm:$0xff]
    %v7141 = vld [vmem:[#allocation3 + $0x5f] sm:$0xff]
    %v7142 = vld [vmem:[#allocation3 + $0x67] sm:$0xff]
    %v7143 = vld [vmem:[#allocation3 + $0x6f] sm:$0xff]
    %v7144 = vld [vmem:[#allocation3 + $0x77] sm:$0x7f]
    %v7145 = vmax.f32 %v7115, %v7130
    %v7146 = vmax.f32 %v7116, %v7131
    %v7147 = vmax.f32 %v7117, %v7132
    %v7148 = vmax.f32 %v7118, %v7133
    %v7149 = vmax.f32 %v7119, %v7134
    %v7150 = vmax.f32 %v7120, %v7135
    %v7151 = vmax.f32 %v7121, %v7136
    %v7152 = vmax.f32 %v7122, %v7137
    %v7153 = vmax.f32 %v7123, %v7138
    %v7154 = vmax.f32 %v7124, %v7139
    %v7155 = vmax.f32 %v7125, %v7140
    %v7156 = vmax.f32 %v7126, %v7141
    %v7157 = vmax.f32 %v7127, %v7142
    %v7158 = vmax.f32 %v7128, %v7143
    %v7159 = vmax.f32 %v7129, %v7144
    %v7161 = vlaneseq
    %v7162 = vshrl.u32 %v7161, 7
    %v7163 = vsub.s32 0, %v7162
    %v7164 = vrot.slane %v7112, %v7163
    %v7166 = vmul.f32 %v7145, %v7164
    %v7167 = vmul.f32 %v7146, %v7164
    %v7168 = vmul.f32 %v7147, %v7164
    %v7169 = vmul.f32 %v7148, %v7164
    %v7170 = vmul.f32 %v7149, %v7164
    %v7171 = vmul.f32 %v7150, %v7164
    %v7172 = vmul.f32 %v7151, %v7164
    %v7173 = vmul.f32 %v7152, %v7164
    %v7174 = vmul.f32 %v7153, %v7164
    %v7175 = vmul.f32 %v7154, %v7164
    %v7176 = vmul.f32 %v7155, %v7164
    %v7177 = vmul.f32 %v7156, %v7164
    %v7178 = vmul.f32 %v7157, %v7164
    %v7179 = vmul.f32 %v7158, %v7164
    %v7180 = vmul.f32 %v7159, %v7164
    %v7182 = vlaneseq
    %v7183 = vshrl.u32 %v7182, 7
    %v7184 = vsub.s32 0, %v7183
    %v7185 = vrot.slane %v7114, %v7184
    %v7187 = vadd.f32 %v7166, %v7185
    %v7188 = vadd.f32 %v7167, %v7185
    %v7189 = vadd.f32 %v7168, %v7185
    %v7190 = vadd.f32 %v7169, %v7185
    %v7191 = vadd.f32 %v7170, %v7185
    %v7192 = vadd.f32 %v7171, %v7185
    %v7193 = vadd.f32 %v7172, %v7185
    %v7194 = vadd.f32 %v7173, %v7185
    %v7195 = vadd.f32 %v7174, %v7185
    %v7196 = vadd.f32 %v7175, %v7185
    %v7197 = vadd.f32 %v7176, %v7185
    %v7198 = vadd.f32 %v7177, %v7185
    %v7199 = vadd.f32 %v7178, %v7185
    %v7200 = vadd.f32 %v7179, %v7185
    %v7201 = vadd.f32 %v7180, %v7185
    %v7202 = vmax.f32 %v7187, 0.0
    %v7203 = vmax.f32 %v7188, 0.0
    %v7204 = vmax.f32 %v7189, 0.0
    %v7205 = vmax.f32 %v7190, 0.0
    %v7206 = vmax.f32 %v7191, 0.0
    %v7207 = vmax.f32 %v7192, 0.0
    %v7208 = vmax.f32 %v7193, 0.0
    %v7209 = vmax.f32 %v7194, 0.0
    %v7210 = vmax.f32 %v7195, 0.0
    %v7211 = vmax.f32 %v7196, 0.0
    %v7212 = vmax.f32 %v7197, 0.0
    %v7213 = vmax.f32 %v7198, 0.0
    %v7214 = vmax.f32 %v7199, 0.0
    %v7215 = vmax.f32 %v7200, 0.0
    %v7216 = vmax.f32 %v7201, 0.0
    %7217 = vst.msk [vmem:[#allocation2] sm:$0xff] %vm37, %v7202
    %7218 = vst.msk [vmem:[#allocation2 + $0x8] sm:$0xff] %vm37, %v7203
    %7219 = vst.msk [vmem:[#allocation2 + $0x10] sm:$0xff] %vm37, %v7204
    %7220 = vst.msk [vmem:[#allocation2 + $0x18] sm:$0xff] %vm37, %v7205
    %7221 = vst.msk [vmem:[#allocation2 + $0x20] sm:$0xff] %vm37, %v7206
    %7222 = vst.msk [vmem:[#allocation2 + $0x28] sm:$0xff] %vm37, %v7207
    %7223 = vst.msk [vmem:[#allocation2 + $0x30] sm:$0xff] %vm37, %v7208
    %7224 = vst.msk [vmem:[#allocation2 + $0x38] sm:$0xff] %vm37, %v7209
    %7225 = vst.msk [vmem:[#allocation2 + $0x40] sm:$0xff] %vm37, %v7210
    %7226 = vst.msk [vmem:[#allocation2 + $0x48] sm:$0xff] %vm37, %v7211
    %7227 = vst.msk [vmem:[#allocation2 + $0x50] sm:$0xff] %vm37, %v7212
    %7228 = vst.msk [vmem:[#allocation2 + $0x58] sm:$0xff] %vm37, %v7213
    %7229 = vst.msk [vmem:[#allocation2 + $0x60] sm:$0xff] %vm37, %v7214
    %7230 = vst.msk [vmem:[#allocation2 + $0x68] sm:$0xff] %vm37, %v7215
    %vm7231 = vcmask 260096
    %7232 = vst.msk [vmem:[#allocation2 + $0x70] sm:$0x7f] %vm7231, %v7216
    %v7233 = vld [vmem:[#allocation2] sm:$0x3f]
    %7234 = vst.msk [vmem:[#allocation7 + $0x9] sm:$0x3f] %vm7109, %v7233
    %v7235 = vld [vmem:[#allocation2 + $0xe] sm:$0x3f]
    %7236 = vst.msk [vmem:[#allocation7 + $0x11] sm:$0x3f] %vm7109, %v7235
    %v7237 = vld [vmem:[#allocation2 + $0x1c] sm:$0x3f]
    %7238 = vst.msk [vmem:[#allocation7 + $0x19] sm:$0x3f] %vm7109, %v7237
    %v7239 = vld [vmem:[#allocation2 + $0x3f] sm:$0x3f]
    %7240 = vst.msk [vmem:[#allocation7 + $0x31] sm:$0x3f] %vm7109, %v7239
    %v7241 = vld [vmem:[#allocation2 + $0x4d] sm:$0x3f]
    %7242 = vst.msk [vmem:[#allocation7 + $0x39] sm:$0x3f] %vm7109, %v7241
    %v7243 = vld [vmem:[#allocation2 + $0x5b] sm:$0x3f]
    %7244 = vst.msk [vmem:[#allocation7 + $0x41] sm:$0x3f] %vm7109, %v7243
    %v7245 = vld [vmem:[#allocation7] sm:$0xff]
    %v7246 = vld [vmem:[#allocation7 + $0x8] sm:$0xff]
    %v7247 = vld [vmem:[#allocation7 + $0x10] sm:$0xff]
    %v7248 = vld [vmem:[#allocation7 + $0x18] sm:$0xff]
    %v7249 = vld [vmem:[#allocation7 + $0x20] sm:$0xff]
    %v7250 = vld [vmem:[#allocation7 + $0x28] sm:$0xff]
    %v7251 = vld [vmem:[#allocation7 + $0x30] sm:$0xff]
    %v7252 = vld [vmem:[#allocation7 + $0x38] sm:$0xff]
    %v7253 = vld [vmem:[#allocation7 + $0x40] sm:$0xff]
    %v7254 = vld [vmem:[#allocation7 + $0x48] sm:$0xff]
    %v7255 = vld [vmem:[#allocation7 + $0x50] sm:$0xff]
    %v7256 = vld [vmem:[#allocation7 + $0x58] sm:$0xff]
    %v7257 = vpack.c.bf16 %v7246, %v7245
    %v7258 = vpack.c.bf16 %v7248, %v7247
    %v7259 = vpack.c.bf16 %v7250, %v7249
    %v7260 = vpack.c.bf16 %v7252, %v7251
    %v7261 = vpack.c.bf16 %v7254, %v7253
    %v7262 = vpack.c.bf16 %v7256, %v7255
    %7263 = vst.msk [vmem:[#allocation4] sm:$0xff] %vm37, %v7257
    %7264 = vst.msk [vmem:[#allocation4 + $0x8] sm:$0xff] %vm37, %v7258
    %7265 = vst.msk [vmem:[#allocation4 + $0x10] sm:$0xff] %vm37, %v7259
    %7266 = vst.msk [vmem:[#allocation4 + $0x18] sm:$0xff] %vm37, %v7260
    %7267 = vst.msk [vmem:[#allocation4 + $0x20] sm:$0xff] %vm37, %v7261
    %7268 = vst.msk [vmem:[#allocation4 + $0x28] sm:$0xff] %vm37, %v7262
    %v7269 = vld [vmem:[#allocation7 + $0x1] sm:$0xff]
    %v7270 = vld [vmem:[#allocation7 + $0x9] sm:$0xff]
    %v7271 = vld [vmem:[#allocation7 + $0x11] sm:$0xff]
    %v7272 = vld [vmem:[#allocation7 + $0x19] sm:$0xff]
    %v7273 = vld [vmem:[#allocation7 + $0x21] sm:$0xff]
    %v7274 = vld [vmem:[#allocation7 + $0x29] sm:$0xff]
    %v7275 = vld [vmem:[#allocation7 + $0x31] sm:$0xff]
    %v7276 = vld [vmem:[#allocation7 + $0x39] sm:$0xff]
    %v7277 = vld [vmem:[#allocation7 + $0x41] sm:$0xff]
    %v7278 = vld [vmem:[#allocation7 + $0x49] sm:$0xff]
    %v7279 = vld [vmem:[#allocation7 + $0x51] sm:$0xff]
    %v7280 = vld [vmem:[#allocation7 + $0x59] sm:$0xff]
    %v7281 = vpack.c.bf16 %v7270, %v7269
    %v7282 = vpack.c.bf16 %v7272, %v7271
    %v7283 = vpack.c.bf16 %v7274, %v7273
    %v7284 = vpack.c.bf16 %v7276, %v7275
    %v7285 = vpack.c.bf16 %v7278, %v7277
    %v7286 = vpack.c.bf16 %v7280, %v7279
    %7293 = vrot.lane.b32.xlu0 %v7281, 32
    %v7294 = vpop.permute.xlu0 %7293
    %7295 = vrot.lane.b32.xlu0 %v7282, 32
    %v7296 = vpop.permute.xlu0 %7295
    %7297 = vrot.lane.b32.xlu0 %v7283, 32
    %v7298 = vpop.permute.xlu0 %7297
    %7299 = vrot.lane.b32.xlu0 %v7284, 32
    %v7300 = vpop.permute.xlu0 %7299
    %7301 = vrot.lane.b32.xlu0 %v7285, 32
    %v7302 = vpop.permute.xlu0 %7301
    %7303 = vrot.lane.b32.xlu0 %v7286, 32
    %v7304 = vpop.permute.xlu0 %7303
    %7311 = vst.msk [vmem:[#allocation4] sm:$0xff] %vm1743, %v7294
    %7312 = vst.msk [vmem:[#allocation4 + $0x8] sm:$0xff] %vm1743, %v7296
    %7313 = vst.msk [vmem:[#allocation4 + $0x10] sm:$0xff] %vm1743, %v7298
    %7314 = vst.msk [vmem:[#allocation4 + $0x18] sm:$0xff] %vm1743, %v7300
    %7315 = vst.msk [vmem:[#allocation4 + $0x20] sm:$0xff] %vm1743, %v7302
    %7316 = vst.msk [vmem:[#allocation4 + $0x28] sm:$0xff] %vm1743, %v7304
    %v7317 = vld [vmem:[#allocation7 + $0x2] sm:$0xff]
    %v7318 = vld [vmem:[#allocation7 + $0xa] sm:$0xff]
    %v7319 = vld [vmem:[#allocation7 + $0x12] sm:$0xff]
    %v7320 = vld [vmem:[#allocation7 + $0x1a] sm:$0xff]
    %v7321 = vld [vmem:[#allocation7 + $0x22] sm:$0xff]
    %v7322 = vld [vmem:[#allocation7 + $0x2a] sm:$0xff]
    %v7323 = vld [vmem:[#allocation7 + $0x32] sm:$0xff]
    %v7324 = vld [vmem:[#allocation7 + $0x3a] sm:$0xff]
    %v7325 = vld [vmem:[#allocation7 + $0x42] sm:$0xff]
    %v7326 = vld [vmem:[#allocation7 + $0x4a] sm:$0xff]
    %v7327 = vld [vmem:[#allocation7 + $0x52] sm:$0xff]
    %v7328 = vld [vmem:[#allocation7 + $0x5a] sm:$0xff]
    %v7329 = vpack.c.bf16 %v7318, %v7317
    %v7330 = vpack.c.bf16 %v7320, %v7319
    %v7331 = vpack.c.bf16 %v7322, %v7321
    %v7332 = vpack.c.bf16 %v7324, %v7323
    %v7333 = vpack.c.bf16 %v7326, %v7325
    %v7334 = vpack.c.bf16 %v7328, %v7327
    %7341 = vrot.lane.b32.xlu0 %v7329, 64
    %v7342 = vpop.permute.xlu0 %7341
    %7343 = vrot.lane.b32.xlu0 %v7330, 64
    %v7344 = vpop.permute.xlu0 %7343
    %7345 = vrot.lane.b32.xlu0 %v7331, 64
    %v7346 = vpop.permute.xlu0 %7345
    %7347 = vrot.lane.b32.xlu0 %v7332, 64
    %v7348 = vpop.permute.xlu0 %7347
    %7349 = vrot.lane.b32.xlu0 %v7333, 64
    %v7350 = vpop.permute.xlu0 %7349
    %7351 = vrot.lane.b32.xlu0 %v7334, 64
    %v7352 = vpop.permute.xlu0 %7351
    %7359 = vst.msk [vmem:[#allocation4] sm:$0xff] %vm2512, %v7342
    %7360 = vst.msk [vmem:[#allocation4 + $0x8] sm:$0xff] %vm2512, %v7344
    %7361 = vst.msk [vmem:[#allocation4 + $0x10] sm:$0xff] %vm2512, %v7346
    %7362 = vst.msk [vmem:[#allocation4 + $0x18] sm:$0xff] %vm2512, %v7348
    %7363 = vst.msk [vmem:[#allocation4 + $0x20] sm:$0xff] %vm2512, %v7350
    %7364 = vst.msk [vmem:[#allocation4 + $0x28] sm:$0xff] %vm2512, %v7352
    %v7365 = vld [vmem:[#allocation4] sm:$0xff]
    %v7366 = vld [vmem:[#allocation4 + $0x8] sm:$0xff]
    %v7367 = vld [vmem:[#allocation4 + $0x10] sm:$0xff]
    %v7368 = vld [vmem:[#allocation4 + $0x18] sm:$0xff]
    %v7369 = vld [vmem:[#allocation4 + $0x20] sm:$0xff]
    %s7370 = scalar_lea.vmem %s2, 384
    %v7371 = vld [vmem:[%s7370] sm:$0xf]
    %v7372 = vld [vmem:[%s7370 + $0x4] sm:$0xf]
    %v7373 = vld [vmem:[%s7370 + $0x8] sm:$0xf]
    %v7374 = vld [vmem:[%s7370 + $0xc] sm:$0xf]
    %v7375 = vld [vmem:[%s7370 + $0x10] sm:$0xf]
    %v7376 = vld [vmem:[%s7370 + $0x14] sm:$0xf]
    %v7377 = vld [vmem:[%s7370 + $0x18] sm:$0xf]
    %v7378 = vld [vmem:[%s7370 + $0x1c] sm:$0xf]
    %v7379 = vld [vmem:[%s7370 + $0x20] sm:$0xf]
    %v7380 = vld [vmem:[%s7370 + $0x24] sm:$0xf]
    %v7381 = vld [vmem:[%s7370 + $0x28] sm:$0xf]
    %v7382 = vld [vmem:[%s7370 + $0x2c] sm:$0xf]
    %v7383 = vld [vmem:[%s7370 + $0x30] sm:$0xf]
    %v7384 = vld [vmem:[%s7370 + $0x34] sm:$0xf]
    %v7385 = vld [vmem:[%s7370 + $0x38] sm:$0xf]
    %v7386 = vld [vmem:[%s7370 + $0x3c] sm:$0xf]
    %v7387 = vld [vmem:[#allocation4] sm:$0xf0]
    %v7388 = vld [vmem:[#allocation4 + $0x28] sm:$0xf]
    %s7389 = scalar_lea.vmem %s2, 448
    %v7390 = vld [vmem:[%s7389] sm:$0xf]
    %v7391 = vld [vmem:[%s7389 + $0x4] sm:$0xf]
    %v7392 = vld [vmem:[%s7389 + $0x8] sm:$0xf]
    %v7393 = vld [vmem:[%s7389 + $0xc] sm:$0xf]
    %v7394 = vld [vmem:[%s7389 + $0x10] sm:$0xf]
    %v7395 = vld [vmem:[%s7389 + $0x14] sm:$0xf]
    %v7396 = vld [vmem:[%s7389 + $0x18] sm:$0xf]
    %v7397 = vld [vmem:[%s7389 + $0x1c] sm:$0xf]
    %v7398 = vld [vmem:[%s7389 + $0x20] sm:$0xf]
    %v7399 = vld [vmem:[%s7389 + $0x24] sm:$0xf]
    %v7400 = vld [vmem:[%s7389 + $0x28] sm:$0xf]
    %v7401 = vld [vmem:[%s7389 + $0x2c] sm:$0xf]
    %v7402 = vld [vmem:[%s7389 + $0x30] sm:$0xf]
    %v7403 = vld [vmem:[%s7389 + $0x34] sm:$0xf]
    %v7404 = vld [vmem:[%s7389 + $0x38] sm:$0xf]
    %v7405 = vld [vmem:[%s7389 + $0x3c] sm:$0xf]
    %vm7412 = vcmask 1043456
    %v7413 = vrot.slane %v7387, 4
    %v7414 = vrot.slane %v7366, 4
    %v7415 = vsel %vm7412, %v7413, %v7414
    %v7416 = vrot.slane %v7367, 4
    %v7417 = vsel %vm7412, %v7414, %v7416
    %v7418 = vrot.slane %v7368, 4
    %v7419 = vsel %vm7412, %v7416, %v7418
    %v7420 = vrot.slane %v7369, 4
    %v7421 = vsel %vm7412, %v7418, %v7420
    %v7422 = vrot.slane %v7388, 4
    %v7423 = vsel %vm7412, %v7420, %v7422
    %v7445 = vunpack.c.l.b16 %v7390
    %v7446 = vunpack.c.l.b16 %v7391
    %v7447 = vunpack.c.l.b16 %v7392
    %v7448 = vunpack.c.l.b16 %v7393
    %v7449 = vunpack.c.l.b16 %v7394
    %v7450 = vunpack.c.l.b16 %v7395
    %v7451 = vunpack.c.l.b16 %v7396
    %v7452 = vunpack.c.l.b16 %v7397
    %v7453 = vunpack.c.l.b16 %v7398
    %v7454 = vunpack.c.l.b16 %v7399
    %v7455 = vunpack.c.l.b16 %v7400
    %v7456 = vunpack.c.l.b16 %v7401
    %v7457 = vunpack.c.l.b16 %v7402
    %v7458 = vunpack.c.l.b16 %v7403
    %v7459 = vunpack.c.l.b16 %v7404
    %v7460 = vunpack.c.l.b16 %v7405
    %v7461 = vpack.c.b16 %v7446, %v7445
    %v7462 = vpack.c.b16 %v7448, %v7447
    %v7463 = vpack.c.b16 %v7450, %v7449
    %v7464 = vpack.c.b16 %v7452, %v7451
    %v7465 = vpack.c.b16 %v7454, %v7453
    %v7466 = vpack.c.b16 %v7456, %v7455
    %v7467 = vpack.c.b16 %v7458, %v7457
    %v7468 = vpack.c.b16 %v7460, %v7459
    %7477 = vmatprep.subr.bf16.mxu0 0
    %7478 = vmatpush1.bf16.msra.mxu0 %v7461
    %7479 = vmatprep.subr.bf16.mxu0 0
    %7480 = vmatpush1.bf16.msra.mxu0 %v7462
    %7481 = vmatprep.subr.bf16.mxu0 0
    %7482 = vmatpush1.bf16.msra.mxu0 %v7463
    %7483 = vmatprep.subr.bf16.mxu0 0
    %7484 = vmatpush1.bf16.msra.mxu0 %v7464
    %7485 = vmatprep.subr.bf16.mxu0 0
    %7486 = vmatpush1.bf16.msra.mxu0 %v7465
    %7487 = vmatprep.subr.bf16.mxu0 0
    %7488 = vmatpush1.bf16.msra.mxu0 %v7466
    %7489 = vmatprep.subr.bf16.mxu0 0
    %7490 = vmatpush1.bf16.msra.mxu0 %v7467
    %7491 = vmatprep.subr.bf16.mxu0 0
    %7492 = vmatpush1.bf16.msra.mxu0 %v7468
    %7493 = vmatprep.subr.bf16.mxu0 0
    %7494 = vmatpush1.bf16.msra.mxu0 0
    %7495 = vmatprep.subr.bf16.mxu0 0
    %7496 = vmatpush1.bf16.msra.mxu0 0
    %7497 = vmatprep.subr.bf16.mxu0 0
    %7498 = vmatpush1.bf16.msra.mxu0 0
    %7499 = vmatprep.subr.bf16.mxu0 0
    %7500 = vmatpush1.bf16.msra.mxu0 0
    %7501 = vmatprep.subr.bf16.mxu0 0
    %7502 = vmatpush1.bf16.msra.mxu0 0
    %7503 = vmatprep.subr.bf16.mxu0 0
    %7504 = vmatpush1.bf16.msra.mxu0 0
    %7505 = vmatprep.subr.bf16.mxu0 0
    %7506 = vmatpush1.bf16.msra.mxu0 0
    %7507 = vmatprep.subr.bf16.mxu0 0
    %7508 = vmatpush1.bf16.msra.mxu0 0
    %7509 = vmatprep.mubr.bf16.mxu0 0
    %7510 = vmatmul.mubr.bf16.gmra.mrb[0].mxu0 %v7415
    %v7511 = vpop.f32.mrb[0].mxu0
    %v7512 = vadd.f32 0.0, %v7511
    %v7513 = vpop.f32.mrb[0].mxu0
    %v7514 = vpop.f32.mrb[0].mxu0
    %v7515 = vadd.f32 0.0, %v7514
    %v7516 = vpop.f32.mrb[0].mxu0
    %7517 = vmatprep.mubr.bf16.mxu0 0
    %7518 = vmatmul.mubr.bf16.gmra.mrb[0].mxu0 %v7417
    %v7519 = vpop.f32.mrb[0].mxu0
    %v7520 = vadd.f32 0.0, %v7519
    %v7521 = vpop.f32.mrb[0].mxu0
    %v7522 = vpop.f32.mrb[0].mxu0
    %v7523 = vadd.f32 0.0, %v7522
    %v7524 = vpop.f32.mrb[0].mxu0
    %7525 = vmatprep.mubr.bf16.mxu0 0
    %7526 = vmatmul.mubr.bf16.gmra.mrb[0].mxu0 %v7419
    %v7527 = vpop.f32.mrb[0].mxu0
    %v7528 = vadd.f32 0.0, %v7527
    %v7529 = vpop.f32.mrb[0].mxu0
    %v7530 = vpop.f32.mrb[0].mxu0
    %v7531 = vadd.f32 0.0, %v7530
    %v7532 = vpop.f32.mrb[0].mxu0
    %7533 = vmatprep.mubr.bf16.mxu0 0
    %7534 = vmatmul.mubr.bf16.gmra.mrb[0].mxu0 %v7421
    %v7535 = vpop.f32.mrb[0].mxu0
    %v7536 = vadd.f32 0.0, %v7535
    %v7537 = vpop.f32.mrb[0].mxu0
    %v7538 = vpop.f32.mrb[0].mxu0
    %v7539 = vadd.f32 0.0, %v7538
    %v7540 = vpop.f32.mrb[0].mxu0
    %7541 = vmatprep.mubr.bf16.mxu0 0
    %7542 = vmatmul.mubr.bf16.gmra.mrb[0].mxu0 %v7423
    %v7543 = vpop.f32.mrb[0].mxu0
    %v7544 = vadd.f32 0.0, %v7543
    %v7545 = vpop.f32.mrb[0].mxu0
    %v7546 = vpop.f32.mrb[0].mxu0
    %v7547 = vadd.f32 0.0, %v7546
    %v7548 = vpop.f32.mrb[0].mxu0
    %7549 = vdwg.mxu0
    %v7566 = vunpack.c.l.b16 %v7371
    %v7567 = vunpack.c.l.b16 %v7372
    %v7568 = vunpack.c.l.b16 %v7373
    %v7569 = vunpack.c.l.b16 %v7374
    %v7570 = vunpack.c.l.b16 %v7375
    %v7571 = vunpack.c.l.b16 %v7376
    %v7572 = vunpack.c.l.b16 %v7377
    %v7573 = vunpack.c.l.b16 %v7378
    %v7574 = vunpack.c.l.b16 %v7379
    %v7575 = vunpack.c.l.b16 %v7380
    %v7576 = vunpack.c.l.b16 %v7381
    %v7577 = vunpack.c.l.b16 %v7382
    %v7578 = vunpack.c.l.b16 %v7383
    %v7579 = vunpack.c.l.b16 %v7384
    %v7580 = vunpack.c.l.b16 %v7385
    %v7581 = vunpack.c.l.b16 %v7386
    %v7582 = vpack.c.b16 %v7567, %v7566
    %v7583 = vpack.c.b16 %v7569, %v7568
    %v7584 = vpack.c.b16 %v7571, %v7570
    %v7585 = vpack.c.b16 %v7573, %v7572
    %v7586 = vpack.c.b16 %v7575, %v7574
    %v7587 = vpack.c.b16 %v7577, %v7576
    %v7588 = vpack.c.b16 %v7579, %v7578
    %v7589 = vpack.c.b16 %v7581, %v7580
    %7598 = vmatprep.subr.bf16.mxu0 0
    %7599 = vmatpush1.bf16.msra.mxu0 %v7582
    %7600 = vmatprep.subr.bf16.mxu0 0
    %7601 = vmatpush1.bf16.msra.mxu0 %v7583
    %7602 = vmatprep.subr.bf16.mxu0 0
    %7603 = vmatpush1.bf16.msra.mxu0 %v7584
    %7604 = vmatprep.subr.bf16.mxu0 0
    %7605 = vmatpush1.bf16.msra.mxu0 %v7585
    %7606 = vmatprep.subr.bf16.mxu0 0
    %7607 = vmatpush1.bf16.msra.mxu0 %v7586
    %7608 = vmatprep.subr.bf16.mxu0 0
    %7609 = vmatpush1.bf16.msra.mxu0 %v7587
    %7610 = vmatprep.subr.bf16.mxu0 0
    %7611 = vmatpush1.bf16.msra.mxu0 %v7588
    %7612 = vmatprep.subr.bf16.mxu0 0
    %7613 = vmatpush1.bf16.msra.mxu0 %v7589
    %7614 = vmatprep.subr.bf16.mxu0 0
    %7615 = vmatpush1.bf16.msra.mxu0 0
    %7616 = vmatprep.subr.bf16.mxu0 0
    %7617 = vmatpush1.bf16.msra.mxu0 0
    %7618 = vmatprep.subr.bf16.mxu0 0
    %7619 = vmatpush1.bf16.msra.mxu0 0
    %7620 = vmatprep.subr.bf16.mxu0 0
    %7621 = vmatpush1.bf16.msra.mxu0 0
    %7622 = vmatprep.subr.bf16.mxu0 0
    %7623 = vmatpush1.bf16.msra.mxu0 0
    %7624 = vmatprep.subr.bf16.mxu0 0
    %7625 = vmatpush1.bf16.msra.mxu0 0
    %7626 = vmatprep.subr.bf16.mxu0 0
    %7627 = vmatpush1.bf16.msra.mxu0 0
    %7628 = vmatprep.subr.bf16.mxu0 0
    %7629 = vmatpush1.bf16.msra.mxu0 0
    %7630 = vmatprep.mubr.bf16.mxu0 0
    %7631 = vmatmul.mubr.bf16.gmra.mrb[0].mxu0 %v7365
    %v7632 = vpop.f32.mrb[0].mxu0
    %v7633 = vadd.f32 %v7512, %v7632
    %v7634 = vpop.f32.mrb[0].mxu0
    %v7635 = vpop.f32.mrb[0].mxu0
    %v7636 = vadd.f32 %v7515, %v7635
    %v7637 = vpop.f32.mrb[0].mxu0
    %7638 = vmatprep.mubr.bf16.mxu0 0
    %7639 = vmatmul.mubr.bf16.gmra.mrb[0].mxu0 %v7366
    %v7640 = vpop.f32.mrb[0].mxu0
    %v7641 = vadd.f32 %v7520, %v7640
    %v7642 = vpop.f32.mrb[0].mxu0
    %v7643 = vpop.f32.mrb[0].mxu0
    %v7644 = vadd.f32 %v7523, %v7643
    %v7645 = vpop.f32.mrb[0].mxu0
    %7646 = vmatprep.mubr.bf16.mxu0 0
    %7647 = vmatmul.mubr.bf16.gmra.mrb[0].mxu0 %v7367
    %v7648 = vpop.f32.mrb[0].mxu0
    %v7649 = vadd.f32 %v7528, %v7648
    %v7650 = vpop.f32.mrb[0].mxu0
    %v7651 = vpop.f32.mrb[0].mxu0
    %v7652 = vadd.f32 %v7531, %v7651
    %v7653 = vpop.f32.mrb[0].mxu0
    %7654 = vmatprep.mubr.bf16.mxu0 0
    %7655 = vmatmul.mubr.bf16.gmra.mrb[0].mxu0 %v7368
    %v7656 = vpop.f32.mrb[0].mxu0
    %v7657 = vadd.f32 %v7536, %v7656
    %v7658 = vpop.f32.mrb[0].mxu0
    %v7659 = vpop.f32.mrb[0].mxu0
    %v7660 = vadd.f32 %v7539, %v7659
    %v7661 = vpop.f32.mrb[0].mxu0
    %7662 = vmatprep.mubr.bf16.mxu0 0
    %7663 = vmatmul.mubr.bf16.gmra.mrb[0].mxu0 %v7369
    %v7664 = vpop.f32.mrb[0].mxu0
    %v7665 = vadd.f32 %v7544, %v7664
    %v7666 = vpop.f32.mrb[0].mxu0
    %v7667 = vpop.f32.mrb[0].mxu0
    %v7668 = vadd.f32 %v7547, %v7667
    %v7669 = vpop.f32.mrb[0].mxu0
    %7670 = vdwg.mxu0
    %v7671 = vld [vmem:[#allocation4 + $0x28] sm:$0xff]
    %s7672 = scalar_lea.vmem %s2, 512
    %v7673 = vld [vmem:[%s7672] sm:$0xf]
    %v7674 = vld [vmem:[%s7672 + $0x4] sm:$0xf]
    %v7675 = vld [vmem:[%s7672 + $0x8] sm:$0xf]
    %v7676 = vld [vmem:[%s7672 + $0xc] sm:$0xf]
    %v7677 = vld [vmem:[%s7672 + $0x10] sm:$0xf]
    %v7678 = vld [vmem:[%s7672 + $0x14] sm:$0xf]
    %v7679 = vld [vmem:[%s7672 + $0x18] sm:$0xf]
    %v7680 = vld [vmem:[%s7672 + $0x1c] sm:$0xf]
    %v7681 = vld [vmem:[%s7672 + $0x20] sm:$0xf]
    %v7682 = vld [vmem:[%s7672 + $0x24] sm:$0xf]
    %v7683 = vld [vmem:[%s7672 + $0x28] sm:$0xf]
    %v7684 = vld [vmem:[%s7672 + $0x2c] sm:$0xf]
    %v7685 = vld [vmem:[%s7672 + $0x30] sm:$0xf]
    %v7686 = vld [vmem:[%s7672 + $0x34] sm:$0xf]
    %v7687 = vld [vmem:[%s7672 + $0x38] sm:$0xf]
    %v7688 = vld [vmem:[%s7672 + $0x3c] sm:$0xf]
    %v7705 = vunpack.c.l.b16 %v7673
    %v7706 = vunpack.c.l.b16 %v7674
    %v7707 = vunpack.c.l.b16 %v7675
    %v7708 = vunpack.c.l.b16 %v7676
    %v7709 = vunpack.c.l.b16 %v7677
    %v7710 = vunpack.c.l.b16 %v7678
    %v7711 = vunpack.c.l.b16 %v7679
    %v7712 = vunpack.c.l.b16 %v7680
    %v7713 = vunpack.c.l.b16 %v7681
    %v7714 = vunpack.c.l.b16 %v7682
    %v7715 = vunpack.c.l.b16 %v7683
    %v7716 = vunpack.c.l.b16 %v7684
    %v7717 = vunpack.c.l.b16 %v7685
    %v7718 = vunpack.c.l.b16 %v7686
    %v7719 = vunpack.c.l.b16 %v7687
    %v7720 = vunpack.c.l.b16 %v7688
    %v7721 = vpack.c.b16 %v7706, %v7705
    %v7722 = vpack.c.b16 %v7708, %v7707
    %v7723 = vpack.c.b16 %v7710, %v7709
    %v7724 = vpack.c.b16 %v7712, %v7711
    %v7725 = vpack.c.b16 %v7714, %v7713
    %v7726 = vpack.c.b16 %v7716, %v7715
    %v7727 = vpack.c.b16 %v7718, %v7717
    %v7728 = vpack.c.b16 %v7720, %v7719
    %7737 = vmatprep.subr.bf16.mxu0 0
    %7738 = vmatpush1.bf16.msra.mxu0 %v7721
    %7739 = vmatprep.subr.bf16.mxu0 0
    %7740 = vmatpush1.bf16.msra.mxu0 %v7722
    %7741 = vmatprep.subr.bf16.mxu0 0
    %7742 = vmatpush1.bf16.msra.mxu0 %v7723
    %7743 = vmatprep.subr.bf16.mxu0 0
    %7744 = vmatpush1.bf16.msra.mxu0 %v7724
    %7745 = vmatprep.subr.bf16.mxu0 0
    %7746 = vmatpush1.bf16.msra.mxu0 %v7725
    %7747 = vmatprep.subr.bf16.mxu0 0
    %7748 = vmatpush1.bf16.msra.mxu0 %v7726
    %7749 = vmatprep.subr.bf16.mxu0 0
    %7750 = vmatpush1.bf16.msra.mxu0 %v7727
    %7751 = vmatprep.subr.bf16.mxu0 0
    %7752 = vmatpush1.bf16.msra.mxu0 %v7728
    %7753 = vmatprep.subr.bf16.mxu0 0
    %7754 = vmatpush1.bf16.msra.mxu0 0
    %7755 = vmatprep.subr.bf16.mxu0 0
    %7756 = vmatpush1.bf16.msra.mxu0 0
    %7757 = vmatprep.subr.bf16.mxu0 0
    %7758 = vmatpush1.bf16.msra.mxu0 0
    %7759 = vmatprep.subr.bf16.mxu0 0
    %7760 = vmatpush1.bf16.msra.mxu0 0
    %7761 = vmatprep.subr.bf16.mxu0 0
    %7762 = vmatpush1.bf16.msra.mxu0 0
    %7763 = vmatprep.subr.bf16.mxu0 0
    %7764 = vmatpush1.bf16.msra.mxu0 0
    %7765 = vmatprep.subr.bf16.mxu0 0
    %7766 = vmatpush1.bf16.msra.mxu0 0
    %7767 = vmatprep.subr.bf16.mxu0 0
    %7768 = vmatpush1.bf16.msra.mxu0 0
    %7769 = vmatprep.mubr.bf16.mxu0 0
    %7770 = vmatmul.mubr.bf16.gmra.mrb[0].mxu0 %v7366
    %v7771 = vpop.f32.mrb[0].mxu0
    %v7772 = vadd.f32 0.0, %v7771
    %v7773 = vpop.f32.mrb[0].mxu0
    %v7774 = vpop.f32.mrb[0].mxu0
    %v7775 = vadd.f32 0.0, %v7774
    %v7776 = vpop.f32.mrb[0].mxu0
    %7777 = vmatprep.mubr.bf16.mxu0 0
    %7778 = vmatmul.mubr.bf16.gmra.mrb[0].mxu0 %v7367
    %v7779 = vpop.f32.mrb[0].mxu0
    %v7780 = vadd.f32 0.0, %v7779
    %v7781 = vpop.f32.mrb[0].mxu0
    %v7782 = vpop.f32.mrb[0].mxu0
    %v7783 = vadd.f32 0.0, %v7782
    %v7784 = vpop.f32.mrb[0].mxu0
    %7785 = vmatprep.mubr.bf16.mxu0 0
    %7786 = vmatmul.mubr.bf16.gmra.mrb[0].mxu0 %v7368
    %v7787 = vpop.f32.mrb[0].mxu0
    %v7788 = vadd.f32 0.0, %v7787
    %v7789 = vpop.f32.mrb[0].mxu0
    %v7790 = vpop.f32.mrb[0].mxu0
    %v7791 = vadd.f32 0.0, %v7790
    %v7792 = vpop.f32.mrb[0].mxu0
    %7793 = vmatprep.mubr.bf16.mxu0 0
    %7794 = vmatmul.mubr.bf16.gmra.mrb[0].mxu0 %v7369
    %v7795 = vpop.f32.mrb[0].mxu0
    %v7796 = vadd.f32 0.0, %v7795
    %v7797 = vpop.f32.mrb[0].mxu0
    %v7798 = vpop.f32.mrb[0].mxu0
    %v7799 = vadd.f32 0.0, %v7798
    %v7800 = vpop.f32.mrb[0].mxu0
    %7801 = vmatprep.mubr.bf16.mxu0 0
    %7802 = vmatmul.mubr.bf16.gmra.mrb[0].mxu0 %v7671
    %v7803 = vpop.f32.mrb[0].mxu0
    %v7804 = vadd.f32 0.0, %v7803
    %v7805 = vpop.f32.mrb[0].mxu0
    %v7806 = vpop.f32.mrb[0].mxu0
    %v7807 = vadd.f32 0.0, %v7806
    %v7808 = vpop.f32.mrb[0].mxu0
    %7809 = vdwg.mxu0
    %v7810 = vadd.f32 %v7633, %v7772
    %v7811 = vadd.f32 %v7636, %v7775
    %v7812 = vadd.f32 %v7641, %v7780
    %v7813 = vadd.f32 %v7644, %v7783
    %v7814 = vadd.f32 %v7649, %v7788
    %v7815 = vadd.f32 %v7652, %v7791
    %v7816 = vadd.f32 %v7657, %v7796
    %v7817 = vadd.f32 %v7660, %v7799
    %v7818 = vadd.f32 %v7665, %v7804
    %v7819 = vadd.f32 %v7668, %v7807
    %7820 = vst.msk [vmem:[#allocation2] sm:$0xff] %vm37, %v7810
    %7821 = vst.msk [vmem:[#allocation2 + $0x8] sm:$0xff] %vm37, %v7811
    %7822 = vst.msk [vmem:[#allocation2 + $0x10] sm:$0xff] %vm37, %v7812
    %7823 = vst.msk [vmem:[#allocation2 + $0x18] sm:$0xff] %vm37, %v7813
    %7824 = vst.msk [vmem:[#allocation2 + $0x20] sm:$0xff] %vm37, %v7814
    %7825 = vst.msk [vmem:[#allocation2 + $0x28] sm:$0xff] %vm37, %v7815
    %7826 = vst.msk [vmem:[#allocation2 + $0x30] sm:$0xff] %vm37, %v7816
    %7827 = vst.msk [vmem:[#allocation2 + $0x38] sm:$0xff] %vm37, %v7817
    %7828 = vst.msk [vmem:[#allocation2 + $0x40] sm:$0xff] %vm37, %v7818
    %7829 = vst.msk [vmem:[#allocation2 + $0x48] sm:$0xff] %vm37, %v7819
    %v7830 = vld [vmem:[#allocation2] ss:$2 sm:$0xff]
    %v7831 = vld [vmem:[%s4993] ss:$2 sm:$0xff]
    %v7832 = vld [vmem:[%s4995] ss:$2 sm:$0xff]
    %v7833 = vld [vmem:[%s4997] ss:$2 sm:$0xff]
    %v7834 = vld [vmem:[%s4999] ss:$2 sm:$0xff]
    %v7835 = vld [vmem:[%s5103] ss:$2 sm:$0xff]
    %v7836 = vld [vmem:[%s5105] ss:$2 sm:$0xff]
    %v7837 = vld [vmem:[%s5107] ss:$2 sm:$0xff]
    %v7838 = vld [vmem:[%s5109] ss:$2 sm:$0xff]
    %v7839 = vld [vmem:[%s5111] ss:$2 sm:$0xff]
    %v7840 = vmax.f32 %v7830, %v7835
    %v7841 = vmax.f32 %v7831, %v7836
    %v7842 = vmax.f32 %v7832, %v7837
    %v7843 = vmax.f32 %v7833, %v7838
    %v7844 = vmax.f32 %v7834, %v7839
    %7845 = vst.msk [vmem:[#allocation3] sm:$0xff] %vm37, %v7840
    %7846 = vst.msk [vmem:[#allocation3 + $0x8] sm:$0xff] %vm37, %v7841
    %7847 = vst.msk [vmem:[#allocation3 + $0x10] sm:$0xff] %vm37, %v7842
    %7848 = vst.msk [vmem:[#allocation3 + $0x18] sm:$0xff] %vm37, %v7843
    %7849 = vst.msk [vmem:[#allocation3 + $0x20] sm:$0xff] %vm37, %v7844
    %s7850 = scalar_lea.vmem %s4, 2
    %v7851 = vld [vmem:[%s7850] sm:$0x1]
    %s7852 = scalar_lea.vmem %s5, 2
    %v7853 = vld [vmem:[%s7852] sm:$0x1]
    %v7854 = vld [vmem:[#allocation3] sm:$0xff]
    %v7855 = vld [vmem:[#allocation3 + $0x8] sm:$0xff]
    %v7856 = vld [vmem:[#allocation3 + $0x10] sm:$0xff]
    %v7857 = vld [vmem:[#allocation3 + $0x18] sm:$0xff]
    %v7858 = vld [vmem:[#allocation3 + $0x20] sm:$0xf]
    %v7859 = vld [vmem:[#allocation3 + $0x4] sm:$0xff]
    %v7860 = vld [vmem:[#allocation3 + $0xc] sm:$0xff]
    %v7861 = vld [vmem:[#allocation3 + $0x14] sm:$0xff]
    %v7862 = vld [vmem:[#allocation3 + $0x1c] sm:$0xff]
    %v7863 = vld [vmem:[#allocation3 + $0x24] sm:$0xf]
    %v7864 = vmax.f32 %v7854, %v7859
    %v7865 = vmax.f32 %v7855, %v7860
    %v7866 = vmax.f32 %v7856, %v7861
    %v7867 = vmax.f32 %v7857, %v7862
    %v7868 = vmax.f32 %v7858, %v7863
    %v7870 = vlaneseq
    %v7871 = vshrl.u32 %v7870, 7
    %v7872 = vsub.s32 0, %v7871
    %v7873 = vrot.slane %v7851, %v7872
    %v7875 = vmul.f32 %v7864, %v7873
    %v7876 = vmul.f32 %v7865, %v7873
    %v7877 = vmul.f32 %v7866, %v7873
    %v7878 = vmul.f32 %v7867, %v7873
    %v7879 = vmul.f32 %v7868, %v7873
    %v7881 = vlaneseq
    %v7882 = vshrl.u32 %v7881, 7
    %v7883 = vsub.s32 0, %v7882
    %v7884 = vrot.slane %v7853, %v7883
    %v7886 = vadd.f32 %v7875, %v7884
    %v7887 = vadd.f32 %v7876, %v7884
    %v7888 = vadd.f32 %v7877, %v7884
    %v7889 = vadd.f32 %v7878, %v7884
    %v7890 = vadd.f32 %v7879, %v7884
    %v7891 = vmax.f32 %v7886, 0.0
    %v7892 = vmax.f32 %v7887, 0.0
    %v7893 = vmax.f32 %v7888, 0.0
    %v7894 = vmax.f32 %v7889, 0.0
    %v7895 = vmax.f32 %v7890, 0.0
    %7896 = vst.msk [vmem:[#allocation2] sm:$0xff] %vm37, %v7891
    %7897 = vst.msk [vmem:[#allocation2 + $0x8] sm:$0xff] %vm37, %v7892
    %7898 = vst.msk [vmem:[#allocation2 + $0x10] sm:$0xff] %vm37, %v7893
    %7899 = vst.msk [vmem:[#allocation2 + $0x18] sm:$0xff] %vm37, %v7894
    %7900 = vst.msk [vmem:[#allocation2 + $0x20] sm:$0xf] %vm679, %v7895
    %v7901 = vld [vmem:[#allocation2] sm:$0x1]
    %vm7902 = vcmask 253952
    %7903 = vst.msk [vmem:[#allocation5] sm:$0x1] %vm7902, %v7901
    %v7904 = vld [vmem:[#allocation2 + $0x1] sm:$0x1]
    %7906 = vrot.lane.b32.xlu0 %v7904, 32
    %v7907 = vpop.permute.xlu0 %7906
    %vm7909 = vcmask 516352
    %7910 = vst.msk [vmem:[#allocation5] sm:$0x1] %vm7909, %v7907
    %v7911 = vld [vmem:[#allocation2 + $0x2] sm:$0x1]
    %7913 = vrot.lane.b32.xlu0 %v7911, 64
    %v7914 = vpop.permute.xlu0 %7913
    %vm7916 = vcmask 778752
    %7917 = vst.msk [vmem:[#allocation5] sm:$0x1] %vm7916, %v7914
    %v7918 = vld [vmem:[#allocation2 + $0x14] sm:$0x1]
    %7919 = vst.msk [vmem:[#allocation5 + $0x1] sm:$0x1] %vm7902, %v7918
    %v7920 = vld [vmem:[#allocation2 + $0x15] sm:$0x1]
    %7922 = vrot.lane.b32.xlu0 %v7920, 32
    %v7923 = vpop.permute.xlu0 %7922
    %7925 = vst.msk [vmem:[#allocation5 + $0x1] sm:$0x1] %vm7909, %v7923
    %v7926 = vld [vmem:[#allocation2 + $0x16] sm:$0x1]
    %7928 = vrot.lane.b32.xlu0 %v7926, 64
    %v7929 = vpop.permute.xlu0 %7928
    %7931 = vst.msk [vmem:[#allocation5 + $0x1] sm:$0x1] %vm7916, %v7929
    %v7932 = vld [vmem:[%s1] sm:$0xf]
    %v7933 = vld [vmem:[%s1 + $0x4] sm:$0xf]
    %v7934 = vld [vmem:[%s1 + $0x8] sm:$0xf]
    %v7935 = vld [vmem:[%s1 + $0xc] sm:$0xf]
    %v7936 = vld [vmem:[%s1 + $0x10] sm:$0x3]
    %v7942 = vunpack.c.l.b16 %v7932
    %v7943 = vunpack.c.l.b16 %v7933
    %v7944 = vunpack.c.l.b16 %v7934
    %v7945 = vunpack.c.l.b16 %v7935
    %v7946 = vunpack.c.l.b16 %v7936
    %v7947 = vpack.c.b16 %v7943, %v7942
    %v7948 = vpack.c.b16 %v7945, %v7944
    %v7949 = vpack.c.b16 %v7946, %v7946
    %7953 = vst.msk [vmem:[#allocation4] sm:$0xff] %vm37, %v7947
    %7954 = vst.msk [vmem:[#allocation4 + $0x8] sm:$0xff] %vm37, %v7948
    %7955 = vst.msk [vmem:[#allocation4 + $0x10] sm:$0x3] %vm5326, %v7949
    %v7956 = vld [vmem:[%s1] sm:$0xf]
    %v7957 = vld [vmem:[%s1 + $0x4] sm:$0xf]
    %v7958 = vld [vmem:[%s1 + $0x8] sm:$0xf]
    %v7959 = vld [vmem:[%s1 + $0xc] sm:$0xf]
    %v7960 = vld [vmem:[%s1 + $0x10] sm:$0x7]
    %v7966 = vunpack.c.l.b16 %v7956
    %v7967 = vunpack.c.l.b16 %v7957
    %v7968 = vunpack.c.l.b16 %v7958
    %v7969 = vunpack.c.l.b16 %v7959
    %v7970 = vunpack.c.l.b16 %v7960
    %v7971 = vpack.c.b16 %v7967, %v7966
    %v7972 = vpack.c.b16 %v7969, %v7968
    %v7973 = vpack.c.b16 %v7970, %v7970
    %v7975 = vshrl.u32 %v7971, 16
    %v7977 = vshll.u32 %v7971, 16
    %v7979 = vrot.slane %v7977, 1
    %v7980 = vor.u32 %v7975, %v7979
    %v7982 = vshll.u32 %v7972, 16
    %v7984 = vrot.slane %v7982, 1
    %v7985 = vsel %vm1094, %v7980, %v7984
    %v7986 = vshrl.u32 %v7972, 16
    %v7988 = vor.u32 %v7986, %v7984
    %v7990 = vshll.u32 %v7973, 16
    %v7992 = vrot.slane %v7990, 1
    %v7993 = vsel %vm1094, %v7988, %v7992
    %v7994 = vshrl.u32 %v7973, 16
    %v7996 = vor.u32 %v7994, %v7992
    %7997 = vrot.lane.b32.xlu0 %v7985, 32
    %v7998 = vpop.permute.xlu0 %7997
    %7999 = vrot.lane.b32.xlu0 %v7993, 32
    %v8000 = vpop.permute.xlu0 %7999
    %8001 = vrot.lane.b32.xlu0 %v7996, 32
    %v8002 = vpop.permute.xlu0 %8001
    %8006 = vst.msk [vmem:[#allocation4] sm:$0xff] %vm1743, %v7998
    %8007 = vst.msk [vmem:[#allocation4 + $0x8] sm:$0xff] %vm1743, %v8000
    %vm8008 = vcmask 517376
    %8009 = vst.msk [vmem:[#allocation4 + $0x10] sm:$0x3] %vm8008, %v8002
    %v8010 = vld [vmem:[%s1] sm:$0xe]
    %v8011 = vld [vmem:[%s1 + $0x4] sm:$0xf]
    %v8012 = vld [vmem:[%s1 + $0x8] sm:$0xf]
    %v8013 = vld [vmem:[%s1 + $0xc] sm:$0xf]
    %v8014 = vld [vmem:[%s1 + $0x10] sm:$0x7]
    %v8020 = vunpack.c.l.b16 %v8010
    %v8021 = vunpack.c.l.b16 %v8011
    %v8022 = vunpack.c.l.b16 %v8012
    %v8023 = vunpack.c.l.b16 %v8013
    %v8024 = vunpack.c.l.b16 %v8014
    %v8025 = vpack.c.b16 %v8021, %v8020
    %v8026 = vpack.c.b16 %v8023, %v8022
    %v8027 = vpack.c.b16 %v8024, %v8024
    %v8028 = vrot.slane %v8025, 1
    %v8029 = vrot.slane %v8026, 1
    %v8030 = vsel %vm2217, %v8028, %v8029
    %v8031 = vrot.slane %v8027, 1
    %v8032 = vsel %vm2217, %v8029, %v8031
    %8033 = vrot.lane.b32.xlu0 %v8030, 64
    %v8034 = vpop.permute.xlu0 %8033
    %8035 = vrot.lane.b32.xlu0 %v8032, 64
    %v8036 = vpop.permute.xlu0 %8035
    %8037 = vrot.lane.b32.xlu0 %v8031, 64
    %v8038 = vpop.permute.xlu0 %8037
    %8042 = vst.msk [vmem:[#allocation4] sm:$0xff] %vm2512, %v8034
    %8043 = vst.msk [vmem:[#allocation4 + $0x8] sm:$0xff] %vm2512, %v8036
    %vm8044 = vcmask 779776
    %8045 = vst.msk [vmem:[#allocation4 + $0x10] sm:$0x3] %vm8044, %v8038
    %v8046 = vld [vmem:[#allocation4] sm:$0xff]
    %v8047 = vld [vmem:[#allocation4 + $0x8] sm:$0xff]
    %v8048 = vld [vmem:[#allocation4 + $0x10] sm:$0x3]
    %v8049 = vld [vmem:[%s3] sm:$0xf]
    %v8050 = vld [vmem:[%s3 + $0x4] sm:$0xf]
    %v8051 = vld [vmem:[%s3 + $0x8] sm:$0xf]
    %v8052 = vld [vmem:[%s3 + $0xc] sm:$0xf]
    %v8053 = vld [vmem:[%s3 + $0x10] sm:$0xf]
    %v8054 = vld [vmem:[%s3 + $0x14] sm:$0xf]
    %v8055 = vld [vmem:[%s3 + $0x18] sm:$0xf]
    %v8056 = vld [vmem:[%s3 + $0x1c] sm:$0xf]
    %v8057 = vld [vmem:[%s3 + $0x20] sm:$0xf]
    %v8058 = vld [vmem:[%s3 + $0x24] sm:$0xf]
    %v8059 = vld [vmem:[%s3 + $0x28] sm:$0xf]
    %v8060 = vld [vmem:[%s3 + $0x2c] sm:$0xf]
    %v8061 = vld [vmem:[%s3 + $0x30] sm:$0xf]
    %v8062 = vld [vmem:[%s3 + $0x34] sm:$0xf]
    %v8063 = vld [vmem:[%s3 + $0x38] sm:$0xf]
    %v8064 = vld [vmem:[%s3 + $0x3c] sm:$0xf]
    %v8081 = vunpack.c.l.b16 %v8049
    %v8082 = vunpack.c.l.b16 %v8050
    %v8083 = vunpack.c.l.b16 %v8051
    %v8084 = vunpack.c.l.b16 %v8052
    %v8085 = vunpack.c.l.b16 %v8053
    %v8086 = vunpack.c.l.b16 %v8054
    %v8087 = vunpack.c.l.b16 %v8055
    %v8088 = vunpack.c.l.b16 %v8056
    %v8089 = vunpack.c.l.b16 %v8057
    %v8090 = vunpack.c.l.b16 %v8058
    %v8091 = vunpack.c.l.b16 %v8059
    %v8092 = vunpack.c.l.b16 %v8060
    %v8093 = vunpack.c.l.b16 %v8061
    %v8094 = vunpack.c.l.b16 %v8062
    %v8095 = vunpack.c.l.b16 %v8063
    %v8096 = vunpack.c.l.b16 %v8064
    %v8097 = vpack.c.b16 %v8082, %v8081
    %v8098 = vpack.c.b16 %v8084, %v8083
    %v8099 = vpack.c.b16 %v8086, %v8085
    %v8100 = vpack.c.b16 %v8088, %v8087
    %v8101 = vpack.c.b16 %v8090, %v8089
    %v8102 = vpack.c.b16 %v8092, %v8091
    %v8103 = vpack.c.b16 %v8094, %v8093
    %v8104 = vpack.c.b16 %v8096, %v8095
    %8113 = vmatprep.subr.bf16.mxu0 0
    %8114 = vmatpush1.bf16.msra.mxu0 %v8097
    %8115 = vmatprep.subr.bf16.mxu0 0
    %8116 = vmatpush1.bf16.msra.mxu0 %v8098
    %8117 = vmatprep.subr.bf16.mxu0 0
    %8118 = vmatpush1.bf16.msra.mxu0 %v8099
    %8119 = vmatprep.subr.bf16.mxu0 0
    %8120 = vmatpush1.bf16.msra.mxu0 %v8100
    %8121 = vmatprep.subr.bf16.mxu0 0
    %8122 = vmatpush1.bf16.msra.mxu0 %v8101
    %8123 = vmatprep.subr.bf16.mxu0 0
    %8124 = vmatpush1.bf16.msra.mxu0 %v8102
    %8125 = vmatprep.subr.bf16.mxu0 0
    %8126 = vmatpush1.bf16.msra.mxu0 %v8103
    %8127 = vmatprep.subr.bf16.mxu0 0
    %8128 = vmatpush1.bf16.msra.mxu0 %v8104
    %8129 = vmatprep.subr.bf16.mxu0 0
    %8130 = vmatpush1.bf16.msra.mxu0 0
    %8131 = vmatprep.subr.bf16.mxu0 0
    %8132 = vmatpush1.bf16.msra.mxu0 0
    %8133 = vmatprep.subr.bf16.mxu0 0
    %8134 = vmatpush1.bf16.msra.mxu0 0
    %8135 = vmatprep.subr.bf16.mxu0 0
    %8136 = vmatpush1.bf16.msra.mxu0 0
    %8137 = vmatprep.subr.bf16.mxu0 0
    %8138 = vmatpush1.bf16.msra.mxu0 0
    %8139 = vmatprep.subr.bf16.mxu0 0
    %8140 = vmatpush1.bf16.msra.mxu0 0
    %8141 = vmatprep.subr.bf16.mxu0 0
    %8142 = vmatpush1.bf16.msra.mxu0 0
    %8143 = vmatprep.subr.bf16.mxu0 0
    %8144 = vmatpush1.bf16.msra.mxu0 0
    %8145 = vmatprep.mubr.bf16.mxu0 0
    %8146 = vmatmul.mubr.bf16.gmra.mrb[0].mxu0 %v8046
    %v8147 = vpop.f32.mrb[0].mxu0
    %v8148 = vadd.f32 0.0, %v8147
    %v8149 = vpop.f32.mrb[0].mxu0
    %v8150 = vpop.f32.mrb[0].mxu0
    %v8151 = vadd.f32 0.0, %v8150
    %v8152 = vpop.f32.mrb[0].mxu0
    %8153 = vmatprep.mubr.bf16.mxu0 0
    %8154 = vmatmul.mubr.bf16.gmra.mrb[0].mxu0 %v8047
    %v8155 = vpop.f32.mrb[0].mxu0
    %v8156 = vadd.f32 0.0, %v8155
    %v8157 = vpop.f32.mrb[0].mxu0
    %v8158 = vpop.f32.mrb[0].mxu0
    %v8159 = vadd.f32 0.0, %v8158
    %v8160 = vpop.f32.mrb[0].mxu0
    %8161 = vmatprep.mubr.bf16.mxu0 0
    %8162 = vmatmul.mubr.bf16.gmra.mrb[0].mxu0 %v8048
    %v8163 = vpop.f32.mrb[0].mxu0
    %v8164 = vadd.f32 0.0, %v8163
    %v8165 = vpop.f32.mrb[0].mxu0
    %v8166 = vpop.f32.mrb[0].mxu0
    %v8167 = vpop.f32.mrb[0].mxu0
    %8168 = vdwg.mxu0
    %8169 = vst.msk [vmem:[#allocation2] sm:$0xff] %vm37, %v8148
    %8170 = vst.msk [vmem:[#allocation2 + $0x8] sm:$0xff] %vm37, %v8151
    %8171 = vst.msk [vmem:[#allocation2 + $0x10] sm:$0xff] %vm37, %v8156
    %8172 = vst.msk [vmem:[#allocation2 + $0x18] sm:$0xff] %vm37, %v8159
    %8173 = vst.msk [vmem:[#allocation2 + $0x20] sm:$0xf] %vm679, %v8164
    %v8174 = vld [vmem:[#allocation2] ss:$2 sm:$0xff]
    %v8175 = vld [vmem:[%s4993] ss:$2 sm:$0xff]
    %v8176 = vld [vmem:[%s4995] ss:$2 sm:$0x3]
    %v8177 = vld [vmem:[%s5103] ss:$2 sm:$0xff]
    %v8178 = vld [vmem:[%s5105] ss:$2 sm:$0xff]
    %v8179 = vld [vmem:[%s5107] ss:$2 sm:$0x3]
    %v8180 = vmax.f32 %v8174, %v8177
    %v8181 = vmax.f32 %v8175, %v8178
    %v8182 = vmax.f32 %v8176, %v8179
    %8183 = vst.msk [vmem:[#allocation3] sm:$0xff] %vm37, %v8180
    %8184 = vst.msk [vmem:[#allocation3 + $0x8] sm:$0xff] %vm37, %v8181
    %8185 = vst.msk [vmem:[#allocation3 + $0x10] sm:$0x3] %vm5326, %v8182
    %v8186 = vld [vmem:[%s6] sm:$0x1]
    %v8187 = vld [vmem:[%s7] sm:$0x1]
    %v8188 = vld [vmem:[#allocation3] sm:$0xff]
    %v8189 = vld [vmem:[#allocation3 + $0x8] sm:$0xff]
    %v8190 = vld [vmem:[#allocation3 + $0x10] sm:$0x3]
    %v8192 = vlaneseq
    %v8193 = vshrl.u32 %v8192, 7
    %v8194 = vsub.s32 0, %v8193
    %v8195 = vrot.slane %v8186, %v8194
    %v8197 = vmul.f32 %v8188, %v8195
    %v8198 = vmul.f32 %v8189, %v8195
    %v8199 = vmul.f32 %v8190, %v8195
    %v8201 = vlaneseq
    %v8202 = vshrl.u32 %v8201, 7
    %v8203 = vsub.s32 0, %v8202
    %v8204 = vrot.slane %v8187, %v8203
    %v8206 = vadd.f32 %v8197, %v8204
    %v8207 = vadd.f32 %v8198, %v8204
    %v8208 = vadd.f32 %v8199, %v8204
    %v8209 = vmax.f32 %v8206, 0.0
    %v8210 = vmax.f32 %v8207, 0.0
    %v8211 = vmax.f32 %v8208, 0.0
    %8212 = vst.msk [vmem:[#allocation2] sm:$0xff] %vm37, %v8209
    %8213 = vst.msk [vmem:[#allocation2 + $0x8] sm:$0xff] %vm37, %v8210
    %8214 = vst.msk [vmem:[#allocation2 + $0x10] sm:$0x3] %vm5326, %v8211
    %v8215 = vld [vmem:[#allocation2] sm:$0x7f]
    %8216 = vst.msk [vmem:[#allocation8 + $0x1] sm:$0x7f] %vm7231, %v8215
    %v8217 = vld [vmem:[#allocation2 + $0x9] sm:$0x7f]
    %8218 = vst.msk [vmem:[#allocation8 + $0xb] sm:$0x7f] %vm7231, %v8217
    %v8219 = vld [vmem:[#allocation8] sm:$0xff]
    %v8220 = vld [vmem:[#allocation8 + $0x8] sm:$0xff]
    %v8221 = vld [vmem:[#allocation8 + $0x10] sm:$0xf]
    %v8222 = vpack.c.bf16 %v8220, %v8219
    %v8223 = vpack.c.bf16 %v8221, %v8221
    %8224 = vst.msk [vmem:[#allocation4] sm:$0xff] %vm37, %v8222
    %8225 = vst.msk [vmem:[#allocation4 + $0x8] sm:$0x3] %vm5326, %v8223
    %v8226 = vld [vmem:[#allocation8 + $0x1] sm:$0xff]
    %v8227 = vld [vmem:[#allocation8 + $0x9] sm:$0xff]
    %v8228 = vld [vmem:[#allocation8 + $0x11] sm:$0xf]
    %v8229 = vpack.c.bf16 %v8227, %v8226
    %v8230 = vpack.c.bf16 %v8228, %v8228
    %8233 = vrot.lane.b32.xlu0 %v8229, 32
    %v8234 = vpop.permute.xlu0 %8233
    %8235 = vrot.lane.b32.xlu0 %v8230, 32
    %v8236 = vpop.permute.xlu0 %8235
    %8239 = vst.msk [vmem:[#allocation4] sm:$0xff] %vm1743, %v8234
    %8240 = vst.msk [vmem:[#allocation4 + $0x8] sm:$0x3] %vm8008, %v8236
    %v8241 = vld [vmem:[#allocation8 + $0x2] sm:$0xff]
    %v8242 = vld [vmem:[#allocation8 + $0xa] sm:$0xff]
    %v8243 = vld [vmem:[#allocation8 + $0x12] sm:$0xf]
    %v8244 = vpack.c.bf16 %v8242, %v8241
    %v8245 = vpack.c.bf16 %v8243, %v8243
    %8248 = vrot.lane.b32.xlu0 %v8244, 64
    %v8249 = vpop.permute.xlu0 %8248
    %8250 = vrot.lane.b32.xlu0 %v8245, 64
    %v8251 = vpop.permute.xlu0 %8250
    %8254 = vst.msk [vmem:[#allocation4] sm:$0xff] %vm2512, %v8249
    %8255 = vst.msk [vmem:[#allocation4 + $0x8] sm:$0x3] %vm8044, %v8251
    %v8256 = vld [vmem:[#allocation4] sm:$0xff]
    %v8257 = vld [vmem:[#allocation4 + $0x8] sm:$0x3]
    %s8258 = scalar_lea.vmem %s3, 64
    %v8259 = vld [vmem:[%s8258] sm:$0xf]
    %v8260 = vld [vmem:[%s8258 + $0x4] sm:$0xf]
    %v8261 = vld [vmem:[%s8258 + $0x8] sm:$0xf]
    %v8262 = vld [vmem:[%s8258 + $0xc] sm:$0xf]
    %v8263 = vld [vmem:[%s8258 + $0x10] sm:$0xf]
    %v8264 = vld [vmem:[%s8258 + $0x14] sm:$0xf]
    %v8265 = vld [vmem:[%s8258 + $0x18] sm:$0xf]
    %v8266 = vld [vmem:[%s8258 + $0x1c] sm:$0xf]
    %v8267 = vld [vmem:[%s8258 + $0x20] sm:$0xf]
    %v8268 = vld [vmem:[%s8258 + $0x24] sm:$0xf]
    %v8269 = vld [vmem:[%s8258 + $0x28] sm:$0xf]
    %v8270 = vld [vmem:[%s8258 + $0x2c] sm:$0xf]
    %v8271 = vld [vmem:[%s8258 + $0x30] sm:$0xf]
    %v8272 = vld [vmem:[%s8258 + $0x34] sm:$0xf]
    %v8273 = vld [vmem:[%s8258 + $0x38] sm:$0xf]
    %v8274 = vld [vmem:[%s8258 + $0x3c] sm:$0xf]
    %v8291 = vunpack.c.l.b16 %v8259
    %v8292 = vunpack.c.l.b16 %v8260
    %v8293 = vunpack.c.l.b16 %v8261
    %v8294 = vunpack.c.l.b16 %v8262
    %v8295 = vunpack.c.l.b16 %v8263
    %v8296 = vunpack.c.l.b16 %v8264
    %v8297 = vunpack.c.l.b16 %v8265
    %v8298 = vunpack.c.l.b16 %v8266
    %v8299 = vunpack.c.l.b16 %v8267
    %v8300 = vunpack.c.l.b16 %v8268
    %v8301 = vunpack.c.l.b16 %v8269
    %v8302 = vunpack.c.l.b16 %v8270
    %v8303 = vunpack.c.l.b16 %v8271
    %v8304 = vunpack.c.l.b16 %v8272
    %v8305 = vunpack.c.l.b16 %v8273
    %v8306 = vunpack.c.l.b16 %v8274
    %v8307 = vpack.c.b16 %v8292, %v8291
    %v8308 = vpack.c.b16 %v8294, %v8293
    %v8309 = vpack.c.b16 %v8296, %v8295
    %v8310 = vpack.c.b16 %v8298, %v8297
    %v8311 = vpack.c.b16 %v8300, %v8299
    %v8312 = vpack.c.b16 %v8302, %v8301
    %v8313 = vpack.c.b16 %v8304, %v8303
    %v8314 = vpack.c.b16 %v8306, %v8305
    %8323 = vmatprep.subr.bf16.mxu0 0
    %8324 = vmatpush1.bf16.msra.mxu0 %v8307
    %8325 = vmatprep.subr.bf16.mxu0 0
    %8326 = vmatpush1.bf16.msra.mxu0 %v8308
    %8327 = vmatprep.subr.bf16.mxu0 0
    %8328 = vmatpush1.bf16.msra.mxu0 %v8309
    %8329 = vmatprep.subr.bf16.mxu0 0
    %8330 = vmatpush1.bf16.msra.mxu0 %v8310
    %8331 = vmatprep.subr.bf16.mxu0 0
    %8332 = vmatpush1.bf16.msra.mxu0 %v8311
    %8333 = vmatprep.subr.bf16.mxu0 0
    %8334 = vmatpush1.bf16.msra.mxu0 %v8312
    %8335 = vmatprep.subr.bf16.mxu0 0
    %8336 = vmatpush1.bf16.msra.mxu0 %v8313
    %8337 = vmatprep.subr.bf16.mxu0 0
    %8338 = vmatpush1.bf16.msra.mxu0 %v8314
    %8339 = vmatprep.subr.bf16.mxu0 0
    %8340 = vmatpush1.bf16.msra.mxu0 0
    %8341 = vmatprep.subr.bf16.mxu0 0
    %8342 = vmatpush1.bf16.msra.mxu0 0
    %8343 = vmatprep.subr.bf16.mxu0 0
    %8344 = vmatpush1.bf16.msra.mxu0 0
    %8345 = vmatprep.subr.bf16.mxu0 0
    %8346 = vmatpush1.bf16.msra.mxu0 0
    %8347 = vmatprep.subr.bf16.mxu0 0
    %8348 = vmatpush1.bf16.msra.mxu0 0
    %8349 = vmatprep.subr.bf16.mxu0 0
    %8350 = vmatpush1.bf16.msra.mxu0 0
    %8351 = vmatprep.subr.bf16.mxu0 0
    %8352 = vmatpush1.bf16.msra.mxu0 0
    %8353 = vmatprep.subr.bf16.mxu0 0
    %8354 = vmatpush1.bf16.msra.mxu0 0
    %8355 = vmatprep.mubr.bf16.mxu0 0
    %8356 = vmatmul.mubr.bf16.gmra.mrb[0].mxu0 %v8256
    %v8357 = vpop.f32.mrb[0].mxu0
    %v8358 = vadd.f32 0.0, %v8357
    %v8359 = vpop.f32.mrb[0].mxu0
    %v8360 = vpop.f32.mrb[0].mxu0
    %v8361 = vadd.f32 0.0, %v8360
    %v8362 = vpop.f32.mrb[0].mxu0
    %8363 = vmatprep.mubr.bf16.mxu0 0
    %8364 = vmatmul.mubr.bf16.gmra.mrb[0].mxu0 %v8257
    %v8365 = vpop.f32.mrb[0].mxu0
    %v8366 = vadd.f32 0.0, %v8365
    %v8367 = vpop.f32.mrb[0].mxu0
    %v8368 = vpop.f32.mrb[0].mxu0
    %v8369 = vpop.f32.mrb[0].mxu0
    %8370 = vdwg.mxu0
    %8371 = vst.msk [vmem:[#allocation2] sm:$0xff] %vm37, %v8358
    %8372 = vst.msk [vmem:[#allocation2 + $0x8] sm:$0xff] %vm37, %v8361
    %8373 = vst.msk [vmem:[#allocation2 + $0x10] sm:$0xf] %vm679, %v8366
    %v8374 = vld [vmem:[#allocation2] ss:$2 sm:$0xff]
    %v8375 = vld [vmem:[%s4993] ss:$2 sm:$0x3]
    %v8376 = vld [vmem:[%s5103] ss:$2 sm:$0xff]
    %v8377 = vld [vmem:[%s5105] ss:$2 sm:$0x3]
    %v8378 = vmax.f32 %v8374, %v8376
    %v8379 = vmax.f32 %v8375, %v8377
    %8380 = vst.msk [vmem:[#allocation3] sm:$0xff] %vm37, %v8378
    %8381 = vst.msk [vmem:[#allocation3 + $0x8] sm:$0x3] %vm5326, %v8379
    %s8382 = scalar_lea.vmem %s6, 1
    %v8383 = vld [vmem:[%s8382] sm:$0x1]
    %s8384 = scalar_lea.vmem %s7, 1
    %v8385 = vld [vmem:[%s8384] sm:$0x1]
    %v8386 = vld [vmem:[#allocation3] sm:$0xff]
    %v8387 = vld [vmem:[#allocation3 + $0x8] sm:$0x3]
    %v8389 = vlaneseq
    %v8390 = vshrl.u32 %v8389, 7
    %v8391 = vsub.s32 0, %v8390
    %v8392 = vrot.slane %v8383, %v8391
    %v8394 = vmul.f32 %v8386, %v8392
    %v8395 = vmul.f32 %v8387, %v8392
    %v8397 = vlaneseq
    %v8398 = vshrl.u32 %v8397, 7
    %v8399 = vsub.s32 0, %v8398
    %v8400 = vrot.slane %v8385, %v8399
    %v8402 = vadd.f32 %v8394, %v8400
    %v8403 = vadd.f32 %v8395, %v8400
    %v8404 = vmax.f32 %v8402, 0.0
    %v8405 = vmax.f32 %v8403, 0.0
    %8406 = vst.msk [vmem:[#allocation2] sm:$0xff] %vm37, %v8404
    %8407 = vst.msk [vmem:[#allocation2 + $0x8] sm:$0x3] %vm5326, %v8405
    %v8408 = vld [vmem:[#allocation2] sm:$0x7]
    %vm8409 = vcmask 256000
    %8410 = vst.msk [vmem:[#allocation9 + $0x1] sm:$0x7] %vm8409, %v8408
    %v8411 = vld [vmem:[#allocation2 + $0x5] sm:$0x7]
    %8412 = vst.msk [vmem:[#allocation9 + $0x7] sm:$0x7] %vm8409, %v8411
    %v8413 = vld [vmem:[#allocation9] sm:$0xff]
    %v8414 = vld [vmem:[#allocation9 + $0x8] sm:$0xf]
    %v8415 = vpack.c.bf16 %v8414, %v8413
    %8416 = vst.msk [vmem:[#allocation4] sm:$0x3f] %vm7109, %v8415
    %v8417 = vld [vmem:[#allocation9 + $0x1] sm:$0xff]
    %v8418 = vld [vmem:[#allocation9 + $0x9] sm:$0xf]
    %v8419 = vpack.c.bf16 %v8418, %v8417
    %8421 = vrot.lane.b32.xlu0 %v8419, 32
    %v8422 = vpop.permute.xlu0 %8421
    %vm8424 = vcmask 521472
    %8425 = vst.msk [vmem:[#allocation4] sm:$0x3f] %vm8424, %v8422
    %v8426 = vld [vmem:[#allocation9 + $0x2] sm:$0xff]
    %v8427 = vld [vmem:[#allocation9 + $0xa] sm:$0xf]
    %v8428 = vpack.c.bf16 %v8427, %v8426
    %8430 = vrot.lane.b32.xlu0 %v8428, 64
    %v8431 = vpop.permute.xlu0 %8430
    %vm8433 = vcmask 783872
    %8434 = vst.msk [vmem:[#allocation4] sm:$0x3f] %vm8433, %v8431
    %v8435 = vld [vmem:[#allocation4] sm:$0x3f]
    %s8436 = scalar_lea.vmem %s3, 128
    %v8437 = vld [vmem:[%s8436] sm:$0xf]
    %v8438 = vld [vmem:[%s8436 + $0x4] sm:$0xf]
    %v8439 = vld [vmem:[%s8436 + $0x8] sm:$0xf]
    %v8440 = vld [vmem:[%s8436 + $0xc] sm:$0xf]
    %v8441 = vld [vmem:[%s8436 + $0x10] sm:$0xf]
    %v8442 = vld [vmem:[%s8436 + $0x14] sm:$0xf]
    %v8443 = vld [vmem:[%s8436 + $0x18] sm:$0xf]
    %v8444 = vld [vmem:[%s8436 + $0x1c] sm:$0xf]
    %v8445 = vld [vmem:[%s8436 + $0x20] sm:$0xf]
    %v8446 = vld [vmem:[%s8436 + $0x24] sm:$0xf]
    %v8447 = vld [vmem:[%s8436 + $0x28] sm:$0xf]
    %v8448 = vld [vmem:[%s8436 + $0x2c] sm:$0xf]
    %v8449 = vld [vmem:[%s8436 + $0x30] sm:$0xf]
    %v8450 = vld [vmem:[%s8436 + $0x34] sm:$0xf]
    %v8451 = vld [vmem:[%s8436 + $0x38] sm:$0xf]
    %v8452 = vld [vmem:[%s8436 + $0x3c] sm:$0xf]
    %v8469 = vunpack.c.l.b16 %v8437
    %v8470 = vunpack.c.l.b16 %v8438
    %v8471 = vunpack.c.l.b16 %v8439
    %v8472 = vunpack.c.l.b16 %v8440
    %v8473 = vunpack.c.l.b16 %v8441
    %v8474 = vunpack.c.l.b16 %v8442
    %v8475 = vunpack.c.l.b16 %v8443
    %v8476 = vunpack.c.l.b16 %v8444
    %v8477 = vunpack.c.l.b16 %v8445
    %v8478 = vunpack.c.l.b16 %v8446
    %v8479 = vunpack.c.l.b16 %v8447
    %v8480 = vunpack.c.l.b16 %v8448
    %v8481 = vunpack.c.l.b16 %v8449
    %v8482 = vunpack.c.l.b16 %v8450
    %v8483 = vunpack.c.l.b16 %v8451
    %v8484 = vunpack.c.l.b16 %v8452
    %v8485 = vpack.c.b16 %v8470, %v8469
    %v8486 = vpack.c.b16 %v8472, %v8471
    %v8487 = vpack.c.b16 %v8474, %v8473
    %v8488 = vpack.c.b16 %v8476, %v8475
    %v8489 = vpack.c.b16 %v8478, %v8477
    %v8490 = vpack.c.b16 %v8480, %v8479
    %v8491 = vpack.c.b16 %v8482, %v8481
    %v8492 = vpack.c.b16 %v8484, %v8483
    %8501 = vmatprep.subr.bf16.mxu0 0
    %8502 = vmatpush1.bf16.msra.mxu0 %v8485
    %8503 = vmatprep.subr.bf16.mxu0 0
    %8504 = vmatpush1.bf16.msra.mxu0 %v8486
    %8505 = vmatprep.subr.bf16.mxu0 0
    %8506 = vmatpush1.bf16.msra.mxu0 %v8487
    %8507 = vmatprep.subr.bf16.mxu0 0
    %8508 = vmatpush1.bf16.msra.mxu0 %v8488
    %8509 = vmatprep.subr.bf16.mxu0 0
    %8510 = vmatpush1.bf16.msra.mxu0 %v8489
    %8511 = vmatprep.subr.bf16.mxu0 0
    %8512 = vmatpush1.bf16.msra.mxu0 %v8490
    %8513 = vmatprep.subr.bf16.mxu0 0
    %8514 = vmatpush1.bf16.msra.mxu0 %v8491
    %8515 = vmatprep.subr.bf16.mxu0 0
    %8516 = vmatpush1.bf16.msra.mxu0 %v8492
    %8517 = vmatprep.subr.bf16.mxu0 0
    %8518 = vmatpush1.bf16.msra.mxu0 0
    %8519 = vmatprep.subr.bf16.mxu0 0
    %8520 = vmatpush1.bf16.msra.mxu0 0
    %8521 = vmatprep.subr.bf16.mxu0 0
    %8522 = vmatpush1.bf16.msra.mxu0 0
    %8523 = vmatprep.subr.bf16.mxu0 0
    %8524 = vmatpush1.bf16.msra.mxu0 0
    %8525 = vmatprep.subr.bf16.mxu0 0
    %8526 = vmatpush1.bf16.msra.mxu0 0
    %8527 = vmatprep.subr.bf16.mxu0 0
    %8528 = vmatpush1.bf16.msra.mxu0 0
    %8529 = vmatprep.subr.bf16.mxu0 0
    %8530 = vmatpush1.bf16.msra.mxu0 0
    %8531 = vmatprep.subr.bf16.mxu0 0
    %8532 = vmatpush1.bf16.msra.mxu0 0
    %8533 = vmatprep.mubr.bf16.mxu0 0
    %8534 = vmatmul.mubr.bf16.gmra.mrb[0].mxu0 %v8435
    %v8535 = vpop.f32.mrb[0].mxu0
    %v8536 = vadd.f32 0.0, %v8535
    %v8537 = vpop.f32.mrb[0].mxu0
    %v8538 = vpop.f32.mrb[0].mxu0
    %v8539 = vadd.f32 0.0, %v8538
    %v8540 = vpop.f32.mrb[0].mxu0
    %8541 = vdwg.mxu0
    %8542 = vst.msk [vmem:[#allocation2] sm:$0xff] %vm37, %v8536
    %8543 = vst.msk [vmem:[#allocation2 + $0x8] sm:$0xf] %vm679, %v8539
    %v8544 = vld [vmem:[#allocation2] ss:$2 sm:$0x3f]
    %v8545 = vld [vmem:[%s5103] ss:$2 sm:$0x3f]
    %v8546 = vmax.f32 %v8544, %v8545
    %8547 = vst.msk [vmem:[#allocation3] sm:$0x3f] %vm7109, %v8546
    %s8548 = scalar_lea.vmem %s6, 2
    %v8549 = vld [vmem:[%s8548] sm:$0x1]
    %s8550 = scalar_lea.vmem %s7, 2
    %v8551 = vld [vmem:[%s8550] sm:$0x1]
    %v8552 = vld [vmem:[#allocation3] sm:$0x3f]
    %v8554 = vlaneseq
    %v8555 = vshrl.u32 %v8554, 7
    %v8556 = vsub.s32 0, %v8555
    %v8557 = vrot.slane %v8549, %v8556
    %v8559 = vmul.f32 %v8552, %v8557
    %v8561 = vlaneseq
    %v8562 = vshrl.u32 %v8561, 7
    %v8563 = vsub.s32 0, %v8562
    %v8564 = vrot.slane %v8551, %v8563
    %v8566 = vadd.f32 %v8559, %v8564
    %v8567 = vmax.f32 %v8566, 0.0
    %8568 = vst.msk [vmem:[#allocation2] sm:$0x3f] %vm7109, %v8567
    %v8569 = vld [vmem:[#allocation2] sm:$0x1]
    %8571 = vrot.lane.b32.xlu0 %v8569, 96
    %v8572 = vpop.permute.xlu0 %8571
    %vm8574 = vcmask 1041152
    %8575 = vst.msk [vmem:[#allocation5] sm:$0x1] %vm8574, %v8572
    %v8576 = vld [vmem:[#allocation2 + $0x3] sm:$0x1]
    %8578 = vrot.lane.b32.xlu0 %v8576, 96
    %v8579 = vpop.permute.xlu0 %8578
    %8581 = vst.msk [vmem:[#allocation5 + $0x1] sm:$0x1] %vm8574, %v8579
    %v8582 = vld [vmem:[#allocation5] sm:$0xff]
    %v8583 = vld [vmem:[%s8] sm:$0xff]
    %v8584 = vld [vmem:[%s8 + $0x8] sm:$0xff]
    %v8585 = vld [vmem:[%s8 + $0x10] sm:$0xff]
    %v8586 = vld [vmem:[%s8 + $0x18] sm:$0xff]
    %v8587 = vld [vmem:[%s8 + $0x20] sm:$0xff]
    %v8588 = vld [vmem:[%s8 + $0x28] sm:$0xff]
    %v8589 = vld [vmem:[%s8 + $0x30] sm:$0xff]
    %v8590 = vld [vmem:[%s8 + $0x38] sm:$0xff]
    %v8591 = vld [vmem:[%s8 + $0x40] sm:$0xff]
    %v8592 = vld [vmem:[%s8 + $0x48] sm:$0xff]
    %v8593 = vld [vmem:[%s8 + $0x50] sm:$0xff]
    %v8594 = vld [vmem:[%s8 + $0x58] sm:$0xff]
    %v8595 = vld [vmem:[%s8 + $0x60] sm:$0xff]
    %v8596 = vld [vmem:[%s8 + $0x68] sm:$0xff]
    %v8597 = vld [vmem:[%s8 + $0x70] sm:$0xff]
    %v8598 = vld [vmem:[%s8 + $0x78] sm:$0xff]
    %v8599 = vld [vmem:[%s9] sm:$0x1]
    %v8601 = vlaneseq
    %v8602 = vshrl.u32 %v8601, 7
    %v8603 = vsub.s32 0, %v8602
    %v8604 = vrot.slane %v8599, %v8603
    %8606 = vmatprep.subr.mxu0 0.0
    %8607 = vmatpush1.msra.mxu0 %v8583
    %8608 = vmatprep.subr.mxu0 0.0
    %8609 = vmatpush1.msra.mxu0 %v8584
    %8610 = vmatprep.subr.mxu0 0.0
    %8611 = vmatpush1.msra.mxu0 %v8585
    %8612 = vmatprep.subr.mxu0 0.0
    %8613 = vmatpush1.msra.mxu0 %v8586
    %8614 = vmatprep.subr.mxu0 0.0
    %8615 = vmatpush1.msra.mxu0 %v8587
    %8616 = vmatprep.subr.mxu0 0.0
    %8617 = vmatpush1.msra.mxu0 %v8588
    %8618 = vmatprep.subr.mxu0 0.0
    %8619 = vmatpush1.msra.mxu0 %v8589
    %8620 = vmatprep.subr.mxu0 0.0
    %8621 = vmatpush1.msra.mxu0 %v8590
    %8622 = vmatprep.subr.mxu0 0.0
    %8623 = vmatpush1.msra.mxu0 %v8591
    %8624 = vmatprep.subr.mxu0 0.0
    %8625 = vmatpush1.msra.mxu0 %v8592
    %8626 = vmatprep.subr.mxu0 0.0
    %8627 = vmatpush1.msra.mxu0 %v8593
    %8628 = vmatprep.subr.mxu0 0.0
    %8629 = vmatpush1.msra.mxu0 %v8594
    %8630 = vmatprep.subr.mxu0 0.0
    %8631 = vmatpush1.msra.mxu0 %v8595
    %8632 = vmatprep.subr.mxu0 0.0
    %8633 = vmatpush1.msra.mxu0 %v8596
    %8634 = vmatprep.subr.mxu0 0.0
    %8635 = vmatpush1.msra.mxu0 %v8597
    %8636 = vmatprep.subr.mxu0 0.0
    %8637 = vmatpush1.msra.mxu0 %v8598
    %8638 = vmatprep.subr.mxu0 0.0
    %8639 = vmatpush1.msra.mxu0 0.0
    %8640 = vmatprep.subr.mxu0 0.0
    %8641 = vmatpush1.msra.mxu0 0.0
    %8642 = vmatprep.subr.mxu0 0.0
    %8643 = vmatpush1.msra.mxu0 0.0
    %8644 = vmatprep.subr.mxu0 0.0
    %8645 = vmatpush1.msra.mxu0 0.0
    %8646 = vmatprep.subr.mxu0 0.0
    %8647 = vmatpush1.msra.mxu0 0.0
    %8648 = vmatprep.subr.mxu0 0.0
    %8649 = vmatpush1.msra.mxu0 0.0
    %8650 = vmatprep.subr.mxu0 0.0
    %8651 = vmatpush1.msra.mxu0 0.0
    %8652 = vmatprep.subr.mxu0 0.0
    %8653 = vmatpush1.msra.mxu0 0.0
    %8654 = vmatprep.subr.mxu0 0.0
    %8655 = vmatpush1.msra.mxu0 0.0
    %8656 = vmatprep.subr.mxu0 0.0
    %8657 = vmatpush1.msra.mxu0 0.0
    %8658 = vmatprep.subr.mxu0 0.0
    %8659 = vmatpush1.msra.mxu0 0.0
    %8660 = vmatprep.subr.mxu0 0.0
    %8661 = vmatpush1.msra.mxu0 0.0
    %8662 = vmatprep.subr.mxu0 0.0
    %8663 = vmatpush1.msra.mxu0 0.0
    %8664 = vmatprep.subr.mxu0 0.0
    %8665 = vmatpush1.msra.mxu0 0.0
    %8666 = vmatprep.subr.mxu0 0.0
    %8667 = vmatpush1.msra.mxu0 0.0
    %8668 = vmatprep.subr.mxu0 0.0
    %8669 = vmatpush1.msra.mxu0 0.0
    %8670 = vmatprep.mubr.f32.mxu0 0.0
    %8671 = vmatmul.mubr.f32.gmra.mrb[0].mxu0 %v8582
    %v8672 = vpop.f32.mrb[0].mxu0
    %v8673 = vadd.f32 %v8604, %v8672
    %v8674 = vpop.f32.mrb[0].mxu0
    %8675 = vdwg.mxu0
    %vm8676 = vcmask 50176
    %8677 = vst.msk [vmem:[#allocation10] sm:$0x3] %vm8676, %v8673
    // Predicated region
    $region42: #{forward.1} parent=1 // pred_check
      _
    $region43: #{forward.1} parent=1 // pred_check_branch
      %8679 = sbr.rel (0) target = $region45
    $region44: #{forward.1} parent=1 // pred_region
      %s8681 = ssub.s32 32, 32
      %8682 = vsyncadd [#allocation11], %s8681
      %s8684 = sshll.u32 [#allocation10], 4
      %s8685 = int_to_ptr.vmem [resolvable:$true] %s8684
      %8687 = dma.vmem_to_hbm [thread:$0]  %s8685, 32, %s10, [#allocation11]
    $region45: #{forward.1} parent=1 // pred_fallthru
      _
    // Predicated region
    $region46: #{forward.1} parent=1 // pred_check
      _
    $region47: #{forward.1} parent=1 // pred_check_branch
      %8689 = sbr.rel (0) target = $region49
    $region48: #{forward.1} parent=1 // pred_region
      %8690 = dma.done [#allocation11], 32
    $region49: #{forward.1} parent=1 // pred_fallthru
      _
    %8691 = vsyncpa [#allocation11], 1

</llo_original>
